<compile_context>
chip_gen: v6e
topology: v6e:2x2x1
jax: 0.10.0
libtpu: 0.0.40
codegen_flags: <defaults>
</compile_context>

<pallas_src>
import jax
import jax.numpy as jnp
from jax.experimental import pallas as pl
from jax.experimental.pallas import tpu as pltpu

V_TH = 1.0      # LIF firing threshold
DECAY = 0.5     # LIF membrane decay
BN_EPS = 1e-5

VMEM_LIMIT_BYTES = 32 * 1024 * 1024
DEFAULT_TM = 1024       # max M-tile (rows of the patch matrix) per grid step


def _round_up(x, m):
    return (x + m - 1) // m * m


def _choose_m_tiling(m, tm_max):
    """Split M into n equal-ish 16-aligned tiles of at most ~tm_max rows.
    Returns (tile_rows, padded_M) with padded_M == tile_rows * n >= M and the
    padding waste bounded by 15 rows per tile (vs. up to tm_max-1 before)."""
    n = -(-m // tm_max)                       # ceil-div
    tm = _round_up(-(-m // n), 16)
    return tm, tm * n


# -----------------------------------------------------------------------------
# Pallas kernels
# -----------------------------------------------------------------------------
def _conv_lif_kernel(x_ref, w_ref, b_ref, s_ref, v_ref):
    """grid = (m, t).  For one M tile and one time step:
         I = x_t @ W_fused + b ; v = decay*v + I ; spike = (v >= V_TH); hard reset.
       v_ref (f32, per-M-tile) persists across the sequential t axis."""
    t = pl.program_id(1)

    @pl.when(t == 0)
    def _():
        v_ref[...] = jnp.zeros_like(v_ref)

    cur = jnp.dot(x_ref[0], w_ref[...],
                  preferred_element_type=jnp.float32) + b_ref[...]
    v = DECAY * v_ref[...] + cur
    spike = (v >= V_TH).astype(jnp.float32)
    v_ref[...] = v * (1.0 - spike)                 # hard reset on spike
    s_ref[0] = spike.astype(s_ref.dtype)           # 0/1 -> bf16 (exact)


def conv_lif_matmul(x, w, b, tm):
    """x: [T, Mp, K] bf16, w: [K, N] bf16, b: [N] f32 -> spikes [T, Mp, N] bf16."""
    T, Mp, K = x.shape
    N = w.shape[1]
    b2 = b.reshape(1, N).astype(jnp.float32)
    return pl.pallas_call(
        _conv_lif_kernel,
        out_shape=jax.ShapeDtypeStruct((T, Mp, N), jnp.bfloat16),
        grid_spec=pltpu.PrefetchScalarGridSpec(
            num_scalar_prefetch=0,
            grid=(Mp // tm, T),                    # M parallel, T (LIF carry) last
            in_specs=[
                pl.BlockSpec((1, tm, K), lambda m, t: (t, m, 0)),
                pl.BlockSpec((K, N), lambda m, t: (0, 0)),
                pl.BlockSpec((1, N), lambda m, t: (0, 0)),
            ],
            out_specs=pl.BlockSpec((1, tm, N), lambda m, t: (t, m, 0)),
            scratch_shapes=[pltpu.VMEM((tm, N), jnp.float32)],
        ),
        compiler_params=pltpu.CompilerParams(
            dimension_semantics=("parallel", "arbitrary"),
            vmem_limit_bytes=VMEM_LIMIT_BYTES,
        ),
    )(x, w, b2)


def _fc_lif_head_kernel(x_ref, w1_ref, b1_ref, w2_ref, b2_ref,
                        o_ref, v_ref, acc_ref):
    """Fused LinearLIF + time-mean + final Linear.
       Each t: LIF update on x_t @ W1 + b1, accumulate spikes; at the last t
       compute (acc / T) @ W2 + b2."""
    t = pl.program_id(0)

    @pl.when(t == 0)
    def _():
        v_ref[...] = jnp.zeros_like(v_ref)
        acc_ref[...] = jnp.zeros_like(acc_ref)

    cur = jnp.dot(x_ref[0], w1_ref[...],
                  preferred_element_type=jnp.float32) + b1_ref[...]
    v = DECAY * v_ref[...] + cur
    spike = (v >= V_TH).astype(jnp.float32)
    v_ref[...] = v * (1.0 - spike)
    acc_ref[...] += spike

    @pl.when(t == pl.num_programs(0) - 1)
    def _():
        mean = acc_ref[...] * (1.0 / pl.num_programs(0))
        o_ref[...] = jnp.dot(mean, w2_ref[...],
                             preferred_element_type=jnp.float32) + b2_ref[...]


def fc1_lif_mean_final(x, w1, b1, w2, b2):
    """x: [T, B, K] bf16, w1: [K, H] bf16, w2: [H, O] f32 -> [B, O] f32."""
    T, B, K = x.shape
    H = w1.shape[1]
    O = w2.shape[1]
    return pl.pallas_call(
        _fc_lif_head_kernel,
        out_shape=jax.ShapeDtypeStruct((B, O), jnp.float32),
        grid_spec=pltpu.PrefetchScalarGridSpec(
            num_scalar_prefetch=0,
            grid=(T,),
            in_specs=[
                pl.BlockSpec((1, B, K), lambda t: (t, 0, 0)),
                pl.BlockSpec((K, H), lambda t: (0, 0)),
                pl.BlockSpec((1, H), lambda t: (0, 0)),
                pl.BlockSpec((H, O), lambda t: (0, 0)),
                pl.BlockSpec((1, O), lambda t: (0, 0)),
            ],
            out_specs=pl.BlockSpec((B, O), lambda t: (0, 0)),
            scratch_shapes=[pltpu.VMEM((B, H), jnp.float32),   # membrane v
                            pltpu.VMEM((B, H), jnp.float32)],  # spike accumulator
        ),
        compiler_params=pltpu.CompilerParams(
            dimension_semantics=("arbitrary",),
            vmem_limit_bytes=VMEM_LIMIT_BYTES,
        ),
    )(x, w1,
      b1.reshape(1, H).astype(jnp.float32),
      w2.astype(jnp.float32),
      b2.reshape(1, O).astype(jnp.float32))


# -----------------------------------------------------------------------------
# Plain-JAX glue (channels-last im2col, BN fusion, padding) — no transposes of
# activations between layers.
# -----------------------------------------------------------------------------
def im2col_nhwc(x, kh, kw, stride, pad):
    """x: [N, H, W, C] -> ([N*Ho*Wo, kh*kw*C], Ho, Wo); K ordered as (i, j, c)."""
    n, h, w, c = x.shape
    xp = jnp.pad(x, ((0, 0), (pad, pad), (pad, pad), (0, 0)))
    ho = (h + 2 * pad - kh) // stride + 1
    wo = (w + 2 * pad - kw) // stride + 1
    cols = [xp[:, i:i + stride * ho:stride, j:j + stride * wo:stride, :]
            for i in range(kh) for j in range(kw)]
    p = jnp.stack(cols, axis=3)                    # [N, Ho, Wo, kh*kw, C]
    return p.reshape(n * ho * wo, kh * kw * c), ho, wo


def conv_bn_lif(x, p, stride, *, tm=DEFAULT_TM):
    """x: [T, B, H, W, C] bf16 -> spikes [T, B, Ho, Wo, Cout] (bf16, exact 0/1)."""
    w = p["w"]                                     # [Cout, Cin, kh, kw] (PyTorch)
    cout, cin, kh, kw = w.shape
    T, B, H, W, C = x.shape
    pad = kh // 2                                  # "same"-style (28->28->14->7)

    patches, ho, wo = im2col_nhwc(x.reshape(T * B, H, W, C), kh, kw, stride, pad)
    K = kh * kw * cin
    M = B * ho * wo
    patches = patches.reshape(T, M, K)

    # Fuse eval-mode BatchNorm into the matmul (weight K-order matches (i,j,c)).
    scale = p["gamma"] / jnp.sqrt(p["var"] + BN_EPS)            # [Cout]
    w_mat = (w * scale[:, None, None, None]).transpose(2, 3, 1, 0).reshape(K, cout)
    bias = p["beta"] - p["mean"] * scale                        # [Cout]

    # Pad K to a 16-multiple (bf16 sublane granule) with zero rows.
    Kp = _round_up(K, 16)
    if Kp != K:
        patches = jnp.pad(patches, ((0, 0), (0, 0), (0, Kp - K)))
        w_mat = jnp.pad(w_mat, ((0, Kp - K), (0, 0)))

    # Tile the independent M axis into equal 16-aligned tiles (<= tm rows each).
    tm_eff, Mp = _choose_m_tiling(M, tm)
    if Mp != M:
        patches = jnp.pad(patches, ((0, 0), (0, Mp - M), (0, 0)))

    s = conv_lif_matmul(patches.astype(jnp.bfloat16),
                        w_mat.astype(jnp.bfloat16),
                        bias.astype(jnp.float32),
                        tm_eff)                                  # [T, Mp, Cout] bf16
    return s[:, :M, :].reshape(T, B, ho, wo, cout)


def lenet5_forward(x, params):
    """x: [T, B, 1, 28, 28] (PyTorch NCHW frames) -> [B, out_channels]."""
    T, B = x.shape[:2]
    # Entry transpose to channels-last is layout-free (C == 1); bf16 cast up
    # front halves the bytes of the 25x-expanded conv1 patch tensor and is
    # bit-identical to casting the patches (im2col is pure gather/pad).
    x = jnp.transpose(x, (0, 1, 3, 4, 2)).astype(jnp.bfloat16)   # [T, B, 28, 28, 1]
    x = conv_bn_lif(x, params["conv1"], stride=1)                # [T, B, 28, 28, 12]
    x = conv_bn_lif(x, params["conv2"], stride=2)                # [T, B, 14, 14, 32]
    x = conv_bn_lif(x, params["conv3"], stride=2)                # [T, B, 7, 7, 64]
    x = x.reshape(T, B, -1)                                      # [T, B, 3136] (h,w,c)

    # Permute fc1 weight columns (c,h,w) -> (h,w,c) once instead of transposing
    # the activation tensor (matches nn.Flatten(2) of the NCHW module).
    hdim, feat = params["fc1_w"].shape                           # (64, 64*7*7)
    w1 = (params["fc1_w"].reshape(hdim, 64, 7, 7)
          .transpose(0, 2, 3, 1).reshape(hdim, feat).T)          # [3136, 64]
    w2 = params["fcf_w"].T                                       # [64, out]

    return fc1_lif_mean_final(x.astype(jnp.bfloat16),
                              w1.astype(jnp.bfloat16),
                              params["fc1_b"], w2, params["fcf_b"])


# -----------------------------------------------------------------------------
# Deterministic parameter init (synthetic, matching module shapes)
# -----------------------------------------------------------------------------
def init_params(key, out_channels):
    ks = jax.random.split(key, 5)

    def conv_p(k, cin, cout, ksize):
        fan_in = cin * ksize * ksize
        return dict(
            w=jax.random.normal(k, (cout, cin, ksize, ksize), jnp.float32)
              * (1.0 / jnp.sqrt(fan_in)),
            gamma=jnp.ones((cout,), jnp.float32),
            beta=jnp.zeros((cout,), jnp.float32),
            mean=jnp.zeros((cout,), jnp.float32),
            var=jnp.ones((cout,), jnp.float32),
        )

    return {
        "conv1": conv_p(ks[0], 1, 12, 5),
        "conv2": conv_p(ks[1], 12, 32, 3),
        "conv3": conv_p(ks[2], 32, 64, 3),
        "fc1_w": jax.random.normal(ks[3], (64, 64 * 7 * 7), jnp.float32)
                 * (1.0 / jnp.sqrt(64 * 7 * 7)),
        "fc1_b": jnp.zeros((64,), jnp.float32),
        "fcf_w": jax.random.normal(ks[4], (out_channels, 64), jnp.float32)
                 * (1.0 / jnp.sqrt(64)),
        "fcf_b": jnp.zeros((out_channels,), jnp.float32),
    }


if __name__ == "__main__":
    key = jax.random.PRNGKey(0)
    k_in, k_par = jax.random.split(key)

    T, B, out_channels = 4, 2, 10
    # Spatial size must be 28x28 so fc1's 64*7*7 input features match the module.
    x = jax.random.uniform(k_in, (T, B, 1, 28, 28), jnp.float32)
    params = init_params(k_par, out_channels)

    out = jax.jit(lenet5_forward)(x, params)
    out = jax.block_until_ready(out)
    assert out.shape == (B, out_channels) and out.dtype == jnp.float32
    assert bool(jnp.all(jnp.isfinite(out)))
    print("KERNEL_OK")
</pallas_src>

<mosaic_0001>
module attributes {stable_mosaic.version = 11 : i64} {
  func.func @_conv_lif_kernel(%arg0: i32, %arg1: i32, %arg2: memref<1x784x32xbf16, #tpu.memory_space<vmem>>, %arg3: memref<32x12xbf16, #tpu.memory_space<vmem>>, %arg4: memref<1x12xf32, #tpu.memory_space<vmem>>, %arg5: memref<1x784x12xbf16, #tpu.memory_space<vmem>>, %arg6: memref<784x12xf32, #tpu.memory_space<vmem>>) attributes {dimension_semantics = [#tpu.dimension_semantics<parallel>, #tpu.dimension_semantics<arbitrary>], iteration_bounds = array<i64: 2, 4>, scalar_prefetch = 0 : i64, scratch_operands = 1 : i64, tpu.core_type = #tpu.core_type<tc>, window_params = [{transform_indices = @transform_0, window_bounds = array<i64: 1, 784, 32>}, {pipeline_mode = #tpu.pipeline_mode<synchronous>, transform_indices = @transform_1, window_bounds = array<i64: 32, 12>}, {pipeline_mode = #tpu.pipeline_mode<synchronous>, transform_indices = @transform_2, window_bounds = array<i64: 1, 12>}, {transform_indices = @transform_3, window_bounds = array<i64: 1, 784, 12>}]} {
    %c0_i32 = arith.constant 0 : i32
    %0 = arith.cmpi eq, %arg1, %c0_i32 : i32
    %1 = arith.extui %0 : i1 to i32
    %c0_i32_0 = arith.constant 0 : i32
    %2 = arith.cmpi ne, %1, %c0_i32_0 : i32
    scf.if %2 {
      %cst_17 = arith.constant 0.000000e+00 : f32
      %26 = vector.broadcast %cst_17 : f32 to vector<784x12xf32>
      %c0_18 = arith.constant 0 : index
      %c0_19 = arith.constant 0 : index
      %27 = vector.load %arg6[%c0_18, %c0_19] : memref<784x12xf32, #tpu.memory_space<vmem>>, vector<784x12xf32>
      tpu.vector_store %arg6[%c0_18, %c0_19], %26 {strides = array<i32>} : memref<784x12xf32, #tpu.memory_space<vmem>>, vector<784x12xf32>,
    } else {
    }
    %c0 = arith.constant 0 : index
    %c0_1 = arith.constant 0 : index
    %c0_2 = arith.constant 0 : index
    %3 = vector.load %arg2[%c0, %c0_1, %c0_2] : memref<1x784x32xbf16, #tpu.memory_space<vmem>>, vector<1x784x32xbf16>
    %4 = vector.shape_cast %3 : vector<1x784x32xbf16> to vector<784x32xbf16>
    %c0_3 = arith.constant 0 : index
    %c0_4 = arith.constant 0 : index
    %5 = vector.load %arg3[%c0_3, %c0_4] : memref<32x12xbf16, #tpu.memory_space<vmem>>, vector<32x12xbf16>
    %cst = arith.constant dense<0.000000e+00> : vector<784x12xf32>
    %6 = tpu.matmul %4, %5, %cst {dimension_numbers = #tpu.dot_dimension_numbers<[1], [0], [0], [1], [0, 0, 1, 1], [], []>} : vector<784x32xbf16>, vector<32x12xbf16>, vector<784x12xf32> -> vector<784x12xf32>
    %c0_5 = arith.constant 0 : index
    %c0_6 = arith.constant 0 : index
    %7 = vector.load %arg4[%c0_5, %c0_6] : memref<1x12xf32, #tpu.memory_space<vmem>>, vector<1x12xf32>
    %8 = vector.broadcast %7 : vector<1x12xf32> to vector<784x12xf32>
    %9 = arith.addf %6, %8 : vector<784x12xf32>
    %c0_7 = arith.constant 0 : index
    %c0_8 = arith.constant 0 : index
    %10 = vector.load %arg6[%c0_7, %c0_8] : memref<784x12xf32, #tpu.memory_space<vmem>>, vector<784x12xf32>
    %cst_9 = arith.constant 5.000000e-01 : f32
    %11 = vector.broadcast %cst_9 : f32 to vector<784x12xf32>
    %12 = arith.mulf %11, %10 : vector<784x12xf32>
    %13 = arith.addf %12, %9 : vector<784x12xf32>
    %cst_10 = arith.constant 1.000000e+00 : f32
    %14 = vector.broadcast %cst_10 : f32 to vector<784x12xf32>
    %15 = arith.cmpf oge, %13, %14 : vector<784x12xf32>
    %16 = arith.extui %15 : vector<784x12xi1> to vector<784x12xi32>
    %17 = arith.sitofp %16 : vector<784x12xi32> to vector<784x12xf32>
    %cst_11 = arith.constant 1.000000e+00 : f32
    %18 = vector.broadcast %cst_11 : f32 to vector<784x12xf32>
    %19 = arith.subf %18, %17 : vector<784x12xf32>
    %20 = arith.mulf %13, %19 : vector<784x12xf32>
    %c0_12 = arith.constant 0 : index
    %c0_13 = arith.constant 0 : index
    %21 = vector.load %arg6[%c0_12, %c0_13] : memref<784x12xf32, #tpu.memory_space<vmem>>, vector<784x12xf32>
    tpu.vector_store %arg6[%c0_12, %c0_13], %20 {strides = array<i32>} : memref<784x12xf32, #tpu.memory_space<vmem>>, vector<784x12xf32>,
    %22 = arith.truncf %17 : vector<784x12xf32> to vector<784x12xbf16>
    %c0_14 = arith.constant 0 : index
    %c0_15 = arith.constant 0 : index
    %c0_16 = arith.constant 0 : index
    %23 = vector.load %arg5[%c0_14, %c0_15, %c0_16] : memref<1x784x12xbf16, #tpu.memory_space<vmem>>, vector<1x784x12xbf16>
    %24 = vector.shape_cast %23 : vector<1x784x12xbf16> to vector<784x12xbf16>
    %25 = vector.shape_cast %22 : vector<784x12xbf16> to vector<1x784x12xbf16>
    tpu.vector_store %arg5[%c0_14, %c0_15, %c0_16], %25 {strides = array<i32>} : memref<1x784x12xbf16, #tpu.memory_space<vmem>>, vector<1x784x12xbf16>,
    return
  }
  func.func @transform_0(%arg0: i32, %arg1: i32) -> (i32, i32, i32) {
    %c0_i32 = arith.constant 0 : i32
    %c0_i32_0 = arith.constant 0 : i32
    return %arg1, %arg0, %c0_i32 : i32, i32, i32
  }
  func.func @transform_1(%arg0: i32, %arg1: i32) -> (i32, i32) {
    %c0_i32 = arith.constant 0 : i32
    %c0_i32_0 = arith.constant 0 : i32
    %c0_i32_1 = arith.constant 0 : i32
    return %c0_i32, %c0_i32_0 : i32, i32
  }
  func.func @transform_2(%arg0: i32, %arg1: i32) -> (i32, i32) {
    %c0_i32 = arith.constant 0 : i32
    %c0_i32_0 = arith.constant 0 : i32
    %c0_i32_1 = arith.constant 0 : i32
    return %c0_i32, %c0_i32_0 : i32, i32
  }
  func.func @transform_3(%arg0: i32, %arg1: i32) -> (i32, i32, i32) {
    %c0_i32 = arith.constant 0 : i32
    %c0_i32_0 = arith.constant 0 : i32
    return %arg1, %arg0, %c0_i32 : i32, i32, i32
  }
}

module attributes {stable_mosaic.version = 11 : i64} {
  func.func @_conv_lif_kernel(%arg0: i32, %arg1: i32, %arg2: memref<1x400x112xbf16, #tpu.memory_space<vmem>>, %arg3: memref<112x32xbf16, #tpu.memory_space<vmem>>, %arg4: memref<1x32xf32, #tpu.memory_space<vmem>>, %arg5: memref<1x400x32xbf16, #tpu.memory_space<vmem>>, %arg6: memref<400x32xf32, #tpu.memory_space<vmem>>) attributes {dimension_semantics = [#tpu.dimension_semantics<parallel>, #tpu.dimension_semantics<arbitrary>], iteration_bounds = array<i64: 1, 4>, scalar_prefetch = 0 : i64, scratch_operands = 1 : i64, tpu.core_type = #tpu.core_type<tc>, window_params = [{transform_indices = @transform_0, window_bounds = array<i64: 1, 400, 112>}, {pipeline_mode = #tpu.pipeline_mode<synchronous>, transform_indices = @transform_1, window_bounds = array<i64: 112, 32>}, {pipeline_mode = #tpu.pipeline_mode<synchronous>, transform_indices = @transform_2, window_bounds = array<i64: 1, 32>}, {transform_indices = @transform_3, window_bounds = array<i64: 1, 400, 32>}]} {
    %c0_i32 = arith.constant 0 : i32
    %0 = arith.cmpi eq, %arg1, %c0_i32 : i32
    %1 = arith.extui %0 : i1 to i32
    %c0_i32_0 = arith.constant 0 : i32
    %2 = arith.cmpi ne, %1, %c0_i32_0 : i32
    scf.if %2 {
      %cst_17 = arith.constant 0.000000e+00 : f32
      %26 = vector.broadcast %cst_17 : f32 to vector<400x32xf32>
      %c0_18 = arith.constant 0 : index
      %c0_19 = arith.constant 0 : index
      %27 = vector.load %arg6[%c0_18, %c0_19] : memref<400x32xf32, #tpu.memory_space<vmem>>, vector<400x32xf32>
      tpu.vector_store %arg6[%c0_18, %c0_19], %26 {strides = array<i32>} : memref<400x32xf32, #tpu.memory_space<vmem>>, vector<400x32xf32>,
    } else {
    }
    %c0 = arith.constant 0 : index
    %c0_1 = arith.constant 0 : index
    %c0_2 = arith.constant 0 : index
    %3 = vector.load %arg2[%c0, %c0_1, %c0_2] : memref<1x400x112xbf16, #tpu.memory_space<vmem>>, vector<1x400x112xbf16>
    %4 = vector.shape_cast %3 : vector<1x400x112xbf16> to vector<400x112xbf16>
    %c0_3 = arith.constant 0 : index
    %c0_4 = arith.constant 0 : index
    %5 = vector.load %arg3[%c0_3, %c0_4] : memref<112x32xbf16, #tpu.memory_space<vmem>>, vector<112x32xbf16>
    %cst = arith.constant dense<0.000000e+00> : vector<400x32xf32>
    %6 = tpu.matmul %4, %5, %cst {dimension_numbers = #tpu.dot_dimension_numbers<[1], [0], [0], [1], [0, 0, 1, 1], [], []>} : vector<400x112xbf16>, vector<112x32xbf16>, vector<400x32xf32> -> vector<400x32xf32>
    %c0_5 = arith.constant 0 : index
    %c0_6 = arith.constant 0 : index
    %7 = vector.load %arg4[%c0_5, %c0_6] : memref<1x32xf32, #tpu.memory_space<vmem>>, vector<1x32xf32>
    %8 = vector.broadcast %7 : vector<1x32xf32> to vector<400x32xf32>
    %9 = arith.addf %6, %8 : vector<400x32xf32>
    %c0_7 = arith.constant 0 : index
    %c0_8 = arith.constant 0 : index
    %10 = vector.load %arg6[%c0_7, %c0_8] : memref<400x32xf32, #tpu.memory_space<vmem>>, vector<400x32xf32>
    %cst_9 = arith.constant 5.000000e-01 : f32
    %11 = vector.broadcast %cst_9 : f32 to vector<400x32xf32>
    %12 = arith.mulf %11, %10 : vector<400x32xf32>
    %13 = arith.addf %12, %9 : vector<400x32xf32>
    %cst_10 = arith.constant 1.000000e+00 : f32
    %14 = vector.broadcast %cst_10 : f32 to vector<400x32xf32>
    %15 = arith.cmpf oge, %13, %14 : vector<400x32xf32>
    %16 = arith.extui %15 : vector<400x32xi1> to vector<400x32xi32>
    %17 = arith.sitofp %16 : vector<400x32xi32> to vector<400x32xf32>
    %cst_11 = arith.constant 1.000000e+00 : f32
    %18 = vector.broadcast %cst_11 : f32 to vector<400x32xf32>
    %19 = arith.subf %18, %17 : vector<400x32xf32>
    %20 = arith.mulf %13, %19 : vector<400x32xf32>
    %c0_12 = arith.constant 0 : index
    %c0_13 = arith.constant 0 : index
    %21 = vector.load %arg6[%c0_12, %c0_13] : memref<400x32xf32, #tpu.memory_space<vmem>>, vector<400x32xf32>
    tpu.vector_store %arg6[%c0_12, %c0_13], %20 {strides = array<i32>} : memref<400x32xf32, #tpu.memory_space<vmem>>, vector<400x32xf32>,
    %22 = arith.truncf %17 : vector<400x32xf32> to vector<400x32xbf16>
    %c0_14 = arith.constant 0 : index
    %c0_15 = arith.constant 0 : index
    %c0_16 = arith.constant 0 : index
    %23 = vector.load %arg5[%c0_14, %c0_15, %c0_16] : memref<1x400x32xbf16, #tpu.memory_space<vmem>>, vector<1x400x32xbf16>
    %24 = vector.shape_cast %23 : vector<1x400x32xbf16> to vector<400x32xbf16>
    %25 = vector.shape_cast %22 : vector<400x32xbf16> to vector<1x400x32xbf16>
    tpu.vector_store %arg5[%c0_14, %c0_15, %c0_16], %25 {strides = array<i32>} : memref<1x400x32xbf16, #tpu.memory_space<vmem>>, vector<1x400x32xbf16>,
    return
  }
  func.func @transform_0(%arg0: i32, %arg1: i32) -> (i32, i32, i32) {
    %c0_i32 = arith.constant 0 : i32
    %c0_i32_0 = arith.constant 0 : i32
    return %arg1, %arg0, %c0_i32 : i32, i32, i32
  }
  func.func @transform_1(%arg0: i32, %arg1: i32) -> (i32, i32) {
    %c0_i32 = arith.constant 0 : i32
    %c0_i32_0 = arith.constant 0 : i32
    %c0_i32_1 = arith.constant 0 : i32
    return %c0_i32, %c0_i32_0 : i32, i32
  }
  func.func @transform_2(%arg0: i32, %arg1: i32) -> (i32, i32) {
    %c0_i32 = arith.constant 0 : i32
    %c0_i32_0 = arith.constant 0 : i32
    %c0_i32_1 = arith.constant 0 : i32
    return %c0_i32, %c0_i32_0 : i32, i32
  }
  func.func @transform_3(%arg0: i32, %arg1: i32) -> (i32, i32, i32) {
    %c0_i32 = arith.constant 0 : i32
    %c0_i32_0 = arith.constant 0 : i32
    return %arg1, %arg0, %c0_i32 : i32, i32, i32
  }
}

module attributes {stable_mosaic.version = 11 : i64} {
  func.func @_conv_lif_kernel(%arg0: i32, %arg1: i32, %arg2: memref<1x112x288xbf16, #tpu.memory_space<vmem>>, %arg3: memref<288x64xbf16, #tpu.memory_space<vmem>>, %arg4: memref<1x64xf32, #tpu.memory_space<vmem>>, %arg5: memref<1x112x64xbf16, #tpu.memory_space<vmem>>, %arg6: memref<112x64xf32, #tpu.memory_space<vmem>>) attributes {dimension_semantics = [#tpu.dimension_semantics<parallel>, #tpu.dimension_semantics<arbitrary>], iteration_bounds = array<i64: 1, 4>, scalar_prefetch = 0 : i64, scratch_operands = 1 : i64, tpu.core_type = #tpu.core_type<tc>, window_params = [{transform_indices = @transform_0, window_bounds = array<i64: 1, 112, 288>}, {pipeline_mode = #tpu.pipeline_mode<synchronous>, transform_indices = @transform_1, window_bounds = array<i64: 288, 64>}, {pipeline_mode = #tpu.pipeline_mode<synchronous>, transform_indices = @transform_2, window_bounds = array<i64: 1, 64>}, {transform_indices = @transform_3, window_bounds = array<i64: 1, 112, 64>}]} {
    %c0_i32 = arith.constant 0 : i32
    %0 = arith.cmpi eq, %arg1, %c0_i32 : i32
    %1 = arith.extui %0 : i1 to i32
    %c0_i32_0 = arith.constant 0 : i32
    %2 = arith.cmpi ne, %1, %c0_i32_0 : i32
    scf.if %2 {
      %cst_17 = arith.constant 0.000000e+00 : f32
      %26 = vector.broadcast %cst_17 : f32 to vector<112x64xf32>
      %c0_18 = arith.constant 0 : index
      %c0_19 = arith.constant 0 : index
      %27 = vector.load %arg6[%c0_18, %c0_19] : memref<112x64xf32, #tpu.memory_space<vmem>>, vector<112x64xf32>
      tpu.vector_store %arg6[%c0_18, %c0_19], %26 {strides = array<i32>} : memref<112x64xf32, #tpu.memory_space<vmem>>, vector<112x64xf32>,
    } else {
    }
    %c0 = arith.constant 0 : index
    %c0_1 = arith.constant 0 : index
    %c0_2 = arith.constant 0 : index
    %3 = vector.load %arg2[%c0, %c0_1, %c0_2] : memref<1x112x288xbf16, #tpu.memory_space<vmem>>, vector<1x112x288xbf16>
    %4 = vector.shape_cast %3 : vector<1x112x288xbf16> to vector<112x288xbf16>
    %c0_3 = arith.constant 0 : index
    %c0_4 = arith.constant 0 : index
    %5 = vector.load %arg3[%c0_3, %c0_4] : memref<288x64xbf16, #tpu.memory_space<vmem>>, vector<288x64xbf16>
    %cst = arith.constant dense<0.000000e+00> : vector<112x64xf32>
    %6 = tpu.matmul %4, %5, %cst {dimension_numbers = #tpu.dot_dimension_numbers<[1], [0], [0], [1], [0, 0, 1, 1], [], []>} : vector<112x288xbf16>, vector<288x64xbf16>, vector<112x64xf32> -> vector<112x64xf32>
    %c0_5 = arith.constant 0 : index
    %c0_6 = arith.constant 0 : index
    %7 = vector.load %arg4[%c0_5, %c0_6] : memref<1x64xf32, #tpu.memory_space<vmem>>, vector<1x64xf32>
    %8 = vector.broadcast %7 : vector<1x64xf32> to vector<112x64xf32>
    %9 = arith.addf %6, %8 : vector<112x64xf32>
    %c0_7 = arith.constant 0 : index
    %c0_8 = arith.constant 0 : index
    %10 = vector.load %arg6[%c0_7, %c0_8] : memref<112x64xf32, #tpu.memory_space<vmem>>, vector<112x64xf32>
    %cst_9 = arith.constant 5.000000e-01 : f32
    %11 = vector.broadcast %cst_9 : f32 to vector<112x64xf32>
    %12 = arith.mulf %11, %10 : vector<112x64xf32>
    %13 = arith.addf %12, %9 : vector<112x64xf32>
    %cst_10 = arith.constant 1.000000e+00 : f32
    %14 = vector.broadcast %cst_10 : f32 to vector<112x64xf32>
    %15 = arith.cmpf oge, %13, %14 : vector<112x64xf32>
    %16 = arith.extui %15 : vector<112x64xi1> to vector<112x64xi32>
    %17 = arith.sitofp %16 : vector<112x64xi32> to vector<112x64xf32>
    %cst_11 = arith.constant 1.000000e+00 : f32
    %18 = vector.broadcast %cst_11 : f32 to vector<112x64xf32>
    %19 = arith.subf %18, %17 : vector<112x64xf32>
    %20 = arith.mulf %13, %19 : vector<112x64xf32>
    %c0_12 = arith.constant 0 : index
    %c0_13 = arith.constant 0 : index
    %21 = vector.load %arg6[%c0_12, %c0_13] : memref<112x64xf32, #tpu.memory_space<vmem>>, vector<112x64xf32>
    tpu.vector_store %arg6[%c0_12, %c0_13], %20 {strides = array<i32>} : memref<112x64xf32, #tpu.memory_space<vmem>>, vector<112x64xf32>,
    %22 = arith.truncf %17 : vector<112x64xf32> to vector<112x64xbf16>
    %c0_14 = arith.constant 0 : index
    %c0_15 = arith.constant 0 : index
    %c0_16 = arith.constant 0 : index
    %23 = vector.load %arg5[%c0_14, %c0_15, %c0_16] : memref<1x112x64xbf16, #tpu.memory_space<vmem>>, vector<1x112x64xbf16>
    %24 = vector.shape_cast %23 : vector<1x112x64xbf16> to vector<112x64xbf16>
    %25 = vector.shape_cast %22 : vector<112x64xbf16> to vector<1x112x64xbf16>
    tpu.vector_store %arg5[%c0_14, %c0_15, %c0_16], %25 {strides = array<i32>} : memref<1x112x64xbf16, #tpu.memory_space<vmem>>, vector<1x112x64xbf16>,
    return
  }
  func.func @transform_0(%arg0: i32, %arg1: i32) -> (i32, i32, i32) {
    %c0_i32 = arith.constant 0 : i32
    %c0_i32_0 = arith.constant 0 : i32
    return %arg1, %arg0, %c0_i32 : i32, i32, i32
  }
  func.func @transform_1(%arg0: i32, %arg1: i32) -> (i32, i32) {
    %c0_i32 = arith.constant 0 : i32
    %c0_i32_0 = arith.constant 0 : i32
    %c0_i32_1 = arith.constant 0 : i32
    return %c0_i32, %c0_i32_0 : i32, i32
  }
  func.func @transform_2(%arg0: i32, %arg1: i32) -> (i32, i32) {
    %c0_i32 = arith.constant 0 : i32
    %c0_i32_0 = arith.constant 0 : i32
    %c0_i32_1 = arith.constant 0 : i32
    return %c0_i32, %c0_i32_0 : i32, i32
  }
  func.func @transform_3(%arg0: i32, %arg1: i32) -> (i32, i32, i32) {
    %c0_i32 = arith.constant 0 : i32
    %c0_i32_0 = arith.constant 0 : i32
    return %arg1, %arg0, %c0_i32 : i32, i32, i32
  }
}

module attributes {stable_mosaic.version = 11 : i64} {
  func.func @_fc_lif_head_kernel(%arg0: i32, %arg1: memref<1x2x3136xbf16, #tpu.memory_space<vmem>>, %arg2: memref<3136x64xbf16, #tpu.memory_space<vmem>>, %arg3: memref<1x64xf32, #tpu.memory_space<vmem>>, %arg4: memref<64x10xf32, #tpu.memory_space<vmem>>, %arg5: memref<1x10xf32, #tpu.memory_space<vmem>>, %arg6: memref<2x10xf32, #tpu.memory_space<vmem>>, %arg7: memref<2x64xf32, #tpu.memory_space<vmem>>, %arg8: memref<2x64xf32, #tpu.memory_space<vmem>>) attributes {dimension_semantics = [#tpu.dimension_semantics<arbitrary>], iteration_bounds = array<i64: 4>, scalar_prefetch = 0 : i64, scratch_operands = 2 : i64, tpu.core_type = #tpu.core_type<tc>, window_params = [{transform_indices = @transform_0, window_bounds = array<i64: 1, 2, 3136>}, {pipeline_mode = #tpu.pipeline_mode<synchronous>, transform_indices = @transform_1, window_bounds = array<i64: 3136, 64>}, {pipeline_mode = #tpu.pipeline_mode<synchronous>, transform_indices = @transform_2, window_bounds = array<i64: 1, 64>}, {pipeline_mode = #tpu.pipeline_mode<synchronous>, transform_indices = @transform_3, window_bounds = array<i64: 64, 10>}, {pipeline_mode = #tpu.pipeline_mode<synchronous>, transform_indices = @transform_4, window_bounds = array<i64: 1, 10>}, {pipeline_mode = #tpu.pipeline_mode<synchronous>, transform_indices = @transform_5, window_bounds = array<i64: 2, 10>}]} {
    %c0_i32 = arith.constant 0 : i32
    %0 = arith.cmpi eq, %arg0, %c0_i32 : i32
    %1 = arith.extui %0 : i1 to i32
    %c0_i32_0 = arith.constant 0 : i32
    %2 = arith.cmpi ne, %1, %c0_i32_0 : i32
    scf.if %2 {
      %cst_19 = arith.constant 0.000000e+00 : f32
      %28 = vector.broadcast %cst_19 : f32 to vector<2x64xf32>
      %c0_20 = arith.constant 0 : index
      %c0_21 = arith.constant 0 : index
      %29 = vector.load %arg7[%c0_20, %c0_21] : memref<2x64xf32, #tpu.memory_space<vmem>>, vector<2x64xf32>
      tpu.vector_store %arg7[%c0_20, %c0_21], %28 {strides = array<i32>} : memref<2x64xf32, #tpu.memory_space<vmem>>, vector<2x64xf32>,
      %cst_22 = arith.constant 0.000000e+00 : f32
      %30 = vector.broadcast %cst_22 : f32 to vector<2x64xf32>
      %c0_23 = arith.constant 0 : index
      %c0_24 = arith.constant 0 : index
      %31 = vector.load %arg8[%c0_23, %c0_24] : memref<2x64xf32, #tpu.memory_space<vmem>>, vector<2x64xf32>
      tpu.vector_store %arg8[%c0_23, %c0_24], %30 {strides = array<i32>} : memref<2x64xf32, #tpu.memory_space<vmem>>, vector<2x64xf32>,
    } else {
    }
    %c0 = arith.constant 0 : index
    %c0_1 = arith.constant 0 : index
    %c0_2 = arith.constant 0 : index
    %3 = vector.load %arg1[%c0, %c0_1, %c0_2] : memref<1x2x3136xbf16, #tpu.memory_space<vmem>>, vector<1x2x3136xbf16>
    %4 = vector.shape_cast %3 : vector<1x2x3136xbf16> to vector<2x3136xbf16>
    %c0_3 = arith.constant 0 : index
    %c0_4 = arith.constant 0 : index
    %5 = vector.load %arg2[%c0_3, %c0_4] : memref<3136x64xbf16, #tpu.memory_space<vmem>>, vector<3136x64xbf16>
    %cst = arith.constant dense<0.000000e+00> : vector<2x64xf32>
    %6 = tpu.matmul %4, %5, %cst {dimension_numbers = #tpu.dot_dimension_numbers<[1], [0], [0], [1], [0, 0, 1, 1], [], []>} : vector<2x3136xbf16>, vector<3136x64xbf16>, vector<2x64xf32> -> vector<2x64xf32>
    %c0_5 = arith.constant 0 : index
    %c0_6 = arith.constant 0 : index
    %7 = vector.load %arg3[%c0_5, %c0_6] : memref<1x64xf32, #tpu.memory_space<vmem>>, vector<1x64xf32>
    %8 = vector.broadcast %7 : vector<1x64xf32> to vector<2x64xf32>
    %9 = arith.addf %6, %8 : vector<2x64xf32>
    %c0_7 = arith.constant 0 : index
    %c0_8 = arith.constant 0 : index
    %10 = vector.load %arg7[%c0_7, %c0_8] : memref<2x64xf32, #tpu.memory_space<vmem>>, vector<2x64xf32>
    %cst_9 = arith.constant 5.000000e-01 : f32
    %11 = vector.broadcast %cst_9 : f32 to vector<2x64xf32>
    %12 = arith.mulf %11, %10 : vector<2x64xf32>
    %13 = arith.addf %12, %9 : vector<2x64xf32>
    %cst_10 = arith.constant 1.000000e+00 : f32
    %14 = vector.broadcast %cst_10 : f32 to vector<2x64xf32>
    %15 = arith.cmpf oge, %13, %14 : vector<2x64xf32>
    %16 = arith.extui %15 : vector<2x64xi1> to vector<2x64xi32>
    %17 = arith.sitofp %16 : vector<2x64xi32> to vector<2x64xf32>
    %cst_11 = arith.constant 1.000000e+00 : f32
    %18 = vector.broadcast %cst_11 : f32 to vector<2x64xf32>
    %19 = arith.subf %18, %17 : vector<2x64xf32>
    %20 = arith.mulf %13, %19 : vector<2x64xf32>
    %c0_12 = arith.constant 0 : index
    %c0_13 = arith.constant 0 : index
    %21 = vector.load %arg7[%c0_12, %c0_13] : memref<2x64xf32, #tpu.memory_space<vmem>>, vector<2x64xf32>
    tpu.vector_store %arg7[%c0_12, %c0_13], %20 {strides = array<i32>} : memref<2x64xf32, #tpu.memory_space<vmem>>, vector<2x64xf32>,
    %c0_14 = arith.constant 0 : index
    %c0_15 = arith.constant 0 : index
    %22 = vector.load %arg8[%c0_14, %c0_15] : memref<2x64xf32, #tpu.memory_space<vmem>>, vector<2x64xf32>
    %23 = arith.addf %22, %17 : vector<2x64xf32>
    %c0_16 = arith.constant 0 : index
    %c0_17 = arith.constant 0 : index
    %24 = vector.load %arg8[%c0_16, %c0_17] : memref<2x64xf32, #tpu.memory_space<vmem>>, vector<2x64xf32>
    tpu.vector_store %arg8[%c0_16, %c0_17], %23 {strides = array<i32>} : memref<2x64xf32, #tpu.memory_space<vmem>>, vector<2x64xf32>,
    %c3_i32 = arith.constant 3 : i32
    %25 = arith.cmpi eq, %arg0, %c3_i32 : i32
    %26 = arith.extui %25 : i1 to i32
    %c0_i32_18 = arith.constant 0 : i32
    %27 = arith.cmpi ne, %26, %c0_i32_18 : i32
    scf.if %27 {
      %c0_19 = arith.constant 0 : index
      %c0_20 = arith.constant 0 : index
      %28 = vector.load %arg8[%c0_19, %c0_20] : memref<2x64xf32, #tpu.memory_space<vmem>>, vector<2x64xf32>
      %cst_21 = arith.constant 2.500000e-01 : f32
      %29 = vector.broadcast %cst_21 : f32 to vector<2x64xf32>
      %30 = arith.mulf %28, %29 : vector<2x64xf32>
      %c0_22 = arith.constant 0 : index
      %c0_23 = arith.constant 0 : index
      %31 = vector.load %arg4[%c0_22, %c0_23] : memref<64x10xf32, #tpu.memory_space<vmem>>, vector<64x10xf32>
      %cst_24 = arith.constant dense<0.000000e+00> : vector<2x10xf32>
      %32 = tpu.matmul %30, %31, %cst_24 {dimension_numbers = #tpu.dot_dimension_numbers<[1], [0], [0], [1], [0, 0, 1, 1], [], []>} : vector<2x64xf32>, vector<64x10xf32>, vector<2x10xf32> -> vector<2x10xf32>
      %c0_25 = arith.constant 0 : index
      %c0_26 = arith.constant 0 : index
      %33 = vector.load %arg5[%c0_25, %c0_26] : memref<1x10xf32, #tpu.memory_space<vmem>>, vector<1x10xf32>
      %34 = vector.broadcast %33 : vector<1x10xf32> to vector<2x10xf32>
      %35 = arith.addf %32, %34 : vector<2x10xf32>
      %c0_27 = arith.constant 0 : index
      %c0_28 = arith.constant 0 : index
      %36 = vector.load %arg6[%c0_27, %c0_28] : memref<2x10xf32, #tpu.memory_space<vmem>>, vector<2x10xf32>
      tpu.vector_store %arg6[%c0_27, %c0_28], %35 {strides = array<i32>} : memref<2x10xf32, #tpu.memory_space<vmem>>, vector<2x10xf32>,
    } else {
    }
    return
  }
  func.func @transform_0(%arg0: i32) -> (i32, i32, i32) {
    %c0_i32 = arith.constant 0 : i32
    %c0_i32_0 = arith.constant 0 : i32
    %c0_i32_1 = arith.constant 0 : i32
    return %arg0, %c0_i32, %c0_i32_0 : i32, i32, i32
  }
  func.func @transform_1(%arg0: i32) -> (i32, i32) {
    %c0_i32 = arith.constant 0 : i32
    %c0_i32_0 = arith.constant 0 : i32
    %c0_i32_1 = arith.constant 0 : i32
    return %c0_i32, %c0_i32_0 : i32, i32
  }
  func.func @transform_2(%arg0: i32) -> (i32, i32) {
    %c0_i32 = arith.constant 0 : i32
    %c0_i32_0 = arith.constant 0 : i32
    %c0_i32_1 = arith.constant 0 : i32
    return %c0_i32, %c0_i32_0 : i32, i32
  }
  func.func @transform_3(%arg0: i32) -> (i32, i32) {
    %c0_i32 = arith.constant 0 : i32
    %c0_i32_0 = arith.constant 0 : i32
    %c0_i32_1 = arith.constant 0 : i32
    return %c0_i32, %c0_i32_0 : i32, i32
  }
  func.func @transform_4(%arg0: i32) -> (i32, i32) {
    %c0_i32 = arith.constant 0 : i32
    %c0_i32_0 = arith.constant 0 : i32
    %c0_i32_1 = arith.constant 0 : i32
    return %c0_i32, %c0_i32_0 : i32, i32
  }
  func.func @transform_5(%arg0: i32) -> (i32, i32) {
    %c0_i32 = arith.constant 0 : i32
    %c0_i32_0 = arith.constant 0 : i32
    %c0_i32_1 = arith.constant 0 : i32
    return %c0_i32, %c0_i32_0 : i32, i32
  }
}

</mosaic_0001>

<llo_original>
// kernel: lenet5_forward.4
$region0: #{lenet5_forward.4}
  #allocation0 [shape = 'u32[]', space=smem, size = 0x4, offset = 0x4, fixed_abs, tag = 'smem constant byte address 0x4 - core index']
  #allocation1 [shape = 'u32[144,128]{1,0:T(1,128)}', space=vmem, size = 0x12000, scoped, tag = 'internal scratch']
  #allocation2 [shape = 'f32[784,12]{1,0:T(8,128)}', space=vmem, size = 0x62000, scoped, tag = 'scratch operand']
  %s0 = inlined_call_operand.vmem [shape: bf16[4,1568,32], index: 0, kind: input, shape index: {}]
  %s1 = inlined_call_operand.vmem [shape: bf16[32,12], index: 1, kind: input, shape index: {}]
  %s2 = inlined_call_operand.vmem [shape: f32[1,12], index: 2, kind: input, shape index: {}]
  %s3 = inlined_call_operand.vmem [shape: bf16[4,1568,12], index: 3, kind: output, shape index: {}]
  %s4 = sld [smem:[#allocation0]]
  $region49: #{lenet5_forward.4} parent=0
    _
  %s6 = ssub.s32 1, %s4
  %s7 = scalar_select 0, %s6, %s4
  loop: start=0, step=1, limit=10
  $region2: #{lenet5_forward.4} parent=0 // loop_pre_header
    _
  $region3: #{lenet5_forward.4} parent=0 // loop_header
    %s9 = sphi 0, %s13
    %p10 = scmp.ge.s32.totalorder %s9, 10
    %s16 = sphi 0, %s28
    %s17 = sphi 0, %s24
    %s18 = sphi 0, %s16
    %s19 = sphi 0, %s17
    %s20 = sphi 0, %s18
    %s21 = sphi 0, %s19
    %s33 = sphi 0, %s35
    %s36 = sphi 0, %s33
    %s37 = sphi 0, %s36
    %s53 = sphi 0, %s37
    %s57 = sphi 0, %s57
    %s59 = sphi 0, %s57
    %s60 = sphi 0, %s59
    %s74 = sphi 0, %s60
    %s78 = sphi 0, %s78
    %s80 = sphi 0, %s78
    %s81 = sphi 0, %s80
    %s95 = sphi 0, %s81
    %s103 = sphi 0, %s105
    %s106 = sphi 0, %s103
    %s107 = sphi 0, %s106
    %s123 = sphi 0, %s107
  $region4: #{lenet5_forward.4} parent=0 // loop_header_branch
    %12 = sbr.rel (%p10) target = $region8
  $region5: #{lenet5_forward.4} parent=0 // loop_body
    %s14 = ssub.s32 %s9, 1
    %s15 = ssub.s32 %s9, 2
    %s22 = sadd.s32 1, %s17
    %p23 = scmp.ge.s32.totalorder %s22, 4
    %s24 = scalar_select %p23, 0, %s22
    %s25 = sadd.s32 1, %s16
    %s26 = scalar_select %p23, %s25, %s16
    %p27 = scmp.ge.s32.totalorder %s26, 2
    %s28 = scalar_select %p27, 0, %s26
    %s29 = ssub.s32 %s17, %s24
    %s30 = ssub.s32 %s16, %s28
    %s31 = sor.u32 %s29, %s30
    %p32 = scmp.eq.s32.totalorder %s31, 0
    %s34 = sadd.s32 %s33, 1
    %s35 = scalar_select %p32, %s33, %s34
    %p38 = pneg %p32
    %p39 = scmp.eq.s32.totalorder %s9, 7
    %p40 = por %p38, %p39
    %p41 = scmp.ne.s32.totalorder %s33, %s36
    %p42 = scmp.eq.s32.totalorder %s9, 0
    %p43 = por %p41, %p42
    %p44 = scmp.ne.s32.totalorder %s33, %s36
    %p45 = scmp.eq.s32.totalorder %s14, 7
    %p46 = por %p44, %p45
    %p47 = scmp.ne.s32.totalorder %s36, %s37
    %p48 = scmp.eq.s32.totalorder %s14, 0
    %p49 = por %p47, %p48
    %p50 = scmp.ne.s32.totalorder %s36, %s37
    %p51 = scmp.eq.s32.totalorder %s15, 7
    %p52 = por %p50, %p51
    %p54 = scmp.ne.s32.totalorder %s37, %s53
    %p55 = scmp.eq.s32.totalorder %s15, 0
    %p56 = por %p54, %p55
    %s58 = sadd.s32 %s57, 1
    %p61 = scmp.eq.s32.totalorder %s9, 7
    %p62 = scmp.ne.s32.totalorder %s57, %s59
    %p63 = scmp.eq.s32.totalorder %s9, 0
    %p64 = por %p62, %p63
    %p65 = scmp.ne.s32.totalorder %s57, %s59
    %p66 = scmp.eq.s32.totalorder %s14, 7
    %p67 = por %p65, %p66
    %p68 = scmp.ne.s32.totalorder %s59, %s60
    %p69 = scmp.eq.s32.totalorder %s14, 0
    %p70 = por %p68, %p69
    %p71 = scmp.ne.s32.totalorder %s59, %s60
    %p72 = scmp.eq.s32.totalorder %s15, 7
    %p73 = por %p71, %p72
    %p75 = scmp.ne.s32.totalorder %s60, %s74
    %p76 = scmp.eq.s32.totalorder %s15, 0
    %p77 = por %p75, %p76
    %s79 = sadd.s32 %s78, 1
    %p82 = scmp.eq.s32.totalorder %s9, 7
    %p83 = scmp.ne.s32.totalorder %s78, %s80
    %p84 = scmp.eq.s32.totalorder %s9, 0
    %p85 = por %p83, %p84
    %p86 = scmp.ne.s32.totalorder %s78, %s80
    %p87 = scmp.eq.s32.totalorder %s14, 7
    %p88 = por %p86, %p87
    %p89 = scmp.ne.s32.totalorder %s80, %s81
    %p90 = scmp.eq.s32.totalorder %s14, 0
    %p91 = por %p89, %p90
    %p92 = scmp.ne.s32.totalorder %s80, %s81
    %p93 = scmp.eq.s32.totalorder %s15, 7
    %p94 = por %p92, %p93
    %p96 = scmp.ne.s32.totalorder %s81, %s95
    %p97 = scmp.eq.s32.totalorder %s15, 0
    %p98 = por %p96, %p97
    %s99 = ssub.s32 %s17, %s24
    %s100 = ssub.s32 %s16, %s28
    %s101 = sor.u32 %s99, %s100
    %p102 = scmp.eq.s32.totalorder %s101, 0
    %s104 = sadd.s32 %s103, 1
    %s105 = scalar_select %p102, %s103, %s104
    %p108 = pneg %p102
    %p109 = scmp.eq.s32.totalorder %s9, 7
    %p110 = por %p108, %p109
    %p111 = scmp.ne.s32.totalorder %s103, %s106
    %p112 = scmp.eq.s32.totalorder %s9, 0
    %p113 = por %p111, %p112
    %p114 = scmp.ne.s32.totalorder %s103, %s106
    %p115 = scmp.eq.s32.totalorder %s14, 7
    %p116 = por %p114, %p115
    %p117 = scmp.ne.s32.totalorder %s106, %s107
    %p118 = scmp.eq.s32.totalorder %s14, 0
    %p119 = por %p117, %p118
    %p120 = scmp.ne.s32.totalorder %s106, %s107
    %p121 = scmp.eq.s32.totalorder %s15, 7
    %p122 = por %p120, %p121
    %p124 = scmp.ne.s32.totalorder %s107, %s123
    %p125 = scmp.eq.s32.totalorder %s15, 0
    %p126 = por %p124, %p125
    %p127 = scmp.le.s32.totalorder 1, %s9
    %p128 = scmp.lt.s32.totalorder %s9, 9
    %p129 = pnand %p127, %p128
    %p130 = pneg %p129
    // Predicated region
    $region9: #{lenet5_forward.4} parent=5 // pred_check
      _
    $region10: #{lenet5_forward.4} parent=5 // pred_check_branch
      %132 = sbr.rel (%p129) target = $region12
    $region11: #{lenet5_forward.4} parent=5 // pred_region
      %s133 = ssub.s32 %s9, 1
      // Predicated region
      $region13: #{lenet5_forward.4} parent=11 // pred_check
        %p134 = pneg %p70
      $region14: #{lenet5_forward.4} parent=11 // pred_check_branch
        %136 = sbr.rel (%p134) target = $region16
      $region15: #{lenet5_forward.4} parent=11 // pred_region
        _
      $region16: #{lenet5_forward.4} parent=11 // pred_fallthru
        _
      // Predicated region
      $region17: #{lenet5_forward.4} parent=11 // pred_check
        %p137 = pneg %p91
      $region18: #{lenet5_forward.4} parent=11 // pred_check_branch
        %139 = sbr.rel (%p137) target = $region20
      $region19: #{lenet5_forward.4} parent=11 // pred_region
        _
      $region20: #{lenet5_forward.4} parent=11 // pred_fallthru
        _
    $region12: #{lenet5_forward.4} parent=5 // pred_fallthru
      _
    %p140 = scmp.lt.s32.totalorder %s9, 8
    // Predicated region
    $region21: #{lenet5_forward.4} parent=5 // pred_check
      %p141 = pneg %p140
    $region22: #{lenet5_forward.4} parent=5 // pred_check_branch
      %143 = sbr.rel (%p141) target = $region24
    $region23: #{lenet5_forward.4} parent=5 // pred_region
      // Predicated region
      $region25: #{lenet5_forward.4} parent=23 // pred_check
        %p144 = pneg %p43
      $region26: #{lenet5_forward.4} parent=23 // pred_check_branch
        %146 = sbr.rel (%p144) target = $region28
      $region27: #{lenet5_forward.4} parent=23 // pred_region
        %s147 = smul.u32 98, %s16
        %p148 = scmp.lt.s32.totalorder %s17, 3
        %s149 = scalar_select %p148, %s17, 3
        %p150 = scmp.lt.s32.totalorder %s147, 195
        %s151 = scalar_select %p150, %s147, 195
        %s152 = smul.addr %s149, 196
        %s153 = sadd.s32 %s151, %s152
        %s154 = smul.addr %s153, 4
        %s155 = scalar_lea.vmem %s0, %s154
        %s156 = smul.u32 98, %s16
      $region28: #{lenet5_forward.4} parent=23 // pred_fallthru
        _
    $region24: #{lenet5_forward.4} parent=5 // pred_fallthru
      _
    %p157 = scmp.le.s32.totalorder 1, %s9
    %p158 = scmp.lt.s32.totalorder %s9, 9
    %p159 = pnand %p157, %p158
    %p160 = pneg %p159
    // Predicated region
    $region29: #{lenet5_forward.4} parent=5 // pred_check
      _
    $region30: #{lenet5_forward.4} parent=5 // pred_check_branch
      %162 = sbr.rel (%p159) target = $region32
    $region31: #{lenet5_forward.4} parent=5 // pred_region
      %s163 = ssub.s32 %s9, 1
      %s164 = smul.u32 98, %s18
      %p165 = scmp.lt.s32.totalorder %s19, 3
      %s166 = scalar_select %p165, %s19, 3
      %p167 = scmp.lt.s32.totalorder %s164, 195
      %s168 = scalar_select %p167, %s164, 195
      %s169 = smul.addr %s166, 196
      %s170 = sadd.s32 %s168, %s169
      %s171 = smul.addr %s170, 4
      %s172 = scalar_lea.vmem %s0, %s171
      %p173 = pneg %p49
      %p174 = pneg %p46
      %p175 = pneg %p70
      %p176 = pneg %p67
      %p177 = pneg %p91
      %p178 = pneg %p88
      %p179 = pneg %p119
      %p180 = pneg %p116
      %s181 = smul.u32 98, %s18
      %p182 = scmp.lt.s32.totalorder %s19, 3
      %s183 = scalar_select %p182, %s19, 3
      %p184 = scmp.lt.s32.totalorder %s181, 195
      %s185 = scalar_select %p184, %s181, 195
      %s186 = smul.addr %s183, 196
      %s187 = sadd.s32 %s185, %s186
      %s188 = smul.addr %s187, 4
      %s189 = scalar_lea.vmem %s3, %s188
      %s190 = smul.u32 98, %s18
      %p191 = scmp.lt.s32.totalorder %s19, 3
      %s192 = scalar_select %p191, %s19, 3
      %p193 = scmp.lt.s32.totalorder %s190, 195
      %s194 = scalar_select %p193, %s190, 195
      %s195 = smul.addr %s192, 196
      %s196 = sadd.s32 %s194, %s195
      %s197 = smul.addr %s196, 4
      %s198 = scalar_lea.vmem %s0, %s197
      %s199 = smul.u32 98, %s18
      %s200 = smul.u32 98, %s18
      %p201 = scmp.lt.s32.totalorder %s19, 3
      %s202 = scalar_select %p201, %s19, 3
      %p203 = scmp.lt.s32.totalorder %s200, 195
      %s204 = scalar_select %p203, %s200, 195
      %s205 = smul.addr %s202, 196
      %s206 = sadd.s32 %s204, %s205
      %s207 = smul.addr %s206, 4
      %s208 = scalar_lea.vmem %s3, %s207
      %s209 = smul.u32 98, %s18
      %p211 = scmp.eq.s32.totalorder %s19, 0
      // Predicated region
      $region33: #{lenet5_forward.4} parent=31 // pred_check
        %p212 = pneg %p211
      $region34: #{lenet5_forward.4} parent=31 // pred_check_branch
        %214 = sbr.rel (%p212) target = $region36
      $region35: #{lenet5_forward.4} parent=31 // pred_region
        %vm215 = vcmask 97280
        %216 = vst.msk [vmem:[#allocation2] sm:$0xff] %vm215, 0.0
        %217 = vst.msk [vmem:[#allocation2 + $0x8] sm:$0xff] %vm215, 0.0
        %218 = vst.msk [vmem:[#allocation2 + $0x10] sm:$0xff] %vm215, 0.0
        %219 = vst.msk [vmem:[#allocation2 + $0x18] sm:$0xff] %vm215, 0.0
        %220 = vst.msk [vmem:[#allocation2 + $0x20] sm:$0xff] %vm215, 0.0
        %221 = vst.msk [vmem:[#allocation2 + $0x28] sm:$0xff] %vm215, 0.0
        %222 = vst.msk [vmem:[#allocation2 + $0x30] sm:$0xff] %vm215, 0.0
        %223 = vst.msk [vmem:[#allocation2 + $0x38] sm:$0xff] %vm215, 0.0
        %224 = vst.msk [vmem:[#allocation2 + $0x40] sm:$0xff] %vm215, 0.0
        %225 = vst.msk [vmem:[#allocation2 + $0x48] sm:$0xff] %vm215, 0.0
        %226 = vst.msk [vmem:[#allocation2 + $0x50] sm:$0xff] %vm215, 0.0
        %227 = vst.msk [vmem:[#allocation2 + $0x58] sm:$0xff] %vm215, 0.0
        %228 = vst.msk [vmem:[#allocation2 + $0x60] sm:$0xff] %vm215, 0.0
        %229 = vst.msk [vmem:[#allocation2 + $0x68] sm:$0xff] %vm215, 0.0
        %230 = vst.msk [vmem:[#allocation2 + $0x70] sm:$0xff] %vm215, 0.0
        %231 = vst.msk [vmem:[#allocation2 + $0x78] sm:$0xff] %vm215, 0.0
        %232 = vst.msk [vmem:[#allocation2 + $0x80] sm:$0xff] %vm215, 0.0
        %233 = vst.msk [vmem:[#allocation2 + $0x88] sm:$0xff] %vm215, 0.0
        %234 = vst.msk [vmem:[#allocation2 + $0x90] sm:$0xff] %vm215, 0.0
        %235 = vst.msk [vmem:[#allocation2 + $0x98] sm:$0xff] %vm215, 0.0
        %236 = vst.msk [vmem:[#allocation2 + $0xa0] sm:$0xff] %vm215, 0.0
        %237 = vst.msk [vmem:[#allocation2 + $0xa8] sm:$0xff] %vm215, 0.0
        %238 = vst.msk [vmem:[#allocation2 + $0xb0] sm:$0xff] %vm215, 0.0
        %239 = vst.msk [vmem:[#allocation2 + $0xb8] sm:$0xff] %vm215, 0.0
        %240 = vst.msk [vmem:[#allocation2 + $0xc0] sm:$0xff] %vm215, 0.0
        %241 = vst.msk [vmem:[#allocation2 + $0xc8] sm:$0xff] %vm215, 0.0
        %242 = vst.msk [vmem:[#allocation2 + $0xd0] sm:$0xff] %vm215, 0.0
        %243 = vst.msk [vmem:[#allocation2 + $0xd8] sm:$0xff] %vm215, 0.0
        %244 = vst.msk [vmem:[#allocation2 + $0xe0] sm:$0xff] %vm215, 0.0
        %245 = vst.msk [vmem:[#allocation2 + $0xe8] sm:$0xff] %vm215, 0.0
        %246 = vst.msk [vmem:[#allocation2 + $0xf0] sm:$0xff] %vm215, 0.0
        %247 = vst.msk [vmem:[#allocation2 + $0xf8] sm:$0xff] %vm215, 0.0
        %248 = vst.msk [vmem:[#allocation2 + $0x100] sm:$0xff] %vm215, 0.0
        %249 = vst.msk [vmem:[#allocation2 + $0x108] sm:$0xff] %vm215, 0.0
        %250 = vst.msk [vmem:[#allocation2 + $0x110] sm:$0xff] %vm215, 0.0
        %251 = vst.msk [vmem:[#allocation2 + $0x118] sm:$0xff] %vm215, 0.0
        %252 = vst.msk [vmem:[#allocation2 + $0x120] sm:$0xff] %vm215, 0.0
        %253 = vst.msk [vmem:[#allocation2 + $0x128] sm:$0xff] %vm215, 0.0
        %254 = vst.msk [vmem:[#allocation2 + $0x130] sm:$0xff] %vm215, 0.0
        %255 = vst.msk [vmem:[#allocation2 + $0x138] sm:$0xff] %vm215, 0.0
        %256 = vst.msk [vmem:[#allocation2 + $0x140] sm:$0xff] %vm215, 0.0
        %257 = vst.msk [vmem:[#allocation2 + $0x148] sm:$0xff] %vm215, 0.0
        %258 = vst.msk [vmem:[#allocation2 + $0x150] sm:$0xff] %vm215, 0.0
        %259 = vst.msk [vmem:[#allocation2 + $0x158] sm:$0xff] %vm215, 0.0
        %260 = vst.msk [vmem:[#allocation2 + $0x160] sm:$0xff] %vm215, 0.0
        %261 = vst.msk [vmem:[#allocation2 + $0x168] sm:$0xff] %vm215, 0.0
        %262 = vst.msk [vmem:[#allocation2 + $0x170] sm:$0xff] %vm215, 0.0
        %263 = vst.msk [vmem:[#allocation2 + $0x178] sm:$0xff] %vm215, 0.0
        %264 = vst.msk [vmem:[#allocation2 + $0x180] sm:$0xff] %vm215, 0.0
        %265 = vst.msk [vmem:[#allocation2 + $0x188] sm:$0xff] %vm215, 0.0
        %266 = vst.msk [vmem:[#allocation2 + $0x190] sm:$0xff] %vm215, 0.0
        %267 = vst.msk [vmem:[#allocation2 + $0x198] sm:$0xff] %vm215, 0.0
        %268 = vst.msk [vmem:[#allocation2 + $0x1a0] sm:$0xff] %vm215, 0.0
        %269 = vst.msk [vmem:[#allocation2 + $0x1a8] sm:$0xff] %vm215, 0.0
        %270 = vst.msk [vmem:[#allocation2 + $0x1b0] sm:$0xff] %vm215, 0.0
        %271 = vst.msk [vmem:[#allocation2 + $0x1b8] sm:$0xff] %vm215, 0.0
        %272 = vst.msk [vmem:[#allocation2 + $0x1c0] sm:$0xff] %vm215, 0.0
        %273 = vst.msk [vmem:[#allocation2 + $0x1c8] sm:$0xff] %vm215, 0.0
        %274 = vst.msk [vmem:[#allocation2 + $0x1d0] sm:$0xff] %vm215, 0.0
        %275 = vst.msk [vmem:[#allocation2 + $0x1d8] sm:$0xff] %vm215, 0.0
        %276 = vst.msk [vmem:[#allocation2 + $0x1e0] sm:$0xff] %vm215, 0.0
        %277 = vst.msk [vmem:[#allocation2 + $0x1e8] sm:$0xff] %vm215, 0.0
        %278 = vst.msk [vmem:[#allocation2 + $0x1f0] sm:$0xff] %vm215, 0.0
        %279 = vst.msk [vmem:[#allocation2 + $0x1f8] sm:$0xff] %vm215, 0.0
        %280 = vst.msk [vmem:[#allocation2 + $0x200] sm:$0xff] %vm215, 0.0
        %281 = vst.msk [vmem:[#allocation2 + $0x208] sm:$0xff] %vm215, 0.0
        %282 = vst.msk [vmem:[#allocation2 + $0x210] sm:$0xff] %vm215, 0.0
        %283 = vst.msk [vmem:[#allocation2 + $0x218] sm:$0xff] %vm215, 0.0
        %284 = vst.msk [vmem:[#allocation2 + $0x220] sm:$0xff] %vm215, 0.0
        %285 = vst.msk [vmem:[#allocation2 + $0x228] sm:$0xff] %vm215, 0.0
        %286 = vst.msk [vmem:[#allocation2 + $0x230] sm:$0xff] %vm215, 0.0
        %287 = vst.msk [vmem:[#allocation2 + $0x238] sm:$0xff] %vm215, 0.0
        %288 = vst.msk [vmem:[#allocation2 + $0x240] sm:$0xff] %vm215, 0.0
        %289 = vst.msk [vmem:[#allocation2 + $0x248] sm:$0xff] %vm215, 0.0
        %290 = vst.msk [vmem:[#allocation2 + $0x250] sm:$0xff] %vm215, 0.0
        %291 = vst.msk [vmem:[#allocation2 + $0x258] sm:$0xff] %vm215, 0.0
        %292 = vst.msk [vmem:[#allocation2 + $0x260] sm:$0xff] %vm215, 0.0
        %293 = vst.msk [vmem:[#allocation2 + $0x268] sm:$0xff] %vm215, 0.0
        %294 = vst.msk [vmem:[#allocation2 + $0x270] sm:$0xff] %vm215, 0.0
        %295 = vst.msk [vmem:[#allocation2 + $0x278] sm:$0xff] %vm215, 0.0
        %296 = vst.msk [vmem:[#allocation2 + $0x280] sm:$0xff] %vm215, 0.0
        %297 = vst.msk [vmem:[#allocation2 + $0x288] sm:$0xff] %vm215, 0.0
        %298 = vst.msk [vmem:[#allocation2 + $0x290] sm:$0xff] %vm215, 0.0
        %299 = vst.msk [vmem:[#allocation2 + $0x298] sm:$0xff] %vm215, 0.0
        %300 = vst.msk [vmem:[#allocation2 + $0x2a0] sm:$0xff] %vm215, 0.0
        %301 = vst.msk [vmem:[#allocation2 + $0x2a8] sm:$0xff] %vm215, 0.0
        %302 = vst.msk [vmem:[#allocation2 + $0x2b0] sm:$0xff] %vm215, 0.0
        %303 = vst.msk [vmem:[#allocation2 + $0x2b8] sm:$0xff] %vm215, 0.0
        %304 = vst.msk [vmem:[#allocation2 + $0x2c0] sm:$0xff] %vm215, 0.0
        %305 = vst.msk [vmem:[#allocation2 + $0x2c8] sm:$0xff] %vm215, 0.0
        %306 = vst.msk [vmem:[#allocation2 + $0x2d0] sm:$0xff] %vm215, 0.0
        %307 = vst.msk [vmem:[#allocation2 + $0x2d8] sm:$0xff] %vm215, 0.0
        %308 = vst.msk [vmem:[#allocation2 + $0x2e0] sm:$0xff] %vm215, 0.0
        %309 = vst.msk [vmem:[#allocation2 + $0x2e8] sm:$0xff] %vm215, 0.0
        %310 = vst.msk [vmem:[#allocation2 + $0x2f0] sm:$0xff] %vm215, 0.0
        %311 = vst.msk [vmem:[#allocation2 + $0x2f8] sm:$0xff] %vm215, 0.0
        %312 = vst.msk [vmem:[#allocation2 + $0x300] sm:$0xff] %vm215, 0.0
        %313 = vst.msk [vmem:[#allocation2 + $0x308] sm:$0xff] %vm215, 0.0
      $region36: #{lenet5_forward.4} parent=31 // pred_fallthru
        _
      %v314 = vld [vmem:[%s198] sm:$0xf]
      %v315 = vld [vmem:[%s198 + $0x4] sm:$0xf]
      %v316 = vld [vmem:[%s198 + $0x8] sm:$0xf]
      %v317 = vld [vmem:[%s198 + $0xc] sm:$0xf]
      %v318 = vld [vmem:[%s198 + $0x10] sm:$0xf]
      %v319 = vld [vmem:[%s198 + $0x14] sm:$0xf]
      %v320 = vld [vmem:[%s198 + $0x18] sm:$0xf]
      %v321 = vld [vmem:[%s198 + $0x1c] sm:$0xf]
      %v322 = vld [vmem:[%s198 + $0x20] sm:$0xf]
      %v323 = vld [vmem:[%s198 + $0x24] sm:$0xf]
      %v324 = vld [vmem:[%s198 + $0x28] sm:$0xf]
      %v325 = vld [vmem:[%s198 + $0x2c] sm:$0xf]
      %v326 = vld [vmem:[%s198 + $0x30] sm:$0xf]
      %v327 = vld [vmem:[%s198 + $0x34] sm:$0xf]
      %v328 = vld [vmem:[%s198 + $0x38] sm:$0xf]
      %v329 = vld [vmem:[%s198 + $0x3c] sm:$0xf]
      %v330 = vld [vmem:[%s198 + $0x40] sm:$0xf]
      %v331 = vld [vmem:[%s198 + $0x44] sm:$0xf]
      %v332 = vld [vmem:[%s198 + $0x48] sm:$0xf]
      %v333 = vld [vmem:[%s198 + $0x4c] sm:$0xf]
      %v334 = vld [vmem:[%s198 + $0x50] sm:$0xf]
      %v335 = vld [vmem:[%s198 + $0x54] sm:$0xf]
      %v336 = vld [vmem:[%s198 + $0x58] sm:$0xf]
      %v337 = vld [vmem:[%s198 + $0x5c] sm:$0xf]
      %v338 = vld [vmem:[%s198 + $0x60] sm:$0xf]
      %v339 = vld [vmem:[%s198 + $0x64] sm:$0xf]
      %v340 = vld [vmem:[%s198 + $0x68] sm:$0xf]
      %v341 = vld [vmem:[%s198 + $0x6c] sm:$0xf]
      %v342 = vld [vmem:[%s198 + $0x70] sm:$0xf]
      %v343 = vld [vmem:[%s198 + $0x74] sm:$0xf]
      %v344 = vld [vmem:[%s198 + $0x78] sm:$0xf]
      %v345 = vld [vmem:[%s198 + $0x7c] sm:$0xf]
      %v346 = vld [vmem:[%s198 + $0x80] sm:$0xf]
      %v347 = vld [vmem:[%s198 + $0x84] sm:$0xf]
      %v348 = vld [vmem:[%s198 + $0x88] sm:$0xf]
      %v349 = vld [vmem:[%s198 + $0x8c] sm:$0xf]
      %v350 = vld [vmem:[%s198 + $0x90] sm:$0xf]
      %v351 = vld [vmem:[%s198 + $0x94] sm:$0xf]
      %v352 = vld [vmem:[%s198 + $0x98] sm:$0xf]
      %v353 = vld [vmem:[%s198 + $0x9c] sm:$0xf]
      %v354 = vld [vmem:[%s198 + $0xa0] sm:$0xf]
      %v355 = vld [vmem:[%s198 + $0xa4] sm:$0xf]
      %v356 = vld [vmem:[%s198 + $0xa8] sm:$0xf]
      %v357 = vld [vmem:[%s198 + $0xac] sm:$0xf]
      %v358 = vld [vmem:[%s198 + $0xb0] sm:$0xf]
      %v359 = vld [vmem:[%s198 + $0xb4] sm:$0xf]
      %v360 = vld [vmem:[%s198 + $0xb8] sm:$0xf]
      %v361 = vld [vmem:[%s198 + $0xbc] sm:$0xf]
      %v362 = vld [vmem:[%s198 + $0xc0] sm:$0xf]
      %v363 = vld [vmem:[%s198 + $0xc4] sm:$0xf]
      %v364 = vld [vmem:[%s198 + $0xc8] sm:$0xf]
      %v365 = vld [vmem:[%s198 + $0xcc] sm:$0xf]
      %v366 = vld [vmem:[%s198 + $0xd0] sm:$0xf]
      %v367 = vld [vmem:[%s198 + $0xd4] sm:$0xf]
      %v368 = vld [vmem:[%s198 + $0xd8] sm:$0xf]
      %v369 = vld [vmem:[%s198 + $0xdc] sm:$0xf]
      %v370 = vld [vmem:[%s198 + $0xe0] sm:$0xf]
      %v371 = vld [vmem:[%s198 + $0xe4] sm:$0xf]
      %v372 = vld [vmem:[%s198 + $0xe8] sm:$0xf]
      %v373 = vld [vmem:[%s198 + $0xec] sm:$0xf]
      %v374 = vld [vmem:[%s198 + $0xf0] sm:$0xf]
      %v375 = vld [vmem:[%s198 + $0xf4] sm:$0xf]
      %v376 = vld [vmem:[%s198 + $0xf8] sm:$0xf]
      %v377 = vld [vmem:[%s198 + $0xfc] sm:$0xf]
      %v378 = vld [vmem:[%s198 + $0x100] sm:$0xf]
      %v379 = vld [vmem:[%s198 + $0x104] sm:$0xf]
      %v380 = vld [vmem:[%s198 + $0x108] sm:$0xf]
      %v381 = vld [vmem:[%s198 + $0x10c] sm:$0xf]
      %v382 = vld [vmem:[%s198 + $0x110] sm:$0xf]
      %v383 = vld [vmem:[%s198 + $0x114] sm:$0xf]
      %v384 = vld [vmem:[%s198 + $0x118] sm:$0xf]
      %v385 = vld [vmem:[%s198 + $0x11c] sm:$0xf]
      %v386 = vld [vmem:[%s198 + $0x120] sm:$0xf]
      %v387 = vld [vmem:[%s198 + $0x124] sm:$0xf]
      %v388 = vld [vmem:[%s198 + $0x128] sm:$0xf]
      %v389 = vld [vmem:[%s198 + $0x12c] sm:$0xf]
      %v390 = vld [vmem:[%s198 + $0x130] sm:$0xf]
      %v391 = vld [vmem:[%s198 + $0x134] sm:$0xf]
      %v392 = vld [vmem:[%s198 + $0x138] sm:$0xf]
      %v393 = vld [vmem:[%s198 + $0x13c] sm:$0xf]
      %v394 = vld [vmem:[%s198 + $0x140] sm:$0xf]
      %v395 = vld [vmem:[%s198 + $0x144] sm:$0xf]
      %v396 = vld [vmem:[%s198 + $0x148] sm:$0xf]
      %v397 = vld [vmem:[%s198 + $0x14c] sm:$0xf]
      %v398 = vld [vmem:[%s198 + $0x150] sm:$0xf]
      %v399 = vld [vmem:[%s198 + $0x154] sm:$0xf]
      %v400 = vld [vmem:[%s198 + $0x158] sm:$0xf]
      %v401 = vld [vmem:[%s198 + $0x15c] sm:$0xf]
      %v402 = vld [vmem:[%s198 + $0x160] sm:$0xf]
      %v403 = vld [vmem:[%s198 + $0x164] sm:$0xf]
      %v404 = vld [vmem:[%s198 + $0x168] sm:$0xf]
      %v405 = vld [vmem:[%s198 + $0x16c] sm:$0xf]
      %v406 = vld [vmem:[%s198 + $0x170] sm:$0xf]
      %v407 = vld [vmem:[%s198 + $0x174] sm:$0xf]
      %v408 = vld [vmem:[%s198 + $0x178] sm:$0xf]
      %v409 = vld [vmem:[%s198 + $0x17c] sm:$0xf]
      %v410 = vld [vmem:[%s198 + $0x180] sm:$0xf]
      %v411 = vld [vmem:[%s198 + $0x184] sm:$0xf]
      %v412 = vld [vmem:[%s1] sm:$0xf]
      %v413 = vld [vmem:[%s1 + $0x4] sm:$0xf]
      %v414 = vld [vmem:[%s1 + $0x8] sm:$0xf]
      %v415 = vld [vmem:[%s1 + $0xc] sm:$0xf]
      %v416 = vld [vmem:[%s2] sm:$0x1]
      %v418 = vlaneseq
      %v419 = vshrl.u32 %v418, 7
      %v420 = vsub.s32 0, %v419
      %v421 = vrot.slane %v416, %v420
      %v521 = vunpack.c.l.b16 %v314
      %v522 = vunpack.c.l.b16 %v315
      %v523 = vunpack.c.l.b16 %v316
      %v524 = vunpack.c.l.b16 %v317
      %v525 = vunpack.c.l.b16 %v318
      %v526 = vunpack.c.l.b16 %v319
      %v527 = vunpack.c.l.b16 %v320
      %v528 = vunpack.c.l.b16 %v321
      %v529 = vunpack.c.l.b16 %v322
      %v530 = vunpack.c.l.b16 %v323
      %v531 = vunpack.c.l.b16 %v324
      %v532 = vunpack.c.l.b16 %v325
      %v533 = vunpack.c.l.b16 %v326
      %v534 = vunpack.c.l.b16 %v327
      %v535 = vunpack.c.l.b16 %v328
      %v536 = vunpack.c.l.b16 %v329
      %v537 = vunpack.c.l.b16 %v330
      %v538 = vunpack.c.l.b16 %v331
      %v539 = vunpack.c.l.b16 %v332
      %v540 = vunpack.c.l.b16 %v333
      %v541 = vunpack.c.l.b16 %v334
      %v542 = vunpack.c.l.b16 %v335
      %v543 = vunpack.c.l.b16 %v336
      %v544 = vunpack.c.l.b16 %v337
      %v545 = vunpack.c.l.b16 %v338
      %v546 = vunpack.c.l.b16 %v339
      %v547 = vunpack.c.l.b16 %v340
      %v548 = vunpack.c.l.b16 %v341
      %v549 = vunpack.c.l.b16 %v342
      %v550 = vunpack.c.l.b16 %v343
      %v551 = vunpack.c.l.b16 %v344
      %v552 = vunpack.c.l.b16 %v345
      %v553 = vunpack.c.l.b16 %v346
      %v554 = vunpack.c.l.b16 %v347
      %v555 = vunpack.c.l.b16 %v348
      %v556 = vunpack.c.l.b16 %v349
      %v557 = vunpack.c.l.b16 %v350
      %v558 = vunpack.c.l.b16 %v351
      %v559 = vunpack.c.l.b16 %v352
      %v560 = vunpack.c.l.b16 %v353
      %v561 = vunpack.c.l.b16 %v354
      %v562 = vunpack.c.l.b16 %v355
      %v563 = vunpack.c.l.b16 %v356
      %v564 = vunpack.c.l.b16 %v357
      %v565 = vunpack.c.l.b16 %v358
      %v566 = vunpack.c.l.b16 %v359
      %v567 = vunpack.c.l.b16 %v360
      %v568 = vunpack.c.l.b16 %v361
      %v569 = vunpack.c.l.b16 %v362
      %v570 = vunpack.c.l.b16 %v363
      %v571 = vunpack.c.l.b16 %v364
      %v572 = vunpack.c.l.b16 %v365
      %v573 = vunpack.c.l.b16 %v366
      %v574 = vunpack.c.l.b16 %v367
      %v575 = vunpack.c.l.b16 %v368
      %v576 = vunpack.c.l.b16 %v369
      %v577 = vunpack.c.l.b16 %v370
      %v578 = vunpack.c.l.b16 %v371
      %v579 = vunpack.c.l.b16 %v372
      %v580 = vunpack.c.l.b16 %v373
      %v581 = vunpack.c.l.b16 %v374
      %v582 = vunpack.c.l.b16 %v375
      %v583 = vunpack.c.l.b16 %v376
      %v584 = vunpack.c.l.b16 %v377
      %v585 = vunpack.c.l.b16 %v378
      %v586 = vunpack.c.l.b16 %v379
      %v587 = vunpack.c.l.b16 %v380
      %v588 = vunpack.c.l.b16 %v381
      %v589 = vunpack.c.l.b16 %v382
      %v590 = vunpack.c.l.b16 %v383
      %v591 = vunpack.c.l.b16 %v384
      %v592 = vunpack.c.l.b16 %v385
      %v593 = vunpack.c.l.b16 %v386
      %v594 = vunpack.c.l.b16 %v387
      %v595 = vunpack.c.l.b16 %v388
      %v596 = vunpack.c.l.b16 %v389
      %v597 = vunpack.c.l.b16 %v390
      %v598 = vunpack.c.l.b16 %v391
      %v599 = vunpack.c.l.b16 %v392
      %v600 = vunpack.c.l.b16 %v393
      %v601 = vunpack.c.l.b16 %v394
      %v602 = vunpack.c.l.b16 %v395
      %v603 = vunpack.c.l.b16 %v396
      %v604 = vunpack.c.l.b16 %v397
      %v605 = vunpack.c.l.b16 %v398
      %v606 = vunpack.c.l.b16 %v399
      %v607 = vunpack.c.l.b16 %v400
      %v608 = vunpack.c.l.b16 %v401
      %v609 = vunpack.c.l.b16 %v402
      %v610 = vunpack.c.l.b16 %v403
      %v611 = vunpack.c.l.b16 %v404
      %v612 = vunpack.c.l.b16 %v405
      %v613 = vunpack.c.l.b16 %v406
      %v614 = vunpack.c.l.b16 %v407
      %v615 = vunpack.c.l.b16 %v408
      %v616 = vunpack.c.l.b16 %v409
      %v617 = vunpack.c.l.b16 %v410
      %v618 = vunpack.c.l.b16 %v411
      %v619 = vpack.c.b16 %v522, %v521
      %v620 = vpack.c.b16 %v524, %v523
      %v621 = vpack.c.b16 %v526, %v525
      %v622 = vpack.c.b16 %v528, %v527
      %v623 = vpack.c.b16 %v530, %v529
      %v624 = vpack.c.b16 %v532, %v531
      %v625 = vpack.c.b16 %v534, %v533
      %v626 = vpack.c.b16 %v536, %v535
      %v627 = vpack.c.b16 %v538, %v537
      %v628 = vpack.c.b16 %v540, %v539
      %v629 = vpack.c.b16 %v542, %v541
      %v630 = vpack.c.b16 %v544, %v543
      %v631 = vpack.c.b16 %v546, %v545
      %v632 = vpack.c.b16 %v548, %v547
      %v633 = vpack.c.b16 %v550, %v549
      %v634 = vpack.c.b16 %v552, %v551
      %v635 = vpack.c.b16 %v554, %v553
      %v636 = vpack.c.b16 %v556, %v555
      %v637 = vpack.c.b16 %v558, %v557
      %v638 = vpack.c.b16 %v560, %v559
      %v639 = vpack.c.b16 %v562, %v561
      %v640 = vpack.c.b16 %v564, %v563
      %v641 = vpack.c.b16 %v566, %v565
      %v642 = vpack.c.b16 %v568, %v567
      %v643 = vpack.c.b16 %v570, %v569
      %v644 = vpack.c.b16 %v572, %v571
      %v645 = vpack.c.b16 %v574, %v573
      %v646 = vpack.c.b16 %v576, %v575
      %v647 = vpack.c.b16 %v578, %v577
      %v648 = vpack.c.b16 %v580, %v579
      %v649 = vpack.c.b16 %v582, %v581
      %v650 = vpack.c.b16 %v584, %v583
      %v651 = vpack.c.b16 %v586, %v585
      %v652 = vpack.c.b16 %v588, %v587
      %v653 = vpack.c.b16 %v590, %v589
      %v654 = vpack.c.b16 %v592, %v591
      %v655 = vpack.c.b16 %v594, %v593
      %v656 = vpack.c.b16 %v596, %v595
      %v657 = vpack.c.b16 %v598, %v597
      %v658 = vpack.c.b16 %v600, %v599
      %v659 = vpack.c.b16 %v602, %v601
      %v660 = vpack.c.b16 %v604, %v603
      %v661 = vpack.c.b16 %v606, %v605
      %v662 = vpack.c.b16 %v608, %v607
      %v663 = vpack.c.b16 %v610, %v609
      %v664 = vpack.c.b16 %v612, %v611
      %v665 = vpack.c.b16 %v614, %v613
      %v666 = vpack.c.b16 %v616, %v615
      %v667 = vpack.c.b16 %v618, %v617
      %v672 = vunpack.c.l.b16 %v412
      %v673 = vunpack.c.l.b16 %v413
      %v674 = vunpack.c.l.b16 %v414
      %v675 = vunpack.c.l.b16 %v415
      %v676 = vpack.c.b16 %v673, %v672
      %v677 = vpack.c.b16 %v675, %v674
      %vm680 = vcmask 261120
      %v682 = vsel %vm680, %v619, 0
      %v685 = vsel %vm680, %v620, 0
      %v688 = vsel %vm680, %v621, 0
      %v691 = vsel %vm680, %v622, 0
      %v694 = vsel %vm680, %v623, 0
      %v697 = vsel %vm680, %v624, 0
      %v700 = vsel %vm680, %v625, 0
      %v703 = vsel %vm680, %v626, 0
      %v706 = vsel %vm680, %v627, 0
      %v709 = vsel %vm680, %v628, 0
      %v712 = vsel %vm680, %v629, 0
      %v715 = vsel %vm680, %v630, 0
      %v718 = vsel %vm680, %v631, 0
      %v721 = vsel %vm680, %v632, 0
      %v724 = vsel %vm680, %v633, 0
      %v727 = vsel %vm680, %v634, 0
      %v730 = vsel %vm680, %v635, 0
      %v733 = vsel %vm680, %v636, 0
      %v736 = vsel %vm680, %v637, 0
      %v739 = vsel %vm680, %v638, 0
      %v742 = vsel %vm680, %v639, 0
      %v745 = vsel %vm680, %v640, 0
      %v748 = vsel %vm680, %v641, 0
      %v751 = vsel %vm680, %v642, 0
      %v754 = vsel %vm680, %v643, 0
      %v757 = vsel %vm680, %v644, 0
      %v760 = vsel %vm680, %v645, 0
      %v763 = vsel %vm680, %v646, 0
      %v766 = vsel %vm680, %v647, 0
      %v769 = vsel %vm680, %v648, 0
      %v772 = vsel %vm680, %v649, 0
      %v775 = vsel %vm680, %v650, 0
      %v778 = vsel %vm680, %v651, 0
      %v781 = vsel %vm680, %v652, 0
      %v784 = vsel %vm680, %v653, 0
      %v787 = vsel %vm680, %v654, 0
      %v790 = vsel %vm680, %v655, 0
      %v793 = vsel %vm680, %v656, 0
      %v796 = vsel %vm680, %v657, 0
      %v799 = vsel %vm680, %v658, 0
      %v802 = vsel %vm680, %v659, 0
      %v805 = vsel %vm680, %v660, 0
      %v808 = vsel %vm680, %v661, 0
      %v811 = vsel %vm680, %v662, 0
      %v814 = vsel %vm680, %v663, 0
      %v817 = vsel %vm680, %v664, 0
      %v820 = vsel %vm680, %v665, 0
      %v823 = vsel %vm680, %v666, 0
      %v826 = vsel %vm680, %v667, 0
      %828 = vmatprep.subr.bf16.mxu0 0
      %829 = vmatpush1.bf16.msra.mxu0 0
      %830 = vmatprep.subr.bf16.mxu0 0
      %831 = vmatpush1.bf16.msra.mxu0 0
      %832 = vmatprep.subr.bf16.mxu0 0
      %833 = vmatpush1.bf16.msra.mxu0 0
      %834 = vmatprep.subr.bf16.mxu0 0
      %835 = vmatpush1.bf16.msra.mxu0 0
      %836 = vmatprep.subr.bf16.mxu0 0
      %837 = vmatpush1.bf16.msra.mxu0 0
      %838 = vmatprep.subr.bf16.mxu0 0
      %839 = vmatpush1.bf16.msra.mxu0 0
      %840 = vmatprep.subr.bf16.mxu0 0
      %841 = vmatpush1.bf16.msra.mxu0 %v677
      %842 = vmatprep.subr.bf16.mxu0 0
      %843 = vmatpush1.bf16.msra.mxu0 %v676
      %844 = vmatprep.subr.bf16.mxu0 0
      %845 = vmatpush2.bf16.msra.mxu0 0
      %846 = vmatprep.subr.bf16.mxu0 0
      %847 = vmatpush2.bf16.msra.mxu0 0
      %848 = vmatprep.subr.bf16.mxu0 0
      %849 = vmatpush2.bf16.msra.mxu0 0
      %850 = vmatprep.subr.bf16.mxu0 0
      %851 = vmatpush2.bf16.msra.mxu0 0
      %852 = vmatprep.subr.bf16.mxu0 0
      %853 = vmatpush2.bf16.msra.mxu0 0
      %854 = vmatprep.subr.bf16.mxu0 0
      %855 = vmatpush2.bf16.msra.mxu0 0
      %856 = vmatprep.subr.bf16.mxu0 0
      %857 = vmatpush2.bf16.msra.mxu0 0
      %858 = vmatprep.subr.bf16.mxu0 0
      %859 = vmatpush2.bf16.msra.mxu0 0
      %860 = vmatprep.mubr.bf16.mxu0 0
      %861 = vmatmul.mubr.bf16.gmra.mxu0 %v682
      %v862 = vpop.f32.mrf.mxu0
      %v863 = vadd.f32 %v421, %v862
      %v864 = vpop.f32.mrf.mxu0
      %v865 = vpop.f32.mrf.mxu0
      %v866 = vadd.f32 %v421, %v865
      %v867 = vpop.f32.mrf.mxu0
      %868 = vmatprep.mubr.bf16.mxu0 0
      %869 = vmatmul.mubr.bf16.gmra.mxu0 %v685
      %v870 = vpop.f32.mrf.mxu0
      %v871 = vadd.f32 %v421, %v870
      %v872 = vpop.f32.mrf.mxu0
      %v873 = vpop.f32.mrf.mxu0
      %v874 = vadd.f32 %v421, %v873
      %v875 = vpop.f32.mrf.mxu0
      %876 = vmatprep.mubr.bf16.mxu0 0
      %877 = vmatmul.mubr.bf16.gmra.mxu0 %v688
      %v878 = vpop.f32.mrf.mxu0
      %v879 = vadd.f32 %v421, %v878
      %v880 = vpop.f32.mrf.mxu0
      %v881 = vpop.f32.mrf.mxu0
      %v882 = vadd.f32 %v421, %v881
      %v883 = vpop.f32.mrf.mxu0
      %884 = vmatprep.mubr.bf16.mxu0 0
      %885 = vmatmul.mubr.bf16.gmra.mxu0 %v691
      %v886 = vpop.f32.mrf.mxu0
      %v887 = vadd.f32 %v421, %v886
      %v888 = vpop.f32.mrf.mxu0
      %v889 = vpop.f32.mrf.mxu0
      %v890 = vadd.f32 %v421, %v889
      %v891 = vpop.f32.mrf.mxu0
      %892 = vmatprep.mubr.bf16.mxu0 0
      %893 = vmatmul.mubr.bf16.gmra.mxu0 %v694
      %v894 = vpop.f32.mrf.mxu0
      %v895 = vadd.f32 %v421, %v894
      %v896 = vpop.f32.mrf.mxu0
      %v897 = vpop.f32.mrf.mxu0
      %v898 = vadd.f32 %v421, %v897
      %v899 = vpop.f32.mrf.mxu0
      %900 = vmatprep.mubr.bf16.mxu0 0
      %901 = vmatmul.mubr.bf16.gmra.mxu0 %v697
      %v902 = vpop.f32.mrf.mxu0
      %v903 = vadd.f32 %v421, %v902
      %v904 = vpop.f32.mrf.mxu0
      %v905 = vpop.f32.mrf.mxu0
      %v906 = vadd.f32 %v421, %v905
      %v907 = vpop.f32.mrf.mxu0
      %908 = vmatprep.mubr.bf16.mxu0 0
      %909 = vmatmul.mubr.bf16.gmra.mxu0 %v700
      %v910 = vpop.f32.mrf.mxu0
      %v911 = vadd.f32 %v421, %v910
      %v912 = vpop.f32.mrf.mxu0
      %v913 = vpop.f32.mrf.mxu0
      %v914 = vadd.f32 %v421, %v913
      %v915 = vpop.f32.mrf.mxu0
      %916 = vmatprep.mubr.bf16.mxu0 0
      %917 = vmatmul.mubr.bf16.gmra.mxu0 %v703
      %v918 = vpop.f32.mrf.mxu0
      %v919 = vadd.f32 %v421, %v918
      %v920 = vpop.f32.mrf.mxu0
      %v921 = vpop.f32.mrf.mxu0
      %v922 = vadd.f32 %v421, %v921
      %v923 = vpop.f32.mrf.mxu0
      %924 = vmatprep.mubr.bf16.mxu0 0
      %925 = vmatmul.mubr.bf16.gmra.mxu0 %v706
      %v926 = vpop.f32.mrf.mxu0
      %v927 = vadd.f32 %v421, %v926
      %v928 = vpop.f32.mrf.mxu0
      %v929 = vpop.f32.mrf.mxu0
      %v930 = vadd.f32 %v421, %v929
      %v931 = vpop.f32.mrf.mxu0
      %932 = vmatprep.mubr.bf16.mxu0 0
      %933 = vmatmul.mubr.bf16.gmra.mxu0 %v709
      %v934 = vpop.f32.mrf.mxu0
      %v935 = vadd.f32 %v421, %v934
      %v936 = vpop.f32.mrf.mxu0
      %v937 = vpop.f32.mrf.mxu0
      %v938 = vadd.f32 %v421, %v937
      %v939 = vpop.f32.mrf.mxu0
      %940 = vmatprep.mubr.bf16.mxu0 0
      %941 = vmatmul.mubr.bf16.gmra.mxu0 %v712
      %v942 = vpop.f32.mrf.mxu0
      %v943 = vadd.f32 %v421, %v942
      %v944 = vpop.f32.mrf.mxu0
      %v945 = vpop.f32.mrf.mxu0
      %v946 = vadd.f32 %v421, %v945
      %v947 = vpop.f32.mrf.mxu0
      %948 = vmatprep.mubr.bf16.mxu0 0
      %949 = vmatmul.mubr.bf16.gmra.mxu0 %v715
      %v950 = vpop.f32.mrf.mxu0
      %v951 = vadd.f32 %v421, %v950
      %v952 = vpop.f32.mrf.mxu0
      %v953 = vpop.f32.mrf.mxu0
      %v954 = vadd.f32 %v421, %v953
      %v955 = vpop.f32.mrf.mxu0
      %956 = vmatprep.mubr.bf16.mxu0 0
      %957 = vmatmul.mubr.bf16.gmra.mxu0 %v718
      %v958 = vpop.f32.mrf.mxu0
      %v959 = vadd.f32 %v421, %v958
      %v960 = vpop.f32.mrf.mxu0
      %v961 = vpop.f32.mrf.mxu0
      %v962 = vadd.f32 %v421, %v961
      %v963 = vpop.f32.mrf.mxu0
      %964 = vmatprep.mubr.bf16.mxu0 0
      %965 = vmatmul.mubr.bf16.gmra.mxu0 %v721
      %v966 = vpop.f32.mrf.mxu0
      %v967 = vadd.f32 %v421, %v966
      %v968 = vpop.f32.mrf.mxu0
      %v969 = vpop.f32.mrf.mxu0
      %v970 = vadd.f32 %v421, %v969
      %v971 = vpop.f32.mrf.mxu0
      %972 = vmatprep.mubr.bf16.mxu0 0
      %973 = vmatmul.mubr.bf16.gmra.mxu0 %v724
      %v974 = vpop.f32.mrf.mxu0
      %v975 = vadd.f32 %v421, %v974
      %v976 = vpop.f32.mrf.mxu0
      %v977 = vpop.f32.mrf.mxu0
      %v978 = vadd.f32 %v421, %v977
      %v979 = vpop.f32.mrf.mxu0
      %980 = vmatprep.mubr.bf16.mxu0 0
      %981 = vmatmul.mubr.bf16.gmra.mxu0 %v727
      %v982 = vpop.f32.mrf.mxu0
      %v983 = vadd.f32 %v421, %v982
      %v984 = vpop.f32.mrf.mxu0
      %v985 = vpop.f32.mrf.mxu0
      %v986 = vadd.f32 %v421, %v985
      %v987 = vpop.f32.mrf.mxu0
      %988 = vmatprep.mubr.bf16.mxu0 0
      %989 = vmatmul.mubr.bf16.gmra.mxu0 %v730
      %v990 = vpop.f32.mrf.mxu0
      %v991 = vadd.f32 %v421, %v990
      %v992 = vpop.f32.mrf.mxu0
      %v993 = vpop.f32.mrf.mxu0
      %v994 = vadd.f32 %v421, %v993
      %v995 = vpop.f32.mrf.mxu0
      %996 = vmatprep.mubr.bf16.mxu0 0
      %997 = vmatmul.mubr.bf16.gmra.mxu0 %v733
      %v998 = vpop.f32.mrf.mxu0
      %v999 = vadd.f32 %v421, %v998
      %v1000 = vpop.f32.mrf.mxu0
      %v1001 = vpop.f32.mrf.mxu0
      %v1002 = vadd.f32 %v421, %v1001
      %v1003 = vpop.f32.mrf.mxu0
      %1004 = vmatprep.mubr.bf16.mxu0 0
      %1005 = vmatmul.mubr.bf16.gmra.mxu0 %v736
      %v1006 = vpop.f32.mrf.mxu0
      %v1007 = vadd.f32 %v421, %v1006
      %v1008 = vpop.f32.mrf.mxu0
      %v1009 = vpop.f32.mrf.mxu0
      %v1010 = vadd.f32 %v421, %v1009
      %v1011 = vpop.f32.mrf.mxu0
      %1012 = vmatprep.mubr.bf16.mxu0 0
      %1013 = vmatmul.mubr.bf16.gmra.mxu0 %v739
      %v1014 = vpop.f32.mrf.mxu0
      %v1015 = vadd.f32 %v421, %v1014
      %v1016 = vpop.f32.mrf.mxu0
      %v1017 = vpop.f32.mrf.mxu0
      %v1018 = vadd.f32 %v421, %v1017
      %v1019 = vpop.f32.mrf.mxu0
      %1020 = vmatprep.mubr.bf16.mxu0 0
      %1021 = vmatmul.mubr.bf16.gmra.mxu0 %v742
      %v1022 = vpop.f32.mrf.mxu0
      %v1023 = vadd.f32 %v421, %v1022
      %v1024 = vpop.f32.mrf.mxu0
      %v1025 = vpop.f32.mrf.mxu0
      %v1026 = vadd.f32 %v421, %v1025
      %v1027 = vpop.f32.mrf.mxu0
      %1028 = vmatprep.mubr.bf16.mxu0 0
      %1029 = vmatmul.mubr.bf16.gmra.mxu0 %v745
      %v1030 = vpop.f32.mrf.mxu0
      %v1031 = vadd.f32 %v421, %v1030
      %v1032 = vpop.f32.mrf.mxu0
      %v1033 = vpop.f32.mrf.mxu0
      %v1034 = vadd.f32 %v421, %v1033
      %v1035 = vpop.f32.mrf.mxu0
      %1036 = vmatprep.mubr.bf16.mxu0 0
      %1037 = vmatmul.mubr.bf16.gmra.mxu0 %v748
      %v1038 = vpop.f32.mrf.mxu0
      %v1039 = vadd.f32 %v421, %v1038
      %v1040 = vpop.f32.mrf.mxu0
      %v1041 = vpop.f32.mrf.mxu0
      %v1042 = vadd.f32 %v421, %v1041
      %v1043 = vpop.f32.mrf.mxu0
      %1044 = vmatprep.mubr.bf16.mxu0 0
      %1045 = vmatmul.mubr.bf16.gmra.mxu0 %v751
      %v1046 = vpop.f32.mrf.mxu0
      %v1047 = vadd.f32 %v421, %v1046
      %v1048 = vpop.f32.mrf.mxu0
      %v1049 = vpop.f32.mrf.mxu0
      %v1050 = vadd.f32 %v421, %v1049
      %v1051 = vpop.f32.mrf.mxu0
      %1052 = vmatprep.mubr.bf16.mxu0 0
      %1053 = vmatmul.mubr.bf16.gmra.mxu0 %v754
      %v1054 = vpop.f32.mrf.mxu0
      %v1055 = vadd.f32 %v421, %v1054
      %v1056 = vpop.f32.mrf.mxu0
      %v1057 = vpop.f32.mrf.mxu0
      %v1058 = vadd.f32 %v421, %v1057
      %v1059 = vpop.f32.mrf.mxu0
      %1060 = vmatprep.mubr.bf16.mxu0 0
      %1061 = vmatmul.mubr.bf16.gmra.mxu0 %v757
      %v1062 = vpop.f32.mrf.mxu0
      %v1063 = vadd.f32 %v421, %v1062
      %v1064 = vpop.f32.mrf.mxu0
      %v1065 = vpop.f32.mrf.mxu0
      %v1066 = vadd.f32 %v421, %v1065
      %v1067 = vpop.f32.mrf.mxu0
      %1068 = vmatprep.mubr.bf16.mxu0 0
      %1069 = vmatmul.mubr.bf16.gmra.mxu0 %v760
      %v1070 = vpop.f32.mrf.mxu0
      %v1071 = vadd.f32 %v421, %v1070
      %v1072 = vpop.f32.mrf.mxu0
      %v1073 = vpop.f32.mrf.mxu0
      %v1074 = vadd.f32 %v421, %v1073
      %v1075 = vpop.f32.mrf.mxu0
      %1076 = vmatprep.mubr.bf16.mxu0 0
      %1077 = vmatmul.mubr.bf16.gmra.mxu0 %v763
      %v1078 = vpop.f32.mrf.mxu0
      %v1079 = vadd.f32 %v421, %v1078
      %v1080 = vpop.f32.mrf.mxu0
      %v1081 = vpop.f32.mrf.mxu0
      %v1082 = vadd.f32 %v421, %v1081
      %v1083 = vpop.f32.mrf.mxu0
      %1084 = vmatprep.mubr.bf16.mxu0 0
      %1085 = vmatmul.mubr.bf16.gmra.mxu0 %v766
      %v1086 = vpop.f32.mrf.mxu0
      %v1087 = vadd.f32 %v421, %v1086
      %v1088 = vpop.f32.mrf.mxu0
      %v1089 = vpop.f32.mrf.mxu0
      %v1090 = vadd.f32 %v421, %v1089
      %v1091 = vpop.f32.mrf.mxu0
      %1092 = vmatprep.mubr.bf16.mxu0 0
      %1093 = vmatmul.mubr.bf16.gmra.mxu0 %v769
      %v1094 = vpop.f32.mrf.mxu0
      %v1095 = vadd.f32 %v421, %v1094
      %v1096 = vpop.f32.mrf.mxu0
      %v1097 = vpop.f32.mrf.mxu0
      %v1098 = vadd.f32 %v421, %v1097
      %v1099 = vpop.f32.mrf.mxu0
      %1100 = vmatprep.mubr.bf16.mxu0 0
      %1101 = vmatmul.mubr.bf16.gmra.mxu0 %v772
      %v1102 = vpop.f32.mrf.mxu0
      %v1103 = vadd.f32 %v421, %v1102
      %v1104 = vpop.f32.mrf.mxu0
      %v1105 = vpop.f32.mrf.mxu0
      %v1106 = vadd.f32 %v421, %v1105
      %v1107 = vpop.f32.mrf.mxu0
      %1108 = vmatprep.mubr.bf16.mxu0 0
      %1109 = vmatmul.mubr.bf16.gmra.mxu0 %v775
      %v1110 = vpop.f32.mrf.mxu0
      %v1111 = vadd.f32 %v421, %v1110
      %v1112 = vpop.f32.mrf.mxu0
      %v1113 = vpop.f32.mrf.mxu0
      %v1114 = vadd.f32 %v421, %v1113
      %v1115 = vpop.f32.mrf.mxu0
      %1116 = vmatprep.mubr.bf16.mxu0 0
      %1117 = vmatmul.mubr.bf16.gmra.mxu0 %v778
      %v1118 = vpop.f32.mrf.mxu0
      %v1119 = vadd.f32 %v421, %v1118
      %v1120 = vpop.f32.mrf.mxu0
      %v1121 = vpop.f32.mrf.mxu0
      %v1122 = vadd.f32 %v421, %v1121
      %v1123 = vpop.f32.mrf.mxu0
      %1124 = vmatprep.mubr.bf16.mxu0 0
      %1125 = vmatmul.mubr.bf16.gmra.mxu0 %v781
      %v1126 = vpop.f32.mrf.mxu0
      %v1127 = vadd.f32 %v421, %v1126
      %v1128 = vpop.f32.mrf.mxu0
      %v1129 = vpop.f32.mrf.mxu0
      %v1130 = vadd.f32 %v421, %v1129
      %v1131 = vpop.f32.mrf.mxu0
      %1132 = vmatprep.mubr.bf16.mxu0 0
      %1133 = vmatmul.mubr.bf16.gmra.mxu0 %v784
      %v1134 = vpop.f32.mrf.mxu0
      %v1135 = vadd.f32 %v421, %v1134
      %v1136 = vpop.f32.mrf.mxu0
      %v1137 = vpop.f32.mrf.mxu0
      %v1138 = vadd.f32 %v421, %v1137
      %v1139 = vpop.f32.mrf.mxu0
      %1140 = vmatprep.mubr.bf16.mxu0 0
      %1141 = vmatmul.mubr.bf16.gmra.mxu0 %v787
      %v1142 = vpop.f32.mrf.mxu0
      %v1143 = vadd.f32 %v421, %v1142
      %v1144 = vpop.f32.mrf.mxu0
      %v1145 = vpop.f32.mrf.mxu0
      %v1146 = vadd.f32 %v421, %v1145
      %v1147 = vpop.f32.mrf.mxu0
      %1148 = vmatprep.mubr.bf16.mxu0 0
      %1149 = vmatmul.mubr.bf16.gmra.mxu0 %v790
      %v1150 = vpop.f32.mrf.mxu0
      %v1151 = vadd.f32 %v421, %v1150
      %v1152 = vpop.f32.mrf.mxu0
      %v1153 = vpop.f32.mrf.mxu0
      %v1154 = vadd.f32 %v421, %v1153
      %v1155 = vpop.f32.mrf.mxu0
      %1156 = vmatprep.mubr.bf16.mxu0 0
      %1157 = vmatmul.mubr.bf16.gmra.mxu0 %v793
      %v1158 = vpop.f32.mrf.mxu0
      %v1159 = vadd.f32 %v421, %v1158
      %v1160 = vpop.f32.mrf.mxu0
      %v1161 = vpop.f32.mrf.mxu0
      %v1162 = vadd.f32 %v421, %v1161
      %v1163 = vpop.f32.mrf.mxu0
      %1164 = vmatprep.mubr.bf16.mxu0 0
      %1165 = vmatmul.mubr.bf16.gmra.mxu0 %v796
      %v1166 = vpop.f32.mrf.mxu0
      %v1167 = vadd.f32 %v421, %v1166
      %v1168 = vpop.f32.mrf.mxu0
      %v1169 = vpop.f32.mrf.mxu0
      %v1170 = vadd.f32 %v421, %v1169
      %v1171 = vpop.f32.mrf.mxu0
      %1172 = vmatprep.mubr.bf16.mxu0 0
      %1173 = vmatmul.mubr.bf16.gmra.mxu0 %v799
      %v1174 = vpop.f32.mrf.mxu0
      %v1175 = vadd.f32 %v421, %v1174
      %v1176 = vpop.f32.mrf.mxu0
      %v1177 = vpop.f32.mrf.mxu0
      %v1178 = vadd.f32 %v421, %v1177
      %v1179 = vpop.f32.mrf.mxu0
      %1180 = vmatprep.mubr.bf16.mxu0 0
      %1181 = vmatmul.mubr.bf16.gmra.mxu0 %v802
      %v1182 = vpop.f32.mrf.mxu0
      %v1183 = vadd.f32 %v421, %v1182
      %v1184 = vpop.f32.mrf.mxu0
      %v1185 = vpop.f32.mrf.mxu0
      %v1186 = vadd.f32 %v421, %v1185
      %v1187 = vpop.f32.mrf.mxu0
      %1188 = vmatprep.mubr.bf16.mxu0 0
      %1189 = vmatmul.mubr.bf16.gmra.mxu0 %v805
      %v1190 = vpop.f32.mrf.mxu0
      %v1191 = vadd.f32 %v421, %v1190
      %v1192 = vpop.f32.mrf.mxu0
      %v1193 = vpop.f32.mrf.mxu0
      %v1194 = vadd.f32 %v421, %v1193
      %v1195 = vpop.f32.mrf.mxu0
      %1196 = vmatprep.mubr.bf16.mxu0 0
      %1197 = vmatmul.mubr.bf16.gmra.mxu0 %v808
      %v1198 = vpop.f32.mrf.mxu0
      %v1199 = vadd.f32 %v421, %v1198
      %v1200 = vpop.f32.mrf.mxu0
      %v1201 = vpop.f32.mrf.mxu0
      %v1202 = vadd.f32 %v421, %v1201
      %v1203 = vpop.f32.mrf.mxu0
      %1204 = vmatprep.mubr.bf16.mxu0 0
      %1205 = vmatmul.mubr.bf16.gmra.mxu0 %v811
      %v1206 = vpop.f32.mrf.mxu0
      %v1207 = vadd.f32 %v421, %v1206
      %v1208 = vpop.f32.mrf.mxu0
      %v1209 = vpop.f32.mrf.mxu0
      %v1210 = vadd.f32 %v421, %v1209
      %v1211 = vpop.f32.mrf.mxu0
      %1212 = vmatprep.mubr.bf16.mxu0 0
      %1213 = vmatmul.mubr.bf16.gmra.mxu0 %v814
      %v1214 = vpop.f32.mrf.mxu0
      %v1215 = vadd.f32 %v421, %v1214
      %v1216 = vpop.f32.mrf.mxu0
      %v1217 = vpop.f32.mrf.mxu0
      %v1218 = vadd.f32 %v421, %v1217
      %v1219 = vpop.f32.mrf.mxu0
      %1220 = vmatprep.mubr.bf16.mxu0 0
      %1221 = vmatmul.mubr.bf16.gmra.mxu0 %v817
      %v1222 = vpop.f32.mrf.mxu0
      %v1223 = vadd.f32 %v421, %v1222
      %v1224 = vpop.f32.mrf.mxu0
      %v1225 = vpop.f32.mrf.mxu0
      %v1226 = vadd.f32 %v421, %v1225
      %v1227 = vpop.f32.mrf.mxu0
      %1228 = vmatprep.mubr.bf16.mxu0 0
      %1229 = vmatmul.mubr.bf16.gmra.mxu0 %v820
      %v1230 = vpop.f32.mrf.mxu0
      %v1231 = vadd.f32 %v421, %v1230
      %v1232 = vpop.f32.mrf.mxu0
      %v1233 = vpop.f32.mrf.mxu0
      %v1234 = vadd.f32 %v421, %v1233
      %v1235 = vpop.f32.mrf.mxu0
      %1236 = vmatprep.mubr.bf16.mxu0 0
      %1237 = vmatmul.mubr.bf16.gmra.mxu0 %v823
      %v1238 = vpop.f32.mrf.mxu0
      %v1239 = vadd.f32 %v421, %v1238
      %v1240 = vpop.f32.mrf.mxu0
      %v1241 = vpop.f32.mrf.mxu0
      %v1242 = vadd.f32 %v421, %v1241
      %v1243 = vpop.f32.mrf.mxu0
      %1244 = vmatprep.mubr.bf16.mxu0 0
      %1245 = vmatmul.mubr.bf16.gmra.mxu0 %v826
      %v1246 = vpop.f32.mrf.mxu0
      %v1247 = vadd.f32 %v421, %v1246
      %v1248 = vpop.f32.mrf.mxu0
      %v1249 = vpop.f32.mrf.mxu0
      %v1250 = vadd.f32 %v421, %v1249
      %v1251 = vpop.f32.mrf.mxu0
      %1252 = vdwg.mxu0
      %v1253 = vld [vmem:[#allocation2] sm:$0xff]
      %v1254 = vld [vmem:[#allocation2 + $0x8] sm:$0xff]
      %v1255 = vld [vmem:[#allocation2 + $0x10] sm:$0xff]
      %v1256 = vld [vmem:[#allocation2 + $0x18] sm:$0xff]
      %v1257 = vld [vmem:[#allocation2 + $0x20] sm:$0xff]
      %v1258 = vld [vmem:[#allocation2 + $0x28] sm:$0xff]
      %v1259 = vld [vmem:[#allocation2 + $0x30] sm:$0xff]
      %v1260 = vld [vmem:[#allocation2 + $0x38] sm:$0xff]
      %v1261 = vld [vmem:[#allocation2 + $0x40] sm:$0xff]
      %v1262 = vld [vmem:[#allocation2 + $0x48] sm:$0xff]
      %v1263 = vld [vmem:[#allocation2 + $0x50] sm:$0xff]
      %v1264 = vld [vmem:[#allocation2 + $0x58] sm:$0xff]
      %v1265 = vld [vmem:[#allocation2 + $0x60] sm:$0xff]
      %v1266 = vld [vmem:[#allocation2 + $0x68] sm:$0xff]
      %v1267 = vld [vmem:[#allocation2 + $0x70] sm:$0xff]
      %v1268 = vld [vmem:[#allocation2 + $0x78] sm:$0xff]
      %v1269 = vld [vmem:[#allocation2 + $0x80] sm:$0xff]
      %v1270 = vld [vmem:[#allocation2 + $0x88] sm:$0xff]
      %v1271 = vld [vmem:[#allocation2 + $0x90] sm:$0xff]
      %v1272 = vld [vmem:[#allocation2 + $0x98] sm:$0xff]
      %v1273 = vld [vmem:[#allocation2 + $0xa0] sm:$0xff]
      %v1274 = vld [vmem:[#allocation2 + $0xa8] sm:$0xff]
      %v1275 = vld [vmem:[#allocation2 + $0xb0] sm:$0xff]
      %v1276 = vld [vmem:[#allocation2 + $0xb8] sm:$0xff]
      %v1277 = vld [vmem:[#allocation2 + $0xc0] sm:$0xff]
      %v1278 = vld [vmem:[#allocation2 + $0xc8] sm:$0xff]
      %v1279 = vld [vmem:[#allocation2 + $0xd0] sm:$0xff]
      %v1280 = vld [vmem:[#allocation2 + $0xd8] sm:$0xff]
      %v1281 = vld [vmem:[#allocation2 + $0xe0] sm:$0xff]
      %v1282 = vld [vmem:[#allocation2 + $0xe8] sm:$0xff]
      %v1283 = vld [vmem:[#allocation2 + $0xf0] sm:$0xff]
      %v1284 = vld [vmem:[#allocation2 + $0xf8] sm:$0xff]
      %v1285 = vld [vmem:[#allocation2 + $0x100] sm:$0xff]
      %v1286 = vld [vmem:[#allocation2 + $0x108] sm:$0xff]
      %v1287 = vld [vmem:[#allocation2 + $0x110] sm:$0xff]
      %v1288 = vld [vmem:[#allocation2 + $0x118] sm:$0xff]
      %v1289 = vld [vmem:[#allocation2 + $0x120] sm:$0xff]
      %v1290 = vld [vmem:[#allocation2 + $0x128] sm:$0xff]
      %v1291 = vld [vmem:[#allocation2 + $0x130] sm:$0xff]
      %v1292 = vld [vmem:[#allocation2 + $0x138] sm:$0xff]
      %v1293 = vld [vmem:[#allocation2 + $0x140] sm:$0xff]
      %v1294 = vld [vmem:[#allocation2 + $0x148] sm:$0xff]
      %v1295 = vld [vmem:[#allocation2 + $0x150] sm:$0xff]
      %v1296 = vld [vmem:[#allocation2 + $0x158] sm:$0xff]
      %v1297 = vld [vmem:[#allocation2 + $0x160] sm:$0xff]
      %v1298 = vld [vmem:[#allocation2 + $0x168] sm:$0xff]
      %v1299 = vld [vmem:[#allocation2 + $0x170] sm:$0xff]
      %v1300 = vld [vmem:[#allocation2 + $0x178] sm:$0xff]
      %v1301 = vld [vmem:[#allocation2 + $0x180] sm:$0xff]
      %v1302 = vld [vmem:[#allocation2 + $0x188] sm:$0xff]
      %v1303 = vld [vmem:[#allocation2 + $0x190] sm:$0xff]
      %v1304 = vld [vmem:[#allocation2 + $0x198] sm:$0xff]
      %v1305 = vld [vmem:[#allocation2 + $0x1a0] sm:$0xff]
      %v1306 = vld [vmem:[#allocation2 + $0x1a8] sm:$0xff]
      %v1307 = vld [vmem:[#allocation2 + $0x1b0] sm:$0xff]
      %v1308 = vld [vmem:[#allocation2 + $0x1b8] sm:$0xff]
      %v1309 = vld [vmem:[#allocation2 + $0x1c0] sm:$0xff]
      %v1310 = vld [vmem:[#allocation2 + $0x1c8] sm:$0xff]
      %v1311 = vld [vmem:[#allocation2 + $0x1d0] sm:$0xff]
      %v1312 = vld [vmem:[#allocation2 + $0x1d8] sm:$0xff]
      %v1313 = vld [vmem:[#allocation2 + $0x1e0] sm:$0xff]
      %v1314 = vld [vmem:[#allocation2 + $0x1e8] sm:$0xff]
      %v1315 = vld [vmem:[#allocation2 + $0x1f0] sm:$0xff]
      %v1316 = vld [vmem:[#allocation2 + $0x1f8] sm:$0xff]
      %v1317 = vld [vmem:[#allocation2 + $0x200] sm:$0xff]
      %v1318 = vld [vmem:[#allocation2 + $0x208] sm:$0xff]
      %v1319 = vld [vmem:[#allocation2 + $0x210] sm:$0xff]
      %v1320 = vld [vmem:[#allocation2 + $0x218] sm:$0xff]
      %v1321 = vld [vmem:[#allocation2 + $0x220] sm:$0xff]
      %v1322 = vld [vmem:[#allocation2 + $0x228] sm:$0xff]
      %v1323 = vld [vmem:[#allocation2 + $0x230] sm:$0xff]
      %v1324 = vld [vmem:[#allocation2 + $0x238] sm:$0xff]
      %v1325 = vld [vmem:[#allocation2 + $0x240] sm:$0xff]
      %v1326 = vld [vmem:[#allocation2 + $0x248] sm:$0xff]
      %v1327 = vld [vmem:[#allocation2 + $0x250] sm:$0xff]
      %v1328 = vld [vmem:[#allocation2 + $0x258] sm:$0xff]
      %v1329 = vld [vmem:[#allocation2 + $0x260] sm:$0xff]
      %v1330 = vld [vmem:[#allocation2 + $0x268] sm:$0xff]
      %v1331 = vld [vmem:[#allocation2 + $0x270] sm:$0xff]
      %v1332 = vld [vmem:[#allocation2 + $0x278] sm:$0xff]
      %v1333 = vld [vmem:[#allocation2 + $0x280] sm:$0xff]
      %v1334 = vld [vmem:[#allocation2 + $0x288] sm:$0xff]
      %v1335 = vld [vmem:[#allocation2 + $0x290] sm:$0xff]
      %v1336 = vld [vmem:[#allocation2 + $0x298] sm:$0xff]
      %v1337 = vld [vmem:[#allocation2 + $0x2a0] sm:$0xff]
      %v1338 = vld [vmem:[#allocation2 + $0x2a8] sm:$0xff]
      %v1339 = vld [vmem:[#allocation2 + $0x2b0] sm:$0xff]
      %v1340 = vld [vmem:[#allocation2 + $0x2b8] sm:$0xff]
      %v1341 = vld [vmem:[#allocation2 + $0x2c0] sm:$0xff]
      %v1342 = vld [vmem:[#allocation2 + $0x2c8] sm:$0xff]
      %v1343 = vld [vmem:[#allocation2 + $0x2d0] sm:$0xff]
      %v1344 = vld [vmem:[#allocation2 + $0x2d8] sm:$0xff]
      %v1345 = vld [vmem:[#allocation2 + $0x2e0] sm:$0xff]
      %v1346 = vld [vmem:[#allocation2 + $0x2e8] sm:$0xff]
      %v1347 = vld [vmem:[#allocation2 + $0x2f0] sm:$0xff]
      %v1348 = vld [vmem:[#allocation2 + $0x2f8] sm:$0xff]
      %v1349 = vld [vmem:[#allocation2 + $0x300] sm:$0xff]
      %v1350 = vld [vmem:[#allocation2 + $0x308] sm:$0xff]
      %v1351 = vmul.f32 %v1253, 0.5
      %v1352 = vmul.f32 %v1254, 0.5
      %v1353 = vmul.f32 %v1255, 0.5
      %v1354 = vmul.f32 %v1256, 0.5
      %v1355 = vmul.f32 %v1257, 0.5
      %v1356 = vmul.f32 %v1258, 0.5
      %v1357 = vmul.f32 %v1259, 0.5
      %v1358 = vmul.f32 %v1260, 0.5
      %v1359 = vmul.f32 %v1261, 0.5
      %v1360 = vmul.f32 %v1262, 0.5
      %v1361 = vmul.f32 %v1263, 0.5
      %v1362 = vmul.f32 %v1264, 0.5
      %v1363 = vmul.f32 %v1265, 0.5
      %v1364 = vmul.f32 %v1266, 0.5
      %v1365 = vmul.f32 %v1267, 0.5
      %v1366 = vmul.f32 %v1268, 0.5
      %v1367 = vmul.f32 %v1269, 0.5
      %v1368 = vmul.f32 %v1270, 0.5
      %v1369 = vmul.f32 %v1271, 0.5
      %v1370 = vmul.f32 %v1272, 0.5
      %v1371 = vmul.f32 %v1273, 0.5
      %v1372 = vmul.f32 %v1274, 0.5
      %v1373 = vmul.f32 %v1275, 0.5
      %v1374 = vmul.f32 %v1276, 0.5
      %v1375 = vmul.f32 %v1277, 0.5
      %v1376 = vmul.f32 %v1278, 0.5
      %v1377 = vmul.f32 %v1279, 0.5
      %v1378 = vmul.f32 %v1280, 0.5
      %v1379 = vmul.f32 %v1281, 0.5
      %v1380 = vmul.f32 %v1282, 0.5
      %v1381 = vmul.f32 %v1283, 0.5
      %v1382 = vmul.f32 %v1284, 0.5
      %v1383 = vmul.f32 %v1285, 0.5
      %v1384 = vmul.f32 %v1286, 0.5
      %v1385 = vmul.f32 %v1287, 0.5
      %v1386 = vmul.f32 %v1288, 0.5
      %v1387 = vmul.f32 %v1289, 0.5
      %v1388 = vmul.f32 %v1290, 0.5
      %v1389 = vmul.f32 %v1291, 0.5
      %v1390 = vmul.f32 %v1292, 0.5
      %v1391 = vmul.f32 %v1293, 0.5
      %v1392 = vmul.f32 %v1294, 0.5
      %v1393 = vmul.f32 %v1295, 0.5
      %v1394 = vmul.f32 %v1296, 0.5
      %v1395 = vmul.f32 %v1297, 0.5
      %v1396 = vmul.f32 %v1298, 0.5
      %v1397 = vmul.f32 %v1299, 0.5
      %v1398 = vmul.f32 %v1300, 0.5
      %v1399 = vmul.f32 %v1301, 0.5
      %v1400 = vmul.f32 %v1302, 0.5
      %v1401 = vmul.f32 %v1303, 0.5
      %v1402 = vmul.f32 %v1304, 0.5
      %v1403 = vmul.f32 %v1305, 0.5
      %v1404 = vmul.f32 %v1306, 0.5
      %v1405 = vmul.f32 %v1307, 0.5
      %v1406 = vmul.f32 %v1308, 0.5
      %v1407 = vmul.f32 %v1309, 0.5
      %v1408 = vmul.f32 %v1310, 0.5
      %v1409 = vmul.f32 %v1311, 0.5
      %v1410 = vmul.f32 %v1312, 0.5
      %v1411 = vmul.f32 %v1313, 0.5
      %v1412 = vmul.f32 %v1314, 0.5
      %v1413 = vmul.f32 %v1315, 0.5
      %v1414 = vmul.f32 %v1316, 0.5
      %v1415 = vmul.f32 %v1317, 0.5
      %v1416 = vmul.f32 %v1318, 0.5
      %v1417 = vmul.f32 %v1319, 0.5
      %v1418 = vmul.f32 %v1320, 0.5
      %v1419 = vmul.f32 %v1321, 0.5
      %v1420 = vmul.f32 %v1322, 0.5
      %v1421 = vmul.f32 %v1323, 0.5
      %v1422 = vmul.f32 %v1324, 0.5
      %v1423 = vmul.f32 %v1325, 0.5
      %v1424 = vmul.f32 %v1326, 0.5
      %v1425 = vmul.f32 %v1327, 0.5
      %v1426 = vmul.f32 %v1328, 0.5
      %v1427 = vmul.f32 %v1329, 0.5
      %v1428 = vmul.f32 %v1330, 0.5
      %v1429 = vmul.f32 %v1331, 0.5
      %v1430 = vmul.f32 %v1332, 0.5
      %v1431 = vmul.f32 %v1333, 0.5
      %v1432 = vmul.f32 %v1334, 0.5
      %v1433 = vmul.f32 %v1335, 0.5
      %v1434 = vmul.f32 %v1336, 0.5
      %v1435 = vmul.f32 %v1337, 0.5
      %v1436 = vmul.f32 %v1338, 0.5
      %v1437 = vmul.f32 %v1339, 0.5
      %v1438 = vmul.f32 %v1340, 0.5
      %v1439 = vmul.f32 %v1341, 0.5
      %v1440 = vmul.f32 %v1342, 0.5
      %v1441 = vmul.f32 %v1343, 0.5
      %v1442 = vmul.f32 %v1344, 0.5
      %v1443 = vmul.f32 %v1345, 0.5
      %v1444 = vmul.f32 %v1346, 0.5
      %v1445 = vmul.f32 %v1347, 0.5
      %v1446 = vmul.f32 %v1348, 0.5
      %v1447 = vmul.f32 %v1349, 0.5
      %v1448 = vmul.f32 %v1350, 0.5
      %v1449 = vadd.f32 %v1351, %v863
      %v1450 = vadd.f32 %v1352, %v866
      %v1451 = vadd.f32 %v1353, %v871
      %v1452 = vadd.f32 %v1354, %v874
      %v1453 = vadd.f32 %v1355, %v879
      %v1454 = vadd.f32 %v1356, %v882
      %v1455 = vadd.f32 %v1357, %v887
      %v1456 = vadd.f32 %v1358, %v890
      %v1457 = vadd.f32 %v1359, %v895
      %v1458 = vadd.f32 %v1360, %v898
      %v1459 = vadd.f32 %v1361, %v903
      %v1460 = vadd.f32 %v1362, %v906
      %v1461 = vadd.f32 %v1363, %v911
      %v1462 = vadd.f32 %v1364, %v914
      %v1463 = vadd.f32 %v1365, %v919
      %v1464 = vadd.f32 %v1366, %v922
      %v1465 = vadd.f32 %v1367, %v927
      %v1466 = vadd.f32 %v1368, %v930
      %v1467 = vadd.f32 %v1369, %v935
      %v1468 = vadd.f32 %v1370, %v938
      %v1469 = vadd.f32 %v1371, %v943
      %v1470 = vadd.f32 %v1372, %v946
      %v1471 = vadd.f32 %v1373, %v951
      %v1472 = vadd.f32 %v1374, %v954
      %v1473 = vadd.f32 %v1375, %v959
      %v1474 = vadd.f32 %v1376, %v962
      %v1475 = vadd.f32 %v1377, %v967
      %v1476 = vadd.f32 %v1378, %v970
      %v1477 = vadd.f32 %v1379, %v975
      %v1478 = vadd.f32 %v1380, %v978
      %v1479 = vadd.f32 %v1381, %v983
      %v1480 = vadd.f32 %v1382, %v986
      %v1481 = vadd.f32 %v1383, %v991
      %v1482 = vadd.f32 %v1384, %v994
      %v1483 = vadd.f32 %v1385, %v999
      %v1484 = vadd.f32 %v1386, %v1002
      %v1485 = vadd.f32 %v1387, %v1007
      %v1486 = vadd.f32 %v1388, %v1010
      %v1487 = vadd.f32 %v1389, %v1015
      %v1488 = vadd.f32 %v1390, %v1018
      %v1489 = vadd.f32 %v1391, %v1023
      %v1490 = vadd.f32 %v1392, %v1026
      %v1491 = vadd.f32 %v1393, %v1031
      %v1492 = vadd.f32 %v1394, %v1034
      %v1493 = vadd.f32 %v1395, %v1039
      %v1494 = vadd.f32 %v1396, %v1042
      %v1495 = vadd.f32 %v1397, %v1047
      %v1496 = vadd.f32 %v1398, %v1050
      %v1497 = vadd.f32 %v1399, %v1055
      %v1498 = vadd.f32 %v1400, %v1058
      %v1499 = vadd.f32 %v1401, %v1063
      %v1500 = vadd.f32 %v1402, %v1066
      %v1501 = vadd.f32 %v1403, %v1071
      %v1502 = vadd.f32 %v1404, %v1074
      %v1503 = vadd.f32 %v1405, %v1079
      %v1504 = vadd.f32 %v1406, %v1082
      %v1505 = vadd.f32 %v1407, %v1087
      %v1506 = vadd.f32 %v1408, %v1090
      %v1507 = vadd.f32 %v1409, %v1095
      %v1508 = vadd.f32 %v1410, %v1098
      %v1509 = vadd.f32 %v1411, %v1103
      %v1510 = vadd.f32 %v1412, %v1106
      %v1511 = vadd.f32 %v1413, %v1111
      %v1512 = vadd.f32 %v1414, %v1114
      %v1513 = vadd.f32 %v1415, %v1119
      %v1514 = vadd.f32 %v1416, %v1122
      %v1515 = vadd.f32 %v1417, %v1127
      %v1516 = vadd.f32 %v1418, %v1130
      %v1517 = vadd.f32 %v1419, %v1135
      %v1518 = vadd.f32 %v1420, %v1138
      %v1519 = vadd.f32 %v1421, %v1143
      %v1520 = vadd.f32 %v1422, %v1146
      %v1521 = vadd.f32 %v1423, %v1151
      %v1522 = vadd.f32 %v1424, %v1154
      %v1523 = vadd.f32 %v1425, %v1159
      %v1524 = vadd.f32 %v1426, %v1162
      %v1525 = vadd.f32 %v1427, %v1167
      %v1526 = vadd.f32 %v1428, %v1170
      %v1527 = vadd.f32 %v1429, %v1175
      %v1528 = vadd.f32 %v1430, %v1178
      %v1529 = vadd.f32 %v1431, %v1183
      %v1530 = vadd.f32 %v1432, %v1186
      %v1531 = vadd.f32 %v1433, %v1191
      %v1532 = vadd.f32 %v1434, %v1194
      %v1533 = vadd.f32 %v1435, %v1199
      %v1534 = vadd.f32 %v1436, %v1202
      %v1535 = vadd.f32 %v1437, %v1207
      %v1536 = vadd.f32 %v1438, %v1210
      %v1537 = vadd.f32 %v1439, %v1215
      %v1538 = vadd.f32 %v1440, %v1218
      %v1539 = vadd.f32 %v1441, %v1223
      %v1540 = vadd.f32 %v1442, %v1226
      %v1541 = vadd.f32 %v1443, %v1231
      %v1542 = vadd.f32 %v1444, %v1234
      %v1543 = vadd.f32 %v1445, %v1239
      %v1544 = vadd.f32 %v1446, %v1242
      %v1545 = vadd.f32 %v1447, %v1247
      %v1546 = vadd.f32 %v1448, %v1250
      %vm1547 = vcmp.ge.f32.partialorder %v1449, 1.0
      %vm1548 = vcmp.ge.f32.partialorder %v1450, 1.0
      %vm1549 = vcmp.ge.f32.partialorder %v1451, 1.0
      %vm1550 = vcmp.ge.f32.partialorder %v1452, 1.0
      %vm1551 = vcmp.ge.f32.partialorder %v1453, 1.0
      %vm1552 = vcmp.ge.f32.partialorder %v1454, 1.0
      %vm1553 = vcmp.ge.f32.partialorder %v1455, 1.0
      %vm1554 = vcmp.ge.f32.partialorder %v1456, 1.0
      %vm1555 = vcmp.ge.f32.partialorder %v1457, 1.0
      %vm1556 = vcmp.ge.f32.partialorder %v1458, 1.0
      %vm1557 = vcmp.ge.f32.partialorder %v1459, 1.0
      %vm1558 = vcmp.ge.f32.partialorder %v1460, 1.0
      %vm1559 = vcmp.ge.f32.partialorder %v1461, 1.0
      %vm1560 = vcmp.ge.f32.partialorder %v1462, 1.0
      %vm1561 = vcmp.ge.f32.partialorder %v1463, 1.0
      %vm1562 = vcmp.ge.f32.partialorder %v1464, 1.0
      %vm1563 = vcmp.ge.f32.partialorder %v1465, 1.0
      %vm1564 = vcmp.ge.f32.partialorder %v1466, 1.0
      %vm1565 = vcmp.ge.f32.partialorder %v1467, 1.0
      %vm1566 = vcmp.ge.f32.partialorder %v1468, 1.0
      %vm1567 = vcmp.ge.f32.partialorder %v1469, 1.0
      %vm1568 = vcmp.ge.f32.partialorder %v1470, 1.0
      %vm1569 = vcmp.ge.f32.partialorder %v1471, 1.0
      %vm1570 = vcmp.ge.f32.partialorder %v1472, 1.0
      %vm1571 = vcmp.ge.f32.partialorder %v1473, 1.0
      %vm1572 = vcmp.ge.f32.partialorder %v1474, 1.0
      %vm1573 = vcmp.ge.f32.partialorder %v1475, 1.0
      %vm1574 = vcmp.ge.f32.partialorder %v1476, 1.0
      %vm1575 = vcmp.ge.f32.partialorder %v1477, 1.0
      %vm1576 = vcmp.ge.f32.partialorder %v1478, 1.0
      %vm1577 = vcmp.ge.f32.partialorder %v1479, 1.0
      %vm1578 = vcmp.ge.f32.partialorder %v1480, 1.0
      %vm1579 = vcmp.ge.f32.partialorder %v1481, 1.0
      %vm1580 = vcmp.ge.f32.partialorder %v1482, 1.0
      %vm1581 = vcmp.ge.f32.partialorder %v1483, 1.0
      %vm1582 = vcmp.ge.f32.partialorder %v1484, 1.0
      %vm1583 = vcmp.ge.f32.partialorder %v1485, 1.0
      %vm1584 = vcmp.ge.f32.partialorder %v1486, 1.0
      %vm1585 = vcmp.ge.f32.partialorder %v1487, 1.0
      %vm1586 = vcmp.ge.f32.partialorder %v1488, 1.0
      %vm1587 = vcmp.ge.f32.partialorder %v1489, 1.0
      %vm1588 = vcmp.ge.f32.partialorder %v1490, 1.0
      %vm1589 = vcmp.ge.f32.partialorder %v1491, 1.0
      %vm1590 = vcmp.ge.f32.partialorder %v1492, 1.0
      %vm1591 = vcmp.ge.f32.partialorder %v1493, 1.0
      %vm1592 = vcmp.ge.f32.partialorder %v1494, 1.0
      %vm1593 = vcmp.ge.f32.partialorder %v1495, 1.0
      %vm1594 = vcmp.ge.f32.partialorder %v1496, 1.0
      %vm1595 = vcmp.ge.f32.partialorder %v1497, 1.0
      %vm1596 = vcmp.ge.f32.partialorder %v1498, 1.0
      %vm1597 = vcmp.ge.f32.partialorder %v1499, 1.0
      %vm1598 = vcmp.ge.f32.partialorder %v1500, 1.0
      %vm1599 = vcmp.ge.f32.partialorder %v1501, 1.0
      %vm1600 = vcmp.ge.f32.partialorder %v1502, 1.0
      %vm1601 = vcmp.ge.f32.partialorder %v1503, 1.0
      %vm1602 = vcmp.ge.f32.partialorder %v1504, 1.0
      %vm1603 = vcmp.ge.f32.partialorder %v1505, 1.0
      %vm1604 = vcmp.ge.f32.partialorder %v1506, 1.0
      %vm1605 = vcmp.ge.f32.partialorder %v1507, 1.0
      %vm1606 = vcmp.ge.f32.partialorder %v1508, 1.0
      %vm1607 = vcmp.ge.f32.partialorder %v1509, 1.0
      %vm1608 = vcmp.ge.f32.partialorder %v1510, 1.0
      %vm1609 = vcmp.ge.f32.partialorder %v1511, 1.0
      %vm1610 = vcmp.ge.f32.partialorder %v1512, 1.0
      %vm1611 = vcmp.ge.f32.partialorder %v1513, 1.0
      %vm1612 = vcmp.ge.f32.partialorder %v1514, 1.0
      %vm1613 = vcmp.ge.f32.partialorder %v1515, 1.0
      %vm1614 = vcmp.ge.f32.partialorder %v1516, 1.0
      %vm1615 = vcmp.ge.f32.partialorder %v1517, 1.0
      %vm1616 = vcmp.ge.f32.partialorder %v1518, 1.0
      %vm1617 = vcmp.ge.f32.partialorder %v1519, 1.0
      %vm1618 = vcmp.ge.f32.partialorder %v1520, 1.0
      %vm1619 = vcmp.ge.f32.partialorder %v1521, 1.0
      %vm1620 = vcmp.ge.f32.partialorder %v1522, 1.0
      %vm1621 = vcmp.ge.f32.partialorder %v1523, 1.0
      %vm1622 = vcmp.ge.f32.partialorder %v1524, 1.0
      %vm1623 = vcmp.ge.f32.partialorder %v1525, 1.0
      %vm1624 = vcmp.ge.f32.partialorder %v1526, 1.0
      %vm1625 = vcmp.ge.f32.partialorder %v1527, 1.0
      %vm1626 = vcmp.ge.f32.partialorder %v1528, 1.0
      %vm1627 = vcmp.ge.f32.partialorder %v1529, 1.0
      %vm1628 = vcmp.ge.f32.partialorder %v1530, 1.0
      %vm1629 = vcmp.ge.f32.partialorder %v1531, 1.0
      %vm1630 = vcmp.ge.f32.partialorder %v1532, 1.0
      %vm1631 = vcmp.ge.f32.partialorder %v1533, 1.0
      %vm1632 = vcmp.ge.f32.partialorder %v1534, 1.0
      %vm1633 = vcmp.ge.f32.partialorder %v1535, 1.0
      %vm1634 = vcmp.ge.f32.partialorder %v1536, 1.0
      %vm1635 = vcmp.ge.f32.partialorder %v1537, 1.0
      %vm1636 = vcmp.ge.f32.partialorder %v1538, 1.0
      %vm1637 = vcmp.ge.f32.partialorder %v1539, 1.0
      %vm1638 = vcmp.ge.f32.partialorder %v1540, 1.0
      %vm1639 = vcmp.ge.f32.partialorder %v1541, 1.0
      %vm1640 = vcmp.ge.f32.partialorder %v1542, 1.0
      %vm1641 = vcmp.ge.f32.partialorder %v1543, 1.0
      %vm1642 = vcmp.ge.f32.partialorder %v1544, 1.0
      %vm1643 = vcmp.ge.f32.partialorder %v1545, 1.0
      %vm1644 = vcmp.ge.f32.partialorder %v1546, 1.0
      %v1645 = vsel %vm1547, 1, 0
      %v1646 = vsel %vm1548, 1, 0
      %v1647 = vsel %vm1549, 1, 0
      %v1648 = vsel %vm1550, 1, 0
      %v1649 = vsel %vm1551, 1, 0
      %v1650 = vsel %vm1552, 1, 0
      %v1651 = vsel %vm1553, 1, 0
      %v1652 = vsel %vm1554, 1, 0
      %v1653 = vsel %vm1555, 1, 0
      %v1654 = vsel %vm1556, 1, 0
      %v1655 = vsel %vm1557, 1, 0
      %v1656 = vsel %vm1558, 1, 0
      %v1657 = vsel %vm1559, 1, 0
      %v1658 = vsel %vm1560, 1, 0
      %v1659 = vsel %vm1561, 1, 0
      %v1660 = vsel %vm1562, 1, 0
      %v1661 = vsel %vm1563, 1, 0
      %v1662 = vsel %vm1564, 1, 0
      %v1663 = vsel %vm1565, 1, 0
      %v1664 = vsel %vm1566, 1, 0
      %v1665 = vsel %vm1567, 1, 0
      %v1666 = vsel %vm1568, 1, 0
      %v1667 = vsel %vm1569, 1, 0
      %v1668 = vsel %vm1570, 1, 0
      %v1669 = vsel %vm1571, 1, 0
      %v1670 = vsel %vm1572, 1, 0
      %v1671 = vsel %vm1573, 1, 0
      %v1672 = vsel %vm1574, 1, 0
      %v1673 = vsel %vm1575, 1, 0
      %v1674 = vsel %vm1576, 1, 0
      %v1675 = vsel %vm1577, 1, 0
      %v1676 = vsel %vm1578, 1, 0
      %v1677 = vsel %vm1579, 1, 0
      %v1678 = vsel %vm1580, 1, 0
      %v1679 = vsel %vm1581, 1, 0
      %v1680 = vsel %vm1582, 1, 0
      %v1681 = vsel %vm1583, 1, 0
      %v1682 = vsel %vm1584, 1, 0
      %v1683 = vsel %vm1585, 1, 0
      %v1684 = vsel %vm1586, 1, 0
      %v1685 = vsel %vm1587, 1, 0
      %v1686 = vsel %vm1588, 1, 0
      %v1687 = vsel %vm1589, 1, 0
      %v1688 = vsel %vm1590, 1, 0
      %v1689 = vsel %vm1591, 1, 0
      %v1690 = vsel %vm1592, 1, 0
      %v1691 = vsel %vm1593, 1, 0
      %v1692 = vsel %vm1594, 1, 0
      %v1693 = vsel %vm1595, 1, 0
      %v1694 = vsel %vm1596, 1, 0
      %v1695 = vsel %vm1597, 1, 0
      %v1696 = vsel %vm1598, 1, 0
      %v1697 = vsel %vm1599, 1, 0
      %v1698 = vsel %vm1600, 1, 0
      %v1699 = vsel %vm1601, 1, 0
      %v1700 = vsel %vm1602, 1, 0
      %v1701 = vsel %vm1603, 1, 0
      %v1702 = vsel %vm1604, 1, 0
      %v1703 = vsel %vm1605, 1, 0
      %v1704 = vsel %vm1606, 1, 0
      %v1705 = vsel %vm1607, 1, 0
      %v1706 = vsel %vm1608, 1, 0
      %v1707 = vsel %vm1609, 1, 0
      %v1708 = vsel %vm1610, 1, 0
      %v1709 = vsel %vm1611, 1, 0
      %v1710 = vsel %vm1612, 1, 0
      %v1711 = vsel %vm1613, 1, 0
      %v1712 = vsel %vm1614, 1, 0
      %v1713 = vsel %vm1615, 1, 0
      %v1714 = vsel %vm1616, 1, 0
      %v1715 = vsel %vm1617, 1, 0
      %v1716 = vsel %vm1618, 1, 0
      %v1717 = vsel %vm1619, 1, 0
      %v1718 = vsel %vm1620, 1, 0
      %v1719 = vsel %vm1621, 1, 0
      %v1720 = vsel %vm1622, 1, 0
      %v1721 = vsel %vm1623, 1, 0
      %v1722 = vsel %vm1624, 1, 0
      %v1723 = vsel %vm1625, 1, 0
      %v1724 = vsel %vm1626, 1, 0
      %v1725 = vsel %vm1627, 1, 0
      %v1726 = vsel %vm1628, 1, 0
      %v1727 = vsel %vm1629, 1, 0
      %v1728 = vsel %vm1630, 1, 0
      %v1729 = vsel %vm1631, 1, 0
      %v1730 = vsel %vm1632, 1, 0
      %v1731 = vsel %vm1633, 1, 0
      %v1732 = vsel %vm1634, 1, 0
      %v1733 = vsel %vm1635, 1, 0
      %v1734 = vsel %vm1636, 1, 0
      %v1735 = vsel %vm1637, 1, 0
      %v1736 = vsel %vm1638, 1, 0
      %v1737 = vsel %vm1639, 1, 0
      %v1738 = vsel %vm1640, 1, 0
      %v1739 = vsel %vm1641, 1, 0
      %v1740 = vsel %vm1642, 1, 0
      %v1741 = vsel %vm1643, 1, 0
      %v1742 = vsel %vm1644, 1, 0
      %v1743 = vcvt.s32.f32 %v1645
      %v1744 = vcvt.s32.f32 %v1646
      %v1745 = vcvt.s32.f32 %v1647
      %v1746 = vcvt.s32.f32 %v1648
      %v1747 = vcvt.s32.f32 %v1649
      %v1748 = vcvt.s32.f32 %v1650
      %v1749 = vcvt.s32.f32 %v1651
      %v1750 = vcvt.s32.f32 %v1652
      %v1751 = vcvt.s32.f32 %v1653
      %v1752 = vcvt.s32.f32 %v1654
      %v1753 = vcvt.s32.f32 %v1655
      %v1754 = vcvt.s32.f32 %v1656
      %v1755 = vcvt.s32.f32 %v1657
      %v1756 = vcvt.s32.f32 %v1658
      %v1757 = vcvt.s32.f32 %v1659
      %v1758 = vcvt.s32.f32 %v1660
      %v1759 = vcvt.s32.f32 %v1661
      %v1760 = vcvt.s32.f32 %v1662
      %v1761 = vcvt.s32.f32 %v1663
      %v1762 = vcvt.s32.f32 %v1664
      %v1763 = vcvt.s32.f32 %v1665
      %v1764 = vcvt.s32.f32 %v1666
      %v1765 = vcvt.s32.f32 %v1667
      %v1766 = vcvt.s32.f32 %v1668
      %v1767 = vcvt.s32.f32 %v1669
      %v1768 = vcvt.s32.f32 %v1670
      %v1769 = vcvt.s32.f32 %v1671
      %v1770 = vcvt.s32.f32 %v1672
      %v1771 = vcvt.s32.f32 %v1673
      %v1772 = vcvt.s32.f32 %v1674
      %v1773 = vcvt.s32.f32 %v1675
      %v1774 = vcvt.s32.f32 %v1676
      %v1775 = vcvt.s32.f32 %v1677
      %v1776 = vcvt.s32.f32 %v1678
      %v1777 = vcvt.s32.f32 %v1679
      %v1778 = vcvt.s32.f32 %v1680
      %v1779 = vcvt.s32.f32 %v1681
      %v1780 = vcvt.s32.f32 %v1682
      %v1781 = vcvt.s32.f32 %v1683
      %v1782 = vcvt.s32.f32 %v1684
      %v1783 = vcvt.s32.f32 %v1685
      %v1784 = vcvt.s32.f32 %v1686
      %v1785 = vcvt.s32.f32 %v1687
      %v1786 = vcvt.s32.f32 %v1688
      %v1787 = vcvt.s32.f32 %v1689
      %v1788 = vcvt.s32.f32 %v1690
      %v1789 = vcvt.s32.f32 %v1691
      %v1790 = vcvt.s32.f32 %v1692
      %v1791 = vcvt.s32.f32 %v1693
      %v1792 = vcvt.s32.f32 %v1694
      %v1793 = vcvt.s32.f32 %v1695
      %v1794 = vcvt.s32.f32 %v1696
      %v1795 = vcvt.s32.f32 %v1697
      %v1796 = vcvt.s32.f32 %v1698
      %v1797 = vcvt.s32.f32 %v1699
      %v1798 = vcvt.s32.f32 %v1700
      %v1799 = vcvt.s32.f32 %v1701
      %v1800 = vcvt.s32.f32 %v1702
      %v1801 = vcvt.s32.f32 %v1703
      %v1802 = vcvt.s32.f32 %v1704
      %v1803 = vcvt.s32.f32 %v1705
      %v1804 = vcvt.s32.f32 %v1706
      %v1805 = vcvt.s32.f32 %v1707
      %v1806 = vcvt.s32.f32 %v1708
      %v1807 = vcvt.s32.f32 %v1709
      %v1808 = vcvt.s32.f32 %v1710
      %v1809 = vcvt.s32.f32 %v1711
      %v1810 = vcvt.s32.f32 %v1712
      %v1811 = vcvt.s32.f32 %v1713
      %v1812 = vcvt.s32.f32 %v1714
      %v1813 = vcvt.s32.f32 %v1715
      %v1814 = vcvt.s32.f32 %v1716
      %v1815 = vcvt.s32.f32 %v1717
      %v1816 = vcvt.s32.f32 %v1718
      %v1817 = vcvt.s32.f32 %v1719
      %v1818 = vcvt.s32.f32 %v1720
      %v1819 = vcvt.s32.f32 %v1721
      %v1820 = vcvt.s32.f32 %v1722
      %v1821 = vcvt.s32.f32 %v1723
      %v1822 = vcvt.s32.f32 %v1724
      %v1823 = vcvt.s32.f32 %v1725
      %v1824 = vcvt.s32.f32 %v1726
      %v1825 = vcvt.s32.f32 %v1727
      %v1826 = vcvt.s32.f32 %v1728
      %v1827 = vcvt.s32.f32 %v1729
      %v1828 = vcvt.s32.f32 %v1730
      %v1829 = vcvt.s32.f32 %v1731
      %v1830 = vcvt.s32.f32 %v1732
      %v1831 = vcvt.s32.f32 %v1733
      %v1832 = vcvt.s32.f32 %v1734
      %v1833 = vcvt.s32.f32 %v1735
      %v1834 = vcvt.s32.f32 %v1736
      %v1835 = vcvt.s32.f32 %v1737
      %v1836 = vcvt.s32.f32 %v1738
      %v1837 = vcvt.s32.f32 %v1739
      %v1838 = vcvt.s32.f32 %v1740
      %v1839 = vcvt.s32.f32 %v1741
      %v1840 = vcvt.s32.f32 %v1742
      %v1841 = vsub.f32 1.0, %v1743
      %v1842 = vsub.f32 1.0, %v1744
      %v1843 = vsub.f32 1.0, %v1745
      %v1844 = vsub.f32 1.0, %v1746
      %v1845 = vsub.f32 1.0, %v1747
      %v1846 = vsub.f32 1.0, %v1748
      %v1847 = vsub.f32 1.0, %v1749
      %v1848 = vsub.f32 1.0, %v1750
      %v1849 = vsub.f32 1.0, %v1751
      %v1850 = vsub.f32 1.0, %v1752
      %v1851 = vsub.f32 1.0, %v1753
      %v1852 = vsub.f32 1.0, %v1754
      %v1853 = vsub.f32 1.0, %v1755
      %v1854 = vsub.f32 1.0, %v1756
      %v1855 = vsub.f32 1.0, %v1757
      %v1856 = vsub.f32 1.0, %v1758
      %v1857 = vsub.f32 1.0, %v1759
      %v1858 = vsub.f32 1.0, %v1760
      %v1859 = vsub.f32 1.0, %v1761
      %v1860 = vsub.f32 1.0, %v1762
      %v1861 = vsub.f32 1.0, %v1763
      %v1862 = vsub.f32 1.0, %v1764
      %v1863 = vsub.f32 1.0, %v1765
      %v1864 = vsub.f32 1.0, %v1766
      %v1865 = vsub.f32 1.0, %v1767
      %v1866 = vsub.f32 1.0, %v1768
      %v1867 = vsub.f32 1.0, %v1769
      %v1868 = vsub.f32 1.0, %v1770
      %v1869 = vsub.f32 1.0, %v1771
      %v1870 = vsub.f32 1.0, %v1772
      %v1871 = vsub.f32 1.0, %v1773
      %v1872 = vsub.f32 1.0, %v1774
      %v1873 = vsub.f32 1.0, %v1775
      %v1874 = vsub.f32 1.0, %v1776
      %v1875 = vsub.f32 1.0, %v1777
      %v1876 = vsub.f32 1.0, %v1778
      %v1877 = vsub.f32 1.0, %v1779
      %v1878 = vsub.f32 1.0, %v1780
      %v1879 = vsub.f32 1.0, %v1781
      %v1880 = vsub.f32 1.0, %v1782
      %v1881 = vsub.f32 1.0, %v1783
      %v1882 = vsub.f32 1.0, %v1784
      %v1883 = vsub.f32 1.0, %v1785
      %v1884 = vsub.f32 1.0, %v1786
      %v1885 = vsub.f32 1.0, %v1787
      %v1886 = vsub.f32 1.0, %v1788
      %v1887 = vsub.f32 1.0, %v1789
      %v1888 = vsub.f32 1.0, %v1790
      %v1889 = vsub.f32 1.0, %v1791
      %v1890 = vsub.f32 1.0, %v1792
      %v1891 = vsub.f32 1.0, %v1793
      %v1892 = vsub.f32 1.0, %v1794
      %v1893 = vsub.f32 1.0, %v1795
      %v1894 = vsub.f32 1.0, %v1796
      %v1895 = vsub.f32 1.0, %v1797
      %v1896 = vsub.f32 1.0, %v1798
      %v1897 = vsub.f32 1.0, %v1799
      %v1898 = vsub.f32 1.0, %v1800
      %v1899 = vsub.f32 1.0, %v1801
      %v1900 = vsub.f32 1.0, %v1802
      %v1901 = vsub.f32 1.0, %v1803
      %v1902 = vsub.f32 1.0, %v1804
      %v1903 = vsub.f32 1.0, %v1805
      %v1904 = vsub.f32 1.0, %v1806
      %v1905 = vsub.f32 1.0, %v1807
      %v1906 = vsub.f32 1.0, %v1808
      %v1907 = vsub.f32 1.0, %v1809
      %v1908 = vsub.f32 1.0, %v1810
      %v1909 = vsub.f32 1.0, %v1811
      %v1910 = vsub.f32 1.0, %v1812
      %v1911 = vsub.f32 1.0, %v1813
      %v1912 = vsub.f32 1.0, %v1814
      %v1913 = vsub.f32 1.0, %v1815
      %v1914 = vsub.f32 1.0, %v1816
      %v1915 = vsub.f32 1.0, %v1817
      %v1916 = vsub.f32 1.0, %v1818
      %v1917 = vsub.f32 1.0, %v1819
      %v1918 = vsub.f32 1.0, %v1820
      %v1919 = vsub.f32 1.0, %v1821
      %v1920 = vsub.f32 1.0, %v1822
      %v1921 = vsub.f32 1.0, %v1823
      %v1922 = vsub.f32 1.0, %v1824
      %v1923 = vsub.f32 1.0, %v1825
      %v1924 = vsub.f32 1.0, %v1826
      %v1925 = vsub.f32 1.0, %v1827
      %v1926 = vsub.f32 1.0, %v1828
      %v1927 = vsub.f32 1.0, %v1829
      %v1928 = vsub.f32 1.0, %v1830
      %v1929 = vsub.f32 1.0, %v1831
      %v1930 = vsub.f32 1.0, %v1832
      %v1931 = vsub.f32 1.0, %v1833
      %v1932 = vsub.f32 1.0, %v1834
      %v1933 = vsub.f32 1.0, %v1835
      %v1934 = vsub.f32 1.0, %v1836
      %v1935 = vsub.f32 1.0, %v1837
      %v1936 = vsub.f32 1.0, %v1838
      %v1937 = vsub.f32 1.0, %v1839
      %v1938 = vsub.f32 1.0, %v1840
      %v1939 = vmul.f32 %v1449, %v1841
      %v1940 = vmul.f32 %v1450, %v1842
      %v1941 = vmul.f32 %v1451, %v1843
      %v1942 = vmul.f32 %v1452, %v1844
      %v1943 = vmul.f32 %v1453, %v1845
      %v1944 = vmul.f32 %v1454, %v1846
      %v1945 = vmul.f32 %v1455, %v1847
      %v1946 = vmul.f32 %v1456, %v1848
      %v1947 = vmul.f32 %v1457, %v1849
      %v1948 = vmul.f32 %v1458, %v1850
      %v1949 = vmul.f32 %v1459, %v1851
      %v1950 = vmul.f32 %v1460, %v1852
      %v1951 = vmul.f32 %v1461, %v1853
      %v1952 = vmul.f32 %v1462, %v1854
      %v1953 = vmul.f32 %v1463, %v1855
      %v1954 = vmul.f32 %v1464, %v1856
      %v1955 = vmul.f32 %v1465, %v1857
      %v1956 = vmul.f32 %v1466, %v1858
      %v1957 = vmul.f32 %v1467, %v1859
      %v1958 = vmul.f32 %v1468, %v1860
      %v1959 = vmul.f32 %v1469, %v1861
      %v1960 = vmul.f32 %v1470, %v1862
      %v1961 = vmul.f32 %v1471, %v1863
      %v1962 = vmul.f32 %v1472, %v1864
      %v1963 = vmul.f32 %v1473, %v1865
      %v1964 = vmul.f32 %v1474, %v1866
      %v1965 = vmul.f32 %v1475, %v1867
      %v1966 = vmul.f32 %v1476, %v1868
      %v1967 = vmul.f32 %v1477, %v1869
      %v1968 = vmul.f32 %v1478, %v1870
      %v1969 = vmul.f32 %v1479, %v1871
      %v1970 = vmul.f32 %v1480, %v1872
      %v1971 = vmul.f32 %v1481, %v1873
      %v1972 = vmul.f32 %v1482, %v1874
      %v1973 = vmul.f32 %v1483, %v1875
      %v1974 = vmul.f32 %v1484, %v1876
      %v1975 = vmul.f32 %v1485, %v1877
      %v1976 = vmul.f32 %v1486, %v1878
      %v1977 = vmul.f32 %v1487, %v1879
      %v1978 = vmul.f32 %v1488, %v1880
      %v1979 = vmul.f32 %v1489, %v1881
      %v1980 = vmul.f32 %v1490, %v1882
      %v1981 = vmul.f32 %v1491, %v1883
      %v1982 = vmul.f32 %v1492, %v1884
      %v1983 = vmul.f32 %v1493, %v1885
      %v1984 = vmul.f32 %v1494, %v1886
      %v1985 = vmul.f32 %v1495, %v1887
      %v1986 = vmul.f32 %v1496, %v1888
      %v1987 = vmul.f32 %v1497, %v1889
      %v1988 = vmul.f32 %v1498, %v1890
      %v1989 = vmul.f32 %v1499, %v1891
      %v1990 = vmul.f32 %v1500, %v1892
      %v1991 = vmul.f32 %v1501, %v1893
      %v1992 = vmul.f32 %v1502, %v1894
      %v1993 = vmul.f32 %v1503, %v1895
      %v1994 = vmul.f32 %v1504, %v1896
      %v1995 = vmul.f32 %v1505, %v1897
      %v1996 = vmul.f32 %v1506, %v1898
      %v1997 = vmul.f32 %v1507, %v1899
      %v1998 = vmul.f32 %v1508, %v1900
      %v1999 = vmul.f32 %v1509, %v1901
      %v2000 = vmul.f32 %v1510, %v1902
      %v2001 = vmul.f32 %v1511, %v1903
      %v2002 = vmul.f32 %v1512, %v1904
      %v2003 = vmul.f32 %v1513, %v1905
      %v2004 = vmul.f32 %v1514, %v1906
      %v2005 = vmul.f32 %v1515, %v1907
      %v2006 = vmul.f32 %v1516, %v1908
      %v2007 = vmul.f32 %v1517, %v1909
      %v2008 = vmul.f32 %v1518, %v1910
      %v2009 = vmul.f32 %v1519, %v1911
      %v2010 = vmul.f32 %v1520, %v1912
      %v2011 = vmul.f32 %v1521, %v1913
      %v2012 = vmul.f32 %v1522, %v1914
      %v2013 = vmul.f32 %v1523, %v1915
      %v2014 = vmul.f32 %v1524, %v1916
      %v2015 = vmul.f32 %v1525, %v1917
      %v2016 = vmul.f32 %v1526, %v1918
      %v2017 = vmul.f32 %v1527, %v1919
      %v2018 = vmul.f32 %v1528, %v1920
      %v2019 = vmul.f32 %v1529, %v1921
      %v2020 = vmul.f32 %v1530, %v1922
      %v2021 = vmul.f32 %v1531, %v1923
      %v2022 = vmul.f32 %v1532, %v1924
      %v2023 = vmul.f32 %v1533, %v1925
      %v2024 = vmul.f32 %v1534, %v1926
      %v2025 = vmul.f32 %v1535, %v1927
      %v2026 = vmul.f32 %v1536, %v1928
      %v2027 = vmul.f32 %v1537, %v1929
      %v2028 = vmul.f32 %v1538, %v1930
      %v2029 = vmul.f32 %v1539, %v1931
      %v2030 = vmul.f32 %v1540, %v1932
      %v2031 = vmul.f32 %v1541, %v1933
      %v2032 = vmul.f32 %v1542, %v1934
      %v2033 = vmul.f32 %v1543, %v1935
      %v2034 = vmul.f32 %v1544, %v1936
      %v2035 = vmul.f32 %v1545, %v1937
      %v2036 = vmul.f32 %v1546, %v1938
      %vm2037 = vcmask 97280
      %2038 = vst.msk [vmem:[#allocation2] sm:$0xff] %vm2037, %v1939
      %2039 = vst.msk [vmem:[#allocation2 + $0x8] sm:$0xff] %vm2037, %v1940
      %2040 = vst.msk [vmem:[#allocation2 + $0x10] sm:$0xff] %vm2037, %v1941
      %2041 = vst.msk [vmem:[#allocation2 + $0x18] sm:$0xff] %vm2037, %v1942
      %2042 = vst.msk [vmem:[#allocation2 + $0x20] sm:$0xff] %vm2037, %v1943
      %2043 = vst.msk [vmem:[#allocation2 + $0x28] sm:$0xff] %vm2037, %v1944
      %2044 = vst.msk [vmem:[#allocation2 + $0x30] sm:$0xff] %vm2037, %v1945
      %2045 = vst.msk [vmem:[#allocation2 + $0x38] sm:$0xff] %vm2037, %v1946
      %2046 = vst.msk [vmem:[#allocation2 + $0x40] sm:$0xff] %vm2037, %v1947
      %2047 = vst.msk [vmem:[#allocation2 + $0x48] sm:$0xff] %vm2037, %v1948
      %2048 = vst.msk [vmem:[#allocation2 + $0x50] sm:$0xff] %vm2037, %v1949
      %2049 = vst.msk [vmem:[#allocation2 + $0x58] sm:$0xff] %vm2037, %v1950
      %2050 = vst.msk [vmem:[#allocation2 + $0x60] sm:$0xff] %vm2037, %v1951
      %2051 = vst.msk [vmem:[#allocation2 + $0x68] sm:$0xff] %vm2037, %v1952
      %2052 = vst.msk [vmem:[#allocation2 + $0x70] sm:$0xff] %vm2037, %v1953
      %2053 = vst.msk [vmem:[#allocation2 + $0x78] sm:$0xff] %vm2037, %v1954
      %2054 = vst.msk [vmem:[#allocation2 + $0x80] sm:$0xff] %vm2037, %v1955
      %2055 = vst.msk [vmem:[#allocation2 + $0x88] sm:$0xff] %vm2037, %v1956
      %2056 = vst.msk [vmem:[#allocation2 + $0x90] sm:$0xff] %vm2037, %v1957
      %2057 = vst.msk [vmem:[#allocation2 + $0x98] sm:$0xff] %vm2037, %v1958
      %2058 = vst.msk [vmem:[#allocation2 + $0xa0] sm:$0xff] %vm2037, %v1959
      %2059 = vst.msk [vmem:[#allocation2 + $0xa8] sm:$0xff] %vm2037, %v1960
      %2060 = vst.msk [vmem:[#allocation2 + $0xb0] sm:$0xff] %vm2037, %v1961
      %2061 = vst.msk [vmem:[#allocation2 + $0xb8] sm:$0xff] %vm2037, %v1962
      %2062 = vst.msk [vmem:[#allocation2 + $0xc0] sm:$0xff] %vm2037, %v1963
      %2063 = vst.msk [vmem:[#allocation2 + $0xc8] sm:$0xff] %vm2037, %v1964
      %2064 = vst.msk [vmem:[#allocation2 + $0xd0] sm:$0xff] %vm2037, %v1965
      %2065 = vst.msk [vmem:[#allocation2 + $0xd8] sm:$0xff] %vm2037, %v1966
      %2066 = vst.msk [vmem:[#allocation2 + $0xe0] sm:$0xff] %vm2037, %v1967
      %2067 = vst.msk [vmem:[#allocation2 + $0xe8] sm:$0xff] %vm2037, %v1968
      %2068 = vst.msk [vmem:[#allocation2 + $0xf0] sm:$0xff] %vm2037, %v1969
      %2069 = vst.msk [vmem:[#allocation2 + $0xf8] sm:$0xff] %vm2037, %v1970
      %2070 = vst.msk [vmem:[#allocation2 + $0x100] sm:$0xff] %vm2037, %v1971
      %2071 = vst.msk [vmem:[#allocation2 + $0x108] sm:$0xff] %vm2037, %v1972
      %2072 = vst.msk [vmem:[#allocation2 + $0x110] sm:$0xff] %vm2037, %v1973
      %2073 = vst.msk [vmem:[#allocation2 + $0x118] sm:$0xff] %vm2037, %v1974
      %2074 = vst.msk [vmem:[#allocation2 + $0x120] sm:$0xff] %vm2037, %v1975
      %2075 = vst.msk [vmem:[#allocation2 + $0x128] sm:$0xff] %vm2037, %v1976
      %2076 = vst.msk [vmem:[#allocation2 + $0x130] sm:$0xff] %vm2037, %v1977
      %2077 = vst.msk [vmem:[#allocation2 + $0x138] sm:$0xff] %vm2037, %v1978
      %2078 = vst.msk [vmem:[#allocation2 + $0x140] sm:$0xff] %vm2037, %v1979
      %2079 = vst.msk [vmem:[#allocation2 + $0x148] sm:$0xff] %vm2037, %v1980
      %2080 = vst.msk [vmem:[#allocation2 + $0x150] sm:$0xff] %vm2037, %v1981
      %2081 = vst.msk [vmem:[#allocation2 + $0x158] sm:$0xff] %vm2037, %v1982
      %2082 = vst.msk [vmem:[#allocation2 + $0x160] sm:$0xff] %vm2037, %v1983
      %2083 = vst.msk [vmem:[#allocation2 + $0x168] sm:$0xff] %vm2037, %v1984
      %2084 = vst.msk [vmem:[#allocation2 + $0x170] sm:$0xff] %vm2037, %v1985
      %2085 = vst.msk [vmem:[#allocation2 + $0x178] sm:$0xff] %vm2037, %v1986
      %2086 = vst.msk [vmem:[#allocation2 + $0x180] sm:$0xff] %vm2037, %v1987
      %2087 = vst.msk [vmem:[#allocation2 + $0x188] sm:$0xff] %vm2037, %v1988
      %2088 = vst.msk [vmem:[#allocation2 + $0x190] sm:$0xff] %vm2037, %v1989
      %2089 = vst.msk [vmem:[#allocation2 + $0x198] sm:$0xff] %vm2037, %v1990
      %2090 = vst.msk [vmem:[#allocation2 + $0x1a0] sm:$0xff] %vm2037, %v1991
      %2091 = vst.msk [vmem:[#allocation2 + $0x1a8] sm:$0xff] %vm2037, %v1992
      %2092 = vst.msk [vmem:[#allocation2 + $0x1b0] sm:$0xff] %vm2037, %v1993
      %2093 = vst.msk [vmem:[#allocation2 + $0x1b8] sm:$0xff] %vm2037, %v1994
      %2094 = vst.msk [vmem:[#allocation2 + $0x1c0] sm:$0xff] %vm2037, %v1995
      %2095 = vst.msk [vmem:[#allocation2 + $0x1c8] sm:$0xff] %vm2037, %v1996
      %2096 = vst.msk [vmem:[#allocation2 + $0x1d0] sm:$0xff] %vm2037, %v1997
      %2097 = vst.msk [vmem:[#allocation2 + $0x1d8] sm:$0xff] %vm2037, %v1998
      %2098 = vst.msk [vmem:[#allocation2 + $0x1e0] sm:$0xff] %vm2037, %v1999
      %2099 = vst.msk [vmem:[#allocation2 + $0x1e8] sm:$0xff] %vm2037, %v2000
      %2100 = vst.msk [vmem:[#allocation2 + $0x1f0] sm:$0xff] %vm2037, %v2001
      %2101 = vst.msk [vmem:[#allocation2 + $0x1f8] sm:$0xff] %vm2037, %v2002
      %2102 = vst.msk [vmem:[#allocation2 + $0x200] sm:$0xff] %vm2037, %v2003
      %2103 = vst.msk [vmem:[#allocation2 + $0x208] sm:$0xff] %vm2037, %v2004
      %2104 = vst.msk [vmem:[#allocation2 + $0x210] sm:$0xff] %vm2037, %v2005
      %2105 = vst.msk [vmem:[#allocation2 + $0x218] sm:$0xff] %vm2037, %v2006
      %2106 = vst.msk [vmem:[#allocation2 + $0x220] sm:$0xff] %vm2037, %v2007
      %2107 = vst.msk [vmem:[#allocation2 + $0x228] sm:$0xff] %vm2037, %v2008
      %2108 = vst.msk [vmem:[#allocation2 + $0x230] sm:$0xff] %vm2037, %v2009
      %2109 = vst.msk [vmem:[#allocation2 + $0x238] sm:$0xff] %vm2037, %v2010
      %2110 = vst.msk [vmem:[#allocation2 + $0x240] sm:$0xff] %vm2037, %v2011
      %2111 = vst.msk [vmem:[#allocation2 + $0x248] sm:$0xff] %vm2037, %v2012
      %2112 = vst.msk [vmem:[#allocation2 + $0x250] sm:$0xff] %vm2037, %v2013
      %2113 = vst.msk [vmem:[#allocation2 + $0x258] sm:$0xff] %vm2037, %v2014
      %2114 = vst.msk [vmem:[#allocation2 + $0x260] sm:$0xff] %vm2037, %v2015
      %2115 = vst.msk [vmem:[#allocation2 + $0x268] sm:$0xff] %vm2037, %v2016
      %2116 = vst.msk [vmem:[#allocation2 + $0x270] sm:$0xff] %vm2037, %v2017
      %2117 = vst.msk [vmem:[#allocation2 + $0x278] sm:$0xff] %vm2037, %v2018
      %2118 = vst.msk [vmem:[#allocation2 + $0x280] sm:$0xff] %vm2037, %v2019
      %2119 = vst.msk [vmem:[#allocation2 + $0x288] sm:$0xff] %vm2037, %v2020
      %2120 = vst.msk [vmem:[#allocation2 + $0x290] sm:$0xff] %vm2037, %v2021
      %2121 = vst.msk [vmem:[#allocation2 + $0x298] sm:$0xff] %vm2037, %v2022
      %2122 = vst.msk [vmem:[#allocation2 + $0x2a0] sm:$0xff] %vm2037, %v2023
      %2123 = vst.msk [vmem:[#allocation2 + $0x2a8] sm:$0xff] %vm2037, %v2024
      %2124 = vst.msk [vmem:[#allocation2 + $0x2b0] sm:$0xff] %vm2037, %v2025
      %2125 = vst.msk [vmem:[#allocation2 + $0x2b8] sm:$0xff] %vm2037, %v2026
      %2126 = vst.msk [vmem:[#allocation2 + $0x2c0] sm:$0xff] %vm2037, %v2027
      %2127 = vst.msk [vmem:[#allocation2 + $0x2c8] sm:$0xff] %vm2037, %v2028
      %2128 = vst.msk [vmem:[#allocation2 + $0x2d0] sm:$0xff] %vm2037, %v2029
      %2129 = vst.msk [vmem:[#allocation2 + $0x2d8] sm:$0xff] %vm2037, %v2030
      %2130 = vst.msk [vmem:[#allocation2 + $0x2e0] sm:$0xff] %vm2037, %v2031
      %2131 = vst.msk [vmem:[#allocation2 + $0x2e8] sm:$0xff] %vm2037, %v2032
      %2132 = vst.msk [vmem:[#allocation2 + $0x2f0] sm:$0xff] %vm2037, %v2033
      %2133 = vst.msk [vmem:[#allocation2 + $0x2f8] sm:$0xff] %vm2037, %v2034
      %2134 = vst.msk [vmem:[#allocation2 + $0x300] sm:$0xff] %vm2037, %v2035
      %2135 = vst.msk [vmem:[#allocation2 + $0x308] sm:$0xff] %vm2037, %v2036
      %v2136 = vpack.c.bf16 %v1744, %v1743
      %v2137 = vpack.c.bf16 %v1746, %v1745
      %v2138 = vpack.c.bf16 %v1748, %v1747
      %v2139 = vpack.c.bf16 %v1750, %v1749
      %v2140 = vpack.c.bf16 %v1752, %v1751
      %v2141 = vpack.c.bf16 %v1754, %v1753
      %v2142 = vpack.c.bf16 %v1756, %v1755
      %v2143 = vpack.c.bf16 %v1758, %v1757
      %v2144 = vpack.c.bf16 %v1760, %v1759
      %v2145 = vpack.c.bf16 %v1762, %v1761
      %v2146 = vpack.c.bf16 %v1764, %v1763
      %v2147 = vpack.c.bf16 %v1766, %v1765
      %v2148 = vpack.c.bf16 %v1768, %v1767
      %v2149 = vpack.c.bf16 %v1770, %v1769
      %v2150 = vpack.c.bf16 %v1772, %v1771
      %v2151 = vpack.c.bf16 %v1774, %v1773
      %v2152 = vpack.c.bf16 %v1776, %v1775
      %v2153 = vpack.c.bf16 %v1778, %v1777
      %v2154 = vpack.c.bf16 %v1780, %v1779
      %v2155 = vpack.c.bf16 %v1782, %v1781
      %v2156 = vpack.c.bf16 %v1784, %v1783
      %v2157 = vpack.c.bf16 %v1786, %v1785
      %v2158 = vpack.c.bf16 %v1788, %v1787
      %v2159 = vpack.c.bf16 %v1790, %v1789
      %v2160 = vpack.c.bf16 %v1792, %v1791
      %v2161 = vpack.c.bf16 %v1794, %v1793
      %v2162 = vpack.c.bf16 %v1796, %v1795
      %v2163 = vpack.c.bf16 %v1798, %v1797
      %v2164 = vpack.c.bf16 %v1800, %v1799
      %v2165 = vpack.c.bf16 %v1802, %v1801
      %v2166 = vpack.c.bf16 %v1804, %v1803
      %v2167 = vpack.c.bf16 %v1806, %v1805
      %v2168 = vpack.c.bf16 %v1808, %v1807
      %v2169 = vpack.c.bf16 %v1810, %v1809
      %v2170 = vpack.c.bf16 %v1812, %v1811
      %v2171 = vpack.c.bf16 %v1814, %v1813
      %v2172 = vpack.c.bf16 %v1816, %v1815
      %v2173 = vpack.c.bf16 %v1818, %v1817
      %v2174 = vpack.c.bf16 %v1820, %v1819
      %v2175 = vpack.c.bf16 %v1822, %v1821
      %v2176 = vpack.c.bf16 %v1824, %v1823
      %v2177 = vpack.c.bf16 %v1826, %v1825
      %v2178 = vpack.c.bf16 %v1828, %v1827
      %v2179 = vpack.c.bf16 %v1830, %v1829
      %v2180 = vpack.c.bf16 %v1832, %v1831
      %v2181 = vpack.c.bf16 %v1834, %v1833
      %v2182 = vpack.c.bf16 %v1836, %v1835
      %v2183 = vpack.c.bf16 %v1838, %v1837
      %v2184 = vpack.c.bf16 %v1840, %v1839
      %v2234 = vunpack.c.l.b16 %v2136
      %v2235 = vunpack.c.h.b16 %v2136
      %v2236 = vunpack.c.l.b16 %v2137
      %v2237 = vunpack.c.h.b16 %v2137
      %v2238 = vunpack.c.l.b16 %v2138
      %v2239 = vunpack.c.h.b16 %v2138
      %v2240 = vunpack.c.l.b16 %v2139
      %v2241 = vunpack.c.h.b16 %v2139
      %v2242 = vunpack.c.l.b16 %v2140
      %v2243 = vunpack.c.h.b16 %v2140
      %v2244 = vunpack.c.l.b16 %v2141
      %v2245 = vunpack.c.h.b16 %v2141
      %v2246 = vunpack.c.l.b16 %v2142
      %v2247 = vunpack.c.h.b16 %v2142
      %v2248 = vunpack.c.l.b16 %v2143
      %v2249 = vunpack.c.h.b16 %v2143
      %v2250 = vunpack.c.l.b16 %v2144
      %v2251 = vunpack.c.h.b16 %v2144
      %v2252 = vunpack.c.l.b16 %v2145
      %v2253 = vunpack.c.h.b16 %v2145
      %v2254 = vunpack.c.l.b16 %v2146
      %v2255 = vunpack.c.h.b16 %v2146
      %v2256 = vunpack.c.l.b16 %v2147
      %v2257 = vunpack.c.h.b16 %v2147
      %v2258 = vunpack.c.l.b16 %v2148
      %v2259 = vunpack.c.h.b16 %v2148
      %v2260 = vunpack.c.l.b16 %v2149
      %v2261 = vunpack.c.h.b16 %v2149
      %v2262 = vunpack.c.l.b16 %v2150
      %v2263 = vunpack.c.h.b16 %v2150
      %v2264 = vunpack.c.l.b16 %v2151
      %v2265 = vunpack.c.h.b16 %v2151
      %v2266 = vunpack.c.l.b16 %v2152
      %v2267 = vunpack.c.h.b16 %v2152
      %v2268 = vunpack.c.l.b16 %v2153
      %v2269 = vunpack.c.h.b16 %v2153
      %v2270 = vunpack.c.l.b16 %v2154
      %v2271 = vunpack.c.h.b16 %v2154
      %v2272 = vunpack.c.l.b16 %v2155
      %v2273 = vunpack.c.h.b16 %v2155
      %v2274 = vunpack.c.l.b16 %v2156
      %v2275 = vunpack.c.h.b16 %v2156
      %v2276 = vunpack.c.l.b16 %v2157
      %v2277 = vunpack.c.h.b16 %v2157
      %v2278 = vunpack.c.l.b16 %v2158
      %v2279 = vunpack.c.h.b16 %v2158
      %v2280 = vunpack.c.l.b16 %v2159
      %v2281 = vunpack.c.h.b16 %v2159
      %v2282 = vunpack.c.l.b16 %v2160
      %v2283 = vunpack.c.h.b16 %v2160
      %v2284 = vunpack.c.l.b16 %v2161
      %v2285 = vunpack.c.h.b16 %v2161
      %v2286 = vunpack.c.l.b16 %v2162
      %v2287 = vunpack.c.h.b16 %v2162
      %v2288 = vunpack.c.l.b16 %v2163
      %v2289 = vunpack.c.h.b16 %v2163
      %v2290 = vunpack.c.l.b16 %v2164
      %v2291 = vunpack.c.h.b16 %v2164
      %v2292 = vunpack.c.l.b16 %v2165
      %v2293 = vunpack.c.h.b16 %v2165
      %v2294 = vunpack.c.l.b16 %v2166
      %v2295 = vunpack.c.h.b16 %v2166
      %v2296 = vunpack.c.l.b16 %v2167
      %v2297 = vunpack.c.h.b16 %v2167
      %v2298 = vunpack.c.l.b16 %v2168
      %v2299 = vunpack.c.h.b16 %v2168
      %v2300 = vunpack.c.l.b16 %v2169
      %v2301 = vunpack.c.h.b16 %v2169
      %v2302 = vunpack.c.l.b16 %v2170
      %v2303 = vunpack.c.h.b16 %v2170
      %v2304 = vunpack.c.l.b16 %v2171
      %v2305 = vunpack.c.h.b16 %v2171
      %v2306 = vunpack.c.l.b16 %v2172
      %v2307 = vunpack.c.h.b16 %v2172
      %v2308 = vunpack.c.l.b16 %v2173
      %v2309 = vunpack.c.h.b16 %v2173
      %v2310 = vunpack.c.l.b16 %v2174
      %v2311 = vunpack.c.h.b16 %v2174
      %v2312 = vunpack.c.l.b16 %v2175
      %v2313 = vunpack.c.h.b16 %v2175
      %v2314 = vunpack.c.l.b16 %v2176
      %v2315 = vunpack.c.h.b16 %v2176
      %v2316 = vunpack.c.l.b16 %v2177
      %v2317 = vunpack.c.h.b16 %v2177
      %v2318 = vunpack.c.l.b16 %v2178
      %v2319 = vunpack.c.h.b16 %v2178
      %v2320 = vunpack.c.l.b16 %v2179
      %v2321 = vunpack.c.h.b16 %v2179
      %v2322 = vunpack.c.l.b16 %v2180
      %v2323 = vunpack.c.h.b16 %v2180
      %v2324 = vunpack.c.l.b16 %v2181
      %v2325 = vunpack.c.h.b16 %v2181
      %v2326 = vunpack.c.l.b16 %v2182
      %v2327 = vunpack.c.h.b16 %v2182
      %v2328 = vunpack.c.l.b16 %v2183
      %v2329 = vunpack.c.h.b16 %v2183
      %v2330 = vunpack.c.l.b16 %v2184
      %v2331 = vunpack.c.h.b16 %v2184
      %v2332 = vpack.c.b16 %v2234, %v2234
      %v2333 = vpack.c.b16 %v2235, %v2235
      %v2334 = vpack.c.b16 %v2236, %v2236
      %v2335 = vpack.c.b16 %v2237, %v2237
      %v2336 = vpack.c.b16 %v2238, %v2238
      %v2337 = vpack.c.b16 %v2239, %v2239
      %v2338 = vpack.c.b16 %v2240, %v2240
      %v2339 = vpack.c.b16 %v2241, %v2241
      %v2340 = vpack.c.b16 %v2242, %v2242
      %v2341 = vpack.c.b16 %v2243, %v2243
      %v2342 = vpack.c.b16 %v2244, %v2244
      %v2343 = vpack.c.b16 %v2245, %v2245
      %v2344 = vpack.c.b16 %v2246, %v2246
      %v2345 = vpack.c.b16 %v2247, %v2247
      %v2346 = vpack.c.b16 %v2248, %v2248
      %v2347 = vpack.c.b16 %v2249, %v2249
      %v2348 = vpack.c.b16 %v2250, %v2250
      %v2349 = vpack.c.b16 %v2251, %v2251
      %v2350 = vpack.c.b16 %v2252, %v2252
      %v2351 = vpack.c.b16 %v2253, %v2253
      %v2352 = vpack.c.b16 %v2254, %v2254
      %v2353 = vpack.c.b16 %v2255, %v2255
      %v2354 = vpack.c.b16 %v2256, %v2256
      %v2355 = vpack.c.b16 %v2257, %v2257
      %v2356 = vpack.c.b16 %v2258, %v2258
      %v2357 = vpack.c.b16 %v2259, %v2259
      %v2358 = vpack.c.b16 %v2260, %v2260
      %v2359 = vpack.c.b16 %v2261, %v2261
      %v2360 = vpack.c.b16 %v2262, %v2262
      %v2361 = vpack.c.b16 %v2263, %v2263
      %v2362 = vpack.c.b16 %v2264, %v2264
      %v2363 = vpack.c.b16 %v2265, %v2265
      %v2364 = vpack.c.b16 %v2266, %v2266
      %v2365 = vpack.c.b16 %v2267, %v2267
      %v2366 = vpack.c.b16 %v2268, %v2268
      %v2367 = vpack.c.b16 %v2269, %v2269
      %v2368 = vpack.c.b16 %v2270, %v2270
      %v2369 = vpack.c.b16 %v2271, %v2271
      %v2370 = vpack.c.b16 %v2272, %v2272
      %v2371 = vpack.c.b16 %v2273, %v2273
      %v2372 = vpack.c.b16 %v2274, %v2274
      %v2373 = vpack.c.b16 %v2275, %v2275
      %v2374 = vpack.c.b16 %v2276, %v2276
      %v2375 = vpack.c.b16 %v2277, %v2277
      %v2376 = vpack.c.b16 %v2278, %v2278
      %v2377 = vpack.c.b16 %v2279, %v2279
      %v2378 = vpack.c.b16 %v2280, %v2280
      %v2379 = vpack.c.b16 %v2281, %v2281
      %v2380 = vpack.c.b16 %v2282, %v2282
      %v2381 = vpack.c.b16 %v2283, %v2283
      %v2382 = vpack.c.b16 %v2284, %v2284
      %v2383 = vpack.c.b16 %v2285, %v2285
      %v2384 = vpack.c.b16 %v2286, %v2286
      %v2385 = vpack.c.b16 %v2287, %v2287
      %v2386 = vpack.c.b16 %v2288, %v2288
      %v2387 = vpack.c.b16 %v2289, %v2289
      %v2388 = vpack.c.b16 %v2290, %v2290
      %v2389 = vpack.c.b16 %v2291, %v2291
      %v2390 = vpack.c.b16 %v2292, %v2292
      %v2391 = vpack.c.b16 %v2293, %v2293
      %v2392 = vpack.c.b16 %v2294, %v2294
      %v2393 = vpack.c.b16 %v2295, %v2295
      %v2394 = vpack.c.b16 %v2296, %v2296
      %v2395 = vpack.c.b16 %v2297, %v2297
      %v2396 = vpack.c.b16 %v2298, %v2298
      %v2397 = vpack.c.b16 %v2299, %v2299
      %v2398 = vpack.c.b16 %v2300, %v2300
      %v2399 = vpack.c.b16 %v2301, %v2301
      %v2400 = vpack.c.b16 %v2302, %v2302
      %v2401 = vpack.c.b16 %v2303, %v2303
      %v2402 = vpack.c.b16 %v2304, %v2304
      %v2403 = vpack.c.b16 %v2305, %v2305
      %v2404 = vpack.c.b16 %v2306, %v2306
      %v2405 = vpack.c.b16 %v2307, %v2307
      %v2406 = vpack.c.b16 %v2308, %v2308
      %v2407 = vpack.c.b16 %v2309, %v2309
      %v2408 = vpack.c.b16 %v2310, %v2310
      %v2409 = vpack.c.b16 %v2311, %v2311
      %v2410 = vpack.c.b16 %v2312, %v2312
      %v2411 = vpack.c.b16 %v2313, %v2313
      %v2412 = vpack.c.b16 %v2314, %v2314
      %v2413 = vpack.c.b16 %v2315, %v2315
      %v2414 = vpack.c.b16 %v2316, %v2316
      %v2415 = vpack.c.b16 %v2317, %v2317
      %v2416 = vpack.c.b16 %v2318, %v2318
      %v2417 = vpack.c.b16 %v2319, %v2319
      %v2418 = vpack.c.b16 %v2320, %v2320
      %v2419 = vpack.c.b16 %v2321, %v2321
      %v2420 = vpack.c.b16 %v2322, %v2322
      %v2421 = vpack.c.b16 %v2323, %v2323
      %v2422 = vpack.c.b16 %v2324, %v2324
      %v2423 = vpack.c.b16 %v2325, %v2325
      %v2424 = vpack.c.b16 %v2326, %v2326
      %v2425 = vpack.c.b16 %v2327, %v2327
      %v2426 = vpack.c.b16 %v2328, %v2328
      %v2427 = vpack.c.b16 %v2329, %v2329
      %v2428 = vpack.c.b16 %v2330, %v2330
      %v2429 = vpack.c.b16 %v2331, %v2331
      %vm2528 = vcmask 93184
      %2529 = vst.msk [vmem:[%s208] sm:$0xf] %vm2528, %v2332
      %2530 = vst.msk [vmem:[%s208 + $0x4] sm:$0xf] %vm2528, %v2333
      %2531 = vst.msk [vmem:[%s208 + $0x8] sm:$0xf] %vm2528, %v2334
      %2532 = vst.msk [vmem:[%s208 + $0xc] sm:$0xf] %vm2528, %v2335
      %2533 = vst.msk [vmem:[%s208 + $0x10] sm:$0xf] %vm2528, %v2336
      %2534 = vst.msk [vmem:[%s208 + $0x14] sm:$0xf] %vm2528, %v2337
      %2535 = vst.msk [vmem:[%s208 + $0x18] sm:$0xf] %vm2528, %v2338
      %2536 = vst.msk [vmem:[%s208 + $0x1c] sm:$0xf] %vm2528, %v2339
      %2537 = vst.msk [vmem:[%s208 + $0x20] sm:$0xf] %vm2528, %v2340
      %2538 = vst.msk [vmem:[%s208 + $0x24] sm:$0xf] %vm2528, %v2341
      %2539 = vst.msk [vmem:[%s208 + $0x28] sm:$0xf] %vm2528, %v2342
      %2540 = vst.msk [vmem:[%s208 + $0x2c] sm:$0xf] %vm2528, %v2343
      %2541 = vst.msk [vmem:[%s208 + $0x30] sm:$0xf] %vm2528, %v2344
      %2542 = vst.msk [vmem:[%s208 + $0x34] sm:$0xf] %vm2528, %v2345
      %2543 = vst.msk [vmem:[%s208 + $0x38] sm:$0xf] %vm2528, %v2346
      %2544 = vst.msk [vmem:[%s208 + $0x3c] sm:$0xf] %vm2528, %v2347
      %2545 = vst.msk [vmem:[%s208 + $0x40] sm:$0xf] %vm2528, %v2348
      %2546 = vst.msk [vmem:[%s208 + $0x44] sm:$0xf] %vm2528, %v2349
      %2547 = vst.msk [vmem:[%s208 + $0x48] sm:$0xf] %vm2528, %v2350
      %2548 = vst.msk [vmem:[%s208 + $0x4c] sm:$0xf] %vm2528, %v2351
      %2549 = vst.msk [vmem:[%s208 + $0x50] sm:$0xf] %vm2528, %v2352
      %2550 = vst.msk [vmem:[%s208 + $0x54] sm:$0xf] %vm2528, %v2353
      %2551 = vst.msk [vmem:[%s208 + $0x58] sm:$0xf] %vm2528, %v2354
      %2552 = vst.msk [vmem:[%s208 + $0x5c] sm:$0xf] %vm2528, %v2355
      %2553 = vst.msk [vmem:[%s208 + $0x60] sm:$0xf] %vm2528, %v2356
      %2554 = vst.msk [vmem:[%s208 + $0x64] sm:$0xf] %vm2528, %v2357
      %2555 = vst.msk [vmem:[%s208 + $0x68] sm:$0xf] %vm2528, %v2358
      %2556 = vst.msk [vmem:[%s208 + $0x6c] sm:$0xf] %vm2528, %v2359
      %2557 = vst.msk [vmem:[%s208 + $0x70] sm:$0xf] %vm2528, %v2360
      %2558 = vst.msk [vmem:[%s208 + $0x74] sm:$0xf] %vm2528, %v2361
      %2559 = vst.msk [vmem:[%s208 + $0x78] sm:$0xf] %vm2528, %v2362
      %2560 = vst.msk [vmem:[%s208 + $0x7c] sm:$0xf] %vm2528, %v2363
      %2561 = vst.msk [vmem:[%s208 + $0x80] sm:$0xf] %vm2528, %v2364
      %2562 = vst.msk [vmem:[%s208 + $0x84] sm:$0xf] %vm2528, %v2365
      %2563 = vst.msk [vmem:[%s208 + $0x88] sm:$0xf] %vm2528, %v2366
      %2564 = vst.msk [vmem:[%s208 + $0x8c] sm:$0xf] %vm2528, %v2367
      %2565 = vst.msk [vmem:[%s208 + $0x90] sm:$0xf] %vm2528, %v2368
      %2566 = vst.msk [vmem:[%s208 + $0x94] sm:$0xf] %vm2528, %v2369
      %2567 = vst.msk [vmem:[%s208 + $0x98] sm:$0xf] %vm2528, %v2370
      %2568 = vst.msk [vmem:[%s208 + $0x9c] sm:$0xf] %vm2528, %v2371
      %2569 = vst.msk [vmem:[%s208 + $0xa0] sm:$0xf] %vm2528, %v2372
      %2570 = vst.msk [vmem:[%s208 + $0xa4] sm:$0xf] %vm2528, %v2373
      %2571 = vst.msk [vmem:[%s208 + $0xa8] sm:$0xf] %vm2528, %v2374
      %2572 = vst.msk [vmem:[%s208 + $0xac] sm:$0xf] %vm2528, %v2375
      %2573 = vst.msk [vmem:[%s208 + $0xb0] sm:$0xf] %vm2528, %v2376
      %2574 = vst.msk [vmem:[%s208 + $0xb4] sm:$0xf] %vm2528, %v2377
      %2575 = vst.msk [vmem:[%s208 + $0xb8] sm:$0xf] %vm2528, %v2378
      %2576 = vst.msk [vmem:[%s208 + $0xbc] sm:$0xf] %vm2528, %v2379
      %2577 = vst.msk [vmem:[%s208 + $0xc0] sm:$0xf] %vm2528, %v2380
      %2578 = vst.msk [vmem:[%s208 + $0xc4] sm:$0xf] %vm2528, %v2381
      %2579 = vst.msk [vmem:[%s208 + $0xc8] sm:$0xf] %vm2528, %v2382
      %2580 = vst.msk [vmem:[%s208 + $0xcc] sm:$0xf] %vm2528, %v2383
      %2581 = vst.msk [vmem:[%s208 + $0xd0] sm:$0xf] %vm2528, %v2384
      %2582 = vst.msk [vmem:[%s208 + $0xd4] sm:$0xf] %vm2528, %v2385
      %2583 = vst.msk [vmem:[%s208 + $0xd8] sm:$0xf] %vm2528, %v2386
      %2584 = vst.msk [vmem:[%s208 + $0xdc] sm:$0xf] %vm2528, %v2387
      %2585 = vst.msk [vmem:[%s208 + $0xe0] sm:$0xf] %vm2528, %v2388
      %2586 = vst.msk [vmem:[%s208 + $0xe4] sm:$0xf] %vm2528, %v2389
      %2587 = vst.msk [vmem:[%s208 + $0xe8] sm:$0xf] %vm2528, %v2390
      %2588 = vst.msk [vmem:[%s208 + $0xec] sm:$0xf] %vm2528, %v2391
      %2589 = vst.msk [vmem:[%s208 + $0xf0] sm:$0xf] %vm2528, %v2392
      %2590 = vst.msk [vmem:[%s208 + $0xf4] sm:$0xf] %vm2528, %v2393
      %2591 = vst.msk [vmem:[%s208 + $0xf8] sm:$0xf] %vm2528, %v2394
      %2592 = vst.msk [vmem:[%s208 + $0xfc] sm:$0xf] %vm2528, %v2395
      %2593 = vst.msk [vmem:[%s208 + $0x100] sm:$0xf] %vm2528, %v2396
      %2594 = vst.msk [vmem:[%s208 + $0x104] sm:$0xf] %vm2528, %v2397
      %2595 = vst.msk [vmem:[%s208 + $0x108] sm:$0xf] %vm2528, %v2398
      %2596 = vst.msk [vmem:[%s208 + $0x10c] sm:$0xf] %vm2528, %v2399
      %2597 = vst.msk [vmem:[%s208 + $0x110] sm:$0xf] %vm2528, %v2400
      %2598 = vst.msk [vmem:[%s208 + $0x114] sm:$0xf] %vm2528, %v2401
      %2599 = vst.msk [vmem:[%s208 + $0x118] sm:$0xf] %vm2528, %v2402
      %2600 = vst.msk [vmem:[%s208 + $0x11c] sm:$0xf] %vm2528, %v2403
      %2601 = vst.msk [vmem:[%s208 + $0x120] sm:$0xf] %vm2528, %v2404
      %2602 = vst.msk [vmem:[%s208 + $0x124] sm:$0xf] %vm2528, %v2405
      %2603 = vst.msk [vmem:[%s208 + $0x128] sm:$0xf] %vm2528, %v2406
      %2604 = vst.msk [vmem:[%s208 + $0x12c] sm:$0xf] %vm2528, %v2407
      %2605 = vst.msk [vmem:[%s208 + $0x130] sm:$0xf] %vm2528, %v2408
      %2606 = vst.msk [vmem:[%s208 + $0x134] sm:$0xf] %vm2528, %v2409
      %2607 = vst.msk [vmem:[%s208 + $0x138] sm:$0xf] %vm2528, %v2410
      %2608 = vst.msk [vmem:[%s208 + $0x13c] sm:$0xf] %vm2528, %v2411
      %2609 = vst.msk [vmem:[%s208 + $0x140] sm:$0xf] %vm2528, %v2412
      %2610 = vst.msk [vmem:[%s208 + $0x144] sm:$0xf] %vm2528, %v2413
      %2611 = vst.msk [vmem:[%s208 + $0x148] sm:$0xf] %vm2528, %v2414
      %2612 = vst.msk [vmem:[%s208 + $0x14c] sm:$0xf] %vm2528, %v2415
      %2613 = vst.msk [vmem:[%s208 + $0x150] sm:$0xf] %vm2528, %v2416
      %2614 = vst.msk [vmem:[%s208 + $0x154] sm:$0xf] %vm2528, %v2417
      %2615 = vst.msk [vmem:[%s208 + $0x158] sm:$0xf] %vm2528, %v2418
      %2616 = vst.msk [vmem:[%s208 + $0x15c] sm:$0xf] %vm2528, %v2419
      %2617 = vst.msk [vmem:[%s208 + $0x160] sm:$0xf] %vm2528, %v2420
      %2618 = vst.msk [vmem:[%s208 + $0x164] sm:$0xf] %vm2528, %v2421
      %2619 = vst.msk [vmem:[%s208 + $0x168] sm:$0xf] %vm2528, %v2422
      %2620 = vst.msk [vmem:[%s208 + $0x16c] sm:$0xf] %vm2528, %v2423
      %2621 = vst.msk [vmem:[%s208 + $0x170] sm:$0xf] %vm2528, %v2424
      %2622 = vst.msk [vmem:[%s208 + $0x174] sm:$0xf] %vm2528, %v2425
      %2623 = vst.msk [vmem:[%s208 + $0x178] sm:$0xf] %vm2528, %v2426
      %2624 = vst.msk [vmem:[%s208 + $0x17c] sm:$0xf] %vm2528, %v2427
      %2625 = vst.msk [vmem:[%s208 + $0x180] sm:$0xf] %vm2528, %v2428
      %2626 = vst.msk [vmem:[%s208 + $0x184] sm:$0xf] %vm2528, %v2429
      %s2627 = smul.u32 98, %s18
      %p2628 = scmp.lt.s32.totalorder %s19, 3
      %s2629 = scalar_select %p2628, %s19, 3
      %p2630 = scmp.lt.s32.totalorder %s2627, 195
      %s2631 = scalar_select %p2630, %s2627, 195
      %s2632 = smul.addr %s2629, 196
      %s2633 = sadd.s32 %s2631, %s2632
      %s2634 = smul.addr %s2633, 4
      %s2635 = scalar_lea.vmem %s3, %s2634
      // Predicated region
      $region37: #{lenet5_forward.4} parent=31 // pred_check
        %p2636 = pneg %p116
      $region38: #{lenet5_forward.4} parent=31 // pred_check_branch
        %2638 = sbr.rel (%p2636) target = $region40
      $region39: #{lenet5_forward.4} parent=31 // pred_region
        %s2639 = smul.u32 98, %s18
      $region40: #{lenet5_forward.4} parent=31 // pred_fallthru
        _
    $region32: #{lenet5_forward.4} parent=5 // pred_fallthru
      _
    %p2640 = scmp.le.s32.totalorder 2, %s9
    // Predicated region
    $region41: #{lenet5_forward.4} parent=5 // pred_check
      %p2641 = pneg %p2640
    $region42: #{lenet5_forward.4} parent=5 // pred_check_branch
      %2643 = sbr.rel (%p2641) target = $region44
    $region43: #{lenet5_forward.4} parent=5 // pred_region
      %s2644 = ssub.s32 %s9, 2
      // Predicated region
      $region45: #{lenet5_forward.4} parent=43 // pred_check
        %p2645 = pneg %p122
      $region46: #{lenet5_forward.4} parent=43 // pred_check_branch
        %2647 = sbr.rel (%p2645) target = $region48
      $region47: #{lenet5_forward.4} parent=43 // pred_region
        %s2648 = smul.u32 98, %s20
        %p2649 = scmp.lt.s32.totalorder %s21, 3
        %s2650 = scalar_select %p2649, %s21, 3
        %p2651 = scmp.lt.s32.totalorder %s2648, 195
        %s2652 = scalar_select %p2651, %s2648, 195
        %s2653 = smul.addr %s2650, 196
        %s2654 = sadd.s32 %s2652, %s2653
        %s2655 = smul.addr %s2654, 4
        %s2656 = scalar_lea.vmem %s3, %s2655
      $region48: #{lenet5_forward.4} parent=43 // pred_fallthru
        _
    $region44: #{lenet5_forward.4} parent=5 // pred_fallthru
      _
  $region6: #{lenet5_forward.4} parent=0 // loop_footer
    %s13 = sadd.s32 1, %s9
  $region7: #{lenet5_forward.4} parent=0 // loop_footer_branch
    %8 = sbr.rel target = $region3
  $region8: #{lenet5_forward.4} parent=0 // loop_exit
    _

// kernel: lenet5_forward.5
$region0: #{lenet5_forward.5}
  #allocation0 [shape = 'u32[]', space=smem, size = 0x4, offset = 0x4, fixed_abs, tag = 'smem constant byte address 0x4 - core index']
  #allocation1 [shape = 'u32[144,128]{1,0:T(1,128)}', space=vmem, size = 0x12000, scoped, tag = 'internal scratch']
  #allocation2 [shape = 'f32[400,32]{1,0:T(8,128)}', space=vmem, size = 0x32000, scoped, tag = 'scratch operand']
  %s0 = inlined_call_operand.vmem [shape: bf16[4,400,112], index: 0, kind: input, shape index: {}]
  %s1 = inlined_call_operand.vmem [shape: bf16[112,32], index: 1, kind: input, shape index: {}]
  %s2 = inlined_call_operand.vmem [shape: f32[1,32], index: 2, kind: input, shape index: {}]
  %s3 = inlined_call_operand.vmem [shape: bf16[4,400,32], index: 3, kind: output, shape index: {}]
  %s4 = sld [smem:[#allocation0]]
  $region49: #{lenet5_forward.5} parent=0
    _
  %s6 = ssub.s32 1, %s4
  %s7 = scalar_select 0, %s6, %s4
  loop: start=0, step=1, limit=6
  $region2: #{lenet5_forward.5} parent=0 // loop_pre_header
    _
  $region3: #{lenet5_forward.5} parent=0 // loop_header
    %s9 = sphi 0, %s13
    %p10 = scmp.ge.s32.totalorder %s9, 6
    %s16 = sphi 0, %s28
    %s17 = sphi 0, %s24
    %s18 = sphi 0, %s16
    %s19 = sphi 0, %s17
    %s20 = sphi 0, %s18
    %s21 = sphi 0, %s19
    %s33 = sphi 0, %s35
    %s36 = sphi 0, %s33
    %s37 = sphi 0, %s36
    %s53 = sphi 0, %s37
    %s57 = sphi 0, %s57
    %s59 = sphi 0, %s57
    %s60 = sphi 0, %s59
    %s74 = sphi 0, %s60
    %s78 = sphi 0, %s78
    %s80 = sphi 0, %s78
    %s81 = sphi 0, %s80
    %s95 = sphi 0, %s81
    %s103 = sphi 0, %s105
    %s106 = sphi 0, %s103
    %s107 = sphi 0, %s106
    %s123 = sphi 0, %s107
  $region4: #{lenet5_forward.5} parent=0 // loop_header_branch
    %12 = sbr.rel (%p10) target = $region8
  $region5: #{lenet5_forward.5} parent=0 // loop_body
    %s14 = ssub.s32 %s9, 1
    %s15 = ssub.s32 %s9, 2
    %s22 = sadd.s32 1, %s17
    %p23 = scmp.ge.s32.totalorder %s22, 4
    %s24 = scalar_select %p23, 0, %s22
    %s25 = sadd.s32 1, %s16
    %s26 = scalar_select %p23, %s25, %s16
    %p27 = scmp.ge.s32.totalorder %s26, 1
    %s28 = scalar_select %p27, 0, %s26
    %s29 = ssub.s32 %s17, %s24
    %s30 = ssub.s32 %s16, %s28
    %s31 = sor.u32 %s29, %s30
    %p32 = scmp.eq.s32.totalorder %s31, 0
    %s34 = sadd.s32 %s33, 1
    %s35 = scalar_select %p32, %s33, %s34
    %p38 = pneg %p32
    %p39 = scmp.eq.s32.totalorder %s9, 3
    %p40 = por %p38, %p39
    %p41 = scmp.ne.s32.totalorder %s33, %s36
    %p42 = scmp.eq.s32.totalorder %s9, 0
    %p43 = por %p41, %p42
    %p44 = scmp.ne.s32.totalorder %s33, %s36
    %p45 = scmp.eq.s32.totalorder %s14, 3
    %p46 = por %p44, %p45
    %p47 = scmp.ne.s32.totalorder %s36, %s37
    %p48 = scmp.eq.s32.totalorder %s14, 0
    %p49 = por %p47, %p48
    %p50 = scmp.ne.s32.totalorder %s36, %s37
    %p51 = scmp.eq.s32.totalorder %s15, 3
    %p52 = por %p50, %p51
    %p54 = scmp.ne.s32.totalorder %s37, %s53
    %p55 = scmp.eq.s32.totalorder %s15, 0
    %p56 = por %p54, %p55
    %s58 = sadd.s32 %s57, 1
    %p61 = scmp.eq.s32.totalorder %s9, 3
    %p62 = scmp.ne.s32.totalorder %s57, %s59
    %p63 = scmp.eq.s32.totalorder %s9, 0
    %p64 = por %p62, %p63
    %p65 = scmp.ne.s32.totalorder %s57, %s59
    %p66 = scmp.eq.s32.totalorder %s14, 3
    %p67 = por %p65, %p66
    %p68 = scmp.ne.s32.totalorder %s59, %s60
    %p69 = scmp.eq.s32.totalorder %s14, 0
    %p70 = por %p68, %p69
    %p71 = scmp.ne.s32.totalorder %s59, %s60
    %p72 = scmp.eq.s32.totalorder %s15, 3
    %p73 = por %p71, %p72
    %p75 = scmp.ne.s32.totalorder %s60, %s74
    %p76 = scmp.eq.s32.totalorder %s15, 0
    %p77 = por %p75, %p76
    %s79 = sadd.s32 %s78, 1
    %p82 = scmp.eq.s32.totalorder %s9, 3
    %p83 = scmp.ne.s32.totalorder %s78, %s80
    %p84 = scmp.eq.s32.totalorder %s9, 0
    %p85 = por %p83, %p84
    %p86 = scmp.ne.s32.totalorder %s78, %s80
    %p87 = scmp.eq.s32.totalorder %s14, 3
    %p88 = por %p86, %p87
    %p89 = scmp.ne.s32.totalorder %s80, %s81
    %p90 = scmp.eq.s32.totalorder %s14, 0
    %p91 = por %p89, %p90
    %p92 = scmp.ne.s32.totalorder %s80, %s81
    %p93 = scmp.eq.s32.totalorder %s15, 3
    %p94 = por %p92, %p93
    %p96 = scmp.ne.s32.totalorder %s81, %s95
    %p97 = scmp.eq.s32.totalorder %s15, 0
    %p98 = por %p96, %p97
    %s99 = ssub.s32 %s17, %s24
    %s100 = ssub.s32 %s16, %s28
    %s101 = sor.u32 %s99, %s100
    %p102 = scmp.eq.s32.totalorder %s101, 0
    %s104 = sadd.s32 %s103, 1
    %s105 = scalar_select %p102, %s103, %s104
    %p108 = pneg %p102
    %p109 = scmp.eq.s32.totalorder %s9, 3
    %p110 = por %p108, %p109
    %p111 = scmp.ne.s32.totalorder %s103, %s106
    %p112 = scmp.eq.s32.totalorder %s9, 0
    %p113 = por %p111, %p112
    %p114 = scmp.ne.s32.totalorder %s103, %s106
    %p115 = scmp.eq.s32.totalorder %s14, 3
    %p116 = por %p114, %p115
    %p117 = scmp.ne.s32.totalorder %s106, %s107
    %p118 = scmp.eq.s32.totalorder %s14, 0
    %p119 = por %p117, %p118
    %p120 = scmp.ne.s32.totalorder %s106, %s107
    %p121 = scmp.eq.s32.totalorder %s15, 3
    %p122 = por %p120, %p121
    %p124 = scmp.ne.s32.totalorder %s107, %s123
    %p125 = scmp.eq.s32.totalorder %s15, 0
    %p126 = por %p124, %p125
    %p127 = scmp.le.s32.totalorder 1, %s9
    %p128 = scmp.lt.s32.totalorder %s9, 5
    %p129 = pnand %p127, %p128
    %p130 = pneg %p129
    // Predicated region
    $region9: #{lenet5_forward.5} parent=5 // pred_check
      _
    $region10: #{lenet5_forward.5} parent=5 // pred_check_branch
      %132 = sbr.rel (%p129) target = $region12
    $region11: #{lenet5_forward.5} parent=5 // pred_region
      %s133 = ssub.s32 %s9, 1
      // Predicated region
      $region13: #{lenet5_forward.5} parent=11 // pred_check
        %p134 = pneg %p70
      $region14: #{lenet5_forward.5} parent=11 // pred_check_branch
        %136 = sbr.rel (%p134) target = $region16
      $region15: #{lenet5_forward.5} parent=11 // pred_region
        _
      $region16: #{lenet5_forward.5} parent=11 // pred_fallthru
        _
      // Predicated region
      $region17: #{lenet5_forward.5} parent=11 // pred_check
        %p137 = pneg %p91
      $region18: #{lenet5_forward.5} parent=11 // pred_check_branch
        %139 = sbr.rel (%p137) target = $region20
      $region19: #{lenet5_forward.5} parent=11 // pred_region
        _
      $region20: #{lenet5_forward.5} parent=11 // pred_fallthru
        _
    $region12: #{lenet5_forward.5} parent=5 // pred_fallthru
      _
    %p140 = scmp.lt.s32.totalorder %s9, 4
    // Predicated region
    $region21: #{lenet5_forward.5} parent=5 // pred_check
      %p141 = pneg %p140
    $region22: #{lenet5_forward.5} parent=5 // pred_check_branch
      %143 = sbr.rel (%p141) target = $region24
    $region23: #{lenet5_forward.5} parent=5 // pred_region
      // Predicated region
      $region25: #{lenet5_forward.5} parent=23 // pred_check
        %p144 = pneg %p43
      $region26: #{lenet5_forward.5} parent=23 // pred_check_branch
        %146 = sbr.rel (%p144) target = $region28
      $region27: #{lenet5_forward.5} parent=23 // pred_region
        %s147 = smul.u32 50, %s16
        %p148 = scmp.lt.s32.totalorder %s17, 3
        %s149 = scalar_select %p148, %s17, 3
        %p150 = scmp.lt.s32.totalorder %s147, 49
        %s151 = scalar_select %p150, %s147, 49
        %s152 = smul.addr %s149, 50
        %s153 = sadd.s32 %s151, %s152
        %s154 = smul.addr %s153, 4
        %s155 = scalar_lea.vmem %s0, %s154
        %s156 = smul.u32 50, %s16
      $region28: #{lenet5_forward.5} parent=23 // pred_fallthru
        _
    $region24: #{lenet5_forward.5} parent=5 // pred_fallthru
      _
    %p157 = scmp.le.s32.totalorder 1, %s9
    %p158 = scmp.lt.s32.totalorder %s9, 5
    %p159 = pnand %p157, %p158
    %p160 = pneg %p159
    // Predicated region
    $region29: #{lenet5_forward.5} parent=5 // pred_check
      _
    $region30: #{lenet5_forward.5} parent=5 // pred_check_branch
      %162 = sbr.rel (%p159) target = $region32
    $region31: #{lenet5_forward.5} parent=5 // pred_region
      %s163 = ssub.s32 %s9, 1
      %s164 = smul.u32 50, %s18
      %p165 = scmp.lt.s32.totalorder %s19, 3
      %s166 = scalar_select %p165, %s19, 3
      %p167 = scmp.lt.s32.totalorder %s164, 49
      %s168 = scalar_select %p167, %s164, 49
      %s169 = smul.addr %s166, 50
      %s170 = sadd.s32 %s168, %s169
      %s171 = smul.addr %s170, 4
      %s172 = scalar_lea.vmem %s0, %s171
      %p173 = pneg %p49
      %p174 = pneg %p46
      %p175 = pneg %p70
      %p176 = pneg %p67
      %p177 = pneg %p91
      %p178 = pneg %p88
      %p179 = pneg %p119
      %p180 = pneg %p116
      %s181 = smul.u32 50, %s18
      %p182 = scmp.lt.s32.totalorder %s19, 3
      %s183 = scalar_select %p182, %s19, 3
      %p184 = scmp.lt.s32.totalorder %s181, 49
      %s185 = scalar_select %p184, %s181, 49
      %s186 = smul.addr %s183, 50
      %s187 = sadd.s32 %s185, %s186
      %s188 = smul.addr %s187, 4
      %s189 = scalar_lea.vmem %s3, %s188
      %s190 = smul.u32 50, %s18
      %p191 = scmp.lt.s32.totalorder %s19, 3
      %s192 = scalar_select %p191, %s19, 3
      %p193 = scmp.lt.s32.totalorder %s190, 49
      %s194 = scalar_select %p193, %s190, 49
      %s195 = smul.addr %s192, 50
      %s196 = sadd.s32 %s194, %s195
      %s197 = smul.addr %s196, 4
      %s198 = scalar_lea.vmem %s0, %s197
      %s199 = smul.u32 50, %s18
      %s200 = smul.u32 50, %s18
      %p201 = scmp.lt.s32.totalorder %s19, 3
      %s202 = scalar_select %p201, %s19, 3
      %p203 = scmp.lt.s32.totalorder %s200, 49
      %s204 = scalar_select %p203, %s200, 49
      %s205 = smul.addr %s202, 50
      %s206 = sadd.s32 %s204, %s205
      %s207 = smul.addr %s206, 4
      %s208 = scalar_lea.vmem %s3, %s207
      %s209 = smul.u32 50, %s18
      %p211 = scmp.eq.s32.totalorder %s19, 0
      // Predicated region
      $region33: #{lenet5_forward.5} parent=31 // pred_check
        %p212 = pneg %p211
      $region34: #{lenet5_forward.5} parent=31 // pred_check_branch
        %214 = sbr.rel (%p212) target = $region36
      $region35: #{lenet5_forward.5} parent=31 // pred_region
        %vm215 = vcmask 261120
        %216 = vst.msk [vmem:[#allocation2] sm:$0xff] %vm215, 0.0
        %217 = vst.msk [vmem:[#allocation2 + $0x8] sm:$0xff] %vm215, 0.0
        %218 = vst.msk [vmem:[#allocation2 + $0x10] sm:$0xff] %vm215, 0.0
        %219 = vst.msk [vmem:[#allocation2 + $0x18] sm:$0xff] %vm215, 0.0
        %220 = vst.msk [vmem:[#allocation2 + $0x20] sm:$0xff] %vm215, 0.0
        %221 = vst.msk [vmem:[#allocation2 + $0x28] sm:$0xff] %vm215, 0.0
        %222 = vst.msk [vmem:[#allocation2 + $0x30] sm:$0xff] %vm215, 0.0
        %223 = vst.msk [vmem:[#allocation2 + $0x38] sm:$0xff] %vm215, 0.0
        %224 = vst.msk [vmem:[#allocation2 + $0x40] sm:$0xff] %vm215, 0.0
        %225 = vst.msk [vmem:[#allocation2 + $0x48] sm:$0xff] %vm215, 0.0
        %226 = vst.msk [vmem:[#allocation2 + $0x50] sm:$0xff] %vm215, 0.0
        %227 = vst.msk [vmem:[#allocation2 + $0x58] sm:$0xff] %vm215, 0.0
        %228 = vst.msk [vmem:[#allocation2 + $0x60] sm:$0xff] %vm215, 0.0
        %229 = vst.msk [vmem:[#allocation2 + $0x68] sm:$0xff] %vm215, 0.0
        %230 = vst.msk [vmem:[#allocation2 + $0x70] sm:$0xff] %vm215, 0.0
        %231 = vst.msk [vmem:[#allocation2 + $0x78] sm:$0xff] %vm215, 0.0
        %232 = vst.msk [vmem:[#allocation2 + $0x80] sm:$0xff] %vm215, 0.0
        %233 = vst.msk [vmem:[#allocation2 + $0x88] sm:$0xff] %vm215, 0.0
        %234 = vst.msk [vmem:[#allocation2 + $0x90] sm:$0xff] %vm215, 0.0
        %235 = vst.msk [vmem:[#allocation2 + $0x98] sm:$0xff] %vm215, 0.0
        %236 = vst.msk [vmem:[#allocation2 + $0xa0] sm:$0xff] %vm215, 0.0
        %237 = vst.msk [vmem:[#allocation2 + $0xa8] sm:$0xff] %vm215, 0.0
        %238 = vst.msk [vmem:[#allocation2 + $0xb0] sm:$0xff] %vm215, 0.0
        %239 = vst.msk [vmem:[#allocation2 + $0xb8] sm:$0xff] %vm215, 0.0
        %240 = vst.msk [vmem:[#allocation2 + $0xc0] sm:$0xff] %vm215, 0.0
        %241 = vst.msk [vmem:[#allocation2 + $0xc8] sm:$0xff] %vm215, 0.0
        %242 = vst.msk [vmem:[#allocation2 + $0xd0] sm:$0xff] %vm215, 0.0
        %243 = vst.msk [vmem:[#allocation2 + $0xd8] sm:$0xff] %vm215, 0.0
        %244 = vst.msk [vmem:[#allocation2 + $0xe0] sm:$0xff] %vm215, 0.0
        %245 = vst.msk [vmem:[#allocation2 + $0xe8] sm:$0xff] %vm215, 0.0
        %246 = vst.msk [vmem:[#allocation2 + $0xf0] sm:$0xff] %vm215, 0.0
        %247 = vst.msk [vmem:[#allocation2 + $0xf8] sm:$0xff] %vm215, 0.0
        %248 = vst.msk [vmem:[#allocation2 + $0x100] sm:$0xff] %vm215, 0.0
        %249 = vst.msk [vmem:[#allocation2 + $0x108] sm:$0xff] %vm215, 0.0
        %250 = vst.msk [vmem:[#allocation2 + $0x110] sm:$0xff] %vm215, 0.0
        %251 = vst.msk [vmem:[#allocation2 + $0x118] sm:$0xff] %vm215, 0.0
        %252 = vst.msk [vmem:[#allocation2 + $0x120] sm:$0xff] %vm215, 0.0
        %253 = vst.msk [vmem:[#allocation2 + $0x128] sm:$0xff] %vm215, 0.0
        %254 = vst.msk [vmem:[#allocation2 + $0x130] sm:$0xff] %vm215, 0.0
        %255 = vst.msk [vmem:[#allocation2 + $0x138] sm:$0xff] %vm215, 0.0
        %256 = vst.msk [vmem:[#allocation2 + $0x140] sm:$0xff] %vm215, 0.0
        %257 = vst.msk [vmem:[#allocation2 + $0x148] sm:$0xff] %vm215, 0.0
        %258 = vst.msk [vmem:[#allocation2 + $0x150] sm:$0xff] %vm215, 0.0
        %259 = vst.msk [vmem:[#allocation2 + $0x158] sm:$0xff] %vm215, 0.0
        %260 = vst.msk [vmem:[#allocation2 + $0x160] sm:$0xff] %vm215, 0.0
        %261 = vst.msk [vmem:[#allocation2 + $0x168] sm:$0xff] %vm215, 0.0
        %262 = vst.msk [vmem:[#allocation2 + $0x170] sm:$0xff] %vm215, 0.0
        %263 = vst.msk [vmem:[#allocation2 + $0x178] sm:$0xff] %vm215, 0.0
        %264 = vst.msk [vmem:[#allocation2 + $0x180] sm:$0xff] %vm215, 0.0
        %265 = vst.msk [vmem:[#allocation2 + $0x188] sm:$0xff] %vm215, 0.0
      $region36: #{lenet5_forward.5} parent=31 // pred_fallthru
        _
      %v266 = vld [vmem:[%s198] sm:$0xf]
      %v267 = vld [vmem:[%s198 + $0x4] sm:$0xf]
      %v268 = vld [vmem:[%s198 + $0x8] sm:$0xf]
      %v269 = vld [vmem:[%s198 + $0xc] sm:$0xf]
      %v270 = vld [vmem:[%s198 + $0x10] sm:$0xf]
      %v271 = vld [vmem:[%s198 + $0x14] sm:$0xf]
      %v272 = vld [vmem:[%s198 + $0x18] sm:$0xf]
      %v273 = vld [vmem:[%s198 + $0x1c] sm:$0xf]
      %v274 = vld [vmem:[%s198 + $0x20] sm:$0xf]
      %v275 = vld [vmem:[%s198 + $0x24] sm:$0xf]
      %v276 = vld [vmem:[%s198 + $0x28] sm:$0xf]
      %v277 = vld [vmem:[%s198 + $0x2c] sm:$0xf]
      %v278 = vld [vmem:[%s198 + $0x30] sm:$0xf]
      %v279 = vld [vmem:[%s198 + $0x34] sm:$0xf]
      %v280 = vld [vmem:[%s198 + $0x38] sm:$0xf]
      %v281 = vld [vmem:[%s198 + $0x3c] sm:$0xf]
      %v282 = vld [vmem:[%s198 + $0x40] sm:$0xf]
      %v283 = vld [vmem:[%s198 + $0x44] sm:$0xf]
      %v284 = vld [vmem:[%s198 + $0x48] sm:$0xf]
      %v285 = vld [vmem:[%s198 + $0x4c] sm:$0xf]
      %v286 = vld [vmem:[%s198 + $0x50] sm:$0xf]
      %v287 = vld [vmem:[%s198 + $0x54] sm:$0xf]
      %v288 = vld [vmem:[%s198 + $0x58] sm:$0xf]
      %v289 = vld [vmem:[%s198 + $0x5c] sm:$0xf]
      %v290 = vld [vmem:[%s198 + $0x60] sm:$0xf]
      %v291 = vld [vmem:[%s198 + $0x64] sm:$0xf]
      %v292 = vld [vmem:[%s198 + $0x68] sm:$0xf]
      %v293 = vld [vmem:[%s198 + $0x6c] sm:$0xf]
      %v294 = vld [vmem:[%s198 + $0x70] sm:$0xf]
      %v295 = vld [vmem:[%s198 + $0x74] sm:$0xf]
      %v296 = vld [vmem:[%s198 + $0x78] sm:$0xf]
      %v297 = vld [vmem:[%s198 + $0x7c] sm:$0xf]
      %v298 = vld [vmem:[%s198 + $0x80] sm:$0xf]
      %v299 = vld [vmem:[%s198 + $0x84] sm:$0xf]
      %v300 = vld [vmem:[%s198 + $0x88] sm:$0xf]
      %v301 = vld [vmem:[%s198 + $0x8c] sm:$0xf]
      %v302 = vld [vmem:[%s198 + $0x90] sm:$0xf]
      %v303 = vld [vmem:[%s198 + $0x94] sm:$0xf]
      %v304 = vld [vmem:[%s198 + $0x98] sm:$0xf]
      %v305 = vld [vmem:[%s198 + $0x9c] sm:$0xf]
      %v306 = vld [vmem:[%s198 + $0xa0] sm:$0xf]
      %v307 = vld [vmem:[%s198 + $0xa4] sm:$0xf]
      %v308 = vld [vmem:[%s198 + $0xa8] sm:$0xf]
      %v309 = vld [vmem:[%s198 + $0xac] sm:$0xf]
      %v310 = vld [vmem:[%s198 + $0xb0] sm:$0xf]
      %v311 = vld [vmem:[%s198 + $0xb4] sm:$0xf]
      %v312 = vld [vmem:[%s198 + $0xb8] sm:$0xf]
      %v313 = vld [vmem:[%s198 + $0xbc] sm:$0xf]
      %v314 = vld [vmem:[%s198 + $0xc0] sm:$0xf]
      %v315 = vld [vmem:[%s198 + $0xc4] sm:$0xf]
      %v316 = vld [vmem:[%s1] sm:$0xf]
      %v317 = vld [vmem:[%s1 + $0x4] sm:$0xf]
      %v318 = vld [vmem:[%s1 + $0x8] sm:$0xf]
      %v319 = vld [vmem:[%s1 + $0xc] sm:$0xf]
      %v320 = vld [vmem:[%s1 + $0x10] sm:$0xf]
      %v321 = vld [vmem:[%s1 + $0x14] sm:$0xf]
      %v322 = vld [vmem:[%s1 + $0x18] sm:$0xf]
      %v323 = vld [vmem:[%s1 + $0x1c] sm:$0xf]
      %v324 = vld [vmem:[%s1 + $0x20] sm:$0xf]
      %v325 = vld [vmem:[%s1 + $0x24] sm:$0xf]
      %v326 = vld [vmem:[%s1 + $0x28] sm:$0xf]
      %v327 = vld [vmem:[%s1 + $0x2c] sm:$0xf]
      %v328 = vld [vmem:[%s1 + $0x30] sm:$0xf]
      %v329 = vld [vmem:[%s1 + $0x34] sm:$0xf]
      %v330 = vld [vmem:[%s2] sm:$0x1]
      %v332 = vlaneseq
      %v333 = vshrl.u32 %v332, 7
      %v334 = vsub.s32 0, %v333
      %v335 = vrot.slane %v330, %v334
      %v387 = vunpack.c.l.b16 %v266
      %v388 = vunpack.c.l.b16 %v267
      %v389 = vunpack.c.l.b16 %v268
      %v390 = vunpack.c.l.b16 %v269
      %v391 = vunpack.c.l.b16 %v270
      %v392 = vunpack.c.l.b16 %v271
      %v393 = vunpack.c.l.b16 %v272
      %v394 = vunpack.c.l.b16 %v273
      %v395 = vunpack.c.l.b16 %v274
      %v396 = vunpack.c.l.b16 %v275
      %v397 = vunpack.c.l.b16 %v276
      %v398 = vunpack.c.l.b16 %v277
      %v399 = vunpack.c.l.b16 %v278
      %v400 = vunpack.c.l.b16 %v279
      %v401 = vunpack.c.l.b16 %v280
      %v402 = vunpack.c.l.b16 %v281
      %v403 = vunpack.c.l.b16 %v282
      %v404 = vunpack.c.l.b16 %v283
      %v405 = vunpack.c.l.b16 %v284
      %v406 = vunpack.c.l.b16 %v285
      %v407 = vunpack.c.l.b16 %v286
      %v408 = vunpack.c.l.b16 %v287
      %v409 = vunpack.c.l.b16 %v288
      %v410 = vunpack.c.l.b16 %v289
      %v411 = vunpack.c.l.b16 %v290
      %v412 = vunpack.c.l.b16 %v291
      %v413 = vunpack.c.l.b16 %v292
      %v414 = vunpack.c.l.b16 %v293
      %v415 = vunpack.c.l.b16 %v294
      %v416 = vunpack.c.l.b16 %v295
      %v417 = vunpack.c.l.b16 %v296
      %v418 = vunpack.c.l.b16 %v297
      %v419 = vunpack.c.l.b16 %v298
      %v420 = vunpack.c.l.b16 %v299
      %v421 = vunpack.c.l.b16 %v300
      %v422 = vunpack.c.l.b16 %v301
      %v423 = vunpack.c.l.b16 %v302
      %v424 = vunpack.c.l.b16 %v303
      %v425 = vunpack.c.l.b16 %v304
      %v426 = vunpack.c.l.b16 %v305
      %v427 = vunpack.c.l.b16 %v306
      %v428 = vunpack.c.l.b16 %v307
      %v429 = vunpack.c.l.b16 %v308
      %v430 = vunpack.c.l.b16 %v309
      %v431 = vunpack.c.l.b16 %v310
      %v432 = vunpack.c.l.b16 %v311
      %v433 = vunpack.c.l.b16 %v312
      %v434 = vunpack.c.l.b16 %v313
      %v435 = vunpack.c.l.b16 %v314
      %v436 = vunpack.c.l.b16 %v315
      %v437 = vpack.c.b16 %v388, %v387
      %v438 = vpack.c.b16 %v390, %v389
      %v439 = vpack.c.b16 %v392, %v391
      %v440 = vpack.c.b16 %v394, %v393
      %v441 = vpack.c.b16 %v396, %v395
      %v442 = vpack.c.b16 %v398, %v397
      %v443 = vpack.c.b16 %v400, %v399
      %v444 = vpack.c.b16 %v402, %v401
      %v445 = vpack.c.b16 %v404, %v403
      %v446 = vpack.c.b16 %v406, %v405
      %v447 = vpack.c.b16 %v408, %v407
      %v448 = vpack.c.b16 %v410, %v409
      %v449 = vpack.c.b16 %v412, %v411
      %v450 = vpack.c.b16 %v414, %v413
      %v451 = vpack.c.b16 %v416, %v415
      %v452 = vpack.c.b16 %v418, %v417
      %v453 = vpack.c.b16 %v420, %v419
      %v454 = vpack.c.b16 %v422, %v421
      %v455 = vpack.c.b16 %v424, %v423
      %v456 = vpack.c.b16 %v426, %v425
      %v457 = vpack.c.b16 %v428, %v427
      %v458 = vpack.c.b16 %v430, %v429
      %v459 = vpack.c.b16 %v432, %v431
      %v460 = vpack.c.b16 %v434, %v433
      %v461 = vpack.c.b16 %v436, %v435
      %v476 = vunpack.c.l.b16 %v316
      %v477 = vunpack.c.l.b16 %v317
      %v478 = vunpack.c.l.b16 %v318
      %v479 = vunpack.c.l.b16 %v319
      %v480 = vunpack.c.l.b16 %v320
      %v481 = vunpack.c.l.b16 %v321
      %v482 = vunpack.c.l.b16 %v322
      %v483 = vunpack.c.l.b16 %v323
      %v484 = vunpack.c.l.b16 %v324
      %v485 = vunpack.c.l.b16 %v325
      %v486 = vunpack.c.l.b16 %v326
      %v487 = vunpack.c.l.b16 %v327
      %v488 = vunpack.c.l.b16 %v328
      %v489 = vunpack.c.l.b16 %v329
      %v490 = vpack.c.b16 %v477, %v476
      %v491 = vpack.c.b16 %v479, %v478
      %v492 = vpack.c.b16 %v481, %v480
      %v493 = vpack.c.b16 %v483, %v482
      %v494 = vpack.c.b16 %v485, %v484
      %v495 = vpack.c.b16 %v487, %v486
      %v496 = vpack.c.b16 %v489, %v488
      %vm504 = vcmask 916480
      %v506 = vsel %vm504, %v437, 0
      %v509 = vsel %vm504, %v438, 0
      %v512 = vsel %vm504, %v439, 0
      %v515 = vsel %vm504, %v440, 0
      %v518 = vsel %vm504, %v441, 0
      %v521 = vsel %vm504, %v442, 0
      %v524 = vsel %vm504, %v443, 0
      %v527 = vsel %vm504, %v444, 0
      %v530 = vsel %vm504, %v445, 0
      %v533 = vsel %vm504, %v446, 0
      %v536 = vsel %vm504, %v447, 0
      %v539 = vsel %vm504, %v448, 0
      %v542 = vsel %vm504, %v449, 0
      %v545 = vsel %vm504, %v450, 0
      %v548 = vsel %vm504, %v451, 0
      %v551 = vsel %vm504, %v452, 0
      %v554 = vsel %vm504, %v453, 0
      %v557 = vsel %vm504, %v454, 0
      %v560 = vsel %vm504, %v455, 0
      %v563 = vsel %vm504, %v456, 0
      %v566 = vsel %vm504, %v457, 0
      %v569 = vsel %vm504, %v458, 0
      %v572 = vsel %vm504, %v459, 0
      %v575 = vsel %vm504, %v460, 0
      %v578 = vsel %vm504, %v461, 0
      %580 = vmatprep.subr.bf16.mxu0 0
      %581 = vmatpush1.bf16.msra.mxu0 0
      %582 = vmatprep.subr.bf16.mxu0 0
      %583 = vmatpush1.bf16.msra.mxu0 %v496
      %584 = vmatprep.subr.bf16.mxu0 0
      %585 = vmatpush1.bf16.msra.mxu0 %v495
      %586 = vmatprep.subr.bf16.mxu0 0
      %587 = vmatpush1.bf16.msra.mxu0 %v494
      %588 = vmatprep.subr.bf16.mxu0 0
      %589 = vmatpush1.bf16.msra.mxu0 %v493
      %590 = vmatprep.subr.bf16.mxu0 0
      %591 = vmatpush1.bf16.msra.mxu0 %v492
      %592 = vmatprep.subr.bf16.mxu0 0
      %593 = vmatpush1.bf16.msra.mxu0 %v491
      %594 = vmatprep.subr.bf16.mxu0 0
      %595 = vmatpush1.bf16.msra.mxu0 %v490
      %596 = vmatprep.subr.bf16.mxu0 0
      %597 = vmatpush2.bf16.msra.mxu0 0
      %598 = vmatprep.subr.bf16.mxu0 0
      %599 = vmatpush2.bf16.msra.mxu0 0
      %600 = vmatprep.subr.bf16.mxu0 0
      %601 = vmatpush2.bf16.msra.mxu0 0
      %602 = vmatprep.subr.bf16.mxu0 0
      %603 = vmatpush2.bf16.msra.mxu0 0
      %604 = vmatprep.subr.bf16.mxu0 0
      %605 = vmatpush2.bf16.msra.mxu0 0
      %606 = vmatprep.subr.bf16.mxu0 0
      %607 = vmatpush2.bf16.msra.mxu0 0
      %608 = vmatprep.subr.bf16.mxu0 0
      %609 = vmatpush2.bf16.msra.mxu0 0
      %610 = vmatprep.subr.bf16.mxu0 0
      %611 = vmatpush2.bf16.msra.mxu0 0
      %612 = vmatprep.mubr.bf16.mxu0 0
      %613 = vmatmul.mubr.bf16.gmra.mxu0 %v506
      %v614 = vpop.f32.mrf.mxu0
      %v615 = vadd.f32 %v335, %v614
      %v616 = vpop.f32.mrf.mxu0
      %v617 = vpop.f32.mrf.mxu0
      %v618 = vadd.f32 %v335, %v617
      %v619 = vpop.f32.mrf.mxu0
      %620 = vmatprep.mubr.bf16.mxu0 0
      %621 = vmatmul.mubr.bf16.gmra.mxu0 %v509
      %v622 = vpop.f32.mrf.mxu0
      %v623 = vadd.f32 %v335, %v622
      %v624 = vpop.f32.mrf.mxu0
      %v625 = vpop.f32.mrf.mxu0
      %v626 = vadd.f32 %v335, %v625
      %v627 = vpop.f32.mrf.mxu0
      %628 = vmatprep.mubr.bf16.mxu0 0
      %629 = vmatmul.mubr.bf16.gmra.mxu0 %v512
      %v630 = vpop.f32.mrf.mxu0
      %v631 = vadd.f32 %v335, %v630
      %v632 = vpop.f32.mrf.mxu0
      %v633 = vpop.f32.mrf.mxu0
      %v634 = vadd.f32 %v335, %v633
      %v635 = vpop.f32.mrf.mxu0
      %636 = vmatprep.mubr.bf16.mxu0 0
      %637 = vmatmul.mubr.bf16.gmra.mxu0 %v515
      %v638 = vpop.f32.mrf.mxu0
      %v639 = vadd.f32 %v335, %v638
      %v640 = vpop.f32.mrf.mxu0
      %v641 = vpop.f32.mrf.mxu0
      %v642 = vadd.f32 %v335, %v641
      %v643 = vpop.f32.mrf.mxu0
      %644 = vmatprep.mubr.bf16.mxu0 0
      %645 = vmatmul.mubr.bf16.gmra.mxu0 %v518
      %v646 = vpop.f32.mrf.mxu0
      %v647 = vadd.f32 %v335, %v646
      %v648 = vpop.f32.mrf.mxu0
      %v649 = vpop.f32.mrf.mxu0
      %v650 = vadd.f32 %v335, %v649
      %v651 = vpop.f32.mrf.mxu0
      %652 = vmatprep.mubr.bf16.mxu0 0
      %653 = vmatmul.mubr.bf16.gmra.mxu0 %v521
      %v654 = vpop.f32.mrf.mxu0
      %v655 = vadd.f32 %v335, %v654
      %v656 = vpop.f32.mrf.mxu0
      %v657 = vpop.f32.mrf.mxu0
      %v658 = vadd.f32 %v335, %v657
      %v659 = vpop.f32.mrf.mxu0
      %660 = vmatprep.mubr.bf16.mxu0 0
      %661 = vmatmul.mubr.bf16.gmra.mxu0 %v524
      %v662 = vpop.f32.mrf.mxu0
      %v663 = vadd.f32 %v335, %v662
      %v664 = vpop.f32.mrf.mxu0
      %v665 = vpop.f32.mrf.mxu0
      %v666 = vadd.f32 %v335, %v665
      %v667 = vpop.f32.mrf.mxu0
      %668 = vmatprep.mubr.bf16.mxu0 0
      %669 = vmatmul.mubr.bf16.gmra.mxu0 %v527
      %v670 = vpop.f32.mrf.mxu0
      %v671 = vadd.f32 %v335, %v670
      %v672 = vpop.f32.mrf.mxu0
      %v673 = vpop.f32.mrf.mxu0
      %v674 = vadd.f32 %v335, %v673
      %v675 = vpop.f32.mrf.mxu0
      %676 = vmatprep.mubr.bf16.mxu0 0
      %677 = vmatmul.mubr.bf16.gmra.mxu0 %v530
      %v678 = vpop.f32.mrf.mxu0
      %v679 = vadd.f32 %v335, %v678
      %v680 = vpop.f32.mrf.mxu0
      %v681 = vpop.f32.mrf.mxu0
      %v682 = vadd.f32 %v335, %v681
      %v683 = vpop.f32.mrf.mxu0
      %684 = vmatprep.mubr.bf16.mxu0 0
      %685 = vmatmul.mubr.bf16.gmra.mxu0 %v533
      %v686 = vpop.f32.mrf.mxu0
      %v687 = vadd.f32 %v335, %v686
      %v688 = vpop.f32.mrf.mxu0
      %v689 = vpop.f32.mrf.mxu0
      %v690 = vadd.f32 %v335, %v689
      %v691 = vpop.f32.mrf.mxu0
      %692 = vmatprep.mubr.bf16.mxu0 0
      %693 = vmatmul.mubr.bf16.gmra.mxu0 %v536
      %v694 = vpop.f32.mrf.mxu0
      %v695 = vadd.f32 %v335, %v694
      %v696 = vpop.f32.mrf.mxu0
      %v697 = vpop.f32.mrf.mxu0
      %v698 = vadd.f32 %v335, %v697
      %v699 = vpop.f32.mrf.mxu0
      %700 = vmatprep.mubr.bf16.mxu0 0
      %701 = vmatmul.mubr.bf16.gmra.mxu0 %v539
      %v702 = vpop.f32.mrf.mxu0
      %v703 = vadd.f32 %v335, %v702
      %v704 = vpop.f32.mrf.mxu0
      %v705 = vpop.f32.mrf.mxu0
      %v706 = vadd.f32 %v335, %v705
      %v707 = vpop.f32.mrf.mxu0
      %708 = vmatprep.mubr.bf16.mxu0 0
      %709 = vmatmul.mubr.bf16.gmra.mxu0 %v542
      %v710 = vpop.f32.mrf.mxu0
      %v711 = vadd.f32 %v335, %v710
      %v712 = vpop.f32.mrf.mxu0
      %v713 = vpop.f32.mrf.mxu0
      %v714 = vadd.f32 %v335, %v713
      %v715 = vpop.f32.mrf.mxu0
      %716 = vmatprep.mubr.bf16.mxu0 0
      %717 = vmatmul.mubr.bf16.gmra.mxu0 %v545
      %v718 = vpop.f32.mrf.mxu0
      %v719 = vadd.f32 %v335, %v718
      %v720 = vpop.f32.mrf.mxu0
      %v721 = vpop.f32.mrf.mxu0
      %v722 = vadd.f32 %v335, %v721
      %v723 = vpop.f32.mrf.mxu0
      %724 = vmatprep.mubr.bf16.mxu0 0
      %725 = vmatmul.mubr.bf16.gmra.mxu0 %v548
      %v726 = vpop.f32.mrf.mxu0
      %v727 = vadd.f32 %v335, %v726
      %v728 = vpop.f32.mrf.mxu0
      %v729 = vpop.f32.mrf.mxu0
      %v730 = vadd.f32 %v335, %v729
      %v731 = vpop.f32.mrf.mxu0
      %732 = vmatprep.mubr.bf16.mxu0 0
      %733 = vmatmul.mubr.bf16.gmra.mxu0 %v551
      %v734 = vpop.f32.mrf.mxu0
      %v735 = vadd.f32 %v335, %v734
      %v736 = vpop.f32.mrf.mxu0
      %v737 = vpop.f32.mrf.mxu0
      %v738 = vadd.f32 %v335, %v737
      %v739 = vpop.f32.mrf.mxu0
      %740 = vmatprep.mubr.bf16.mxu0 0
      %741 = vmatmul.mubr.bf16.gmra.mxu0 %v554
      %v742 = vpop.f32.mrf.mxu0
      %v743 = vadd.f32 %v335, %v742
      %v744 = vpop.f32.mrf.mxu0
      %v745 = vpop.f32.mrf.mxu0
      %v746 = vadd.f32 %v335, %v745
      %v747 = vpop.f32.mrf.mxu0
      %748 = vmatprep.mubr.bf16.mxu0 0
      %749 = vmatmul.mubr.bf16.gmra.mxu0 %v557
      %v750 = vpop.f32.mrf.mxu0
      %v751 = vadd.f32 %v335, %v750
      %v752 = vpop.f32.mrf.mxu0
      %v753 = vpop.f32.mrf.mxu0
      %v754 = vadd.f32 %v335, %v753
      %v755 = vpop.f32.mrf.mxu0
      %756 = vmatprep.mubr.bf16.mxu0 0
      %757 = vmatmul.mubr.bf16.gmra.mxu0 %v560
      %v758 = vpop.f32.mrf.mxu0
      %v759 = vadd.f32 %v335, %v758
      %v760 = vpop.f32.mrf.mxu0
      %v761 = vpop.f32.mrf.mxu0
      %v762 = vadd.f32 %v335, %v761
      %v763 = vpop.f32.mrf.mxu0
      %764 = vmatprep.mubr.bf16.mxu0 0
      %765 = vmatmul.mubr.bf16.gmra.mxu0 %v563
      %v766 = vpop.f32.mrf.mxu0
      %v767 = vadd.f32 %v335, %v766
      %v768 = vpop.f32.mrf.mxu0
      %v769 = vpop.f32.mrf.mxu0
      %v770 = vadd.f32 %v335, %v769
      %v771 = vpop.f32.mrf.mxu0
      %772 = vmatprep.mubr.bf16.mxu0 0
      %773 = vmatmul.mubr.bf16.gmra.mxu0 %v566
      %v774 = vpop.f32.mrf.mxu0
      %v775 = vadd.f32 %v335, %v774
      %v776 = vpop.f32.mrf.mxu0
      %v777 = vpop.f32.mrf.mxu0
      %v778 = vadd.f32 %v335, %v777
      %v779 = vpop.f32.mrf.mxu0
      %780 = vmatprep.mubr.bf16.mxu0 0
      %781 = vmatmul.mubr.bf16.gmra.mxu0 %v569
      %v782 = vpop.f32.mrf.mxu0
      %v783 = vadd.f32 %v335, %v782
      %v784 = vpop.f32.mrf.mxu0
      %v785 = vpop.f32.mrf.mxu0
      %v786 = vadd.f32 %v335, %v785
      %v787 = vpop.f32.mrf.mxu0
      %788 = vmatprep.mubr.bf16.mxu0 0
      %789 = vmatmul.mubr.bf16.gmra.mxu0 %v572
      %v790 = vpop.f32.mrf.mxu0
      %v791 = vadd.f32 %v335, %v790
      %v792 = vpop.f32.mrf.mxu0
      %v793 = vpop.f32.mrf.mxu0
      %v794 = vadd.f32 %v335, %v793
      %v795 = vpop.f32.mrf.mxu0
      %796 = vmatprep.mubr.bf16.mxu0 0
      %797 = vmatmul.mubr.bf16.gmra.mxu0 %v575
      %v798 = vpop.f32.mrf.mxu0
      %v799 = vadd.f32 %v335, %v798
      %v800 = vpop.f32.mrf.mxu0
      %v801 = vpop.f32.mrf.mxu0
      %v802 = vadd.f32 %v335, %v801
      %v803 = vpop.f32.mrf.mxu0
      %804 = vmatprep.mubr.bf16.mxu0 0
      %805 = vmatmul.mubr.bf16.gmra.mxu0 %v578
      %v806 = vpop.f32.mrf.mxu0
      %v807 = vadd.f32 %v335, %v806
      %v808 = vpop.f32.mrf.mxu0
      %v809 = vpop.f32.mrf.mxu0
      %v810 = vadd.f32 %v335, %v809
      %v811 = vpop.f32.mrf.mxu0
      %812 = vdwg.mxu0
      %v813 = vld [vmem:[#allocation2] sm:$0xff]
      %v814 = vld [vmem:[#allocation2 + $0x8] sm:$0xff]
      %v815 = vld [vmem:[#allocation2 + $0x10] sm:$0xff]
      %v816 = vld [vmem:[#allocation2 + $0x18] sm:$0xff]
      %v817 = vld [vmem:[#allocation2 + $0x20] sm:$0xff]
      %v818 = vld [vmem:[#allocation2 + $0x28] sm:$0xff]
      %v819 = vld [vmem:[#allocation2 + $0x30] sm:$0xff]
      %v820 = vld [vmem:[#allocation2 + $0x38] sm:$0xff]
      %v821 = vld [vmem:[#allocation2 + $0x40] sm:$0xff]
      %v822 = vld [vmem:[#allocation2 + $0x48] sm:$0xff]
      %v823 = vld [vmem:[#allocation2 + $0x50] sm:$0xff]
      %v824 = vld [vmem:[#allocation2 + $0x58] sm:$0xff]
      %v825 = vld [vmem:[#allocation2 + $0x60] sm:$0xff]
      %v826 = vld [vmem:[#allocation2 + $0x68] sm:$0xff]
      %v827 = vld [vmem:[#allocation2 + $0x70] sm:$0xff]
      %v828 = vld [vmem:[#allocation2 + $0x78] sm:$0xff]
      %v829 = vld [vmem:[#allocation2 + $0x80] sm:$0xff]
      %v830 = vld [vmem:[#allocation2 + $0x88] sm:$0xff]
      %v831 = vld [vmem:[#allocation2 + $0x90] sm:$0xff]
      %v832 = vld [vmem:[#allocation2 + $0x98] sm:$0xff]
      %v833 = vld [vmem:[#allocation2 + $0xa0] sm:$0xff]
      %v834 = vld [vmem:[#allocation2 + $0xa8] sm:$0xff]
      %v835 = vld [vmem:[#allocation2 + $0xb0] sm:$0xff]
      %v836 = vld [vmem:[#allocation2 + $0xb8] sm:$0xff]
      %v837 = vld [vmem:[#allocation2 + $0xc0] sm:$0xff]
      %v838 = vld [vmem:[#allocation2 + $0xc8] sm:$0xff]
      %v839 = vld [vmem:[#allocation2 + $0xd0] sm:$0xff]
      %v840 = vld [vmem:[#allocation2 + $0xd8] sm:$0xff]
      %v841 = vld [vmem:[#allocation2 + $0xe0] sm:$0xff]
      %v842 = vld [vmem:[#allocation2 + $0xe8] sm:$0xff]
      %v843 = vld [vmem:[#allocation2 + $0xf0] sm:$0xff]
      %v844 = vld [vmem:[#allocation2 + $0xf8] sm:$0xff]
      %v845 = vld [vmem:[#allocation2 + $0x100] sm:$0xff]
      %v846 = vld [vmem:[#allocation2 + $0x108] sm:$0xff]
      %v847 = vld [vmem:[#allocation2 + $0x110] sm:$0xff]
      %v848 = vld [vmem:[#allocation2 + $0x118] sm:$0xff]
      %v849 = vld [vmem:[#allocation2 + $0x120] sm:$0xff]
      %v850 = vld [vmem:[#allocation2 + $0x128] sm:$0xff]
      %v851 = vld [vmem:[#allocation2 + $0x130] sm:$0xff]
      %v852 = vld [vmem:[#allocation2 + $0x138] sm:$0xff]
      %v853 = vld [vmem:[#allocation2 + $0x140] sm:$0xff]
      %v854 = vld [vmem:[#allocation2 + $0x148] sm:$0xff]
      %v855 = vld [vmem:[#allocation2 + $0x150] sm:$0xff]
      %v856 = vld [vmem:[#allocation2 + $0x158] sm:$0xff]
      %v857 = vld [vmem:[#allocation2 + $0x160] sm:$0xff]
      %v858 = vld [vmem:[#allocation2 + $0x168] sm:$0xff]
      %v859 = vld [vmem:[#allocation2 + $0x170] sm:$0xff]
      %v860 = vld [vmem:[#allocation2 + $0x178] sm:$0xff]
      %v861 = vld [vmem:[#allocation2 + $0x180] sm:$0xff]
      %v862 = vld [vmem:[#allocation2 + $0x188] sm:$0xff]
      %v863 = vmul.f32 %v813, 0.5
      %v864 = vmul.f32 %v814, 0.5
      %v865 = vmul.f32 %v815, 0.5
      %v866 = vmul.f32 %v816, 0.5
      %v867 = vmul.f32 %v817, 0.5
      %v868 = vmul.f32 %v818, 0.5
      %v869 = vmul.f32 %v819, 0.5
      %v870 = vmul.f32 %v820, 0.5
      %v871 = vmul.f32 %v821, 0.5
      %v872 = vmul.f32 %v822, 0.5
      %v873 = vmul.f32 %v823, 0.5
      %v874 = vmul.f32 %v824, 0.5
      %v875 = vmul.f32 %v825, 0.5
      %v876 = vmul.f32 %v826, 0.5
      %v877 = vmul.f32 %v827, 0.5
      %v878 = vmul.f32 %v828, 0.5
      %v879 = vmul.f32 %v829, 0.5
      %v880 = vmul.f32 %v830, 0.5
      %v881 = vmul.f32 %v831, 0.5
      %v882 = vmul.f32 %v832, 0.5
      %v883 = vmul.f32 %v833, 0.5
      %v884 = vmul.f32 %v834, 0.5
      %v885 = vmul.f32 %v835, 0.5
      %v886 = vmul.f32 %v836, 0.5
      %v887 = vmul.f32 %v837, 0.5
      %v888 = vmul.f32 %v838, 0.5
      %v889 = vmul.f32 %v839, 0.5
      %v890 = vmul.f32 %v840, 0.5
      %v891 = vmul.f32 %v841, 0.5
      %v892 = vmul.f32 %v842, 0.5
      %v893 = vmul.f32 %v843, 0.5
      %v894 = vmul.f32 %v844, 0.5
      %v895 = vmul.f32 %v845, 0.5
      %v896 = vmul.f32 %v846, 0.5
      %v897 = vmul.f32 %v847, 0.5
      %v898 = vmul.f32 %v848, 0.5
      %v899 = vmul.f32 %v849, 0.5
      %v900 = vmul.f32 %v850, 0.5
      %v901 = vmul.f32 %v851, 0.5
      %v902 = vmul.f32 %v852, 0.5
      %v903 = vmul.f32 %v853, 0.5
      %v904 = vmul.f32 %v854, 0.5
      %v905 = vmul.f32 %v855, 0.5
      %v906 = vmul.f32 %v856, 0.5
      %v907 = vmul.f32 %v857, 0.5
      %v908 = vmul.f32 %v858, 0.5
      %v909 = vmul.f32 %v859, 0.5
      %v910 = vmul.f32 %v860, 0.5
      %v911 = vmul.f32 %v861, 0.5
      %v912 = vmul.f32 %v862, 0.5
      %v913 = vadd.f32 %v863, %v615
      %v914 = vadd.f32 %v864, %v618
      %v915 = vadd.f32 %v865, %v623
      %v916 = vadd.f32 %v866, %v626
      %v917 = vadd.f32 %v867, %v631
      %v918 = vadd.f32 %v868, %v634
      %v919 = vadd.f32 %v869, %v639
      %v920 = vadd.f32 %v870, %v642
      %v921 = vadd.f32 %v871, %v647
      %v922 = vadd.f32 %v872, %v650
      %v923 = vadd.f32 %v873, %v655
      %v924 = vadd.f32 %v874, %v658
      %v925 = vadd.f32 %v875, %v663
      %v926 = vadd.f32 %v876, %v666
      %v927 = vadd.f32 %v877, %v671
      %v928 = vadd.f32 %v878, %v674
      %v929 = vadd.f32 %v879, %v679
      %v930 = vadd.f32 %v880, %v682
      %v931 = vadd.f32 %v881, %v687
      %v932 = vadd.f32 %v882, %v690
      %v933 = vadd.f32 %v883, %v695
      %v934 = vadd.f32 %v884, %v698
      %v935 = vadd.f32 %v885, %v703
      %v936 = vadd.f32 %v886, %v706
      %v937 = vadd.f32 %v887, %v711
      %v938 = vadd.f32 %v888, %v714
      %v939 = vadd.f32 %v889, %v719
      %v940 = vadd.f32 %v890, %v722
      %v941 = vadd.f32 %v891, %v727
      %v942 = vadd.f32 %v892, %v730
      %v943 = vadd.f32 %v893, %v735
      %v944 = vadd.f32 %v894, %v738
      %v945 = vadd.f32 %v895, %v743
      %v946 = vadd.f32 %v896, %v746
      %v947 = vadd.f32 %v897, %v751
      %v948 = vadd.f32 %v898, %v754
      %v949 = vadd.f32 %v899, %v759
      %v950 = vadd.f32 %v900, %v762
      %v951 = vadd.f32 %v901, %v767
      %v952 = vadd.f32 %v902, %v770
      %v953 = vadd.f32 %v903, %v775
      %v954 = vadd.f32 %v904, %v778
      %v955 = vadd.f32 %v905, %v783
      %v956 = vadd.f32 %v906, %v786
      %v957 = vadd.f32 %v907, %v791
      %v958 = vadd.f32 %v908, %v794
      %v959 = vadd.f32 %v909, %v799
      %v960 = vadd.f32 %v910, %v802
      %v961 = vadd.f32 %v911, %v807
      %v962 = vadd.f32 %v912, %v810
      %vm963 = vcmp.ge.f32.partialorder %v913, 1.0
      %vm964 = vcmp.ge.f32.partialorder %v914, 1.0
      %vm965 = vcmp.ge.f32.partialorder %v915, 1.0
      %vm966 = vcmp.ge.f32.partialorder %v916, 1.0
      %vm967 = vcmp.ge.f32.partialorder %v917, 1.0
      %vm968 = vcmp.ge.f32.partialorder %v918, 1.0
      %vm969 = vcmp.ge.f32.partialorder %v919, 1.0
      %vm970 = vcmp.ge.f32.partialorder %v920, 1.0
      %vm971 = vcmp.ge.f32.partialorder %v921, 1.0
      %vm972 = vcmp.ge.f32.partialorder %v922, 1.0
      %vm973 = vcmp.ge.f32.partialorder %v923, 1.0
      %vm974 = vcmp.ge.f32.partialorder %v924, 1.0
      %vm975 = vcmp.ge.f32.partialorder %v925, 1.0
      %vm976 = vcmp.ge.f32.partialorder %v926, 1.0
      %vm977 = vcmp.ge.f32.partialorder %v927, 1.0
      %vm978 = vcmp.ge.f32.partialorder %v928, 1.0
      %vm979 = vcmp.ge.f32.partialorder %v929, 1.0
      %vm980 = vcmp.ge.f32.partialorder %v930, 1.0
      %vm981 = vcmp.ge.f32.partialorder %v931, 1.0
      %vm982 = vcmp.ge.f32.partialorder %v932, 1.0
      %vm983 = vcmp.ge.f32.partialorder %v933, 1.0
      %vm984 = vcmp.ge.f32.partialorder %v934, 1.0
      %vm985 = vcmp.ge.f32.partialorder %v935, 1.0
      %vm986 = vcmp.ge.f32.partialorder %v936, 1.0
      %vm987 = vcmp.ge.f32.partialorder %v937, 1.0
      %vm988 = vcmp.ge.f32.partialorder %v938, 1.0
      %vm989 = vcmp.ge.f32.partialorder %v939, 1.0
      %vm990 = vcmp.ge.f32.partialorder %v940, 1.0
      %vm991 = vcmp.ge.f32.partialorder %v941, 1.0
      %vm992 = vcmp.ge.f32.partialorder %v942, 1.0
      %vm993 = vcmp.ge.f32.partialorder %v943, 1.0
      %vm994 = vcmp.ge.f32.partialorder %v944, 1.0
      %vm995 = vcmp.ge.f32.partialorder %v945, 1.0
      %vm996 = vcmp.ge.f32.partialorder %v946, 1.0
      %vm997 = vcmp.ge.f32.partialorder %v947, 1.0
      %vm998 = vcmp.ge.f32.partialorder %v948, 1.0
      %vm999 = vcmp.ge.f32.partialorder %v949, 1.0
      %vm1000 = vcmp.ge.f32.partialorder %v950, 1.0
      %vm1001 = vcmp.ge.f32.partialorder %v951, 1.0
      %vm1002 = vcmp.ge.f32.partialorder %v952, 1.0
      %vm1003 = vcmp.ge.f32.partialorder %v953, 1.0
      %vm1004 = vcmp.ge.f32.partialorder %v954, 1.0
      %vm1005 = vcmp.ge.f32.partialorder %v955, 1.0
      %vm1006 = vcmp.ge.f32.partialorder %v956, 1.0
      %vm1007 = vcmp.ge.f32.partialorder %v957, 1.0
      %vm1008 = vcmp.ge.f32.partialorder %v958, 1.0
      %vm1009 = vcmp.ge.f32.partialorder %v959, 1.0
      %vm1010 = vcmp.ge.f32.partialorder %v960, 1.0
      %vm1011 = vcmp.ge.f32.partialorder %v961, 1.0
      %vm1012 = vcmp.ge.f32.partialorder %v962, 1.0
      %v1013 = vsel %vm963, 1, 0
      %v1014 = vsel %vm964, 1, 0
      %v1015 = vsel %vm965, 1, 0
      %v1016 = vsel %vm966, 1, 0
      %v1017 = vsel %vm967, 1, 0
      %v1018 = vsel %vm968, 1, 0
      %v1019 = vsel %vm969, 1, 0
      %v1020 = vsel %vm970, 1, 0
      %v1021 = vsel %vm971, 1, 0
      %v1022 = vsel %vm972, 1, 0
      %v1023 = vsel %vm973, 1, 0
      %v1024 = vsel %vm974, 1, 0
      %v1025 = vsel %vm975, 1, 0
      %v1026 = vsel %vm976, 1, 0
      %v1027 = vsel %vm977, 1, 0
      %v1028 = vsel %vm978, 1, 0
      %v1029 = vsel %vm979, 1, 0
      %v1030 = vsel %vm980, 1, 0
      %v1031 = vsel %vm981, 1, 0
      %v1032 = vsel %vm982, 1, 0
      %v1033 = vsel %vm983, 1, 0
      %v1034 = vsel %vm984, 1, 0
      %v1035 = vsel %vm985, 1, 0
      %v1036 = vsel %vm986, 1, 0
      %v1037 = vsel %vm987, 1, 0
      %v1038 = vsel %vm988, 1, 0
      %v1039 = vsel %vm989, 1, 0
      %v1040 = vsel %vm990, 1, 0
      %v1041 = vsel %vm991, 1, 0
      %v1042 = vsel %vm992, 1, 0
      %v1043 = vsel %vm993, 1, 0
      %v1044 = vsel %vm994, 1, 0
      %v1045 = vsel %vm995, 1, 0
      %v1046 = vsel %vm996, 1, 0
      %v1047 = vsel %vm997, 1, 0
      %v1048 = vsel %vm998, 1, 0
      %v1049 = vsel %vm999, 1, 0
      %v1050 = vsel %vm1000, 1, 0
      %v1051 = vsel %vm1001, 1, 0
      %v1052 = vsel %vm1002, 1, 0
      %v1053 = vsel %vm1003, 1, 0
      %v1054 = vsel %vm1004, 1, 0
      %v1055 = vsel %vm1005, 1, 0
      %v1056 = vsel %vm1006, 1, 0
      %v1057 = vsel %vm1007, 1, 0
      %v1058 = vsel %vm1008, 1, 0
      %v1059 = vsel %vm1009, 1, 0
      %v1060 = vsel %vm1010, 1, 0
      %v1061 = vsel %vm1011, 1, 0
      %v1062 = vsel %vm1012, 1, 0
      %v1063 = vcvt.s32.f32 %v1013
      %v1064 = vcvt.s32.f32 %v1014
      %v1065 = vcvt.s32.f32 %v1015
      %v1066 = vcvt.s32.f32 %v1016
      %v1067 = vcvt.s32.f32 %v1017
      %v1068 = vcvt.s32.f32 %v1018
      %v1069 = vcvt.s32.f32 %v1019
      %v1070 = vcvt.s32.f32 %v1020
      %v1071 = vcvt.s32.f32 %v1021
      %v1072 = vcvt.s32.f32 %v1022
      %v1073 = vcvt.s32.f32 %v1023
      %v1074 = vcvt.s32.f32 %v1024
      %v1075 = vcvt.s32.f32 %v1025
      %v1076 = vcvt.s32.f32 %v1026
      %v1077 = vcvt.s32.f32 %v1027
      %v1078 = vcvt.s32.f32 %v1028
      %v1079 = vcvt.s32.f32 %v1029
      %v1080 = vcvt.s32.f32 %v1030
      %v1081 = vcvt.s32.f32 %v1031
      %v1082 = vcvt.s32.f32 %v1032
      %v1083 = vcvt.s32.f32 %v1033
      %v1084 = vcvt.s32.f32 %v1034
      %v1085 = vcvt.s32.f32 %v1035
      %v1086 = vcvt.s32.f32 %v1036
      %v1087 = vcvt.s32.f32 %v1037
      %v1088 = vcvt.s32.f32 %v1038
      %v1089 = vcvt.s32.f32 %v1039
      %v1090 = vcvt.s32.f32 %v1040
      %v1091 = vcvt.s32.f32 %v1041
      %v1092 = vcvt.s32.f32 %v1042
      %v1093 = vcvt.s32.f32 %v1043
      %v1094 = vcvt.s32.f32 %v1044
      %v1095 = vcvt.s32.f32 %v1045
      %v1096 = vcvt.s32.f32 %v1046
      %v1097 = vcvt.s32.f32 %v1047
      %v1098 = vcvt.s32.f32 %v1048
      %v1099 = vcvt.s32.f32 %v1049
      %v1100 = vcvt.s32.f32 %v1050
      %v1101 = vcvt.s32.f32 %v1051
      %v1102 = vcvt.s32.f32 %v1052
      %v1103 = vcvt.s32.f32 %v1053
      %v1104 = vcvt.s32.f32 %v1054
      %v1105 = vcvt.s32.f32 %v1055
      %v1106 = vcvt.s32.f32 %v1056
      %v1107 = vcvt.s32.f32 %v1057
      %v1108 = vcvt.s32.f32 %v1058
      %v1109 = vcvt.s32.f32 %v1059
      %v1110 = vcvt.s32.f32 %v1060
      %v1111 = vcvt.s32.f32 %v1061
      %v1112 = vcvt.s32.f32 %v1062
      %v1113 = vsub.f32 1.0, %v1063
      %v1114 = vsub.f32 1.0, %v1064
      %v1115 = vsub.f32 1.0, %v1065
      %v1116 = vsub.f32 1.0, %v1066
      %v1117 = vsub.f32 1.0, %v1067
      %v1118 = vsub.f32 1.0, %v1068
      %v1119 = vsub.f32 1.0, %v1069
      %v1120 = vsub.f32 1.0, %v1070
      %v1121 = vsub.f32 1.0, %v1071
      %v1122 = vsub.f32 1.0, %v1072
      %v1123 = vsub.f32 1.0, %v1073
      %v1124 = vsub.f32 1.0, %v1074
      %v1125 = vsub.f32 1.0, %v1075
      %v1126 = vsub.f32 1.0, %v1076
      %v1127 = vsub.f32 1.0, %v1077
      %v1128 = vsub.f32 1.0, %v1078
      %v1129 = vsub.f32 1.0, %v1079
      %v1130 = vsub.f32 1.0, %v1080
      %v1131 = vsub.f32 1.0, %v1081
      %v1132 = vsub.f32 1.0, %v1082
      %v1133 = vsub.f32 1.0, %v1083
      %v1134 = vsub.f32 1.0, %v1084
      %v1135 = vsub.f32 1.0, %v1085
      %v1136 = vsub.f32 1.0, %v1086
      %v1137 = vsub.f32 1.0, %v1087
      %v1138 = vsub.f32 1.0, %v1088
      %v1139 = vsub.f32 1.0, %v1089
      %v1140 = vsub.f32 1.0, %v1090
      %v1141 = vsub.f32 1.0, %v1091
      %v1142 = vsub.f32 1.0, %v1092
      %v1143 = vsub.f32 1.0, %v1093
      %v1144 = vsub.f32 1.0, %v1094
      %v1145 = vsub.f32 1.0, %v1095
      %v1146 = vsub.f32 1.0, %v1096
      %v1147 = vsub.f32 1.0, %v1097
      %v1148 = vsub.f32 1.0, %v1098
      %v1149 = vsub.f32 1.0, %v1099
      %v1150 = vsub.f32 1.0, %v1100
      %v1151 = vsub.f32 1.0, %v1101
      %v1152 = vsub.f32 1.0, %v1102
      %v1153 = vsub.f32 1.0, %v1103
      %v1154 = vsub.f32 1.0, %v1104
      %v1155 = vsub.f32 1.0, %v1105
      %v1156 = vsub.f32 1.0, %v1106
      %v1157 = vsub.f32 1.0, %v1107
      %v1158 = vsub.f32 1.0, %v1108
      %v1159 = vsub.f32 1.0, %v1109
      %v1160 = vsub.f32 1.0, %v1110
      %v1161 = vsub.f32 1.0, %v1111
      %v1162 = vsub.f32 1.0, %v1112
      %v1163 = vmul.f32 %v913, %v1113
      %v1164 = vmul.f32 %v914, %v1114
      %v1165 = vmul.f32 %v915, %v1115
      %v1166 = vmul.f32 %v916, %v1116
      %v1167 = vmul.f32 %v917, %v1117
      %v1168 = vmul.f32 %v918, %v1118
      %v1169 = vmul.f32 %v919, %v1119
      %v1170 = vmul.f32 %v920, %v1120
      %v1171 = vmul.f32 %v921, %v1121
      %v1172 = vmul.f32 %v922, %v1122
      %v1173 = vmul.f32 %v923, %v1123
      %v1174 = vmul.f32 %v924, %v1124
      %v1175 = vmul.f32 %v925, %v1125
      %v1176 = vmul.f32 %v926, %v1126
      %v1177 = vmul.f32 %v927, %v1127
      %v1178 = vmul.f32 %v928, %v1128
      %v1179 = vmul.f32 %v929, %v1129
      %v1180 = vmul.f32 %v930, %v1130
      %v1181 = vmul.f32 %v931, %v1131
      %v1182 = vmul.f32 %v932, %v1132
      %v1183 = vmul.f32 %v933, %v1133
      %v1184 = vmul.f32 %v934, %v1134
      %v1185 = vmul.f32 %v935, %v1135
      %v1186 = vmul.f32 %v936, %v1136
      %v1187 = vmul.f32 %v937, %v1137
      %v1188 = vmul.f32 %v938, %v1138
      %v1189 = vmul.f32 %v939, %v1139
      %v1190 = vmul.f32 %v940, %v1140
      %v1191 = vmul.f32 %v941, %v1141
      %v1192 = vmul.f32 %v942, %v1142
      %v1193 = vmul.f32 %v943, %v1143
      %v1194 = vmul.f32 %v944, %v1144
      %v1195 = vmul.f32 %v945, %v1145
      %v1196 = vmul.f32 %v946, %v1146
      %v1197 = vmul.f32 %v947, %v1147
      %v1198 = vmul.f32 %v948, %v1148
      %v1199 = vmul.f32 %v949, %v1149
      %v1200 = vmul.f32 %v950, %v1150
      %v1201 = vmul.f32 %v951, %v1151
      %v1202 = vmul.f32 %v952, %v1152
      %v1203 = vmul.f32 %v953, %v1153
      %v1204 = vmul.f32 %v954, %v1154
      %v1205 = vmul.f32 %v955, %v1155
      %v1206 = vmul.f32 %v956, %v1156
      %v1207 = vmul.f32 %v957, %v1157
      %v1208 = vmul.f32 %v958, %v1158
      %v1209 = vmul.f32 %v959, %v1159
      %v1210 = vmul.f32 %v960, %v1160
      %v1211 = vmul.f32 %v961, %v1161
      %v1212 = vmul.f32 %v962, %v1162
      %vm1213 = vcmask 261120
      %1214 = vst.msk [vmem:[#allocation2] sm:$0xff] %vm1213, %v1163
      %1215 = vst.msk [vmem:[#allocation2 + $0x8] sm:$0xff] %vm1213, %v1164
      %1216 = vst.msk [vmem:[#allocation2 + $0x10] sm:$0xff] %vm1213, %v1165
      %1217 = vst.msk [vmem:[#allocation2 + $0x18] sm:$0xff] %vm1213, %v1166
      %1218 = vst.msk [vmem:[#allocation2 + $0x20] sm:$0xff] %vm1213, %v1167
      %1219 = vst.msk [vmem:[#allocation2 + $0x28] sm:$0xff] %vm1213, %v1168
      %1220 = vst.msk [vmem:[#allocation2 + $0x30] sm:$0xff] %vm1213, %v1169
      %1221 = vst.msk [vmem:[#allocation2 + $0x38] sm:$0xff] %vm1213, %v1170
      %1222 = vst.msk [vmem:[#allocation2 + $0x40] sm:$0xff] %vm1213, %v1171
      %1223 = vst.msk [vmem:[#allocation2 + $0x48] sm:$0xff] %vm1213, %v1172
      %1224 = vst.msk [vmem:[#allocation2 + $0x50] sm:$0xff] %vm1213, %v1173
      %1225 = vst.msk [vmem:[#allocation2 + $0x58] sm:$0xff] %vm1213, %v1174
      %1226 = vst.msk [vmem:[#allocation2 + $0x60] sm:$0xff] %vm1213, %v1175
      %1227 = vst.msk [vmem:[#allocation2 + $0x68] sm:$0xff] %vm1213, %v1176
      %1228 = vst.msk [vmem:[#allocation2 + $0x70] sm:$0xff] %vm1213, %v1177
      %1229 = vst.msk [vmem:[#allocation2 + $0x78] sm:$0xff] %vm1213, %v1178
      %1230 = vst.msk [vmem:[#allocation2 + $0x80] sm:$0xff] %vm1213, %v1179
      %1231 = vst.msk [vmem:[#allocation2 + $0x88] sm:$0xff] %vm1213, %v1180
      %1232 = vst.msk [vmem:[#allocation2 + $0x90] sm:$0xff] %vm1213, %v1181
      %1233 = vst.msk [vmem:[#allocation2 + $0x98] sm:$0xff] %vm1213, %v1182
      %1234 = vst.msk [vmem:[#allocation2 + $0xa0] sm:$0xff] %vm1213, %v1183
      %1235 = vst.msk [vmem:[#allocation2 + $0xa8] sm:$0xff] %vm1213, %v1184
      %1236 = vst.msk [vmem:[#allocation2 + $0xb0] sm:$0xff] %vm1213, %v1185
      %1237 = vst.msk [vmem:[#allocation2 + $0xb8] sm:$0xff] %vm1213, %v1186
      %1238 = vst.msk [vmem:[#allocation2 + $0xc0] sm:$0xff] %vm1213, %v1187
      %1239 = vst.msk [vmem:[#allocation2 + $0xc8] sm:$0xff] %vm1213, %v1188
      %1240 = vst.msk [vmem:[#allocation2 + $0xd0] sm:$0xff] %vm1213, %v1189
      %1241 = vst.msk [vmem:[#allocation2 + $0xd8] sm:$0xff] %vm1213, %v1190
      %1242 = vst.msk [vmem:[#allocation2 + $0xe0] sm:$0xff] %vm1213, %v1191
      %1243 = vst.msk [vmem:[#allocation2 + $0xe8] sm:$0xff] %vm1213, %v1192
      %1244 = vst.msk [vmem:[#allocation2 + $0xf0] sm:$0xff] %vm1213, %v1193
      %1245 = vst.msk [vmem:[#allocation2 + $0xf8] sm:$0xff] %vm1213, %v1194
      %1246 = vst.msk [vmem:[#allocation2 + $0x100] sm:$0xff] %vm1213, %v1195
      %1247 = vst.msk [vmem:[#allocation2 + $0x108] sm:$0xff] %vm1213, %v1196
      %1248 = vst.msk [vmem:[#allocation2 + $0x110] sm:$0xff] %vm1213, %v1197
      %1249 = vst.msk [vmem:[#allocation2 + $0x118] sm:$0xff] %vm1213, %v1198
      %1250 = vst.msk [vmem:[#allocation2 + $0x120] sm:$0xff] %vm1213, %v1199
      %1251 = vst.msk [vmem:[#allocation2 + $0x128] sm:$0xff] %vm1213, %v1200
      %1252 = vst.msk [vmem:[#allocation2 + $0x130] sm:$0xff] %vm1213, %v1201
      %1253 = vst.msk [vmem:[#allocation2 + $0x138] sm:$0xff] %vm1213, %v1202
      %1254 = vst.msk [vmem:[#allocation2 + $0x140] sm:$0xff] %vm1213, %v1203
      %1255 = vst.msk [vmem:[#allocation2 + $0x148] sm:$0xff] %vm1213, %v1204
      %1256 = vst.msk [vmem:[#allocation2 + $0x150] sm:$0xff] %vm1213, %v1205
      %1257 = vst.msk [vmem:[#allocation2 + $0x158] sm:$0xff] %vm1213, %v1206
      %1258 = vst.msk [vmem:[#allocation2 + $0x160] sm:$0xff] %vm1213, %v1207
      %1259 = vst.msk [vmem:[#allocation2 + $0x168] sm:$0xff] %vm1213, %v1208
      %1260 = vst.msk [vmem:[#allocation2 + $0x170] sm:$0xff] %vm1213, %v1209
      %1261 = vst.msk [vmem:[#allocation2 + $0x178] sm:$0xff] %vm1213, %v1210
      %1262 = vst.msk [vmem:[#allocation2 + $0x180] sm:$0xff] %vm1213, %v1211
      %1263 = vst.msk [vmem:[#allocation2 + $0x188] sm:$0xff] %vm1213, %v1212
      %v1264 = vpack.c.bf16 %v1064, %v1063
      %v1265 = vpack.c.bf16 %v1066, %v1065
      %v1266 = vpack.c.bf16 %v1068, %v1067
      %v1267 = vpack.c.bf16 %v1070, %v1069
      %v1268 = vpack.c.bf16 %v1072, %v1071
      %v1269 = vpack.c.bf16 %v1074, %v1073
      %v1270 = vpack.c.bf16 %v1076, %v1075
      %v1271 = vpack.c.bf16 %v1078, %v1077
      %v1272 = vpack.c.bf16 %v1080, %v1079
      %v1273 = vpack.c.bf16 %v1082, %v1081
      %v1274 = vpack.c.bf16 %v1084, %v1083
      %v1275 = vpack.c.bf16 %v1086, %v1085
      %v1276 = vpack.c.bf16 %v1088, %v1087
      %v1277 = vpack.c.bf16 %v1090, %v1089
      %v1278 = vpack.c.bf16 %v1092, %v1091
      %v1279 = vpack.c.bf16 %v1094, %v1093
      %v1280 = vpack.c.bf16 %v1096, %v1095
      %v1281 = vpack.c.bf16 %v1098, %v1097
      %v1282 = vpack.c.bf16 %v1100, %v1099
      %v1283 = vpack.c.bf16 %v1102, %v1101
      %v1284 = vpack.c.bf16 %v1104, %v1103
      %v1285 = vpack.c.bf16 %v1106, %v1105
      %v1286 = vpack.c.bf16 %v1108, %v1107
      %v1287 = vpack.c.bf16 %v1110, %v1109
      %v1288 = vpack.c.bf16 %v1112, %v1111
      %v1314 = vunpack.c.l.b16 %v1264
      %v1315 = vunpack.c.h.b16 %v1264
      %v1316 = vunpack.c.l.b16 %v1265
      %v1317 = vunpack.c.h.b16 %v1265
      %v1318 = vunpack.c.l.b16 %v1266
      %v1319 = vunpack.c.h.b16 %v1266
      %v1320 = vunpack.c.l.b16 %v1267
      %v1321 = vunpack.c.h.b16 %v1267
      %v1322 = vunpack.c.l.b16 %v1268
      %v1323 = vunpack.c.h.b16 %v1268
      %v1324 = vunpack.c.l.b16 %v1269
      %v1325 = vunpack.c.h.b16 %v1269
      %v1326 = vunpack.c.l.b16 %v1270
      %v1327 = vunpack.c.h.b16 %v1270
      %v1328 = vunpack.c.l.b16 %v1271
      %v1329 = vunpack.c.h.b16 %v1271
      %v1330 = vunpack.c.l.b16 %v1272
      %v1331 = vunpack.c.h.b16 %v1272
      %v1332 = vunpack.c.l.b16 %v1273
      %v1333 = vunpack.c.h.b16 %v1273
      %v1334 = vunpack.c.l.b16 %v1274
      %v1335 = vunpack.c.h.b16 %v1274
      %v1336 = vunpack.c.l.b16 %v1275
      %v1337 = vunpack.c.h.b16 %v1275
      %v1338 = vunpack.c.l.b16 %v1276
      %v1339 = vunpack.c.h.b16 %v1276
      %v1340 = vunpack.c.l.b16 %v1277
      %v1341 = vunpack.c.h.b16 %v1277
      %v1342 = vunpack.c.l.b16 %v1278
      %v1343 = vunpack.c.h.b16 %v1278
      %v1344 = vunpack.c.l.b16 %v1279
      %v1345 = vunpack.c.h.b16 %v1279
      %v1346 = vunpack.c.l.b16 %v1280
      %v1347 = vunpack.c.h.b16 %v1280
      %v1348 = vunpack.c.l.b16 %v1281
      %v1349 = vunpack.c.h.b16 %v1281
      %v1350 = vunpack.c.l.b16 %v1282
      %v1351 = vunpack.c.h.b16 %v1282
      %v1352 = vunpack.c.l.b16 %v1283
      %v1353 = vunpack.c.h.b16 %v1283
      %v1354 = vunpack.c.l.b16 %v1284
      %v1355 = vunpack.c.h.b16 %v1284
      %v1356 = vunpack.c.l.b16 %v1285
      %v1357 = vunpack.c.h.b16 %v1285
      %v1358 = vunpack.c.l.b16 %v1286
      %v1359 = vunpack.c.h.b16 %v1286
      %v1360 = vunpack.c.l.b16 %v1287
      %v1361 = vunpack.c.h.b16 %v1287
      %v1362 = vunpack.c.l.b16 %v1288
      %v1363 = vunpack.c.h.b16 %v1288
      %v1364 = vpack.c.b16 %v1314, %v1314
      %v1365 = vpack.c.b16 %v1315, %v1315
      %v1366 = vpack.c.b16 %v1316, %v1316
      %v1367 = vpack.c.b16 %v1317, %v1317
      %v1368 = vpack.c.b16 %v1318, %v1318
      %v1369 = vpack.c.b16 %v1319, %v1319
      %v1370 = vpack.c.b16 %v1320, %v1320
      %v1371 = vpack.c.b16 %v1321, %v1321
      %v1372 = vpack.c.b16 %v1322, %v1322
      %v1373 = vpack.c.b16 %v1323, %v1323
      %v1374 = vpack.c.b16 %v1324, %v1324
      %v1375 = vpack.c.b16 %v1325, %v1325
      %v1376 = vpack.c.b16 %v1326, %v1326
      %v1377 = vpack.c.b16 %v1327, %v1327
      %v1378 = vpack.c.b16 %v1328, %v1328
      %v1379 = vpack.c.b16 %v1329, %v1329
      %v1380 = vpack.c.b16 %v1330, %v1330
      %v1381 = vpack.c.b16 %v1331, %v1331
      %v1382 = vpack.c.b16 %v1332, %v1332
      %v1383 = vpack.c.b16 %v1333, %v1333
      %v1384 = vpack.c.b16 %v1334, %v1334
      %v1385 = vpack.c.b16 %v1335, %v1335
      %v1386 = vpack.c.b16 %v1336, %v1336
      %v1387 = vpack.c.b16 %v1337, %v1337
      %v1388 = vpack.c.b16 %v1338, %v1338
      %v1389 = vpack.c.b16 %v1339, %v1339
      %v1390 = vpack.c.b16 %v1340, %v1340
      %v1391 = vpack.c.b16 %v1341, %v1341
      %v1392 = vpack.c.b16 %v1342, %v1342
      %v1393 = vpack.c.b16 %v1343, %v1343
      %v1394 = vpack.c.b16 %v1344, %v1344
      %v1395 = vpack.c.b16 %v1345, %v1345
      %v1396 = vpack.c.b16 %v1346, %v1346
      %v1397 = vpack.c.b16 %v1347, %v1347
      %v1398 = vpack.c.b16 %v1348, %v1348
      %v1399 = vpack.c.b16 %v1349, %v1349
      %v1400 = vpack.c.b16 %v1350, %v1350
      %v1401 = vpack.c.b16 %v1351, %v1351
      %v1402 = vpack.c.b16 %v1352, %v1352
      %v1403 = vpack.c.b16 %v1353, %v1353
      %v1404 = vpack.c.b16 %v1354, %v1354
      %v1405 = vpack.c.b16 %v1355, %v1355
      %v1406 = vpack.c.b16 %v1356, %v1356
      %v1407 = vpack.c.b16 %v1357, %v1357
      %v1408 = vpack.c.b16 %v1358, %v1358
      %v1409 = vpack.c.b16 %v1359, %v1359
      %v1410 = vpack.c.b16 %v1360, %v1360
      %v1411 = vpack.c.b16 %v1361, %v1361
      %v1412 = vpack.c.b16 %v1362, %v1362
      %v1413 = vpack.c.b16 %v1363, %v1363
      %vm1464 = vcmask 257024
      %1465 = vst.msk [vmem:[%s208] sm:$0xf] %vm1464, %v1364
      %1466 = vst.msk [vmem:[%s208 + $0x4] sm:$0xf] %vm1464, %v1365
      %1467 = vst.msk [vmem:[%s208 + $0x8] sm:$0xf] %vm1464, %v1366
      %1468 = vst.msk [vmem:[%s208 + $0xc] sm:$0xf] %vm1464, %v1367
      %1469 = vst.msk [vmem:[%s208 + $0x10] sm:$0xf] %vm1464, %v1368
      %1470 = vst.msk [vmem:[%s208 + $0x14] sm:$0xf] %vm1464, %v1369
      %1471 = vst.msk [vmem:[%s208 + $0x18] sm:$0xf] %vm1464, %v1370
      %1472 = vst.msk [vmem:[%s208 + $0x1c] sm:$0xf] %vm1464, %v1371
      %1473 = vst.msk [vmem:[%s208 + $0x20] sm:$0xf] %vm1464, %v1372
      %1474 = vst.msk [vmem:[%s208 + $0x24] sm:$0xf] %vm1464, %v1373
      %1475 = vst.msk [vmem:[%s208 + $0x28] sm:$0xf] %vm1464, %v1374
      %1476 = vst.msk [vmem:[%s208 + $0x2c] sm:$0xf] %vm1464, %v1375
      %1477 = vst.msk [vmem:[%s208 + $0x30] sm:$0xf] %vm1464, %v1376
      %1478 = vst.msk [vmem:[%s208 + $0x34] sm:$0xf] %vm1464, %v1377
      %1479 = vst.msk [vmem:[%s208 + $0x38] sm:$0xf] %vm1464, %v1378
      %1480 = vst.msk [vmem:[%s208 + $0x3c] sm:$0xf] %vm1464, %v1379
      %1481 = vst.msk [vmem:[%s208 + $0x40] sm:$0xf] %vm1464, %v1380
      %1482 = vst.msk [vmem:[%s208 + $0x44] sm:$0xf] %vm1464, %v1381
      %1483 = vst.msk [vmem:[%s208 + $0x48] sm:$0xf] %vm1464, %v1382
      %1484 = vst.msk [vmem:[%s208 + $0x4c] sm:$0xf] %vm1464, %v1383
      %1485 = vst.msk [vmem:[%s208 + $0x50] sm:$0xf] %vm1464, %v1384
      %1486 = vst.msk [vmem:[%s208 + $0x54] sm:$0xf] %vm1464, %v1385
      %1487 = vst.msk [vmem:[%s208 + $0x58] sm:$0xf] %vm1464, %v1386
      %1488 = vst.msk [vmem:[%s208 + $0x5c] sm:$0xf] %vm1464, %v1387
      %1489 = vst.msk [vmem:[%s208 + $0x60] sm:$0xf] %vm1464, %v1388
      %1490 = vst.msk [vmem:[%s208 + $0x64] sm:$0xf] %vm1464, %v1389
      %1491 = vst.msk [vmem:[%s208 + $0x68] sm:$0xf] %vm1464, %v1390
      %1492 = vst.msk [vmem:[%s208 + $0x6c] sm:$0xf] %vm1464, %v1391
      %1493 = vst.msk [vmem:[%s208 + $0x70] sm:$0xf] %vm1464, %v1392
      %1494 = vst.msk [vmem:[%s208 + $0x74] sm:$0xf] %vm1464, %v1393
      %1495 = vst.msk [vmem:[%s208 + $0x78] sm:$0xf] %vm1464, %v1394
      %1496 = vst.msk [vmem:[%s208 + $0x7c] sm:$0xf] %vm1464, %v1395
      %1497 = vst.msk [vmem:[%s208 + $0x80] sm:$0xf] %vm1464, %v1396
      %1498 = vst.msk [vmem:[%s208 + $0x84] sm:$0xf] %vm1464, %v1397
      %1499 = vst.msk [vmem:[%s208 + $0x88] sm:$0xf] %vm1464, %v1398
      %1500 = vst.msk [vmem:[%s208 + $0x8c] sm:$0xf] %vm1464, %v1399
      %1501 = vst.msk [vmem:[%s208 + $0x90] sm:$0xf] %vm1464, %v1400
      %1502 = vst.msk [vmem:[%s208 + $0x94] sm:$0xf] %vm1464, %v1401
      %1503 = vst.msk [vmem:[%s208 + $0x98] sm:$0xf] %vm1464, %v1402
      %1504 = vst.msk [vmem:[%s208 + $0x9c] sm:$0xf] %vm1464, %v1403
      %1505 = vst.msk [vmem:[%s208 + $0xa0] sm:$0xf] %vm1464, %v1404
      %1506 = vst.msk [vmem:[%s208 + $0xa4] sm:$0xf] %vm1464, %v1405
      %1507 = vst.msk [vmem:[%s208 + $0xa8] sm:$0xf] %vm1464, %v1406
      %1508 = vst.msk [vmem:[%s208 + $0xac] sm:$0xf] %vm1464, %v1407
      %1509 = vst.msk [vmem:[%s208 + $0xb0] sm:$0xf] %vm1464, %v1408
      %1510 = vst.msk [vmem:[%s208 + $0xb4] sm:$0xf] %vm1464, %v1409
      %1511 = vst.msk [vmem:[%s208 + $0xb8] sm:$0xf] %vm1464, %v1410
      %1512 = vst.msk [vmem:[%s208 + $0xbc] sm:$0xf] %vm1464, %v1411
      %1513 = vst.msk [vmem:[%s208 + $0xc0] sm:$0xf] %vm1464, %v1412
      %1514 = vst.msk [vmem:[%s208 + $0xc4] sm:$0xf] %vm1464, %v1413
      %s1515 = smul.u32 50, %s18
      %p1516 = scmp.lt.s32.totalorder %s19, 3
      %s1517 = scalar_select %p1516, %s19, 3
      %p1518 = scmp.lt.s32.totalorder %s1515, 49
      %s1519 = scalar_select %p1518, %s1515, 49
      %s1520 = smul.addr %s1517, 50
      %s1521 = sadd.s32 %s1519, %s1520
      %s1522 = smul.addr %s1521, 4
      %s1523 = scalar_lea.vmem %s3, %s1522
      // Predicated region
      $region37: #{lenet5_forward.5} parent=31 // pred_check
        %p1524 = pneg %p116
      $region38: #{lenet5_forward.5} parent=31 // pred_check_branch
        %1526 = sbr.rel (%p1524) target = $region40
      $region39: #{lenet5_forward.5} parent=31 // pred_region
        %s1527 = smul.u32 50, %s18
      $region40: #{lenet5_forward.5} parent=31 // pred_fallthru
        _
    $region32: #{lenet5_forward.5} parent=5 // pred_fallthru
      _
    %p1528 = scmp.le.s32.totalorder 2, %s9
    // Predicated region
    $region41: #{lenet5_forward.5} parent=5 // pred_check
      %p1529 = pneg %p1528
    $region42: #{lenet5_forward.5} parent=5 // pred_check_branch
      %1531 = sbr.rel (%p1529) target = $region44
    $region43: #{lenet5_forward.5} parent=5 // pred_region
      %s1532 = ssub.s32 %s9, 2
      // Predicated region
      $region45: #{lenet5_forward.5} parent=43 // pred_check
        %p1533 = pneg %p122
      $region46: #{lenet5_forward.5} parent=43 // pred_check_branch
        %1535 = sbr.rel (%p1533) target = $region48
      $region47: #{lenet5_forward.5} parent=43 // pred_region
        %s1536 = smul.u32 50, %s20
        %p1537 = scmp.lt.s32.totalorder %s21, 3
        %s1538 = scalar_select %p1537, %s21, 3
        %p1539 = scmp.lt.s32.totalorder %s1536, 49
        %s1540 = scalar_select %p1539, %s1536, 49
        %s1541 = smul.addr %s1538, 50
        %s1542 = sadd.s32 %s1540, %s1541
        %s1543 = smul.addr %s1542, 4
        %s1544 = scalar_lea.vmem %s3, %s1543
      $region48: #{lenet5_forward.5} parent=43 // pred_fallthru
        _
    $region44: #{lenet5_forward.5} parent=5 // pred_fallthru
      _
  $region6: #{lenet5_forward.5} parent=0 // loop_footer
    %s13 = sadd.s32 1, %s9
  $region7: #{lenet5_forward.5} parent=0 // loop_footer_branch
    %8 = sbr.rel target = $region3
  $region8: #{lenet5_forward.5} parent=0 // loop_exit
    _

// kernel: lenet5_forward.6
$region0: #{lenet5_forward.6}
  #allocation0 [shape = 'u32[]', space=smem, size = 0x4, offset = 0x4, fixed_abs, tag = 'smem constant byte address 0x4 - core index']
  #allocation1 [shape = 'u32[144,128]{1,0:T(1,128)}', space=vmem, size = 0x12000, scoped, tag = 'internal scratch']
  #allocation2 [shape = 'f32[112,64]{1,0:T(8,128)}', space=vmem, size = 0xe000, scoped, tag = 'scratch operand']
  %s0 = inlined_call_operand.vmem [shape: bf16[4,112,288], index: 0, kind: input, shape index: {}]
  %s1 = inlined_call_operand.vmem [shape: bf16[288,64], index: 1, kind: input, shape index: {}]
  %s2 = inlined_call_operand.vmem [shape: f32[1,64], index: 2, kind: input, shape index: {}]
  %s3 = inlined_call_operand.vmem [shape: bf16[4,112,64], index: 3, kind: output, shape index: {}]
  %s4 = sld [smem:[#allocation0]]
  $region49: #{lenet5_forward.6} parent=0
    _
  %s6 = ssub.s32 1, %s4
  %s7 = scalar_select 0, %s6, %s4
  loop: start=0, step=1, limit=6
  $region2: #{lenet5_forward.6} parent=0 // loop_pre_header
    _
  $region3: #{lenet5_forward.6} parent=0 // loop_header
    %s9 = sphi 0, %s13
    %p10 = scmp.ge.s32.totalorder %s9, 6
    %s16 = sphi 0, %s28
    %s17 = sphi 0, %s24
    %s18 = sphi 0, %s16
    %s19 = sphi 0, %s17
    %s20 = sphi 0, %s18
    %s21 = sphi 0, %s19
    %s33 = sphi 0, %s35
    %s36 = sphi 0, %s33
    %s37 = sphi 0, %s36
    %s53 = sphi 0, %s37
    %s57 = sphi 0, %s57
    %s59 = sphi 0, %s57
    %s60 = sphi 0, %s59
    %s74 = sphi 0, %s60
    %s78 = sphi 0, %s78
    %s80 = sphi 0, %s78
    %s81 = sphi 0, %s80
    %s95 = sphi 0, %s81
    %s103 = sphi 0, %s105
    %s106 = sphi 0, %s103
    %s107 = sphi 0, %s106
    %s123 = sphi 0, %s107
  $region4: #{lenet5_forward.6} parent=0 // loop_header_branch
    %12 = sbr.rel (%p10) target = $region8
  $region5: #{lenet5_forward.6} parent=0 // loop_body
    %s14 = ssub.s32 %s9, 1
    %s15 = ssub.s32 %s9, 2
    %s22 = sadd.s32 1, %s17
    %p23 = scmp.ge.s32.totalorder %s22, 4
    %s24 = scalar_select %p23, 0, %s22
    %s25 = sadd.s32 1, %s16
    %s26 = scalar_select %p23, %s25, %s16
    %p27 = scmp.ge.s32.totalorder %s26, 1
    %s28 = scalar_select %p27, 0, %s26
    %s29 = ssub.s32 %s17, %s24
    %s30 = ssub.s32 %s16, %s28
    %s31 = sor.u32 %s29, %s30
    %p32 = scmp.eq.s32.totalorder %s31, 0
    %s34 = sadd.s32 %s33, 1
    %s35 = scalar_select %p32, %s33, %s34
    %p38 = pneg %p32
    %p39 = scmp.eq.s32.totalorder %s9, 3
    %p40 = por %p38, %p39
    %p41 = scmp.ne.s32.totalorder %s33, %s36
    %p42 = scmp.eq.s32.totalorder %s9, 0
    %p43 = por %p41, %p42
    %p44 = scmp.ne.s32.totalorder %s33, %s36
    %p45 = scmp.eq.s32.totalorder %s14, 3
    %p46 = por %p44, %p45
    %p47 = scmp.ne.s32.totalorder %s36, %s37
    %p48 = scmp.eq.s32.totalorder %s14, 0
    %p49 = por %p47, %p48
    %p50 = scmp.ne.s32.totalorder %s36, %s37
    %p51 = scmp.eq.s32.totalorder %s15, 3
    %p52 = por %p50, %p51
    %p54 = scmp.ne.s32.totalorder %s37, %s53
    %p55 = scmp.eq.s32.totalorder %s15, 0
    %p56 = por %p54, %p55
    %s58 = sadd.s32 %s57, 1
    %p61 = scmp.eq.s32.totalorder %s9, 3
    %p62 = scmp.ne.s32.totalorder %s57, %s59
    %p63 = scmp.eq.s32.totalorder %s9, 0
    %p64 = por %p62, %p63
    %p65 = scmp.ne.s32.totalorder %s57, %s59
    %p66 = scmp.eq.s32.totalorder %s14, 3
    %p67 = por %p65, %p66
    %p68 = scmp.ne.s32.totalorder %s59, %s60
    %p69 = scmp.eq.s32.totalorder %s14, 0
    %p70 = por %p68, %p69
    %p71 = scmp.ne.s32.totalorder %s59, %s60
    %p72 = scmp.eq.s32.totalorder %s15, 3
    %p73 = por %p71, %p72
    %p75 = scmp.ne.s32.totalorder %s60, %s74
    %p76 = scmp.eq.s32.totalorder %s15, 0
    %p77 = por %p75, %p76
    %s79 = sadd.s32 %s78, 1
    %p82 = scmp.eq.s32.totalorder %s9, 3
    %p83 = scmp.ne.s32.totalorder %s78, %s80
    %p84 = scmp.eq.s32.totalorder %s9, 0
    %p85 = por %p83, %p84
    %p86 = scmp.ne.s32.totalorder %s78, %s80
    %p87 = scmp.eq.s32.totalorder %s14, 3
    %p88 = por %p86, %p87
    %p89 = scmp.ne.s32.totalorder %s80, %s81
    %p90 = scmp.eq.s32.totalorder %s14, 0
    %p91 = por %p89, %p90
    %p92 = scmp.ne.s32.totalorder %s80, %s81
    %p93 = scmp.eq.s32.totalorder %s15, 3
    %p94 = por %p92, %p93
    %p96 = scmp.ne.s32.totalorder %s81, %s95
    %p97 = scmp.eq.s32.totalorder %s15, 0
    %p98 = por %p96, %p97
    %s99 = ssub.s32 %s17, %s24
    %s100 = ssub.s32 %s16, %s28
    %s101 = sor.u32 %s99, %s100
    %p102 = scmp.eq.s32.totalorder %s101, 0
    %s104 = sadd.s32 %s103, 1
    %s105 = scalar_select %p102, %s103, %s104
    %p108 = pneg %p102
    %p109 = scmp.eq.s32.totalorder %s9, 3
    %p110 = por %p108, %p109
    %p111 = scmp.ne.s32.totalorder %s103, %s106
    %p112 = scmp.eq.s32.totalorder %s9, 0
    %p113 = por %p111, %p112
    %p114 = scmp.ne.s32.totalorder %s103, %s106
    %p115 = scmp.eq.s32.totalorder %s14, 3
    %p116 = por %p114, %p115
    %p117 = scmp.ne.s32.totalorder %s106, %s107
    %p118 = scmp.eq.s32.totalorder %s14, 0
    %p119 = por %p117, %p118
    %p120 = scmp.ne.s32.totalorder %s106, %s107
    %p121 = scmp.eq.s32.totalorder %s15, 3
    %p122 = por %p120, %p121
    %p124 = scmp.ne.s32.totalorder %s107, %s123
    %p125 = scmp.eq.s32.totalorder %s15, 0
    %p126 = por %p124, %p125
    %p127 = scmp.le.s32.totalorder 1, %s9
    %p128 = scmp.lt.s32.totalorder %s9, 5
    %p129 = pnand %p127, %p128
    %p130 = pneg %p129
    // Predicated region
    $region9: #{lenet5_forward.6} parent=5 // pred_check
      _
    $region10: #{lenet5_forward.6} parent=5 // pred_check_branch
      %132 = sbr.rel (%p129) target = $region12
    $region11: #{lenet5_forward.6} parent=5 // pred_region
      %s133 = ssub.s32 %s9, 1
      // Predicated region
      $region13: #{lenet5_forward.6} parent=11 // pred_check
        %p134 = pneg %p70
      $region14: #{lenet5_forward.6} parent=11 // pred_check_branch
        %136 = sbr.rel (%p134) target = $region16
      $region15: #{lenet5_forward.6} parent=11 // pred_region
        _
      $region16: #{lenet5_forward.6} parent=11 // pred_fallthru
        _
      // Predicated region
      $region17: #{lenet5_forward.6} parent=11 // pred_check
        %p137 = pneg %p91
      $region18: #{lenet5_forward.6} parent=11 // pred_check_branch
        %139 = sbr.rel (%p137) target = $region20
      $region19: #{lenet5_forward.6} parent=11 // pred_region
        _
      $region20: #{lenet5_forward.6} parent=11 // pred_fallthru
        _
    $region12: #{lenet5_forward.6} parent=5 // pred_fallthru
      _
    %p140 = scmp.lt.s32.totalorder %s9, 4
    // Predicated region
    $region21: #{lenet5_forward.6} parent=5 // pred_check
      %p141 = pneg %p140
    $region22: #{lenet5_forward.6} parent=5 // pred_check_branch
      %143 = sbr.rel (%p141) target = $region24
    $region23: #{lenet5_forward.6} parent=5 // pred_region
      // Predicated region
      $region25: #{lenet5_forward.6} parent=23 // pred_check
        %p144 = pneg %p43
      $region26: #{lenet5_forward.6} parent=23 // pred_check_branch
        %146 = sbr.rel (%p144) target = $region28
      $region27: #{lenet5_forward.6} parent=23 // pred_region
        %s147 = smul.u32 14, %s16
        %p148 = scmp.lt.s32.totalorder %s17, 3
        %s149 = scalar_select %p148, %s17, 3
        %p150 = scmp.lt.s32.totalorder %s147, 13
        %s151 = scalar_select %p150, %s147, 13
        %s152 = smul.addr %s151, 3
        %s153 = smul.addr %s149, 42
        %s154 = sadd.s32 %s152, %s153
        %s155 = smul.addr %s154, 4
        %s156 = scalar_lea.vmem %s0, %s155
        %s157 = smul.u32 14, %s16
      $region28: #{lenet5_forward.6} parent=23 // pred_fallthru
        _
    $region24: #{lenet5_forward.6} parent=5 // pred_fallthru
      _
    %p158 = scmp.le.s32.totalorder 1, %s9
    %p159 = scmp.lt.s32.totalorder %s9, 5
    %p160 = pnand %p158, %p159
    %p161 = pneg %p160
    // Predicated region
    $region29: #{lenet5_forward.6} parent=5 // pred_check
      _
    $region30: #{lenet5_forward.6} parent=5 // pred_check_branch
      %163 = sbr.rel (%p160) target = $region32
    $region31: #{lenet5_forward.6} parent=5 // pred_region
      %s164 = ssub.s32 %s9, 1
      %s165 = smul.u32 14, %s18
      %p166 = scmp.lt.s32.totalorder %s19, 3
      %s167 = scalar_select %p166, %s19, 3
      %p168 = scmp.lt.s32.totalorder %s165, 13
      %s169 = scalar_select %p168, %s165, 13
      %s170 = smul.addr %s169, 3
      %s171 = smul.addr %s167, 42
      %s172 = sadd.s32 %s170, %s171
      %s173 = smul.addr %s172, 4
      %s174 = scalar_lea.vmem %s0, %s173
      %p175 = pneg %p49
      %p176 = pneg %p46
      %p177 = pneg %p70
      %p178 = pneg %p67
      %p179 = pneg %p91
      %p180 = pneg %p88
      %p181 = pneg %p119
      %p182 = pneg %p116
      %s183 = smul.u32 14, %s18
      %p184 = scmp.lt.s32.totalorder %s19, 3
      %s185 = scalar_select %p184, %s19, 3
      %p186 = scmp.lt.s32.totalorder %s183, 13
      %s187 = scalar_select %p186, %s183, 13
      %s188 = smul.addr %s185, 14
      %s189 = sadd.s32 %s187, %s188
      %s190 = smul.addr %s189, 4
      %s191 = scalar_lea.vmem %s3, %s190
      %s192 = smul.u32 14, %s18
      %p193 = scmp.lt.s32.totalorder %s19, 3
      %s194 = scalar_select %p193, %s19, 3
      %p195 = scmp.lt.s32.totalorder %s192, 13
      %s196 = scalar_select %p195, %s192, 13
      %s197 = smul.addr %s196, 3
      %s198 = smul.addr %s194, 42
      %s199 = sadd.s32 %s197, %s198
      %s200 = smul.addr %s199, 4
      %s201 = scalar_lea.vmem %s0, %s200
      %s202 = smul.u32 14, %s18
      %s203 = smul.u32 14, %s18
      %p204 = scmp.lt.s32.totalorder %s19, 3
      %s205 = scalar_select %p204, %s19, 3
      %p206 = scmp.lt.s32.totalorder %s203, 13
      %s207 = scalar_select %p206, %s203, 13
      %s208 = smul.addr %s205, 14
      %s209 = sadd.s32 %s207, %s208
      %s210 = smul.addr %s209, 4
      %s211 = scalar_lea.vmem %s3, %s210
      %s212 = smul.u32 14, %s18
      %p214 = scmp.eq.s32.totalorder %s19, 0
      // Predicated region
      $region33: #{lenet5_forward.6} parent=31 // pred_check
        %p215 = pneg %p214
      $region34: #{lenet5_forward.6} parent=31 // pred_check_branch
        %217 = sbr.rel (%p215) target = $region36
      $region35: #{lenet5_forward.6} parent=31 // pred_region
        %vm218 = vcmask 523264
        %219 = vst.msk [vmem:[#allocation2] sm:$0xff] %vm218, 0.0
        %220 = vst.msk [vmem:[#allocation2 + $0x8] sm:$0xff] %vm218, 0.0
        %221 = vst.msk [vmem:[#allocation2 + $0x10] sm:$0xff] %vm218, 0.0
        %222 = vst.msk [vmem:[#allocation2 + $0x18] sm:$0xff] %vm218, 0.0
        %223 = vst.msk [vmem:[#allocation2 + $0x20] sm:$0xff] %vm218, 0.0
        %224 = vst.msk [vmem:[#allocation2 + $0x28] sm:$0xff] %vm218, 0.0
        %225 = vst.msk [vmem:[#allocation2 + $0x30] sm:$0xff] %vm218, 0.0
        %226 = vst.msk [vmem:[#allocation2 + $0x38] sm:$0xff] %vm218, 0.0
        %227 = vst.msk [vmem:[#allocation2 + $0x40] sm:$0xff] %vm218, 0.0
        %228 = vst.msk [vmem:[#allocation2 + $0x48] sm:$0xff] %vm218, 0.0
        %229 = vst.msk [vmem:[#allocation2 + $0x50] sm:$0xff] %vm218, 0.0
        %230 = vst.msk [vmem:[#allocation2 + $0x58] sm:$0xff] %vm218, 0.0
        %231 = vst.msk [vmem:[#allocation2 + $0x60] sm:$0xff] %vm218, 0.0
        %232 = vst.msk [vmem:[#allocation2 + $0x68] sm:$0xff] %vm218, 0.0
      $region36: #{lenet5_forward.6} parent=31 // pred_fallthru
        _
      %v233 = vld [vmem:[%s201] sm:$0xff]
      %v234 = vld [vmem:[%s201 + $0x8] sm:$0xf]
      %v235 = vld [vmem:[%s201 + $0xc] sm:$0xff]
      %v236 = vld [vmem:[%s201 + $0x14] sm:$0xf]
      %v237 = vld [vmem:[%s201 + $0x18] sm:$0xff]
      %v238 = vld [vmem:[%s201 + $0x20] sm:$0xf]
      %v239 = vld [vmem:[%s201 + $0x24] sm:$0xff]
      %v240 = vld [vmem:[%s201 + $0x2c] sm:$0xf]
      %v241 = vld [vmem:[%s201 + $0x30] sm:$0xff]
      %v242 = vld [vmem:[%s201 + $0x38] sm:$0xf]
      %v243 = vld [vmem:[%s201 + $0x3c] sm:$0xff]
      %v244 = vld [vmem:[%s201 + $0x44] sm:$0xf]
      %v245 = vld [vmem:[%s201 + $0x48] sm:$0xff]
      %v246 = vld [vmem:[%s201 + $0x50] sm:$0xf]
      %v247 = vld [vmem:[%s201 + $0x54] sm:$0xff]
      %v248 = vld [vmem:[%s201 + $0x5c] sm:$0xf]
      %v249 = vld [vmem:[%s201 + $0x60] sm:$0xff]
      %v250 = vld [vmem:[%s201 + $0x68] sm:$0xf]
      %v251 = vld [vmem:[%s201 + $0x6c] sm:$0xff]
      %v252 = vld [vmem:[%s201 + $0x74] sm:$0xf]
      %v253 = vld [vmem:[%s201 + $0x78] sm:$0xff]
      %v254 = vld [vmem:[%s201 + $0x80] sm:$0xf]
      %v255 = vld [vmem:[%s201 + $0x84] sm:$0xff]
      %v256 = vld [vmem:[%s201 + $0x8c] sm:$0xf]
      %v257 = vld [vmem:[%s201 + $0x90] sm:$0xff]
      %v258 = vld [vmem:[%s201 + $0x98] sm:$0xf]
      %v259 = vld [vmem:[%s201 + $0x9c] sm:$0xff]
      %v260 = vld [vmem:[%s201 + $0xa4] sm:$0xf]
      %v261 = vld [vmem:[%s1] sm:$0xf]
      %v262 = vld [vmem:[%s1 + $0x4] sm:$0xf]
      %v263 = vld [vmem:[%s1 + $0x8] sm:$0xf]
      %v264 = vld [vmem:[%s1 + $0xc] sm:$0xf]
      %v265 = vld [vmem:[%s1 + $0x10] sm:$0xf]
      %v266 = vld [vmem:[%s1 + $0x14] sm:$0xf]
      %v267 = vld [vmem:[%s1 + $0x18] sm:$0xf]
      %v268 = vld [vmem:[%s1 + $0x1c] sm:$0xf]
      %v269 = vld [vmem:[%s1 + $0x20] sm:$0xf]
      %v270 = vld [vmem:[%s1 + $0x24] sm:$0xf]
      %v271 = vld [vmem:[%s1 + $0x28] sm:$0xf]
      %v272 = vld [vmem:[%s1 + $0x2c] sm:$0xf]
      %v273 = vld [vmem:[%s1 + $0x30] sm:$0xf]
      %v274 = vld [vmem:[%s1 + $0x34] sm:$0xf]
      %v275 = vld [vmem:[%s1 + $0x38] sm:$0xf]
      %v276 = vld [vmem:[%s1 + $0x3c] sm:$0xf]
      %v277 = vld [vmem:[%s1 + $0x40] sm:$0xf]
      %v278 = vld [vmem:[%s1 + $0x44] sm:$0xf]
      %v279 = vld [vmem:[%s1 + $0x48] sm:$0xf]
      %v280 = vld [vmem:[%s1 + $0x4c] sm:$0xf]
      %v281 = vld [vmem:[%s1 + $0x50] sm:$0xf]
      %v282 = vld [vmem:[%s1 + $0x54] sm:$0xf]
      %v283 = vld [vmem:[%s1 + $0x58] sm:$0xf]
      %v284 = vld [vmem:[%s1 + $0x5c] sm:$0xf]
      %v285 = vld [vmem:[%s1 + $0x60] sm:$0xf]
      %v286 = vld [vmem:[%s1 + $0x64] sm:$0xf]
      %v287 = vld [vmem:[%s1 + $0x68] sm:$0xf]
      %v288 = vld [vmem:[%s1 + $0x6c] sm:$0xf]
      %v289 = vld [vmem:[%s1 + $0x70] sm:$0xf]
      %v290 = vld [vmem:[%s1 + $0x74] sm:$0xf]
      %v291 = vld [vmem:[%s1 + $0x78] sm:$0xf]
      %v292 = vld [vmem:[%s1 + $0x7c] sm:$0xf]
      %v293 = vld [vmem:[%s1 + $0x80] sm:$0xf]
      %v294 = vld [vmem:[%s1 + $0x84] sm:$0xf]
      %v295 = vld [vmem:[%s1 + $0x88] sm:$0xf]
      %v296 = vld [vmem:[%s1 + $0x8c] sm:$0xf]
      %v297 = vld [vmem:[%s2] sm:$0x1]
      %v299 = vlaneseq
      %v300 = vshrl.u32 %v299, 7
      %v301 = vsub.s32 0, %v300
      %v302 = vrot.slane %v297, %v301
      %v332 = vunpack.c.l.b16 %v233
      %v333 = vunpack.c.h.b16 %v233
      %v334 = vunpack.c.l.b16 %v234
      %v335 = vunpack.c.l.b16 %v235
      %v336 = vunpack.c.h.b16 %v235
      %v337 = vunpack.c.l.b16 %v236
      %v338 = vunpack.c.l.b16 %v237
      %v339 = vunpack.c.h.b16 %v237
      %v340 = vunpack.c.l.b16 %v238
      %v341 = vunpack.c.l.b16 %v239
      %v342 = vunpack.c.h.b16 %v239
      %v343 = vunpack.c.l.b16 %v240
      %v344 = vunpack.c.l.b16 %v241
      %v345 = vunpack.c.h.b16 %v241
      %v346 = vunpack.c.l.b16 %v242
      %v347 = vunpack.c.l.b16 %v243
      %v348 = vunpack.c.h.b16 %v243
      %v349 = vunpack.c.l.b16 %v244
      %v350 = vunpack.c.l.b16 %v245
      %v351 = vunpack.c.h.b16 %v245
      %v352 = vunpack.c.l.b16 %v246
      %v353 = vunpack.c.l.b16 %v247
      %v354 = vunpack.c.h.b16 %v247
      %v355 = vunpack.c.l.b16 %v248
      %v356 = vunpack.c.l.b16 %v249
      %v357 = vunpack.c.h.b16 %v249
      %v358 = vunpack.c.l.b16 %v250
      %v359 = vunpack.c.l.b16 %v251
      %v360 = vunpack.c.h.b16 %v251
      %v361 = vunpack.c.l.b16 %v252
      %v362 = vunpack.c.l.b16 %v253
      %v363 = vunpack.c.h.b16 %v253
      %v364 = vunpack.c.l.b16 %v254
      %v365 = vunpack.c.l.b16 %v255
      %v366 = vunpack.c.h.b16 %v255
      %v367 = vunpack.c.l.b16 %v256
      %v368 = vunpack.c.l.b16 %v257
      %v369 = vunpack.c.h.b16 %v257
      %v370 = vunpack.c.l.b16 %v258
      %v371 = vunpack.c.l.b16 %v259
      %v372 = vunpack.c.h.b16 %v259
      %v373 = vunpack.c.l.b16 %v260
      %v374 = vpack.c.b16 %v335, %v332
      %v375 = vpack.c.b16 %v336, %v333
      %v376 = vpack.c.b16 %v337, %v334
      %v377 = vpack.c.b16 %v341, %v338
      %v378 = vpack.c.b16 %v342, %v339
      %v379 = vpack.c.b16 %v343, %v340
      %v380 = vpack.c.b16 %v347, %v344
      %v381 = vpack.c.b16 %v348, %v345
      %v382 = vpack.c.b16 %v349, %v346
      %v383 = vpack.c.b16 %v353, %v350
      %v384 = vpack.c.b16 %v354, %v351
      %v385 = vpack.c.b16 %v355, %v352
      %v386 = vpack.c.b16 %v359, %v356
      %v387 = vpack.c.b16 %v360, %v357
      %v388 = vpack.c.b16 %v361, %v358
      %v389 = vpack.c.b16 %v365, %v362
      %v390 = vpack.c.b16 %v366, %v363
      %v391 = vpack.c.b16 %v367, %v364
      %v392 = vpack.c.b16 %v371, %v368
      %v393 = vpack.c.b16 %v372, %v369
      %v394 = vpack.c.b16 %v373, %v370
      %v445 = vunpack.c.l.b16 %v261
      %v446 = vunpack.c.l.b16 %v262
      %v447 = vunpack.c.l.b16 %v263
      %v448 = vunpack.c.l.b16 %v264
      %v449 = vunpack.c.l.b16 %v265
      %v450 = vunpack.c.l.b16 %v266
      %v451 = vunpack.c.l.b16 %v267
      %v452 = vunpack.c.l.b16 %v268
      %v453 = vunpack.c.l.b16 %v269
      %v454 = vunpack.c.l.b16 %v270
      %v455 = vunpack.c.l.b16 %v271
      %v456 = vunpack.c.l.b16 %v272
      %v457 = vunpack.c.l.b16 %v273
      %v458 = vunpack.c.l.b16 %v274
      %v459 = vunpack.c.l.b16 %v275
      %v460 = vunpack.c.l.b16 %v276
      %v461 = vunpack.c.l.b16 %v277
      %v462 = vunpack.c.l.b16 %v278
      %v463 = vunpack.c.l.b16 %v279
      %v464 = vunpack.c.l.b16 %v280
      %v465 = vunpack.c.l.b16 %v281
      %v466 = vunpack.c.l.b16 %v282
      %v467 = vunpack.c.l.b16 %v283
      %v468 = vunpack.c.l.b16 %v284
      %v469 = vunpack.c.l.b16 %v285
      %v470 = vunpack.c.l.b16 %v286
      %v471 = vunpack.c.l.b16 %v287
      %v472 = vunpack.c.l.b16 %v288
      %v473 = vunpack.c.l.b16 %v289
      %v474 = vunpack.c.l.b16 %v290
      %v475 = vunpack.c.l.b16 %v291
      %v476 = vunpack.c.l.b16 %v292
      %v477 = vunpack.c.l.b16 %v293
      %v478 = vunpack.c.l.b16 %v294
      %v479 = vunpack.c.l.b16 %v295
      %v480 = vunpack.c.l.b16 %v296
      %v481 = vpack.c.b16 %v446, %v445
      %v482 = vpack.c.b16 %v448, %v447
      %v483 = vpack.c.b16 %v450, %v449
      %v484 = vpack.c.b16 %v452, %v451
      %v485 = vpack.c.b16 %v454, %v453
      %v486 = vpack.c.b16 %v456, %v455
      %v487 = vpack.c.b16 %v458, %v457
      %v488 = vpack.c.b16 %v460, %v459
      %v489 = vpack.c.b16 %v462, %v461
      %v490 = vpack.c.b16 %v464, %v463
      %v491 = vpack.c.b16 %v466, %v465
      %v492 = vpack.c.b16 %v468, %v467
      %v493 = vpack.c.b16 %v470, %v469
      %v494 = vpack.c.b16 %v472, %v471
      %v495 = vpack.c.b16 %v474, %v473
      %v496 = vpack.c.b16 %v476, %v475
      %v497 = vpack.c.b16 %v478, %v477
      %v498 = vpack.c.b16 %v480, %v479
      %vm517 = vcmask 261120
      %v519 = vsel %vm517, %v376, 0
      %v522 = vsel %vm517, %v379, 0
      %v525 = vsel %vm517, %v382, 0
      %v528 = vsel %vm517, %v385, 0
      %v531 = vsel %vm517, %v388, 0
      %v534 = vsel %vm517, %v391, 0
      %v537 = vsel %vm517, %v394, 0
      %539 = vmatprep.subr.bf16.mxu0 0
      %540 = vmatpush1.bf16.msra.mxu0 %v488
      %541 = vmatprep.subr.bf16.mxu0 0
      %542 = vmatpush1.bf16.msra.mxu0 %v487
      %543 = vmatprep.subr.bf16.mxu0 0
      %544 = vmatpush1.bf16.msra.mxu0 %v486
      %545 = vmatprep.subr.bf16.mxu0 0
      %546 = vmatpush1.bf16.msra.mxu0 %v485
      %547 = vmatprep.subr.bf16.mxu0 0
      %548 = vmatpush1.bf16.msra.mxu0 %v484
      %549 = vmatprep.subr.bf16.mxu0 0
      %550 = vmatpush1.bf16.msra.mxu0 %v483
      %551 = vmatprep.subr.bf16.mxu0 0
      %552 = vmatpush1.bf16.msra.mxu0 %v482
      %553 = vmatprep.subr.bf16.mxu0 0
      %554 = vmatpush1.bf16.msra.mxu0 %v481
      %555 = vmatprep.subr.bf16.mxu0 0
      %556 = vmatpush2.bf16.msra.mxu0 %v496
      %557 = vmatprep.subr.bf16.mxu0 0
      %558 = vmatpush2.bf16.msra.mxu0 %v495
      %559 = vmatprep.subr.bf16.mxu0 0
      %560 = vmatpush2.bf16.msra.mxu0 %v494
      %561 = vmatprep.subr.bf16.mxu0 0
      %562 = vmatpush2.bf16.msra.mxu0 %v493
      %563 = vmatprep.subr.bf16.mxu0 0
      %564 = vmatpush2.bf16.msra.mxu0 %v492
      %565 = vmatprep.subr.bf16.mxu0 0
      %566 = vmatpush2.bf16.msra.mxu0 %v491
      %567 = vmatprep.subr.bf16.mxu0 0
      %568 = vmatpush2.bf16.msra.mxu0 %v490
      %569 = vmatprep.subr.bf16.mxu0 0
      %570 = vmatpush2.bf16.msra.mxu0 %v489
      %571 = vmatprep.mubr.bf16.mxu0 %v375
      %572 = vmatmul.mubr.bf16.gmra.mxu0 %v374
      %v573 = vpop.f32.mrf.mxu0
      %v574 = vadd.f32 %v302, %v573
      %v575 = vpop.f32.mrf.mxu0
      %v576 = vpop.f32.mrf.mxu0
      %v577 = vadd.f32 %v302, %v576
      %v578 = vpop.f32.mrf.mxu0
      %579 = vmatprep.mubr.bf16.mxu0 %v378
      %580 = vmatmul.mubr.bf16.gmra.mxu0 %v377
      %v581 = vpop.f32.mrf.mxu0
      %v582 = vadd.f32 %v302, %v581
      %v583 = vpop.f32.mrf.mxu0
      %v584 = vpop.f32.mrf.mxu0
      %v585 = vadd.f32 %v302, %v584
      %v586 = vpop.f32.mrf.mxu0
      %587 = vmatprep.mubr.bf16.mxu0 %v381
      %588 = vmatmul.mubr.bf16.gmra.mxu0 %v380
      %v589 = vpop.f32.mrf.mxu0
      %v590 = vadd.f32 %v302, %v589
      %v591 = vpop.f32.mrf.mxu0
      %v592 = vpop.f32.mrf.mxu0
      %v593 = vadd.f32 %v302, %v592
      %v594 = vpop.f32.mrf.mxu0
      %595 = vmatprep.mubr.bf16.mxu0 %v384
      %596 = vmatmul.mubr.bf16.gmra.mxu0 %v383
      %v597 = vpop.f32.mrf.mxu0
      %v598 = vadd.f32 %v302, %v597
      %v599 = vpop.f32.mrf.mxu0
      %v600 = vpop.f32.mrf.mxu0
      %v601 = vadd.f32 %v302, %v600
      %v602 = vpop.f32.mrf.mxu0
      %603 = vmatprep.mubr.bf16.mxu0 %v387
      %604 = vmatmul.mubr.bf16.gmra.mxu0 %v386
      %v605 = vpop.f32.mrf.mxu0
      %v606 = vadd.f32 %v302, %v605
      %v607 = vpop.f32.mrf.mxu0
      %v608 = vpop.f32.mrf.mxu0
      %v609 = vadd.f32 %v302, %v608
      %v610 = vpop.f32.mrf.mxu0
      %611 = vmatprep.mubr.bf16.mxu0 %v390
      %612 = vmatmul.mubr.bf16.gmra.mxu0 %v389
      %v613 = vpop.f32.mrf.mxu0
      %v614 = vadd.f32 %v302, %v613
      %v615 = vpop.f32.mrf.mxu0
      %v616 = vpop.f32.mrf.mxu0
      %v617 = vadd.f32 %v302, %v616
      %v618 = vpop.f32.mrf.mxu0
      %619 = vmatprep.mubr.bf16.mxu0 %v393
      %620 = vmatmul.mubr.bf16.gmra.mxu0 %v392
      %v621 = vpop.f32.mrf.mxu0
      %v622 = vadd.f32 %v302, %v621
      %v623 = vpop.f32.mrf.mxu0
      %v624 = vpop.f32.mrf.mxu0
      %v625 = vadd.f32 %v302, %v624
      %v626 = vpop.f32.mrf.mxu0
      %627 = vdwg.mxu0
      %628 = vmatprep.subr.bf16.mxu0 0
      %629 = vmatpush1.bf16.msra.mxu0 0
      %630 = vmatprep.subr.bf16.mxu0 0
      %631 = vmatpush1.bf16.msra.mxu0 0
      %632 = vmatprep.subr.bf16.mxu0 0
      %633 = vmatpush1.bf16.msra.mxu0 0
      %634 = vmatprep.subr.bf16.mxu0 0
      %635 = vmatpush1.bf16.msra.mxu0 0
      %636 = vmatprep.subr.bf16.mxu0 0
      %637 = vmatpush1.bf16.msra.mxu0 0
      %638 = vmatprep.subr.bf16.mxu0 0
      %639 = vmatpush1.bf16.msra.mxu0 0
      %640 = vmatprep.subr.bf16.mxu0 0
      %641 = vmatpush1.bf16.msra.mxu0 %v498
      %642 = vmatprep.subr.bf16.mxu0 0
      %643 = vmatpush1.bf16.msra.mxu0 %v497
      %644 = vmatprep.subr.bf16.mxu0 0
      %645 = vmatpush2.bf16.msra.mxu0 0
      %646 = vmatprep.subr.bf16.mxu0 0
      %647 = vmatpush2.bf16.msra.mxu0 0
      %648 = vmatprep.subr.bf16.mxu0 0
      %649 = vmatpush2.bf16.msra.mxu0 0
      %650 = vmatprep.subr.bf16.mxu0 0
      %651 = vmatpush2.bf16.msra.mxu0 0
      %652 = vmatprep.subr.bf16.mxu0 0
      %653 = vmatpush2.bf16.msra.mxu0 0
      %654 = vmatprep.subr.bf16.mxu0 0
      %655 = vmatpush2.bf16.msra.mxu0 0
      %656 = vmatprep.subr.bf16.mxu0 0
      %657 = vmatpush2.bf16.msra.mxu0 0
      %658 = vmatprep.subr.bf16.mxu0 0
      %659 = vmatpush2.bf16.msra.mxu0 0
      %660 = vmatprep.mubr.bf16.mxu0 0
      %661 = vmatmul.mubr.bf16.gmra.mxu0 %v519
      %v662 = vpop.f32.mrf.mxu0
      %v663 = vadd.f32 %v574, %v662
      %v664 = vpop.f32.mrf.mxu0
      %v665 = vpop.f32.mrf.mxu0
      %v666 = vadd.f32 %v577, %v665
      %v667 = vpop.f32.mrf.mxu0
      %668 = vmatprep.mubr.bf16.mxu0 0
      %669 = vmatmul.mubr.bf16.gmra.mxu0 %v522
      %v670 = vpop.f32.mrf.mxu0
      %v671 = vadd.f32 %v582, %v670
      %v672 = vpop.f32.mrf.mxu0
      %v673 = vpop.f32.mrf.mxu0
      %v674 = vadd.f32 %v585, %v673
      %v675 = vpop.f32.mrf.mxu0
      %676 = vmatprep.mubr.bf16.mxu0 0
      %677 = vmatmul.mubr.bf16.gmra.mxu0 %v525
      %v678 = vpop.f32.mrf.mxu0
      %v679 = vadd.f32 %v590, %v678
      %v680 = vpop.f32.mrf.mxu0
      %v681 = vpop.f32.mrf.mxu0
      %v682 = vadd.f32 %v593, %v681
      %v683 = vpop.f32.mrf.mxu0
      %684 = vmatprep.mubr.bf16.mxu0 0
      %685 = vmatmul.mubr.bf16.gmra.mxu0 %v528
      %v686 = vpop.f32.mrf.mxu0
      %v687 = vadd.f32 %v598, %v686
      %v688 = vpop.f32.mrf.mxu0
      %v689 = vpop.f32.mrf.mxu0
      %v690 = vadd.f32 %v601, %v689
      %v691 = vpop.f32.mrf.mxu0
      %692 = vmatprep.mubr.bf16.mxu0 0
      %693 = vmatmul.mubr.bf16.gmra.mxu0 %v531
      %v694 = vpop.f32.mrf.mxu0
      %v695 = vadd.f32 %v606, %v694
      %v696 = vpop.f32.mrf.mxu0
      %v697 = vpop.f32.mrf.mxu0
      %v698 = vadd.f32 %v609, %v697
      %v699 = vpop.f32.mrf.mxu0
      %700 = vmatprep.mubr.bf16.mxu0 0
      %701 = vmatmul.mubr.bf16.gmra.mxu0 %v534
      %v702 = vpop.f32.mrf.mxu0
      %v703 = vadd.f32 %v614, %v702
      %v704 = vpop.f32.mrf.mxu0
      %v705 = vpop.f32.mrf.mxu0
      %v706 = vadd.f32 %v617, %v705
      %v707 = vpop.f32.mrf.mxu0
      %708 = vmatprep.mubr.bf16.mxu0 0
      %709 = vmatmul.mubr.bf16.gmra.mxu0 %v537
      %v710 = vpop.f32.mrf.mxu0
      %v711 = vadd.f32 %v622, %v710
      %v712 = vpop.f32.mrf.mxu0
      %v713 = vpop.f32.mrf.mxu0
      %v714 = vadd.f32 %v625, %v713
      %v715 = vpop.f32.mrf.mxu0
      %716 = vdwg.mxu0
      %v717 = vld [vmem:[#allocation2] sm:$0xff]
      %v718 = vld [vmem:[#allocation2 + $0x8] sm:$0xff]
      %v719 = vld [vmem:[#allocation2 + $0x10] sm:$0xff]
      %v720 = vld [vmem:[#allocation2 + $0x18] sm:$0xff]
      %v721 = vld [vmem:[#allocation2 + $0x20] sm:$0xff]
      %v722 = vld [vmem:[#allocation2 + $0x28] sm:$0xff]
      %v723 = vld [vmem:[#allocation2 + $0x30] sm:$0xff]
      %v724 = vld [vmem:[#allocation2 + $0x38] sm:$0xff]
      %v725 = vld [vmem:[#allocation2 + $0x40] sm:$0xff]
      %v726 = vld [vmem:[#allocation2 + $0x48] sm:$0xff]
      %v727 = vld [vmem:[#allocation2 + $0x50] sm:$0xff]
      %v728 = vld [vmem:[#allocation2 + $0x58] sm:$0xff]
      %v729 = vld [vmem:[#allocation2 + $0x60] sm:$0xff]
      %v730 = vld [vmem:[#allocation2 + $0x68] sm:$0xff]
      %v731 = vmul.f32 %v717, 0.5
      %v732 = vmul.f32 %v718, 0.5
      %v733 = vmul.f32 %v719, 0.5
      %v734 = vmul.f32 %v720, 0.5
      %v735 = vmul.f32 %v721, 0.5
      %v736 = vmul.f32 %v722, 0.5
      %v737 = vmul.f32 %v723, 0.5
      %v738 = vmul.f32 %v724, 0.5
      %v739 = vmul.f32 %v725, 0.5
      %v740 = vmul.f32 %v726, 0.5
      %v741 = vmul.f32 %v727, 0.5
      %v742 = vmul.f32 %v728, 0.5
      %v743 = vmul.f32 %v729, 0.5
      %v744 = vmul.f32 %v730, 0.5
      %v745 = vadd.f32 %v731, %v663
      %v746 = vadd.f32 %v732, %v666
      %v747 = vadd.f32 %v733, %v671
      %v748 = vadd.f32 %v734, %v674
      %v749 = vadd.f32 %v735, %v679
      %v750 = vadd.f32 %v736, %v682
      %v751 = vadd.f32 %v737, %v687
      %v752 = vadd.f32 %v738, %v690
      %v753 = vadd.f32 %v739, %v695
      %v754 = vadd.f32 %v740, %v698
      %v755 = vadd.f32 %v741, %v703
      %v756 = vadd.f32 %v742, %v706
      %v757 = vadd.f32 %v743, %v711
      %v758 = vadd.f32 %v744, %v714
      %vm759 = vcmp.ge.f32.partialorder %v745, 1.0
      %vm760 = vcmp.ge.f32.partialorder %v746, 1.0
      %vm761 = vcmp.ge.f32.partialorder %v747, 1.0
      %vm762 = vcmp.ge.f32.partialorder %v748, 1.0
      %vm763 = vcmp.ge.f32.partialorder %v749, 1.0
      %vm764 = vcmp.ge.f32.partialorder %v750, 1.0
      %vm765 = vcmp.ge.f32.partialorder %v751, 1.0
      %vm766 = vcmp.ge.f32.partialorder %v752, 1.0
      %vm767 = vcmp.ge.f32.partialorder %v753, 1.0
      %vm768 = vcmp.ge.f32.partialorder %v754, 1.0
      %vm769 = vcmp.ge.f32.partialorder %v755, 1.0
      %vm770 = vcmp.ge.f32.partialorder %v756, 1.0
      %vm771 = vcmp.ge.f32.partialorder %v757, 1.0
      %vm772 = vcmp.ge.f32.partialorder %v758, 1.0
      %v773 = vsel %vm759, 1, 0
      %v774 = vsel %vm760, 1, 0
      %v775 = vsel %vm761, 1, 0
      %v776 = vsel %vm762, 1, 0
      %v777 = vsel %vm763, 1, 0
      %v778 = vsel %vm764, 1, 0
      %v779 = vsel %vm765, 1, 0
      %v780 = vsel %vm766, 1, 0
      %v781 = vsel %vm767, 1, 0
      %v782 = vsel %vm768, 1, 0
      %v783 = vsel %vm769, 1, 0
      %v784 = vsel %vm770, 1, 0
      %v785 = vsel %vm771, 1, 0
      %v786 = vsel %vm772, 1, 0
      %v787 = vcvt.s32.f32 %v773
      %v788 = vcvt.s32.f32 %v774
      %v789 = vcvt.s32.f32 %v775
      %v790 = vcvt.s32.f32 %v776
      %v791 = vcvt.s32.f32 %v777
      %v792 = vcvt.s32.f32 %v778
      %v793 = vcvt.s32.f32 %v779
      %v794 = vcvt.s32.f32 %v780
      %v795 = vcvt.s32.f32 %v781
      %v796 = vcvt.s32.f32 %v782
      %v797 = vcvt.s32.f32 %v783
      %v798 = vcvt.s32.f32 %v784
      %v799 = vcvt.s32.f32 %v785
      %v800 = vcvt.s32.f32 %v786
      %v801 = vsub.f32 1.0, %v787
      %v802 = vsub.f32 1.0, %v788
      %v803 = vsub.f32 1.0, %v789
      %v804 = vsub.f32 1.0, %v790
      %v805 = vsub.f32 1.0, %v791
      %v806 = vsub.f32 1.0, %v792
      %v807 = vsub.f32 1.0, %v793
      %v808 = vsub.f32 1.0, %v794
      %v809 = vsub.f32 1.0, %v795
      %v810 = vsub.f32 1.0, %v796
      %v811 = vsub.f32 1.0, %v797
      %v812 = vsub.f32 1.0, %v798
      %v813 = vsub.f32 1.0, %v799
      %v814 = vsub.f32 1.0, %v800
      %v815 = vmul.f32 %v745, %v801
      %v816 = vmul.f32 %v746, %v802
      %v817 = vmul.f32 %v747, %v803
      %v818 = vmul.f32 %v748, %v804
      %v819 = vmul.f32 %v749, %v805
      %v820 = vmul.f32 %v750, %v806
      %v821 = vmul.f32 %v751, %v807
      %v822 = vmul.f32 %v752, %v808
      %v823 = vmul.f32 %v753, %v809
      %v824 = vmul.f32 %v754, %v810
      %v825 = vmul.f32 %v755, %v811
      %v826 = vmul.f32 %v756, %v812
      %v827 = vmul.f32 %v757, %v813
      %v828 = vmul.f32 %v758, %v814
      %vm829 = vcmask 523264
      %830 = vst.msk [vmem:[#allocation2] sm:$0xff] %vm829, %v815
      %831 = vst.msk [vmem:[#allocation2 + $0x8] sm:$0xff] %vm829, %v816
      %832 = vst.msk [vmem:[#allocation2 + $0x10] sm:$0xff] %vm829, %v817
      %833 = vst.msk [vmem:[#allocation2 + $0x18] sm:$0xff] %vm829, %v818
      %834 = vst.msk [vmem:[#allocation2 + $0x20] sm:$0xff] %vm829, %v819
      %835 = vst.msk [vmem:[#allocation2 + $0x28] sm:$0xff] %vm829, %v820
      %836 = vst.msk [vmem:[#allocation2 + $0x30] sm:$0xff] %vm829, %v821
      %837 = vst.msk [vmem:[#allocation2 + $0x38] sm:$0xff] %vm829, %v822
      %838 = vst.msk [vmem:[#allocation2 + $0x40] sm:$0xff] %vm829, %v823
      %839 = vst.msk [vmem:[#allocation2 + $0x48] sm:$0xff] %vm829, %v824
      %840 = vst.msk [vmem:[#allocation2 + $0x50] sm:$0xff] %vm829, %v825
      %841 = vst.msk [vmem:[#allocation2 + $0x58] sm:$0xff] %vm829, %v826
      %842 = vst.msk [vmem:[#allocation2 + $0x60] sm:$0xff] %vm829, %v827
      %843 = vst.msk [vmem:[#allocation2 + $0x68] sm:$0xff] %vm829, %v828
      %v844 = vpack.c.bf16 %v788, %v787
      %v845 = vpack.c.bf16 %v790, %v789
      %v846 = vpack.c.bf16 %v792, %v791
      %v847 = vpack.c.bf16 %v794, %v793
      %v848 = vpack.c.bf16 %v796, %v795
      %v849 = vpack.c.bf16 %v798, %v797
      %v850 = vpack.c.bf16 %v800, %v799
      %v858 = vunpack.c.l.b16 %v844
      %v859 = vunpack.c.h.b16 %v844
      %v860 = vunpack.c.l.b16 %v845
      %v861 = vunpack.c.h.b16 %v845
      %v862 = vunpack.c.l.b16 %v846
      %v863 = vunpack.c.h.b16 %v846
      %v864 = vunpack.c.l.b16 %v847
      %v865 = vunpack.c.h.b16 %v847
      %v866 = vunpack.c.l.b16 %v848
      %v867 = vunpack.c.h.b16 %v848
      %v868 = vunpack.c.l.b16 %v849
      %v869 = vunpack.c.h.b16 %v849
      %v870 = vunpack.c.l.b16 %v850
      %v871 = vunpack.c.h.b16 %v850
      %v872 = vpack.c.b16 %v858, %v858
      %v873 = vpack.c.b16 %v859, %v859
      %v874 = vpack.c.b16 %v860, %v860
      %v875 = vpack.c.b16 %v861, %v861
      %v876 = vpack.c.b16 %v862, %v862
      %v877 = vpack.c.b16 %v863, %v863
      %v878 = vpack.c.b16 %v864, %v864
      %v879 = vpack.c.b16 %v865, %v865
      %v880 = vpack.c.b16 %v866, %v866
      %v881 = vpack.c.b16 %v867, %v867
      %v882 = vpack.c.b16 %v868, %v868
      %v883 = vpack.c.b16 %v869, %v869
      %v884 = vpack.c.b16 %v870, %v870
      %v885 = vpack.c.b16 %v871, %v871
      %vm900 = vcmask 519168
      %901 = vst.msk [vmem:[%s211] sm:$0xf] %vm900, %v872
      %902 = vst.msk [vmem:[%s211 + $0x4] sm:$0xf] %vm900, %v873
      %903 = vst.msk [vmem:[%s211 + $0x8] sm:$0xf] %vm900, %v874
      %904 = vst.msk [vmem:[%s211 + $0xc] sm:$0xf] %vm900, %v875
      %905 = vst.msk [vmem:[%s211 + $0x10] sm:$0xf] %vm900, %v876
      %906 = vst.msk [vmem:[%s211 + $0x14] sm:$0xf] %vm900, %v877
      %907 = vst.msk [vmem:[%s211 + $0x18] sm:$0xf] %vm900, %v878
      %908 = vst.msk [vmem:[%s211 + $0x1c] sm:$0xf] %vm900, %v879
      %909 = vst.msk [vmem:[%s211 + $0x20] sm:$0xf] %vm900, %v880
      %910 = vst.msk [vmem:[%s211 + $0x24] sm:$0xf] %vm900, %v881
      %911 = vst.msk [vmem:[%s211 + $0x28] sm:$0xf] %vm900, %v882
      %912 = vst.msk [vmem:[%s211 + $0x2c] sm:$0xf] %vm900, %v883
      %913 = vst.msk [vmem:[%s211 + $0x30] sm:$0xf] %vm900, %v884
      %914 = vst.msk [vmem:[%s211 + $0x34] sm:$0xf] %vm900, %v885
      %s915 = smul.u32 14, %s18
      %p916 = scmp.lt.s32.totalorder %s19, 3
      %s917 = scalar_select %p916, %s19, 3
      %p918 = scmp.lt.s32.totalorder %s915, 13
      %s919 = scalar_select %p918, %s915, 13
      %s920 = smul.addr %s917, 14
      %s921 = sadd.s32 %s919, %s920
      %s922 = smul.addr %s921, 4
      %s923 = scalar_lea.vmem %s3, %s922
      // Predicated region
      $region37: #{lenet5_forward.6} parent=31 // pred_check
        %p924 = pneg %p116
      $region38: #{lenet5_forward.6} parent=31 // pred_check_branch
        %926 = sbr.rel (%p924) target = $region40
      $region39: #{lenet5_forward.6} parent=31 // pred_region
        %s927 = smul.u32 14, %s18
      $region40: #{lenet5_forward.6} parent=31 // pred_fallthru
        _
    $region32: #{lenet5_forward.6} parent=5 // pred_fallthru
      _
    %p928 = scmp.le.s32.totalorder 2, %s9
    // Predicated region
    $region41: #{lenet5_forward.6} parent=5 // pred_check
      %p929 = pneg %p928
    $region42: #{lenet5_forward.6} parent=5 // pred_check_branch
      %931 = sbr.rel (%p929) target = $region44
    $region43: #{lenet5_forward.6} parent=5 // pred_region
      %s932 = ssub.s32 %s9, 2
      // Predicated region
      $region45: #{lenet5_forward.6} parent=43 // pred_check
        %p933 = pneg %p122
      $region46: #{lenet5_forward.6} parent=43 // pred_check_branch
        %935 = sbr.rel (%p933) target = $region48
      $region47: #{lenet5_forward.6} parent=43 // pred_region
        %s936 = smul.u32 14, %s20
        %p937 = scmp.lt.s32.totalorder %s21, 3
        %s938 = scalar_select %p937, %s21, 3
        %p939 = scmp.lt.s32.totalorder %s936, 13
        %s940 = scalar_select %p939, %s936, 13
        %s941 = smul.addr %s938, 14
        %s942 = sadd.s32 %s940, %s941
        %s943 = smul.addr %s942, 4
        %s944 = scalar_lea.vmem %s3, %s943
      $region48: #{lenet5_forward.6} parent=43 // pred_fallthru
        _
    $region44: #{lenet5_forward.6} parent=5 // pred_fallthru
      _
  $region6: #{lenet5_forward.6} parent=0 // loop_footer
    %s13 = sadd.s32 1, %s9
  $region7: #{lenet5_forward.6} parent=0 // loop_footer_branch
    %8 = sbr.rel target = $region3
  $region8: #{lenet5_forward.6} parent=0 // loop_exit
    _

// kernel: lenet5_forward.7
$region0: #{lenet5_forward.7}
  #allocation0 [shape = 'u32[]', space=smem, size = 0x4, offset = 0x4, fixed_abs, tag = 'smem constant byte address 0x4 - core index']
  #allocation1 [shape = 'u32[144,128]{1,0:T(1,128)}', space=vmem, size = 0x12000, scoped, tag = 'internal scratch']
  #allocation2 [shape = 'f32[2,64]{1,0:T(2,128)}', space=vmem, size = 0x400, scoped, tag = 'scratch operand']
  #allocation3 [shape = 'f32[2,64]{1,0:T(2,128)}', space=vmem, size = 0x400, scoped, tag = 'scratch operand']
  %s0 = inlined_call_operand.vmem [shape: bf16[4,2,3136], index: 0, kind: input, shape index: {}]
  %s1 = inlined_call_operand.vmem [shape: bf16[3136,64], index: 1, kind: input, shape index: {}]
  %s2 = inlined_call_operand.vmem [shape: f32[1,64], index: 2, kind: input, shape index: {}]
  %s3 = inlined_call_operand.vmem [shape: f32[64,10], index: 3, kind: input, shape index: {}]
  %s4 = inlined_call_operand.vmem [shape: f32[1,10], index: 4, kind: input, shape index: {}]
  %s5 = inlined_call_operand.hbm [shape: f32[2,10], index: 5, kind: output, shape index: {}]
  %s6 = sld [smem:[#allocation0]]
  $region61: #{lenet5_forward.7} parent=0
    _
  %s8 = ssub.s32 1, %s6
  %s9 = scalar_select 0, %s8, %s6
  $region1: #{lenet5_forward.7} parent=0
    #allocation4 [shape = 'u8[1024]{0}', space=vmem, size = 0x400, scoped, tag = 'output window, operand 0, single buffered']
    #allocation5 [shape = 's32[2]{0}', space=sflag, size = 0x8, scoped, tag = 'scoped memory for lenet5_forward.7']
    %10 = vsyncpa [#allocation5], 0
    loop: start=0, step=1, limit=6
    $region2: #{lenet5_forward.7} parent=1 // loop_pre_header
      _
    $region3: #{lenet5_forward.7} parent=1 // loop_header
      %s12 = sphi 0, %s16
      %p13 = scmp.ge.s32.totalorder %s12, 6
      %s22 = sphi 0, %s24
      %s25 = sphi 0, %s22
      %s26 = sphi 0, %s25
      %s42 = sphi 0, %s26
      %s46 = sphi 0, %s46
      %s48 = sphi 0, %s46
      %s49 = sphi 0, %s48
      %s63 = sphi 0, %s49
      %s67 = sphi 0, %s67
      %s69 = sphi 0, %s67
      %s70 = sphi 0, %s69
      %s84 = sphi 0, %s70
      %s88 = sphi 0, %s88
      %s90 = sphi 0, %s88
      %s91 = sphi 0, %s90
      %s105 = sphi 0, %s91
      %s109 = sphi 0, %s109
      %s111 = sphi 0, %s109
      %s112 = sphi 0, %s111
      %s126 = sphi 0, %s112
      %s130 = sphi 0, %s130
      %s132 = sphi 0, %s130
      %s133 = sphi 0, %s132
      %s147 = sphi 0, %s133
    $region4: #{lenet5_forward.7} parent=1 // loop_header_branch
      %15 = sbr.rel (%p13) target = $region8
    $region5: #{lenet5_forward.7} parent=1 // loop_body
      %s17 = ssub.s32 %s12, 1
      %s18 = ssub.s32 %s12, 2
      %s19 = sadd.s32 %s12, 1
      %s20 = ssub.s32 %s12, %s19
      %p21 = scmp.eq.s32.totalorder %s20, 0
      %s23 = sadd.s32 %s22, 1
      %s24 = scalar_select %p21, %s22, %s23
      %p27 = pneg %p21
      %p28 = scmp.eq.s32.totalorder %s12, 3
      %p29 = por %p27, %p28
      %p30 = scmp.ne.s32.totalorder %s22, %s25
      %p31 = scmp.eq.s32.totalorder %s12, 0
      %p32 = por %p30, %p31
      %p33 = scmp.ne.s32.totalorder %s22, %s25
      %p34 = scmp.eq.s32.totalorder %s17, 3
      %p35 = por %p33, %p34
      %p36 = scmp.ne.s32.totalorder %s25, %s26
      %p37 = scmp.eq.s32.totalorder %s17, 0
      %p38 = por %p36, %p37
      %p39 = scmp.ne.s32.totalorder %s25, %s26
      %p40 = scmp.eq.s32.totalorder %s18, 3
      %p41 = por %p39, %p40
      %p43 = scmp.ne.s32.totalorder %s26, %s42
      %p44 = scmp.eq.s32.totalorder %s18, 0
      %p45 = por %p43, %p44
      %s47 = sadd.s32 %s46, 1
      %p50 = scmp.eq.s32.totalorder %s12, 3
      %p51 = scmp.ne.s32.totalorder %s46, %s48
      %p52 = scmp.eq.s32.totalorder %s12, 0
      %p53 = por %p51, %p52
      %p54 = scmp.ne.s32.totalorder %s46, %s48
      %p55 = scmp.eq.s32.totalorder %s17, 3
      %p56 = por %p54, %p55
      %p57 = scmp.ne.s32.totalorder %s48, %s49
      %p58 = scmp.eq.s32.totalorder %s17, 0
      %p59 = por %p57, %p58
      %p60 = scmp.ne.s32.totalorder %s48, %s49
      %p61 = scmp.eq.s32.totalorder %s18, 3
      %p62 = por %p60, %p61
      %p64 = scmp.ne.s32.totalorder %s49, %s63
      %p65 = scmp.eq.s32.totalorder %s18, 0
      %p66 = por %p64, %p65
      %s68 = sadd.s32 %s67, 1
      %p71 = scmp.eq.s32.totalorder %s12, 3
      %p72 = scmp.ne.s32.totalorder %s67, %s69
      %p73 = scmp.eq.s32.totalorder %s12, 0
      %p74 = por %p72, %p73
      %p75 = scmp.ne.s32.totalorder %s67, %s69
      %p76 = scmp.eq.s32.totalorder %s17, 3
      %p77 = por %p75, %p76
      %p78 = scmp.ne.s32.totalorder %s69, %s70
      %p79 = scmp.eq.s32.totalorder %s17, 0
      %p80 = por %p78, %p79
      %p81 = scmp.ne.s32.totalorder %s69, %s70
      %p82 = scmp.eq.s32.totalorder %s18, 3
      %p83 = por %p81, %p82
      %p85 = scmp.ne.s32.totalorder %s70, %s84
      %p86 = scmp.eq.s32.totalorder %s18, 0
      %p87 = por %p85, %p86
      %s89 = sadd.s32 %s88, 1
      %p92 = scmp.eq.s32.totalorder %s12, 3
      %p93 = scmp.ne.s32.totalorder %s88, %s90
      %p94 = scmp.eq.s32.totalorder %s12, 0
      %p95 = por %p93, %p94
      %p96 = scmp.ne.s32.totalorder %s88, %s90
      %p97 = scmp.eq.s32.totalorder %s17, 3
      %p98 = por %p96, %p97
      %p99 = scmp.ne.s32.totalorder %s90, %s91
      %p100 = scmp.eq.s32.totalorder %s17, 0
      %p101 = por %p99, %p100
      %p102 = scmp.ne.s32.totalorder %s90, %s91
      %p103 = scmp.eq.s32.totalorder %s18, 3
      %p104 = por %p102, %p103
      %p106 = scmp.ne.s32.totalorder %s91, %s105
      %p107 = scmp.eq.s32.totalorder %s18, 0
      %p108 = por %p106, %p107
      %s110 = sadd.s32 %s109, 1
      %p113 = scmp.eq.s32.totalorder %s12, 3
      %p114 = scmp.ne.s32.totalorder %s109, %s111
      %p115 = scmp.eq.s32.totalorder %s12, 0
      %p116 = por %p114, %p115
      %p117 = scmp.ne.s32.totalorder %s109, %s111
      %p118 = scmp.eq.s32.totalorder %s17, 3
      %p119 = por %p117, %p118
      %p120 = scmp.ne.s32.totalorder %s111, %s112
      %p121 = scmp.eq.s32.totalorder %s17, 0
      %p122 = por %p120, %p121
      %p123 = scmp.ne.s32.totalorder %s111, %s112
      %p124 = scmp.eq.s32.totalorder %s18, 3
      %p125 = por %p123, %p124
      %p127 = scmp.ne.s32.totalorder %s112, %s126
      %p128 = scmp.eq.s32.totalorder %s18, 0
      %p129 = por %p127, %p128
      %s131 = sadd.s32 %s130, 1
      %p134 = scmp.eq.s32.totalorder %s12, 3
      %p135 = scmp.ne.s32.totalorder %s130, %s132
      %p136 = scmp.eq.s32.totalorder %s12, 0
      %p137 = por %p135, %p136
      %p138 = scmp.ne.s32.totalorder %s130, %s132
      %p139 = scmp.eq.s32.totalorder %s17, 3
      %p140 = por %p138, %p139
      %p141 = scmp.ne.s32.totalorder %s132, %s133
      %p142 = scmp.eq.s32.totalorder %s17, 0
      %p143 = por %p141, %p142
      %p144 = scmp.ne.s32.totalorder %s132, %s133
      %p145 = scmp.eq.s32.totalorder %s18, 3
      %p146 = por %p144, %p145
      %p148 = scmp.ne.s32.totalorder %s133, %s147
      %p149 = scmp.eq.s32.totalorder %s18, 0
      %p150 = por %p148, %p149
      %p151 = scmp.le.s32.totalorder 1, %s12
      %p152 = scmp.lt.s32.totalorder %s12, 5
      %p153 = pnand %p151, %p152
      %p154 = pneg %p153
      // Predicated region
      $region9: #{lenet5_forward.7} parent=5 // pred_check
        _
      $region10: #{lenet5_forward.7} parent=5 // pred_check_branch
        %156 = sbr.rel (%p153) target = $region12
      $region11: #{lenet5_forward.7} parent=5 // pred_region
        %s157 = ssub.s32 %s12, 1
        // Predicated region
        $region13: #{lenet5_forward.7} parent=11 // pred_check
          %p158 = pneg %p59
        $region14: #{lenet5_forward.7} parent=11 // pred_check_branch
          %160 = sbr.rel (%p158) target = $region16
        $region15: #{lenet5_forward.7} parent=11 // pred_region
          _
        $region16: #{lenet5_forward.7} parent=11 // pred_fallthru
          _
        // Predicated region
        $region17: #{lenet5_forward.7} parent=11 // pred_check
          %p161 = pneg %p80
        $region18: #{lenet5_forward.7} parent=11 // pred_check_branch
          %163 = sbr.rel (%p161) target = $region20
        $region19: #{lenet5_forward.7} parent=11 // pred_region
          _
        $region20: #{lenet5_forward.7} parent=11 // pred_fallthru
          _
        // Predicated region
        $region21: #{lenet5_forward.7} parent=11 // pred_check
          %p164 = pneg %p101
        $region22: #{lenet5_forward.7} parent=11 // pred_check_branch
          %166 = sbr.rel (%p164) target = $region24
        $region23: #{lenet5_forward.7} parent=11 // pred_region
          _
        $region24: #{lenet5_forward.7} parent=11 // pred_fallthru
          _
        // Predicated region
        $region25: #{lenet5_forward.7} parent=11 // pred_check
          %p167 = pneg %p122
        $region26: #{lenet5_forward.7} parent=11 // pred_check_branch
          %169 = sbr.rel (%p167) target = $region28
        $region27: #{lenet5_forward.7} parent=11 // pred_region
          _
        $region28: #{lenet5_forward.7} parent=11 // pred_fallthru
          _
      $region12: #{lenet5_forward.7} parent=5 // pred_fallthru
        _
      %p170 = scmp.lt.s32.totalorder %s12, 4
      // Predicated region
      $region29: #{lenet5_forward.7} parent=5 // pred_check
        %p171 = pneg %p170
      $region30: #{lenet5_forward.7} parent=5 // pred_check_branch
        %173 = sbr.rel (%p171) target = $region32
      $region31: #{lenet5_forward.7} parent=5 // pred_region
        // Predicated region
        $region33: #{lenet5_forward.7} parent=31 // pred_check
          %p174 = pneg %p32
        $region34: #{lenet5_forward.7} parent=31 // pred_check_branch
          %176 = sbr.rel (%p174) target = $region36
        $region35: #{lenet5_forward.7} parent=31 // pred_region
          %p177 = scmp.lt.s32.totalorder %s12, 3
          %s178 = scalar_select %p177, %s12, 3
          %s179 = smul.addr %s178, 25
          %s180 = scalar_lea.vmem %s0, %s179
        $region36: #{lenet5_forward.7} parent=31 // pred_fallthru
          _
      $region32: #{lenet5_forward.7} parent=5 // pred_fallthru
        _
      %p181 = scmp.le.s32.totalorder 1, %s12
      %p182 = scmp.lt.s32.totalorder %s12, 5
      %p183 = pnand %p181, %p182
      %p184 = pneg %p183
      // Predicated region
      $region37: #{lenet5_forward.7} parent=5 // pred_check
        _
      $region38: #{lenet5_forward.7} parent=5 // pred_check_branch
        %186 = sbr.rel (%p183) target = $region40
      $region39: #{lenet5_forward.7} parent=5 // pred_region
        %s187 = ssub.s32 %s12, 1
        %p188 = scmp.lt.s32.totalorder %s17, 3
        %s189 = scalar_select %p188, %s17, 3
        %s190 = smul.addr %s189, 25
        %s191 = scalar_lea.vmem %s0, %s190
        %p192 = pneg %p38
        %p193 = pneg %p35
        %p194 = pneg %p59
        %p195 = pneg %p56
        %p196 = pneg %p80
        %p197 = pneg %p77
        %p198 = pneg %p101
        %p199 = pneg %p98
        %p200 = pneg %p122
        %p201 = pneg %p119
        %p202 = pneg %p143
        %p203 = pneg %p140
        %p204 = scmp.lt.s32.totalorder %s17, 3
        %s205 = scalar_select %p204, %s17, 3
        %s206 = smul.addr %s205, 25
        %s207 = scalar_lea.vmem %s0, %s206
        %p209 = scmp.eq.s32.totalorder %s17, 0
        // Predicated region
        $region41: #{lenet5_forward.7} parent=39 // pred_check
          %p210 = pneg %p209
        $region42: #{lenet5_forward.7} parent=39 // pred_check_branch
          %212 = sbr.rel (%p210) target = $region44
        $region43: #{lenet5_forward.7} parent=39 // pred_region
          %vm213 = vcmask 517120
          %214 = vst.msk [vmem:[#allocation2] sm:$0x3] %vm213, 0.0
          %215 = vst.msk [vmem:[#allocation3] sm:$0x3] %vm213, 0.0
        $region44: #{lenet5_forward.7} parent=39 // pred_fallthru
          _
        %v216 = vld [vmem:[%s207] sm:$0xff]
        %v217 = vld [vmem:[%s207 + $0x8] sm:$0xff]
        %v218 = vld [vmem:[%s207 + $0x10] sm:$0xff]
        %v219 = vld [vmem:[%s207 + $0x18] sm:$0x1]
        %v220 = vld [vmem:[%s1] sm:$0xf]
        %v221 = vld [vmem:[%s1 + $0x4] sm:$0xf]
        %v222 = vld [vmem:[%s1 + $0x8] sm:$0xf]
        %v223 = vld [vmem:[%s1 + $0xc] sm:$0xf]
        %v224 = vld [vmem:[%s1 + $0x10] sm:$0xf]
        %v225 = vld [vmem:[%s1 + $0x14] sm:$0xf]
        %v226 = vld [vmem:[%s1 + $0x18] sm:$0xf]
        %v227 = vld [vmem:[%s1 + $0x1c] sm:$0xf]
        %v228 = vld [vmem:[%s1 + $0x20] sm:$0xf]
        %v229 = vld [vmem:[%s1 + $0x24] sm:$0xf]
        %v230 = vld [vmem:[%s1 + $0x28] sm:$0xf]
        %v231 = vld [vmem:[%s1 + $0x2c] sm:$0xf]
        %v232 = vld [vmem:[%s1 + $0x30] sm:$0xf]
        %v233 = vld [vmem:[%s1 + $0x34] sm:$0xf]
        %v234 = vld [vmem:[%s1 + $0x38] sm:$0xf]
        %v235 = vld [vmem:[%s1 + $0x3c] sm:$0xf]
        %v236 = vld [vmem:[%s1 + $0x40] sm:$0xf]
        %v237 = vld [vmem:[%s1 + $0x44] sm:$0xf]
        %v238 = vld [vmem:[%s1 + $0x48] sm:$0xf]
        %v239 = vld [vmem:[%s1 + $0x4c] sm:$0xf]
        %v240 = vld [vmem:[%s1 + $0x50] sm:$0xf]
        %v241 = vld [vmem:[%s1 + $0x54] sm:$0xf]
        %v242 = vld [vmem:[%s1 + $0x58] sm:$0xf]
        %v243 = vld [vmem:[%s1 + $0x5c] sm:$0xf]
        %v244 = vld [vmem:[%s1 + $0x60] sm:$0xf]
        %v245 = vld [vmem:[%s1 + $0x64] sm:$0xf]
        %v246 = vld [vmem:[%s1 + $0x68] sm:$0xf]
        %v247 = vld [vmem:[%s1 + $0x6c] sm:$0xf]
        %v248 = vld [vmem:[%s1 + $0x70] sm:$0xf]
        %v249 = vld [vmem:[%s1 + $0x74] sm:$0xf]
        %v250 = vld [vmem:[%s1 + $0x78] sm:$0xf]
        %v251 = vld [vmem:[%s1 + $0x7c] sm:$0xf]
        %v252 = vld [vmem:[%s1 + $0x80] sm:$0xf]
        %v253 = vld [vmem:[%s1 + $0x84] sm:$0xf]
        %v254 = vld [vmem:[%s1 + $0x88] sm:$0xf]
        %v255 = vld [vmem:[%s1 + $0x8c] sm:$0xf]
        %v256 = vld [vmem:[%s1 + $0x90] sm:$0xf]
        %v257 = vld [vmem:[%s1 + $0x94] sm:$0xf]
        %v258 = vld [vmem:[%s1 + $0x98] sm:$0xf]
        %v259 = vld [vmem:[%s1 + $0x9c] sm:$0xf]
        %v260 = vld [vmem:[%s1 + $0xa0] sm:$0xf]
        %v261 = vld [vmem:[%s1 + $0xa4] sm:$0xf]
        %v262 = vld [vmem:[%s1 + $0xa8] sm:$0xf]
        %v263 = vld [vmem:[%s1 + $0xac] sm:$0xf]
        %v264 = vld [vmem:[%s1 + $0xb0] sm:$0xf]
        %v265 = vld [vmem:[%s1 + $0xb4] sm:$0xf]
        %v266 = vld [vmem:[%s1 + $0xb8] sm:$0xf]
        %v267 = vld [vmem:[%s1 + $0xbc] sm:$0xf]
        %v268 = vld [vmem:[%s1 + $0xc0] sm:$0xf]
        %v269 = vld [vmem:[%s1 + $0xc4] sm:$0xf]
        %v270 = vld [vmem:[%s1 + $0xc8] sm:$0xf]
        %v271 = vld [vmem:[%s1 + $0xcc] sm:$0xf]
        %v272 = vld [vmem:[%s1 + $0xd0] sm:$0xf]
        %v273 = vld [vmem:[%s1 + $0xd4] sm:$0xf]
        %v274 = vld [vmem:[%s1 + $0xd8] sm:$0xf]
        %v275 = vld [vmem:[%s1 + $0xdc] sm:$0xf]
        %v276 = vld [vmem:[%s1 + $0xe0] sm:$0xf]
        %v277 = vld [vmem:[%s1 + $0xe4] sm:$0xf]
        %v278 = vld [vmem:[%s1 + $0xe8] sm:$0xf]
        %v279 = vld [vmem:[%s1 + $0xec] sm:$0xf]
        %v280 = vld [vmem:[%s1 + $0xf0] sm:$0xf]
        %v281 = vld [vmem:[%s1 + $0xf4] sm:$0xf]
        %v282 = vld [vmem:[%s1 + $0xf8] sm:$0xf]
        %v283 = vld [vmem:[%s1 + $0xfc] sm:$0xf]
        %v284 = vld [vmem:[%s1 + $0x100] sm:$0xf]
        %v285 = vld [vmem:[%s1 + $0x104] sm:$0xf]
        %v286 = vld [vmem:[%s1 + $0x108] sm:$0xf]
        %v287 = vld [vmem:[%s1 + $0x10c] sm:$0xf]
        %v288 = vld [vmem:[%s1 + $0x110] sm:$0xf]
        %v289 = vld [vmem:[%s1 + $0x114] sm:$0xf]
        %v290 = vld [vmem:[%s1 + $0x118] sm:$0xf]
        %v291 = vld [vmem:[%s1 + $0x11c] sm:$0xf]
        %v292 = vld [vmem:[%s1 + $0x120] sm:$0xf]
        %v293 = vld [vmem:[%s1 + $0x124] sm:$0xf]
        %v294 = vld [vmem:[%s1 + $0x128] sm:$0xf]
        %v295 = vld [vmem:[%s1 + $0x12c] sm:$0xf]
        %v296 = vld [vmem:[%s1 + $0x130] sm:$0xf]
        %v297 = vld [vmem:[%s1 + $0x134] sm:$0xf]
        %v298 = vld [vmem:[%s1 + $0x138] sm:$0xf]
        %v299 = vld [vmem:[%s1 + $0x13c] sm:$0xf]
        %v300 = vld [vmem:[%s1 + $0x140] sm:$0xf]
        %v301 = vld [vmem:[%s1 + $0x144] sm:$0xf]
        %v302 = vld [vmem:[%s1 + $0x148] sm:$0xf]
        %v303 = vld [vmem:[%s1 + $0x14c] sm:$0xf]
        %v304 = vld [vmem:[%s1 + $0x150] sm:$0xf]
        %v305 = vld [vmem:[%s1 + $0x154] sm:$0xf]
        %v306 = vld [vmem:[%s1 + $0x158] sm:$0xf]
        %v307 = vld [vmem:[%s1 + $0x15c] sm:$0xf]
        %v308 = vld [vmem:[%s1 + $0x160] sm:$0xf]
        %v309 = vld [vmem:[%s1 + $0x164] sm:$0xf]
        %v310 = vld [vmem:[%s1 + $0x168] sm:$0xf]
        %v311 = vld [vmem:[%s1 + $0x16c] sm:$0xf]
        %v312 = vld [vmem:[%s1 + $0x170] sm:$0xf]
        %v313 = vld [vmem:[%s1 + $0x174] sm:$0xf]
        %v314 = vld [vmem:[%s1 + $0x178] sm:$0xf]
        %v315 = vld [vmem:[%s1 + $0x17c] sm:$0xf]
        %v316 = vld [vmem:[%s1 + $0x180] sm:$0xf]
        %v317 = vld [vmem:[%s1 + $0x184] sm:$0xf]
        %v318 = vld [vmem:[%s1 + $0x188] sm:$0xf]
        %v319 = vld [vmem:[%s1 + $0x18c] sm:$0xf]
        %v320 = vld [vmem:[%s1 + $0x190] sm:$0xf]
        %v321 = vld [vmem:[%s1 + $0x194] sm:$0xf]
        %v322 = vld [vmem:[%s1 + $0x198] sm:$0xf]
        %v323 = vld [vmem:[%s1 + $0x19c] sm:$0xf]
        %v324 = vld [vmem:[%s1 + $0x1a0] sm:$0xf]
        %v325 = vld [vmem:[%s1 + $0x1a4] sm:$0xf]
        %v326 = vld [vmem:[%s1 + $0x1a8] sm:$0xf]
        %v327 = vld [vmem:[%s1 + $0x1ac] sm:$0xf]
        %v328 = vld [vmem:[%s1 + $0x1b0] sm:$0xf]
        %v329 = vld [vmem:[%s1 + $0x1b4] sm:$0xf]
        %v330 = vld [vmem:[%s1 + $0x1b8] sm:$0xf]
        %v331 = vld [vmem:[%s1 + $0x1bc] sm:$0xf]
        %v332 = vld [vmem:[%s1 + $0x1c0] sm:$0xf]
        %v333 = vld [vmem:[%s1 + $0x1c4] sm:$0xf]
        %v334 = vld [vmem:[%s1 + $0x1c8] sm:$0xf]
        %v335 = vld [vmem:[%s1 + $0x1cc] sm:$0xf]
        %v336 = vld [vmem:[%s1 + $0x1d0] sm:$0xf]
        %v337 = vld [vmem:[%s1 + $0x1d4] sm:$0xf]
        %v338 = vld [vmem:[%s1 + $0x1d8] sm:$0xf]
        %v339 = vld [vmem:[%s1 + $0x1dc] sm:$0xf]
        %v340 = vld [vmem:[%s1 + $0x1e0] sm:$0xf]
        %v341 = vld [vmem:[%s1 + $0x1e4] sm:$0xf]
        %v342 = vld [vmem:[%s1 + $0x1e8] sm:$0xf]
        %v343 = vld [vmem:[%s1 + $0x1ec] sm:$0xf]
        %v344 = vld [vmem:[%s1 + $0x1f0] sm:$0xf]
        %v345 = vld [vmem:[%s1 + $0x1f4] sm:$0xf]
        %v346 = vld [vmem:[%s1 + $0x1f8] sm:$0xf]
        %v347 = vld [vmem:[%s1 + $0x1fc] sm:$0xf]
        %v348 = vld [vmem:[%s1 + $0x200] sm:$0xf]
        %v349 = vld [vmem:[%s1 + $0x204] sm:$0xf]
        %v350 = vld [vmem:[%s1 + $0x208] sm:$0xf]
        %v351 = vld [vmem:[%s1 + $0x20c] sm:$0xf]
        %v352 = vld [vmem:[%s1 + $0x210] sm:$0xf]
        %v353 = vld [vmem:[%s1 + $0x214] sm:$0xf]
        %v354 = vld [vmem:[%s1 + $0x218] sm:$0xf]
        %v355 = vld [vmem:[%s1 + $0x21c] sm:$0xf]
        %v356 = vld [vmem:[%s1 + $0x220] sm:$0xf]
        %v357 = vld [vmem:[%s1 + $0x224] sm:$0xf]
        %v358 = vld [vmem:[%s1 + $0x228] sm:$0xf]
        %v359 = vld [vmem:[%s1 + $0x22c] sm:$0xf]
        %v360 = vld [vmem:[%s1 + $0x230] sm:$0xf]
        %v361 = vld [vmem:[%s1 + $0x234] sm:$0xf]
        %v362 = vld [vmem:[%s1 + $0x238] sm:$0xf]
        %v363 = vld [vmem:[%s1 + $0x23c] sm:$0xf]
        %v364 = vld [vmem:[%s1 + $0x240] sm:$0xf]
        %v365 = vld [vmem:[%s1 + $0x244] sm:$0xf]
        %v366 = vld [vmem:[%s1 + $0x248] sm:$0xf]
        %v367 = vld [vmem:[%s1 + $0x24c] sm:$0xf]
        %v368 = vld [vmem:[%s1 + $0x250] sm:$0xf]
        %v369 = vld [vmem:[%s1 + $0x254] sm:$0xf]
        %v370 = vld [vmem:[%s1 + $0x258] sm:$0xf]
        %v371 = vld [vmem:[%s1 + $0x25c] sm:$0xf]
        %v372 = vld [vmem:[%s1 + $0x260] sm:$0xf]
        %v373 = vld [vmem:[%s1 + $0x264] sm:$0xf]
        %v374 = vld [vmem:[%s1 + $0x268] sm:$0xf]
        %v375 = vld [vmem:[%s1 + $0x26c] sm:$0xf]
        %v376 = vld [vmem:[%s1 + $0x270] sm:$0xf]
        %v377 = vld [vmem:[%s1 + $0x274] sm:$0xf]
        %v378 = vld [vmem:[%s1 + $0x278] sm:$0xf]
        %v379 = vld [vmem:[%s1 + $0x27c] sm:$0xf]
        %v380 = vld [vmem:[%s1 + $0x280] sm:$0xf]
        %v381 = vld [vmem:[%s1 + $0x284] sm:$0xf]
        %v382 = vld [vmem:[%s1 + $0x288] sm:$0xf]
        %v383 = vld [vmem:[%s1 + $0x28c] sm:$0xf]
        %v384 = vld [vmem:[%s1 + $0x290] sm:$0xf]
        %v385 = vld [vmem:[%s1 + $0x294] sm:$0xf]
        %v386 = vld [vmem:[%s1 + $0x298] sm:$0xf]
        %v387 = vld [vmem:[%s1 + $0x29c] sm:$0xf]
        %v388 = vld [vmem:[%s1 + $0x2a0] sm:$0xf]
        %v389 = vld [vmem:[%s1 + $0x2a4] sm:$0xf]
        %v390 = vld [vmem:[%s1 + $0x2a8] sm:$0xf]
        %v391 = vld [vmem:[%s1 + $0x2ac] sm:$0xf]
        %v392 = vld [vmem:[%s1 + $0x2b0] sm:$0xf]
        %v393 = vld [vmem:[%s1 + $0x2b4] sm:$0xf]
        %v394 = vld [vmem:[%s1 + $0x2b8] sm:$0xf]
        %v395 = vld [vmem:[%s1 + $0x2bc] sm:$0xf]
        %v396 = vld [vmem:[%s1 + $0x2c0] sm:$0xf]
        %v397 = vld [vmem:[%s1 + $0x2c4] sm:$0xf]
        %v398 = vld [vmem:[%s1 + $0x2c8] sm:$0xf]
        %v399 = vld [vmem:[%s1 + $0x2cc] sm:$0xf]
        %v400 = vld [vmem:[%s1 + $0x2d0] sm:$0xf]
        %v401 = vld [vmem:[%s1 + $0x2d4] sm:$0xf]
        %v402 = vld [vmem:[%s1 + $0x2d8] sm:$0xf]
        %v403 = vld [vmem:[%s1 + $0x2dc] sm:$0xf]
        %v404 = vld [vmem:[%s1 + $0x2e0] sm:$0xf]
        %v405 = vld [vmem:[%s1 + $0x2e4] sm:$0xf]
        %v406 = vld [vmem:[%s1 + $0x2e8] sm:$0xf]
        %v407 = vld [vmem:[%s1 + $0x2ec] sm:$0xf]
        %v408 = vld [vmem:[%s1 + $0x2f0] sm:$0xf]
        %v409 = vld [vmem:[%s1 + $0x2f4] sm:$0xf]
        %v410 = vld [vmem:[%s1 + $0x2f8] sm:$0xf]
        %v411 = vld [vmem:[%s1 + $0x2fc] sm:$0xf]
        %v412 = vld [vmem:[%s1 + $0x300] sm:$0xf]
        %v413 = vld [vmem:[%s1 + $0x304] sm:$0xf]
        %v414 = vld [vmem:[%s1 + $0x308] sm:$0xf]
        %v415 = vld [vmem:[%s1 + $0x30c] sm:$0xf]
        %v416 = vld [vmem:[%s1 + $0x310] sm:$0xf]
        %v417 = vld [vmem:[%s1 + $0x314] sm:$0xf]
        %v418 = vld [vmem:[%s1 + $0x318] sm:$0xf]
        %v419 = vld [vmem:[%s1 + $0x31c] sm:$0xf]
        %v420 = vld [vmem:[%s1 + $0x320] sm:$0xf]
        %v421 = vld [vmem:[%s1 + $0x324] sm:$0xf]
        %v422 = vld [vmem:[%s1 + $0x328] sm:$0xf]
        %v423 = vld [vmem:[%s1 + $0x32c] sm:$0xf]
        %v424 = vld [vmem:[%s1 + $0x330] sm:$0xf]
        %v425 = vld [vmem:[%s1 + $0x334] sm:$0xf]
        %v426 = vld [vmem:[%s1 + $0x338] sm:$0xf]
        %v427 = vld [vmem:[%s1 + $0x33c] sm:$0xf]
        %v428 = vld [vmem:[%s1 + $0x340] sm:$0xf]
        %v429 = vld [vmem:[%s1 + $0x344] sm:$0xf]
        %v430 = vld [vmem:[%s1 + $0x348] sm:$0xf]
        %v431 = vld [vmem:[%s1 + $0x34c] sm:$0xf]
        %v432 = vld [vmem:[%s1 + $0x350] sm:$0xf]
        %v433 = vld [vmem:[%s1 + $0x354] sm:$0xf]
        %v434 = vld [vmem:[%s1 + $0x358] sm:$0xf]
        %v435 = vld [vmem:[%s1 + $0x35c] sm:$0xf]
        %v436 = vld [vmem:[%s1 + $0x360] sm:$0xf]
        %v437 = vld [vmem:[%s1 + $0x364] sm:$0xf]
        %v438 = vld [vmem:[%s1 + $0x368] sm:$0xf]
        %v439 = vld [vmem:[%s1 + $0x36c] sm:$0xf]
        %v440 = vld [vmem:[%s1 + $0x370] sm:$0xf]
        %v441 = vld [vmem:[%s1 + $0x374] sm:$0xf]
        %v442 = vld [vmem:[%s1 + $0x378] sm:$0xf]
        %v443 = vld [vmem:[%s1 + $0x37c] sm:$0xf]
        %v444 = vld [vmem:[%s1 + $0x380] sm:$0xf]
        %v445 = vld [vmem:[%s1 + $0x384] sm:$0xf]
        %v446 = vld [vmem:[%s1 + $0x388] sm:$0xf]
        %v447 = vld [vmem:[%s1 + $0x38c] sm:$0xf]
        %v448 = vld [vmem:[%s1 + $0x390] sm:$0xf]
        %v449 = vld [vmem:[%s1 + $0x394] sm:$0xf]
        %v450 = vld [vmem:[%s1 + $0x398] sm:$0xf]
        %v451 = vld [vmem:[%s1 + $0x39c] sm:$0xf]
        %v452 = vld [vmem:[%s1 + $0x3a0] sm:$0xf]
        %v453 = vld [vmem:[%s1 + $0x3a4] sm:$0xf]
        %v454 = vld [vmem:[%s1 + $0x3a8] sm:$0xf]
        %v455 = vld [vmem:[%s1 + $0x3ac] sm:$0xf]
        %v456 = vld [vmem:[%s1 + $0x3b0] sm:$0xf]
        %v457 = vld [vmem:[%s1 + $0x3b4] sm:$0xf]
        %v458 = vld [vmem:[%s1 + $0x3b8] sm:$0xf]
        %v459 = vld [vmem:[%s1 + $0x3bc] sm:$0xf]
        %v460 = vld [vmem:[%s1 + $0x3c0] sm:$0xf]
        %v461 = vld [vmem:[%s1 + $0x3c4] sm:$0xf]
        %v462 = vld [vmem:[%s1 + $0x3c8] sm:$0xf]
        %v463 = vld [vmem:[%s1 + $0x3cc] sm:$0xf]
        %v464 = vld [vmem:[%s1 + $0x3d0] sm:$0xf]
        %v465 = vld [vmem:[%s1 + $0x3d4] sm:$0xf]
        %v466 = vld [vmem:[%s1 + $0x3d8] sm:$0xf]
        %v467 = vld [vmem:[%s1 + $0x3dc] sm:$0xf]
        %v468 = vld [vmem:[%s1 + $0x3e0] sm:$0xf]
        %v469 = vld [vmem:[%s1 + $0x3e4] sm:$0xf]
        %v470 = vld [vmem:[%s1 + $0x3e8] sm:$0xf]
        %v471 = vld [vmem:[%s1 + $0x3ec] sm:$0xf]
        %v472 = vld [vmem:[%s1 + $0x3f0] sm:$0xf]
        %v473 = vld [vmem:[%s1 + $0x3f4] sm:$0xf]
        %v474 = vld [vmem:[%s1 + $0x3f8] sm:$0xf]
        %v475 = vld [vmem:[%s1 + $0x3fc] sm:$0xf]
        %v476 = vld [vmem:[%s1 + $0x400] sm:$0xf]
        %v477 = vld [vmem:[%s1 + $0x404] sm:$0xf]
        %v478 = vld [vmem:[%s1 + $0x408] sm:$0xf]
        %v479 = vld [vmem:[%s1 + $0x40c] sm:$0xf]
        %v480 = vld [vmem:[%s1 + $0x410] sm:$0xf]
        %v481 = vld [vmem:[%s1 + $0x414] sm:$0xf]
        %v482 = vld [vmem:[%s1 + $0x418] sm:$0xf]
        %v483 = vld [vmem:[%s1 + $0x41c] sm:$0xf]
        %v484 = vld [vmem:[%s1 + $0x420] sm:$0xf]
        %v485 = vld [vmem:[%s1 + $0x424] sm:$0xf]
        %v486 = vld [vmem:[%s1 + $0x428] sm:$0xf]
        %v487 = vld [vmem:[%s1 + $0x42c] sm:$0xf]
        %v488 = vld [vmem:[%s1 + $0x430] sm:$0xf]
        %v489 = vld [vmem:[%s1 + $0x434] sm:$0xf]
        %v490 = vld [vmem:[%s1 + $0x438] sm:$0xf]
        %v491 = vld [vmem:[%s1 + $0x43c] sm:$0xf]
        %v492 = vld [vmem:[%s1 + $0x440] sm:$0xf]
        %v493 = vld [vmem:[%s1 + $0x444] sm:$0xf]
        %v494 = vld [vmem:[%s1 + $0x448] sm:$0xf]
        %v495 = vld [vmem:[%s1 + $0x44c] sm:$0xf]
        %v496 = vld [vmem:[%s1 + $0x450] sm:$0xf]
        %v497 = vld [vmem:[%s1 + $0x454] sm:$0xf]
        %v498 = vld [vmem:[%s1 + $0x458] sm:$0xf]
        %v499 = vld [vmem:[%s1 + $0x45c] sm:$0xf]
        %v500 = vld [vmem:[%s1 + $0x460] sm:$0xf]
        %v501 = vld [vmem:[%s1 + $0x464] sm:$0xf]
        %v502 = vld [vmem:[%s1 + $0x468] sm:$0xf]
        %v503 = vld [vmem:[%s1 + $0x46c] sm:$0xf]
        %v504 = vld [vmem:[%s1 + $0x470] sm:$0xf]
        %v505 = vld [vmem:[%s1 + $0x474] sm:$0xf]
        %v506 = vld [vmem:[%s1 + $0x478] sm:$0xf]
        %v507 = vld [vmem:[%s1 + $0x47c] sm:$0xf]
        %v508 = vld [vmem:[%s1 + $0x480] sm:$0xf]
        %v509 = vld [vmem:[%s1 + $0x484] sm:$0xf]
        %v510 = vld [vmem:[%s1 + $0x488] sm:$0xf]
        %v511 = vld [vmem:[%s1 + $0x48c] sm:$0xf]
        %v512 = vld [vmem:[%s1 + $0x490] sm:$0xf]
        %v513 = vld [vmem:[%s1 + $0x494] sm:$0xf]
        %v514 = vld [vmem:[%s1 + $0x498] sm:$0xf]
        %v515 = vld [vmem:[%s1 + $0x49c] sm:$0xf]
        %v516 = vld [vmem:[%s1 + $0x4a0] sm:$0xf]
        %v517 = vld [vmem:[%s1 + $0x4a4] sm:$0xf]
        %v518 = vld [vmem:[%s1 + $0x4a8] sm:$0xf]
        %v519 = vld [vmem:[%s1 + $0x4ac] sm:$0xf]
        %v520 = vld [vmem:[%s1 + $0x4b0] sm:$0xf]
        %v521 = vld [vmem:[%s1 + $0x4b4] sm:$0xf]
        %v522 = vld [vmem:[%s1 + $0x4b8] sm:$0xf]
        %v523 = vld [vmem:[%s1 + $0x4bc] sm:$0xf]
        %v524 = vld [vmem:[%s1 + $0x4c0] sm:$0xf]
        %v525 = vld [vmem:[%s1 + $0x4c4] sm:$0xf]
        %v526 = vld [vmem:[%s1 + $0x4c8] sm:$0xf]
        %v527 = vld [vmem:[%s1 + $0x4cc] sm:$0xf]
        %v528 = vld [vmem:[%s1 + $0x4d0] sm:$0xf]
        %v529 = vld [vmem:[%s1 + $0x4d4] sm:$0xf]
        %v530 = vld [vmem:[%s1 + $0x4d8] sm:$0xf]
        %v531 = vld [vmem:[%s1 + $0x4dc] sm:$0xf]
        %v532 = vld [vmem:[%s1 + $0x4e0] sm:$0xf]
        %v533 = vld [vmem:[%s1 + $0x4e4] sm:$0xf]
        %v534 = vld [vmem:[%s1 + $0x4e8] sm:$0xf]
        %v535 = vld [vmem:[%s1 + $0x4ec] sm:$0xf]
        %v536 = vld [vmem:[%s1 + $0x4f0] sm:$0xf]
        %v537 = vld [vmem:[%s1 + $0x4f4] sm:$0xf]
        %v538 = vld [vmem:[%s1 + $0x4f8] sm:$0xf]
        %v539 = vld [vmem:[%s1 + $0x4fc] sm:$0xf]
        %v540 = vld [vmem:[%s1 + $0x500] sm:$0xf]
        %v541 = vld [vmem:[%s1 + $0x504] sm:$0xf]
        %v542 = vld [vmem:[%s1 + $0x508] sm:$0xf]
        %v543 = vld [vmem:[%s1 + $0x50c] sm:$0xf]
        %v544 = vld [vmem:[%s1 + $0x510] sm:$0xf]
        %v545 = vld [vmem:[%s1 + $0x514] sm:$0xf]
        %v546 = vld [vmem:[%s1 + $0x518] sm:$0xf]
        %v547 = vld [vmem:[%s1 + $0x51c] sm:$0xf]
        %v548 = vld [vmem:[%s1 + $0x520] sm:$0xf]
        %v549 = vld [vmem:[%s1 + $0x524] sm:$0xf]
        %v550 = vld [vmem:[%s1 + $0x528] sm:$0xf]
        %v551 = vld [vmem:[%s1 + $0x52c] sm:$0xf]
        %v552 = vld [vmem:[%s1 + $0x530] sm:$0xf]
        %v553 = vld [vmem:[%s1 + $0x534] sm:$0xf]
        %v554 = vld [vmem:[%s1 + $0x538] sm:$0xf]
        %v555 = vld [vmem:[%s1 + $0x53c] sm:$0xf]
        %v556 = vld [vmem:[%s1 + $0x540] sm:$0xf]
        %v557 = vld [vmem:[%s1 + $0x544] sm:$0xf]
        %v558 = vld [vmem:[%s1 + $0x548] sm:$0xf]
        %v559 = vld [vmem:[%s1 + $0x54c] sm:$0xf]
        %v560 = vld [vmem:[%s1 + $0x550] sm:$0xf]
        %v561 = vld [vmem:[%s1 + $0x554] sm:$0xf]
        %v562 = vld [vmem:[%s1 + $0x558] sm:$0xf]
        %v563 = vld [vmem:[%s1 + $0x55c] sm:$0xf]
        %v564 = vld [vmem:[%s1 + $0x560] sm:$0xf]
        %v565 = vld [vmem:[%s1 + $0x564] sm:$0xf]
        %v566 = vld [vmem:[%s1 + $0x568] sm:$0xf]
        %v567 = vld [vmem:[%s1 + $0x56c] sm:$0xf]
        %v568 = vld [vmem:[%s1 + $0x570] sm:$0xf]
        %v569 = vld [vmem:[%s1 + $0x574] sm:$0xf]
        %v570 = vld [vmem:[%s1 + $0x578] sm:$0xf]
        %v571 = vld [vmem:[%s1 + $0x57c] sm:$0xf]
        %v572 = vld [vmem:[%s1 + $0x580] sm:$0xf]
        %v573 = vld [vmem:[%s1 + $0x584] sm:$0xf]
        %v574 = vld [vmem:[%s1 + $0x588] sm:$0xf]
        %v575 = vld [vmem:[%s1 + $0x58c] sm:$0xf]
        %v576 = vld [vmem:[%s1 + $0x590] sm:$0xf]
        %v577 = vld [vmem:[%s1 + $0x594] sm:$0xf]
        %v578 = vld [vmem:[%s1 + $0x598] sm:$0xf]
        %v579 = vld [vmem:[%s1 + $0x59c] sm:$0xf]
        %v580 = vld [vmem:[%s1 + $0x5a0] sm:$0xf]
        %v581 = vld [vmem:[%s1 + $0x5a4] sm:$0xf]
        %v582 = vld [vmem:[%s1 + $0x5a8] sm:$0xf]
        %v583 = vld [vmem:[%s1 + $0x5ac] sm:$0xf]
        %v584 = vld [vmem:[%s1 + $0x5b0] sm:$0xf]
        %v585 = vld [vmem:[%s1 + $0x5b4] sm:$0xf]
        %v586 = vld [vmem:[%s1 + $0x5b8] sm:$0xf]
        %v587 = vld [vmem:[%s1 + $0x5bc] sm:$0xf]
        %v588 = vld [vmem:[%s1 + $0x5c0] sm:$0xf]
        %v589 = vld [vmem:[%s1 + $0x5c4] sm:$0xf]
        %v590 = vld [vmem:[%s1 + $0x5c8] sm:$0xf]
        %v591 = vld [vmem:[%s1 + $0x5cc] sm:$0xf]
        %v592 = vld [vmem:[%s1 + $0x5d0] sm:$0xf]
        %v593 = vld [vmem:[%s1 + $0x5d4] sm:$0xf]
        %v594 = vld [vmem:[%s1 + $0x5d8] sm:$0xf]
        %v595 = vld [vmem:[%s1 + $0x5dc] sm:$0xf]
        %v596 = vld [vmem:[%s1 + $0x5e0] sm:$0xf]
        %v597 = vld [vmem:[%s1 + $0x5e4] sm:$0xf]
        %v598 = vld [vmem:[%s1 + $0x5e8] sm:$0xf]
        %v599 = vld [vmem:[%s1 + $0x5ec] sm:$0xf]
        %v600 = vld [vmem:[%s1 + $0x5f0] sm:$0xf]
        %v601 = vld [vmem:[%s1 + $0x5f4] sm:$0xf]
        %v602 = vld [vmem:[%s1 + $0x5f8] sm:$0xf]
        %v603 = vld [vmem:[%s1 + $0x5fc] sm:$0xf]
        %v604 = vld [vmem:[%s1 + $0x600] sm:$0xf]
        %v605 = vld [vmem:[%s1 + $0x604] sm:$0xf]
        %v606 = vld [vmem:[%s1 + $0x608] sm:$0xf]
        %v607 = vld [vmem:[%s1 + $0x60c] sm:$0xf]
        %v608 = vld [vmem:[%s1 + $0x610] sm:$0xf]
        %v609 = vld [vmem:[%s1 + $0x614] sm:$0xf]
        %v610 = vld [vmem:[%s1 + $0x618] sm:$0xf]
        %v611 = vld [vmem:[%s1 + $0x61c] sm:$0xf]
        %v612 = vld [vmem:[%s2] sm:$0x1]
        %v614 = vlaneseq
        %v615 = vshrl.u32 %v614, 7
        %v616 = vsub.s32 0, %v615
        %v617 = vrot.slane %v612, %v616
        %v623 = vcombine.high %v216, %v216
        %v625 = vunpack.c.l.s4 1966171168
        %v626 = vunpack.c.0.s8 %v625
        %v627 = vlaneseq
        %v628 = vshrl.u32 %v627, 7
        %v629 = vsub.s32 %v626, %v628
        %v630 = vrot.slane %v216, %v629
        %v632 = vunpack.c.l.s4 1966171168
        %v633 = vunpack.c.0.s8 %v632
        %v634 = vlaneseq
        %v635 = vshrl.u32 %v634, 7
        %v636 = vsub.s32 %v633, %v635
        %v637 = vrot.slane %v623, %v636
        %v638 = vcombine.high %v630, %v630
        %v639 = vcombine.high %v637, %v637
        %v641 = vunpack.c.l.s4 1966171168
        %v642 = vunpack.c.0.s8 %v641
        %v643 = vlaneseq
        %v644 = vshrl.u32 %v643, 7
        %v645 = vsub.s32 %v642, %v644
        %v646 = vrot.slane %v630, %v645
        %v648 = vunpack.c.l.s4 1966171168
        %v649 = vunpack.c.0.s8 %v648
        %v650 = vlaneseq
        %v651 = vshrl.u32 %v650, 7
        %v652 = vsub.s32 %v649, %v651
        %v653 = vrot.slane %v637, %v652
        %v655 = vunpack.c.l.s4 1966171168
        %v656 = vunpack.c.0.s8 %v655
        %v657 = vlaneseq
        %v658 = vshrl.u32 %v657, 7
        %v659 = vsub.s32 %v656, %v658
        %v660 = vrot.slane %v638, %v659
        %v662 = vunpack.c.l.s4 1966171168
        %v663 = vunpack.c.0.s8 %v662
        %v664 = vlaneseq
        %v665 = vshrl.u32 %v664, 7
        %v666 = vsub.s32 %v663, %v665
        %v667 = vrot.slane %v639, %v666
        %v668 = vcombine.high %v646, %v646
        %v669 = vcombine.high %v653, %v653
        %v670 = vcombine.high %v660, %v660
        %v671 = vcombine.high %v667, %v667
        %v672 = vcombine.high %v217, %v217
        %v674 = vunpack.c.l.s4 1966171168
        %v675 = vunpack.c.0.s8 %v674
        %v676 = vlaneseq
        %v677 = vshrl.u32 %v676, 7
        %v678 = vsub.s32 %v675, %v677
        %v679 = vrot.slane %v217, %v678
        %v681 = vunpack.c.l.s4 1966171168
        %v682 = vunpack.c.0.s8 %v681
        %v683 = vlaneseq
        %v684 = vshrl.u32 %v683, 7
        %v685 = vsub.s32 %v682, %v684
        %v686 = vrot.slane %v672, %v685
        %v687 = vcombine.high %v679, %v679
        %v688 = vcombine.high %v686, %v686
        %v690 = vunpack.c.l.s4 1966171168
        %v691 = vunpack.c.0.s8 %v690
        %v692 = vlaneseq
        %v693 = vshrl.u32 %v692, 7
        %v694 = vsub.s32 %v691, %v693
        %v695 = vrot.slane %v679, %v694
        %v697 = vunpack.c.l.s4 1966171168
        %v698 = vunpack.c.0.s8 %v697
        %v699 = vlaneseq
        %v700 = vshrl.u32 %v699, 7
        %v701 = vsub.s32 %v698, %v700
        %v702 = vrot.slane %v686, %v701
        %v704 = vunpack.c.l.s4 1966171168
        %v705 = vunpack.c.0.s8 %v704
        %v706 = vlaneseq
        %v707 = vshrl.u32 %v706, 7
        %v708 = vsub.s32 %v705, %v707
        %v709 = vrot.slane %v687, %v708
        %v711 = vunpack.c.l.s4 1966171168
        %v712 = vunpack.c.0.s8 %v711
        %v713 = vlaneseq
        %v714 = vshrl.u32 %v713, 7
        %v715 = vsub.s32 %v712, %v714
        %v716 = vrot.slane %v688, %v715
        %v717 = vcombine.high %v695, %v695
        %v718 = vcombine.high %v702, %v702
        %v719 = vcombine.high %v709, %v709
        %v720 = vcombine.high %v716, %v716
        %v721 = vcombine.high %v218, %v218
        %v723 = vunpack.c.l.s4 1966171168
        %v724 = vunpack.c.0.s8 %v723
        %v725 = vlaneseq
        %v726 = vshrl.u32 %v725, 7
        %v727 = vsub.s32 %v724, %v726
        %v728 = vrot.slane %v218, %v727
        %v730 = vunpack.c.l.s4 1966171168
        %v731 = vunpack.c.0.s8 %v730
        %v732 = vlaneseq
        %v733 = vshrl.u32 %v732, 7
        %v734 = vsub.s32 %v731, %v733
        %v735 = vrot.slane %v721, %v734
        %v736 = vcombine.high %v728, %v728
        %v737 = vcombine.high %v735, %v735
        %v739 = vunpack.c.l.s4 1966171168
        %v740 = vunpack.c.0.s8 %v739
        %v741 = vlaneseq
        %v742 = vshrl.u32 %v741, 7
        %v743 = vsub.s32 %v740, %v742
        %v744 = vrot.slane %v728, %v743
        %v746 = vunpack.c.l.s4 1966171168
        %v747 = vunpack.c.0.s8 %v746
        %v748 = vlaneseq
        %v749 = vshrl.u32 %v748, 7
        %v750 = vsub.s32 %v747, %v749
        %v751 = vrot.slane %v735, %v750
        %v753 = vunpack.c.l.s4 1966171168
        %v754 = vunpack.c.0.s8 %v753
        %v755 = vlaneseq
        %v756 = vshrl.u32 %v755, 7
        %v757 = vsub.s32 %v754, %v756
        %v758 = vrot.slane %v736, %v757
        %v760 = vunpack.c.l.s4 1966171168
        %v761 = vunpack.c.0.s8 %v760
        %v762 = vlaneseq
        %v763 = vshrl.u32 %v762, 7
        %v764 = vsub.s32 %v761, %v763
        %v765 = vrot.slane %v737, %v764
        %v766 = vcombine.high %v744, %v744
        %v767 = vcombine.high %v751, %v751
        %v768 = vcombine.high %v758, %v758
        %v769 = vcombine.high %v765, %v765
        %v771 = vunpack.c.l.s4 1966171168
        %v772 = vunpack.c.0.s8 %v771
        %v773 = vlaneseq
        %v774 = vshrl.u32 %v773, 7
        %v775 = vsub.s32 %v772, %v774
        %v776 = vrot.slane %v219, %v775
        %v778 = vunpack.c.l.s4 1966171168
        %v779 = vunpack.c.0.s8 %v778
        %v780 = vlaneseq
        %v781 = vshrl.u32 %v780, 7
        %v782 = vsub.s32 %v779, %v781
        %v783 = vrot.slane %v776, %v782
        %v1200 = vunpack.c.l.b16 %v220
        %v1201 = vunpack.c.l.b16 %v221
        %v1202 = vunpack.c.l.b16 %v222
        %v1203 = vunpack.c.l.b16 %v223
        %v1204 = vunpack.c.l.b16 %v224
        %v1205 = vunpack.c.l.b16 %v225
        %v1206 = vunpack.c.l.b16 %v226
        %v1207 = vunpack.c.l.b16 %v227
        %v1208 = vunpack.c.l.b16 %v228
        %v1209 = vunpack.c.l.b16 %v229
        %v1210 = vunpack.c.l.b16 %v230
        %v1211 = vunpack.c.l.b16 %v231
        %v1212 = vunpack.c.l.b16 %v232
        %v1213 = vunpack.c.l.b16 %v233
        %v1214 = vunpack.c.l.b16 %v234
        %v1215 = vunpack.c.l.b16 %v235
        %v1216 = vunpack.c.l.b16 %v236
        %v1217 = vunpack.c.l.b16 %v237
        %v1218 = vunpack.c.l.b16 %v238
        %v1219 = vunpack.c.l.b16 %v239
        %v1220 = vunpack.c.l.b16 %v240
        %v1221 = vunpack.c.l.b16 %v241
        %v1222 = vunpack.c.l.b16 %v242
        %v1223 = vunpack.c.l.b16 %v243
        %v1224 = vunpack.c.l.b16 %v244
        %v1225 = vunpack.c.l.b16 %v245
        %v1226 = vunpack.c.l.b16 %v246
        %v1227 = vunpack.c.l.b16 %v247
        %v1228 = vunpack.c.l.b16 %v248
        %v1229 = vunpack.c.l.b16 %v249
        %v1230 = vunpack.c.l.b16 %v250
        %v1231 = vunpack.c.l.b16 %v251
        %v1232 = vunpack.c.l.b16 %v252
        %v1233 = vunpack.c.l.b16 %v253
        %v1234 = vunpack.c.l.b16 %v254
        %v1235 = vunpack.c.l.b16 %v255
        %v1236 = vunpack.c.l.b16 %v256
        %v1237 = vunpack.c.l.b16 %v257
        %v1238 = vunpack.c.l.b16 %v258
        %v1239 = vunpack.c.l.b16 %v259
        %v1240 = vunpack.c.l.b16 %v260
        %v1241 = vunpack.c.l.b16 %v261
        %v1242 = vunpack.c.l.b16 %v262
        %v1243 = vunpack.c.l.b16 %v263
        %v1244 = vunpack.c.l.b16 %v264
        %v1245 = vunpack.c.l.b16 %v265
        %v1246 = vunpack.c.l.b16 %v266
        %v1247 = vunpack.c.l.b16 %v267
        %v1248 = vunpack.c.l.b16 %v268
        %v1249 = vunpack.c.l.b16 %v269
        %v1250 = vunpack.c.l.b16 %v270
        %v1251 = vunpack.c.l.b16 %v271
        %v1252 = vunpack.c.l.b16 %v272
        %v1253 = vunpack.c.l.b16 %v273
        %v1254 = vunpack.c.l.b16 %v274
        %v1255 = vunpack.c.l.b16 %v275
        %v1256 = vunpack.c.l.b16 %v276
        %v1257 = vunpack.c.l.b16 %v277
        %v1258 = vunpack.c.l.b16 %v278
        %v1259 = vunpack.c.l.b16 %v279
        %v1260 = vunpack.c.l.b16 %v280
        %v1261 = vunpack.c.l.b16 %v281
        %v1262 = vunpack.c.l.b16 %v282
        %v1263 = vunpack.c.l.b16 %v283
        %v1264 = vunpack.c.l.b16 %v284
        %v1265 = vunpack.c.l.b16 %v285
        %v1266 = vunpack.c.l.b16 %v286
        %v1267 = vunpack.c.l.b16 %v287
        %v1268 = vunpack.c.l.b16 %v288
        %v1269 = vunpack.c.l.b16 %v289
        %v1270 = vunpack.c.l.b16 %v290
        %v1271 = vunpack.c.l.b16 %v291
        %v1272 = vunpack.c.l.b16 %v292
        %v1273 = vunpack.c.l.b16 %v293
        %v1274 = vunpack.c.l.b16 %v294
        %v1275 = vunpack.c.l.b16 %v295
        %v1276 = vunpack.c.l.b16 %v296
        %v1277 = vunpack.c.l.b16 %v297
        %v1278 = vunpack.c.l.b16 %v298
        %v1279 = vunpack.c.l.b16 %v299
        %v1280 = vunpack.c.l.b16 %v300
        %v1281 = vunpack.c.l.b16 %v301
        %v1282 = vunpack.c.l.b16 %v302
        %v1283 = vunpack.c.l.b16 %v303
        %v1284 = vunpack.c.l.b16 %v304
        %v1285 = vunpack.c.l.b16 %v305
        %v1286 = vunpack.c.l.b16 %v306
        %v1287 = vunpack.c.l.b16 %v307
        %v1288 = vunpack.c.l.b16 %v308
        %v1289 = vunpack.c.l.b16 %v309
        %v1290 = vunpack.c.l.b16 %v310
        %v1291 = vunpack.c.l.b16 %v311
        %v1292 = vunpack.c.l.b16 %v312
        %v1293 = vunpack.c.l.b16 %v313
        %v1294 = vunpack.c.l.b16 %v314
        %v1295 = vunpack.c.l.b16 %v315
        %v1296 = vunpack.c.l.b16 %v316
        %v1297 = vunpack.c.l.b16 %v317
        %v1298 = vunpack.c.l.b16 %v318
        %v1299 = vunpack.c.l.b16 %v319
        %v1300 = vunpack.c.l.b16 %v320
        %v1301 = vunpack.c.l.b16 %v321
        %v1302 = vunpack.c.l.b16 %v322
        %v1303 = vunpack.c.l.b16 %v323
        %v1304 = vunpack.c.l.b16 %v324
        %v1305 = vunpack.c.l.b16 %v325
        %v1306 = vunpack.c.l.b16 %v326
        %v1307 = vunpack.c.l.b16 %v327
        %v1308 = vunpack.c.l.b16 %v328
        %v1309 = vunpack.c.l.b16 %v329
        %v1310 = vunpack.c.l.b16 %v330
        %v1311 = vunpack.c.l.b16 %v331
        %v1312 = vunpack.c.l.b16 %v332
        %v1313 = vunpack.c.l.b16 %v333
        %v1314 = vunpack.c.l.b16 %v334
        %v1315 = vunpack.c.l.b16 %v335
        %v1316 = vunpack.c.l.b16 %v336
        %v1317 = vunpack.c.l.b16 %v337
        %v1318 = vunpack.c.l.b16 %v338
        %v1319 = vunpack.c.l.b16 %v339
        %v1320 = vunpack.c.l.b16 %v340
        %v1321 = vunpack.c.l.b16 %v341
        %v1322 = vunpack.c.l.b16 %v342
        %v1323 = vunpack.c.l.b16 %v343
        %v1324 = vunpack.c.l.b16 %v344
        %v1325 = vunpack.c.l.b16 %v345
        %v1326 = vunpack.c.l.b16 %v346
        %v1327 = vunpack.c.l.b16 %v347
        %v1328 = vunpack.c.l.b16 %v348
        %v1329 = vunpack.c.l.b16 %v349
        %v1330 = vunpack.c.l.b16 %v350
        %v1331 = vunpack.c.l.b16 %v351
        %v1332 = vunpack.c.l.b16 %v352
        %v1333 = vunpack.c.l.b16 %v353
        %v1334 = vunpack.c.l.b16 %v354
        %v1335 = vunpack.c.l.b16 %v355
        %v1336 = vunpack.c.l.b16 %v356
        %v1337 = vunpack.c.l.b16 %v357
        %v1338 = vunpack.c.l.b16 %v358
        %v1339 = vunpack.c.l.b16 %v359
        %v1340 = vunpack.c.l.b16 %v360
        %v1341 = vunpack.c.l.b16 %v361
        %v1342 = vunpack.c.l.b16 %v362
        %v1343 = vunpack.c.l.b16 %v363
        %v1344 = vunpack.c.l.b16 %v364
        %v1345 = vunpack.c.l.b16 %v365
        %v1346 = vunpack.c.l.b16 %v366
        %v1347 = vunpack.c.l.b16 %v367
        %v1348 = vunpack.c.l.b16 %v368
        %v1349 = vunpack.c.l.b16 %v369
        %v1350 = vunpack.c.l.b16 %v370
        %v1351 = vunpack.c.l.b16 %v371
        %v1352 = vunpack.c.l.b16 %v372
        %v1353 = vunpack.c.l.b16 %v373
        %v1354 = vunpack.c.l.b16 %v374
        %v1355 = vunpack.c.l.b16 %v375
        %v1356 = vunpack.c.l.b16 %v376
        %v1357 = vunpack.c.l.b16 %v377
        %v1358 = vunpack.c.l.b16 %v378
        %v1359 = vunpack.c.l.b16 %v379
        %v1360 = vunpack.c.l.b16 %v380
        %v1361 = vunpack.c.l.b16 %v381
        %v1362 = vunpack.c.l.b16 %v382
        %v1363 = vunpack.c.l.b16 %v383
        %v1364 = vunpack.c.l.b16 %v384
        %v1365 = vunpack.c.l.b16 %v385
        %v1366 = vunpack.c.l.b16 %v386
        %v1367 = vunpack.c.l.b16 %v387
        %v1368 = vunpack.c.l.b16 %v388
        %v1369 = vunpack.c.l.b16 %v389
        %v1370 = vunpack.c.l.b16 %v390
        %v1371 = vunpack.c.l.b16 %v391
        %v1372 = vunpack.c.l.b16 %v392
        %v1373 = vunpack.c.l.b16 %v393
        %v1374 = vunpack.c.l.b16 %v394
        %v1375 = vunpack.c.l.b16 %v395
        %v1376 = vunpack.c.l.b16 %v396
        %v1377 = vunpack.c.l.b16 %v397
        %v1378 = vunpack.c.l.b16 %v398
        %v1379 = vunpack.c.l.b16 %v399
        %v1380 = vunpack.c.l.b16 %v400
        %v1381 = vunpack.c.l.b16 %v401
        %v1382 = vunpack.c.l.b16 %v402
        %v1383 = vunpack.c.l.b16 %v403
        %v1384 = vunpack.c.l.b16 %v404
        %v1385 = vunpack.c.l.b16 %v405
        %v1386 = vunpack.c.l.b16 %v406
        %v1387 = vunpack.c.l.b16 %v407
        %v1388 = vunpack.c.l.b16 %v408
        %v1389 = vunpack.c.l.b16 %v409
        %v1390 = vunpack.c.l.b16 %v410
        %v1391 = vunpack.c.l.b16 %v411
        %v1392 = vunpack.c.l.b16 %v412
        %v1393 = vunpack.c.l.b16 %v413
        %v1394 = vunpack.c.l.b16 %v414
        %v1395 = vunpack.c.l.b16 %v415
        %v1396 = vunpack.c.l.b16 %v416
        %v1397 = vunpack.c.l.b16 %v417
        %v1398 = vunpack.c.l.b16 %v418
        %v1399 = vunpack.c.l.b16 %v419
        %v1400 = vunpack.c.l.b16 %v420
        %v1401 = vunpack.c.l.b16 %v421
        %v1402 = vunpack.c.l.b16 %v422
        %v1403 = vunpack.c.l.b16 %v423
        %v1404 = vunpack.c.l.b16 %v424
        %v1405 = vunpack.c.l.b16 %v425
        %v1406 = vunpack.c.l.b16 %v426
        %v1407 = vunpack.c.l.b16 %v427
        %v1408 = vunpack.c.l.b16 %v428
        %v1409 = vunpack.c.l.b16 %v429
        %v1410 = vunpack.c.l.b16 %v430
        %v1411 = vunpack.c.l.b16 %v431
        %v1412 = vunpack.c.l.b16 %v432
        %v1413 = vunpack.c.l.b16 %v433
        %v1414 = vunpack.c.l.b16 %v434
        %v1415 = vunpack.c.l.b16 %v435
        %v1416 = vunpack.c.l.b16 %v436
        %v1417 = vunpack.c.l.b16 %v437
        %v1418 = vunpack.c.l.b16 %v438
        %v1419 = vunpack.c.l.b16 %v439
        %v1420 = vunpack.c.l.b16 %v440
        %v1421 = vunpack.c.l.b16 %v441
        %v1422 = vunpack.c.l.b16 %v442
        %v1423 = vunpack.c.l.b16 %v443
        %v1424 = vunpack.c.l.b16 %v444
        %v1425 = vunpack.c.l.b16 %v445
        %v1426 = vunpack.c.l.b16 %v446
        %v1427 = vunpack.c.l.b16 %v447
        %v1428 = vunpack.c.l.b16 %v448
        %v1429 = vunpack.c.l.b16 %v449
        %v1430 = vunpack.c.l.b16 %v450
        %v1431 = vunpack.c.l.b16 %v451
        %v1432 = vunpack.c.l.b16 %v452
        %v1433 = vunpack.c.l.b16 %v453
        %v1434 = vunpack.c.l.b16 %v454
        %v1435 = vunpack.c.l.b16 %v455
        %v1436 = vunpack.c.l.b16 %v456
        %v1437 = vunpack.c.l.b16 %v457
        %v1438 = vunpack.c.l.b16 %v458
        %v1439 = vunpack.c.l.b16 %v459
        %v1440 = vunpack.c.l.b16 %v460
        %v1441 = vunpack.c.l.b16 %v461
        %v1442 = vunpack.c.l.b16 %v462
        %v1443 = vunpack.c.l.b16 %v463
        %v1444 = vunpack.c.l.b16 %v464
        %v1445 = vunpack.c.l.b16 %v465
        %v1446 = vunpack.c.l.b16 %v466
        %v1447 = vunpack.c.l.b16 %v467
        %v1448 = vunpack.c.l.b16 %v468
        %v1449 = vunpack.c.l.b16 %v469
        %v1450 = vunpack.c.l.b16 %v470
        %v1451 = vunpack.c.l.b16 %v471
        %v1452 = vunpack.c.l.b16 %v472
        %v1453 = vunpack.c.l.b16 %v473
        %v1454 = vunpack.c.l.b16 %v474
        %v1455 = vunpack.c.l.b16 %v475
        %v1456 = vunpack.c.l.b16 %v476
        %v1457 = vunpack.c.l.b16 %v477
        %v1458 = vunpack.c.l.b16 %v478
        %v1459 = vunpack.c.l.b16 %v479
        %v1460 = vunpack.c.l.b16 %v480
        %v1461 = vunpack.c.l.b16 %v481
        %v1462 = vunpack.c.l.b16 %v482
        %v1463 = vunpack.c.l.b16 %v483
        %v1464 = vunpack.c.l.b16 %v484
        %v1465 = vunpack.c.l.b16 %v485
        %v1466 = vunpack.c.l.b16 %v486
        %v1467 = vunpack.c.l.b16 %v487
        %v1468 = vunpack.c.l.b16 %v488
        %v1469 = vunpack.c.l.b16 %v489
        %v1470 = vunpack.c.l.b16 %v490
        %v1471 = vunpack.c.l.b16 %v491
        %v1472 = vunpack.c.l.b16 %v492
        %v1473 = vunpack.c.l.b16 %v493
        %v1474 = vunpack.c.l.b16 %v494
        %v1475 = vunpack.c.l.b16 %v495
        %v1476 = vunpack.c.l.b16 %v496
        %v1477 = vunpack.c.l.b16 %v497
        %v1478 = vunpack.c.l.b16 %v498
        %v1479 = vunpack.c.l.b16 %v499
        %v1480 = vunpack.c.l.b16 %v500
        %v1481 = vunpack.c.l.b16 %v501
        %v1482 = vunpack.c.l.b16 %v502
        %v1483 = vunpack.c.l.b16 %v503
        %v1484 = vunpack.c.l.b16 %v504
        %v1485 = vunpack.c.l.b16 %v505
        %v1486 = vunpack.c.l.b16 %v506
        %v1487 = vunpack.c.l.b16 %v507
        %v1488 = vunpack.c.l.b16 %v508
        %v1489 = vunpack.c.l.b16 %v509
        %v1490 = vunpack.c.l.b16 %v510
        %v1491 = vunpack.c.l.b16 %v511
        %v1492 = vunpack.c.l.b16 %v512
        %v1493 = vunpack.c.l.b16 %v513
        %v1494 = vunpack.c.l.b16 %v514
        %v1495 = vunpack.c.l.b16 %v515
        %v1496 = vunpack.c.l.b16 %v516
        %v1497 = vunpack.c.l.b16 %v517
        %v1498 = vunpack.c.l.b16 %v518
        %v1499 = vunpack.c.l.b16 %v519
        %v1500 = vunpack.c.l.b16 %v520
        %v1501 = vunpack.c.l.b16 %v521
        %v1502 = vunpack.c.l.b16 %v522
        %v1503 = vunpack.c.l.b16 %v523
        %v1504 = vunpack.c.l.b16 %v524
        %v1505 = vunpack.c.l.b16 %v525
        %v1506 = vunpack.c.l.b16 %v526
        %v1507 = vunpack.c.l.b16 %v527
        %v1508 = vunpack.c.l.b16 %v528
        %v1509 = vunpack.c.l.b16 %v529
        %v1510 = vunpack.c.l.b16 %v530
        %v1511 = vunpack.c.l.b16 %v531
        %v1512 = vunpack.c.l.b16 %v532
        %v1513 = vunpack.c.l.b16 %v533
        %v1514 = vunpack.c.l.b16 %v534
        %v1515 = vunpack.c.l.b16 %v535
        %v1516 = vunpack.c.l.b16 %v536
        %v1517 = vunpack.c.l.b16 %v537
        %v1518 = vunpack.c.l.b16 %v538
        %v1519 = vunpack.c.l.b16 %v539
        %v1520 = vunpack.c.l.b16 %v540
        %v1521 = vunpack.c.l.b16 %v541
        %v1522 = vunpack.c.l.b16 %v542
        %v1523 = vunpack.c.l.b16 %v543
        %v1524 = vunpack.c.l.b16 %v544
        %v1525 = vunpack.c.l.b16 %v545
        %v1526 = vunpack.c.l.b16 %v546
        %v1527 = vunpack.c.l.b16 %v547
        %v1528 = vunpack.c.l.b16 %v548
        %v1529 = vunpack.c.l.b16 %v549
        %v1530 = vunpack.c.l.b16 %v550
        %v1531 = vunpack.c.l.b16 %v551
        %v1532 = vunpack.c.l.b16 %v552
        %v1533 = vunpack.c.l.b16 %v553
        %v1534 = vunpack.c.l.b16 %v554
        %v1535 = vunpack.c.l.b16 %v555
        %v1536 = vunpack.c.l.b16 %v556
        %v1537 = vunpack.c.l.b16 %v557
        %v1538 = vunpack.c.l.b16 %v558
        %v1539 = vunpack.c.l.b16 %v559
        %v1540 = vunpack.c.l.b16 %v560
        %v1541 = vunpack.c.l.b16 %v561
        %v1542 = vunpack.c.l.b16 %v562
        %v1543 = vunpack.c.l.b16 %v563
        %v1544 = vunpack.c.l.b16 %v564
        %v1545 = vunpack.c.l.b16 %v565
        %v1546 = vunpack.c.l.b16 %v566
        %v1547 = vunpack.c.l.b16 %v567
        %v1548 = vunpack.c.l.b16 %v568
        %v1549 = vunpack.c.l.b16 %v569
        %v1550 = vunpack.c.l.b16 %v570
        %v1551 = vunpack.c.l.b16 %v571
        %v1552 = vunpack.c.l.b16 %v572
        %v1553 = vunpack.c.l.b16 %v573
        %v1554 = vunpack.c.l.b16 %v574
        %v1555 = vunpack.c.l.b16 %v575
        %v1556 = vunpack.c.l.b16 %v576
        %v1557 = vunpack.c.l.b16 %v577
        %v1558 = vunpack.c.l.b16 %v578
        %v1559 = vunpack.c.l.b16 %v579
        %v1560 = vunpack.c.l.b16 %v580
        %v1561 = vunpack.c.l.b16 %v581
        %v1562 = vunpack.c.l.b16 %v582
        %v1563 = vunpack.c.l.b16 %v583
        %v1564 = vunpack.c.l.b16 %v584
        %v1565 = vunpack.c.l.b16 %v585
        %v1566 = vunpack.c.l.b16 %v586
        %v1567 = vunpack.c.l.b16 %v587
        %v1568 = vunpack.c.l.b16 %v588
        %v1569 = vunpack.c.l.b16 %v589
        %v1570 = vunpack.c.l.b16 %v590
        %v1571 = vunpack.c.l.b16 %v591
        %v1572 = vunpack.c.l.b16 %v592
        %v1573 = vunpack.c.l.b16 %v593
        %v1574 = vunpack.c.l.b16 %v594
        %v1575 = vunpack.c.l.b16 %v595
        %v1576 = vunpack.c.l.b16 %v596
        %v1577 = vunpack.c.l.b16 %v597
        %v1578 = vunpack.c.l.b16 %v598
        %v1579 = vunpack.c.l.b16 %v599
        %v1580 = vunpack.c.l.b16 %v600
        %v1581 = vunpack.c.l.b16 %v601
        %v1582 = vunpack.c.l.b16 %v602
        %v1583 = vunpack.c.l.b16 %v603
        %v1584 = vunpack.c.l.b16 %v604
        %v1585 = vunpack.c.l.b16 %v605
        %v1586 = vunpack.c.l.b16 %v606
        %v1587 = vunpack.c.l.b16 %v607
        %v1588 = vunpack.c.l.b16 %v608
        %v1589 = vunpack.c.l.b16 %v609
        %v1590 = vunpack.c.l.b16 %v610
        %v1591 = vunpack.c.l.b16 %v611
        %v1592 = vpack.c.b16 %v1201, %v1200
        %v1593 = vpack.c.b16 %v1203, %v1202
        %v1594 = vpack.c.b16 %v1205, %v1204
        %v1595 = vpack.c.b16 %v1207, %v1206
        %v1596 = vpack.c.b16 %v1209, %v1208
        %v1597 = vpack.c.b16 %v1211, %v1210
        %v1598 = vpack.c.b16 %v1213, %v1212
        %v1599 = vpack.c.b16 %v1215, %v1214
        %v1600 = vpack.c.b16 %v1217, %v1216
        %v1601 = vpack.c.b16 %v1219, %v1218
        %v1602 = vpack.c.b16 %v1221, %v1220
        %v1603 = vpack.c.b16 %v1223, %v1222
        %v1604 = vpack.c.b16 %v1225, %v1224
        %v1605 = vpack.c.b16 %v1227, %v1226
        %v1606 = vpack.c.b16 %v1229, %v1228
        %v1607 = vpack.c.b16 %v1231, %v1230
        %v1608 = vpack.c.b16 %v1233, %v1232
        %v1609 = vpack.c.b16 %v1235, %v1234
        %v1610 = vpack.c.b16 %v1237, %v1236
        %v1611 = vpack.c.b16 %v1239, %v1238
        %v1612 = vpack.c.b16 %v1241, %v1240
        %v1613 = vpack.c.b16 %v1243, %v1242
        %v1614 = vpack.c.b16 %v1245, %v1244
        %v1615 = vpack.c.b16 %v1247, %v1246
        %v1616 = vpack.c.b16 %v1249, %v1248
        %v1617 = vpack.c.b16 %v1251, %v1250
        %v1618 = vpack.c.b16 %v1253, %v1252
        %v1619 = vpack.c.b16 %v1255, %v1254
        %v1620 = vpack.c.b16 %v1257, %v1256
        %v1621 = vpack.c.b16 %v1259, %v1258
        %v1622 = vpack.c.b16 %v1261, %v1260
        %v1623 = vpack.c.b16 %v1263, %v1262
        %v1624 = vpack.c.b16 %v1265, %v1264
        %v1625 = vpack.c.b16 %v1267, %v1266
        %v1626 = vpack.c.b16 %v1269, %v1268
        %v1627 = vpack.c.b16 %v1271, %v1270
        %v1628 = vpack.c.b16 %v1273, %v1272
        %v1629 = vpack.c.b16 %v1275, %v1274
        %v1630 = vpack.c.b16 %v1277, %v1276
        %v1631 = vpack.c.b16 %v1279, %v1278
        %v1632 = vpack.c.b16 %v1281, %v1280
        %v1633 = vpack.c.b16 %v1283, %v1282
        %v1634 = vpack.c.b16 %v1285, %v1284
        %v1635 = vpack.c.b16 %v1287, %v1286
        %v1636 = vpack.c.b16 %v1289, %v1288
        %v1637 = vpack.c.b16 %v1291, %v1290
        %v1638 = vpack.c.b16 %v1293, %v1292
        %v1639 = vpack.c.b16 %v1295, %v1294
        %v1640 = vpack.c.b16 %v1297, %v1296
        %v1641 = vpack.c.b16 %v1299, %v1298
        %v1642 = vpack.c.b16 %v1301, %v1300
        %v1643 = vpack.c.b16 %v1303, %v1302
        %v1644 = vpack.c.b16 %v1305, %v1304
        %v1645 = vpack.c.b16 %v1307, %v1306
        %v1646 = vpack.c.b16 %v1309, %v1308
        %v1647 = vpack.c.b16 %v1311, %v1310
        %v1648 = vpack.c.b16 %v1313, %v1312
        %v1649 = vpack.c.b16 %v1315, %v1314
        %v1650 = vpack.c.b16 %v1317, %v1316
        %v1651 = vpack.c.b16 %v1319, %v1318
        %v1652 = vpack.c.b16 %v1321, %v1320
        %v1653 = vpack.c.b16 %v1323, %v1322
        %v1654 = vpack.c.b16 %v1325, %v1324
        %v1655 = vpack.c.b16 %v1327, %v1326
        %v1656 = vpack.c.b16 %v1329, %v1328
        %v1657 = vpack.c.b16 %v1331, %v1330
        %v1658 = vpack.c.b16 %v1333, %v1332
        %v1659 = vpack.c.b16 %v1335, %v1334
        %v1660 = vpack.c.b16 %v1337, %v1336
        %v1661 = vpack.c.b16 %v1339, %v1338
        %v1662 = vpack.c.b16 %v1341, %v1340
        %v1663 = vpack.c.b16 %v1343, %v1342
        %v1664 = vpack.c.b16 %v1345, %v1344
        %v1665 = vpack.c.b16 %v1347, %v1346
        %v1666 = vpack.c.b16 %v1349, %v1348
        %v1667 = vpack.c.b16 %v1351, %v1350
        %v1668 = vpack.c.b16 %v1353, %v1352
        %v1669 = vpack.c.b16 %v1355, %v1354
        %v1670 = vpack.c.b16 %v1357, %v1356
        %v1671 = vpack.c.b16 %v1359, %v1358
        %v1672 = vpack.c.b16 %v1361, %v1360
        %v1673 = vpack.c.b16 %v1363, %v1362
        %v1674 = vpack.c.b16 %v1365, %v1364
        %v1675 = vpack.c.b16 %v1367, %v1366
        %v1676 = vpack.c.b16 %v1369, %v1368
        %v1677 = vpack.c.b16 %v1371, %v1370
        %v1678 = vpack.c.b16 %v1373, %v1372
        %v1679 = vpack.c.b16 %v1375, %v1374
        %v1680 = vpack.c.b16 %v1377, %v1376
        %v1681 = vpack.c.b16 %v1379, %v1378
        %v1682 = vpack.c.b16 %v1381, %v1380
        %v1683 = vpack.c.b16 %v1383, %v1382
        %v1684 = vpack.c.b16 %v1385, %v1384
        %v1685 = vpack.c.b16 %v1387, %v1386
        %v1686 = vpack.c.b16 %v1389, %v1388
        %v1687 = vpack.c.b16 %v1391, %v1390
        %v1688 = vpack.c.b16 %v1393, %v1392
        %v1689 = vpack.c.b16 %v1395, %v1394
        %v1690 = vpack.c.b16 %v1397, %v1396
        %v1691 = vpack.c.b16 %v1399, %v1398
        %v1692 = vpack.c.b16 %v1401, %v1400
        %v1693 = vpack.c.b16 %v1403, %v1402
        %v1694 = vpack.c.b16 %v1405, %v1404
        %v1695 = vpack.c.b16 %v1407, %v1406
        %v1696 = vpack.c.b16 %v1409, %v1408
        %v1697 = vpack.c.b16 %v1411, %v1410
        %v1698 = vpack.c.b16 %v1413, %v1412
        %v1699 = vpack.c.b16 %v1415, %v1414
        %v1700 = vpack.c.b16 %v1417, %v1416
        %v1701 = vpack.c.b16 %v1419, %v1418
        %v1702 = vpack.c.b16 %v1421, %v1420
        %v1703 = vpack.c.b16 %v1423, %v1422
        %v1704 = vpack.c.b16 %v1425, %v1424
        %v1705 = vpack.c.b16 %v1427, %v1426
        %v1706 = vpack.c.b16 %v1429, %v1428
        %v1707 = vpack.c.b16 %v1431, %v1430
        %v1708 = vpack.c.b16 %v1433, %v1432
        %v1709 = vpack.c.b16 %v1435, %v1434
        %v1710 = vpack.c.b16 %v1437, %v1436
        %v1711 = vpack.c.b16 %v1439, %v1438
        %v1712 = vpack.c.b16 %v1441, %v1440
        %v1713 = vpack.c.b16 %v1443, %v1442
        %v1714 = vpack.c.b16 %v1445, %v1444
        %v1715 = vpack.c.b16 %v1447, %v1446
        %v1716 = vpack.c.b16 %v1449, %v1448
        %v1717 = vpack.c.b16 %v1451, %v1450
        %v1718 = vpack.c.b16 %v1453, %v1452
        %v1719 = vpack.c.b16 %v1455, %v1454
        %v1720 = vpack.c.b16 %v1457, %v1456
        %v1721 = vpack.c.b16 %v1459, %v1458
        %v1722 = vpack.c.b16 %v1461, %v1460
        %v1723 = vpack.c.b16 %v1463, %v1462
        %v1724 = vpack.c.b16 %v1465, %v1464
        %v1725 = vpack.c.b16 %v1467, %v1466
        %v1726 = vpack.c.b16 %v1469, %v1468
        %v1727 = vpack.c.b16 %v1471, %v1470
        %v1728 = vpack.c.b16 %v1473, %v1472
        %v1729 = vpack.c.b16 %v1475, %v1474
        %v1730 = vpack.c.b16 %v1477, %v1476
        %v1731 = vpack.c.b16 %v1479, %v1478
        %v1732 = vpack.c.b16 %v1481, %v1480
        %v1733 = vpack.c.b16 %v1483, %v1482
        %v1734 = vpack.c.b16 %v1485, %v1484
        %v1735 = vpack.c.b16 %v1487, %v1486
        %v1736 = vpack.c.b16 %v1489, %v1488
        %v1737 = vpack.c.b16 %v1491, %v1490
        %v1738 = vpack.c.b16 %v1493, %v1492
        %v1739 = vpack.c.b16 %v1495, %v1494
        %v1740 = vpack.c.b16 %v1497, %v1496
        %v1741 = vpack.c.b16 %v1499, %v1498
        %v1742 = vpack.c.b16 %v1501, %v1500
        %v1743 = vpack.c.b16 %v1503, %v1502
        %v1744 = vpack.c.b16 %v1505, %v1504
        %v1745 = vpack.c.b16 %v1507, %v1506
        %v1746 = vpack.c.b16 %v1509, %v1508
        %v1747 = vpack.c.b16 %v1511, %v1510
        %v1748 = vpack.c.b16 %v1513, %v1512
        %v1749 = vpack.c.b16 %v1515, %v1514
        %v1750 = vpack.c.b16 %v1517, %v1516
        %v1751 = vpack.c.b16 %v1519, %v1518
        %v1752 = vpack.c.b16 %v1521, %v1520
        %v1753 = vpack.c.b16 %v1523, %v1522
        %v1754 = vpack.c.b16 %v1525, %v1524
        %v1755 = vpack.c.b16 %v1527, %v1526
        %v1756 = vpack.c.b16 %v1529, %v1528
        %v1757 = vpack.c.b16 %v1531, %v1530
        %v1758 = vpack.c.b16 %v1533, %v1532
        %v1759 = vpack.c.b16 %v1535, %v1534
        %v1760 = vpack.c.b16 %v1537, %v1536
        %v1761 = vpack.c.b16 %v1539, %v1538
        %v1762 = vpack.c.b16 %v1541, %v1540
        %v1763 = vpack.c.b16 %v1543, %v1542
        %v1764 = vpack.c.b16 %v1545, %v1544
        %v1765 = vpack.c.b16 %v1547, %v1546
        %v1766 = vpack.c.b16 %v1549, %v1548
        %v1767 = vpack.c.b16 %v1551, %v1550
        %v1768 = vpack.c.b16 %v1553, %v1552
        %v1769 = vpack.c.b16 %v1555, %v1554
        %v1770 = vpack.c.b16 %v1557, %v1556
        %v1771 = vpack.c.b16 %v1559, %v1558
        %v1772 = vpack.c.b16 %v1561, %v1560
        %v1773 = vpack.c.b16 %v1563, %v1562
        %v1774 = vpack.c.b16 %v1565, %v1564
        %v1775 = vpack.c.b16 %v1567, %v1566
        %v1776 = vpack.c.b16 %v1569, %v1568
        %v1777 = vpack.c.b16 %v1571, %v1570
        %v1778 = vpack.c.b16 %v1573, %v1572
        %v1779 = vpack.c.b16 %v1575, %v1574
        %v1780 = vpack.c.b16 %v1577, %v1576
        %v1781 = vpack.c.b16 %v1579, %v1578
        %v1782 = vpack.c.b16 %v1581, %v1580
        %v1783 = vpack.c.b16 %v1583, %v1582
        %v1784 = vpack.c.b16 %v1585, %v1584
        %v1785 = vpack.c.b16 %v1587, %v1586
        %v1786 = vpack.c.b16 %v1589, %v1588
        %v1787 = vpack.c.b16 %v1591, %v1590
        %vm1984 = vcmask 523264
        %v1986 = vsel %vm1984, %v783, 0
        %1988 = vmatprep.subr.bf16.mxu0 0
        %1989 = vmatpush1.bf16.msra.mxu0 %v1599
        %1990 = vmatprep.subr.bf16.mxu0 0
        %1991 = vmatpush1.bf16.msra.mxu0 %v1598
        %1992 = vmatprep.subr.bf16.mxu0 0
        %1993 = vmatpush1.bf16.msra.mxu0 %v1597
        %1994 = vmatprep.subr.bf16.mxu0 0
        %1995 = vmatpush1.bf16.msra.mxu0 %v1596
        %1996 = vmatprep.subr.bf16.mxu0 0
        %1997 = vmatpush1.bf16.msra.mxu0 %v1595
        %1998 = vmatprep.subr.bf16.mxu0 0
        %1999 = vmatpush1.bf16.msra.mxu0 %v1594
        %2000 = vmatprep.subr.bf16.mxu0 0
        %2001 = vmatpush1.bf16.msra.mxu0 %v1593
        %2002 = vmatprep.subr.bf16.mxu0 0
        %2003 = vmatpush1.bf16.msra.mxu0 %v1592
        %2004 = vmatprep.subr.bf16.mxu0 0
        %2005 = vmatpush2.bf16.msra.mxu0 %v1607
        %2006 = vmatprep.subr.bf16.mxu0 0
        %2007 = vmatpush2.bf16.msra.mxu0 %v1606
        %2008 = vmatprep.subr.bf16.mxu0 0
        %2009 = vmatpush2.bf16.msra.mxu0 %v1605
        %2010 = vmatprep.subr.bf16.mxu0 0
        %2011 = vmatpush2.bf16.msra.mxu0 %v1604
        %2012 = vmatprep.subr.bf16.mxu0 0
        %2013 = vmatpush2.bf16.msra.mxu0 %v1603
        %2014 = vmatprep.subr.bf16.mxu0 0
        %2015 = vmatpush2.bf16.msra.mxu0 %v1602
        %2016 = vmatprep.subr.bf16.mxu0 0
        %2017 = vmatpush2.bf16.msra.mxu0 %v1601
        %2018 = vmatprep.subr.bf16.mxu0 0
        %2019 = vmatpush2.bf16.msra.mxu0 %v1600
        %2020 = vmatprep.mubr.bf16.mxu0 %v660
        %2021 = vmatmul.mubr.bf16.gmra.mxu0 %v646
        %v2022 = vpop.f32.mrf.mxu0
        %v2023 = vadd.f32 %v617, %v2022
        %v2024 = vpop.f32.mrf.mxu0
        %v2025 = vpop.f32.mrf.mxu0
        %v2026 = vpop.f32.mrf.mxu0
        %2027 = vdwg.mxu0
        %2028 = vmatprep.subr.bf16.mxu0 0
        %2029 = vmatpush1.bf16.msra.mxu0 %v1615
        %2030 = vmatprep.subr.bf16.mxu0 0
        %2031 = vmatpush1.bf16.msra.mxu0 %v1614
        %2032 = vmatprep.subr.bf16.mxu0 0
        %2033 = vmatpush1.bf16.msra.mxu0 %v1613
        %2034 = vmatprep.subr.bf16.mxu0 0
        %2035 = vmatpush1.bf16.msra.mxu0 %v1612
        %2036 = vmatprep.subr.bf16.mxu0 0
        %2037 = vmatpush1.bf16.msra.mxu0 %v1611
        %2038 = vmatprep.subr.bf16.mxu0 0
        %2039 = vmatpush1.bf16.msra.mxu0 %v1610
        %2040 = vmatprep.subr.bf16.mxu0 0
        %2041 = vmatpush1.bf16.msra.mxu0 %v1609
        %2042 = vmatprep.subr.bf16.mxu0 0
        %2043 = vmatpush1.bf16.msra.mxu0 %v1608
        %2044 = vmatprep.subr.bf16.mxu0 0
        %2045 = vmatpush2.bf16.msra.mxu0 %v1623
        %2046 = vmatprep.subr.bf16.mxu0 0
        %2047 = vmatpush2.bf16.msra.mxu0 %v1622
        %2048 = vmatprep.subr.bf16.mxu0 0
        %2049 = vmatpush2.bf16.msra.mxu0 %v1621
        %2050 = vmatprep.subr.bf16.mxu0 0
        %2051 = vmatpush2.bf16.msra.mxu0 %v1620
        %2052 = vmatprep.subr.bf16.mxu0 0
        %2053 = vmatpush2.bf16.msra.mxu0 %v1619
        %2054 = vmatprep.subr.bf16.mxu0 0
        %2055 = vmatpush2.bf16.msra.mxu0 %v1618
        %2056 = vmatprep.subr.bf16.mxu0 0
        %2057 = vmatpush2.bf16.msra.mxu0 %v1617
        %2058 = vmatprep.subr.bf16.mxu0 0
        %2059 = vmatpush2.bf16.msra.mxu0 %v1616
        %2060 = vmatprep.mubr.bf16.mxu0 %v670
        %2061 = vmatmul.mubr.bf16.gmra.mxu0 %v668
        %v2062 = vpop.f32.mrf.mxu0
        %v2063 = vadd.f32 %v2023, %v2062
        %v2064 = vpop.f32.mrf.mxu0
        %v2065 = vpop.f32.mrf.mxu0
        %v2066 = vpop.f32.mrf.mxu0
        %2067 = vdwg.mxu0
        %2068 = vmatprep.subr.bf16.mxu0 0
        %2069 = vmatpush1.bf16.msra.mxu0 %v1631
        %2070 = vmatprep.subr.bf16.mxu0 0
        %2071 = vmatpush1.bf16.msra.mxu0 %v1630
        %2072 = vmatprep.subr.bf16.mxu0 0
        %2073 = vmatpush1.bf16.msra.mxu0 %v1629
        %2074 = vmatprep.subr.bf16.mxu0 0
        %2075 = vmatpush1.bf16.msra.mxu0 %v1628
        %2076 = vmatprep.subr.bf16.mxu0 0
        %2077 = vmatpush1.bf16.msra.mxu0 %v1627
        %2078 = vmatprep.subr.bf16.mxu0 0
        %2079 = vmatpush1.bf16.msra.mxu0 %v1626
        %2080 = vmatprep.subr.bf16.mxu0 0
        %2081 = vmatpush1.bf16.msra.mxu0 %v1625
        %2082 = vmatprep.subr.bf16.mxu0 0
        %2083 = vmatpush1.bf16.msra.mxu0 %v1624
        %2084 = vmatprep.subr.bf16.mxu0 0
        %2085 = vmatpush2.bf16.msra.mxu0 %v1639
        %2086 = vmatprep.subr.bf16.mxu0 0
        %2087 = vmatpush2.bf16.msra.mxu0 %v1638
        %2088 = vmatprep.subr.bf16.mxu0 0
        %2089 = vmatpush2.bf16.msra.mxu0 %v1637
        %2090 = vmatprep.subr.bf16.mxu0 0
        %2091 = vmatpush2.bf16.msra.mxu0 %v1636
        %2092 = vmatprep.subr.bf16.mxu0 0
        %2093 = vmatpush2.bf16.msra.mxu0 %v1635
        %2094 = vmatprep.subr.bf16.mxu0 0
        %2095 = vmatpush2.bf16.msra.mxu0 %v1634
        %2096 = vmatprep.subr.bf16.mxu0 0
        %2097 = vmatpush2.bf16.msra.mxu0 %v1633
        %2098 = vmatprep.subr.bf16.mxu0 0
        %2099 = vmatpush2.bf16.msra.mxu0 %v1632
        %2100 = vmatprep.mubr.bf16.mxu0 %v667
        %2101 = vmatmul.mubr.bf16.gmra.mxu0 %v653
        %v2102 = vpop.f32.mrf.mxu0
        %v2103 = vadd.f32 %v2063, %v2102
        %v2104 = vpop.f32.mrf.mxu0
        %v2105 = vpop.f32.mrf.mxu0
        %v2106 = vpop.f32.mrf.mxu0
        %2107 = vdwg.mxu0
        %2108 = vmatprep.subr.bf16.mxu0 0
        %2109 = vmatpush1.bf16.msra.mxu0 %v1647
        %2110 = vmatprep.subr.bf16.mxu0 0
        %2111 = vmatpush1.bf16.msra.mxu0 %v1646
        %2112 = vmatprep.subr.bf16.mxu0 0
        %2113 = vmatpush1.bf16.msra.mxu0 %v1645
        %2114 = vmatprep.subr.bf16.mxu0 0
        %2115 = vmatpush1.bf16.msra.mxu0 %v1644
        %2116 = vmatprep.subr.bf16.mxu0 0
        %2117 = vmatpush1.bf16.msra.mxu0 %v1643
        %2118 = vmatprep.subr.bf16.mxu0 0
        %2119 = vmatpush1.bf16.msra.mxu0 %v1642
        %2120 = vmatprep.subr.bf16.mxu0 0
        %2121 = vmatpush1.bf16.msra.mxu0 %v1641
        %2122 = vmatprep.subr.bf16.mxu0 0
        %2123 = vmatpush1.bf16.msra.mxu0 %v1640
        %2124 = vmatprep.subr.bf16.mxu0 0
        %2125 = vmatpush2.bf16.msra.mxu0 %v1655
        %2126 = vmatprep.subr.bf16.mxu0 0
        %2127 = vmatpush2.bf16.msra.mxu0 %v1654
        %2128 = vmatprep.subr.bf16.mxu0 0
        %2129 = vmatpush2.bf16.msra.mxu0 %v1653
        %2130 = vmatprep.subr.bf16.mxu0 0
        %2131 = vmatpush2.bf16.msra.mxu0 %v1652
        %2132 = vmatprep.subr.bf16.mxu0 0
        %2133 = vmatpush2.bf16.msra.mxu0 %v1651
        %2134 = vmatprep.subr.bf16.mxu0 0
        %2135 = vmatpush2.bf16.msra.mxu0 %v1650
        %2136 = vmatprep.subr.bf16.mxu0 0
        %2137 = vmatpush2.bf16.msra.mxu0 %v1649
        %2138 = vmatprep.subr.bf16.mxu0 0
        %2139 = vmatpush2.bf16.msra.mxu0 %v1648
        %2140 = vmatprep.mubr.bf16.mxu0 %v671
        %2141 = vmatmul.mubr.bf16.gmra.mxu0 %v669
        %v2142 = vpop.f32.mrf.mxu0
        %v2143 = vadd.f32 %v2103, %v2142
        %v2144 = vpop.f32.mrf.mxu0
        %v2145 = vpop.f32.mrf.mxu0
        %v2146 = vpop.f32.mrf.mxu0
        %2147 = vdwg.mxu0
        %2148 = vmatprep.subr.bf16.mxu0 0
        %2149 = vmatpush1.bf16.msra.mxu0 %v1663
        %2150 = vmatprep.subr.bf16.mxu0 0
        %2151 = vmatpush1.bf16.msra.mxu0 %v1662
        %2152 = vmatprep.subr.bf16.mxu0 0
        %2153 = vmatpush1.bf16.msra.mxu0 %v1661
        %2154 = vmatprep.subr.bf16.mxu0 0
        %2155 = vmatpush1.bf16.msra.mxu0 %v1660
        %2156 = vmatprep.subr.bf16.mxu0 0
        %2157 = vmatpush1.bf16.msra.mxu0 %v1659
        %2158 = vmatprep.subr.bf16.mxu0 0
        %2159 = vmatpush1.bf16.msra.mxu0 %v1658
        %2160 = vmatprep.subr.bf16.mxu0 0
        %2161 = vmatpush1.bf16.msra.mxu0 %v1657
        %2162 = vmatprep.subr.bf16.mxu0 0
        %2163 = vmatpush1.bf16.msra.mxu0 %v1656
        %2164 = vmatprep.subr.bf16.mxu0 0
        %2165 = vmatpush2.bf16.msra.mxu0 %v1671
        %2166 = vmatprep.subr.bf16.mxu0 0
        %2167 = vmatpush2.bf16.msra.mxu0 %v1670
        %2168 = vmatprep.subr.bf16.mxu0 0
        %2169 = vmatpush2.bf16.msra.mxu0 %v1669
        %2170 = vmatprep.subr.bf16.mxu0 0
        %2171 = vmatpush2.bf16.msra.mxu0 %v1668
        %2172 = vmatprep.subr.bf16.mxu0 0
        %2173 = vmatpush2.bf16.msra.mxu0 %v1667
        %2174 = vmatprep.subr.bf16.mxu0 0
        %2175 = vmatpush2.bf16.msra.mxu0 %v1666
        %2176 = vmatprep.subr.bf16.mxu0 0
        %2177 = vmatpush2.bf16.msra.mxu0 %v1665
        %2178 = vmatprep.subr.bf16.mxu0 0
        %2179 = vmatpush2.bf16.msra.mxu0 %v1664
        %2180 = vmatprep.mubr.bf16.mxu0 %v709
        %2181 = vmatmul.mubr.bf16.gmra.mxu0 %v695
        %v2182 = vpop.f32.mrf.mxu0
        %v2183 = vadd.f32 %v2143, %v2182
        %v2184 = vpop.f32.mrf.mxu0
        %v2185 = vpop.f32.mrf.mxu0
        %v2186 = vpop.f32.mrf.mxu0
        %2187 = vdwg.mxu0
        %2188 = vmatprep.subr.bf16.mxu0 0
        %2189 = vmatpush1.bf16.msra.mxu0 %v1679
        %2190 = vmatprep.subr.bf16.mxu0 0
        %2191 = vmatpush1.bf16.msra.mxu0 %v1678
        %2192 = vmatprep.subr.bf16.mxu0 0
        %2193 = vmatpush1.bf16.msra.mxu0 %v1677
        %2194 = vmatprep.subr.bf16.mxu0 0
        %2195 = vmatpush1.bf16.msra.mxu0 %v1676
        %2196 = vmatprep.subr.bf16.mxu0 0
        %2197 = vmatpush1.bf16.msra.mxu0 %v1675
        %2198 = vmatprep.subr.bf16.mxu0 0
        %2199 = vmatpush1.bf16.msra.mxu0 %v1674
        %2200 = vmatprep.subr.bf16.mxu0 0
        %2201 = vmatpush1.bf16.msra.mxu0 %v1673
        %2202 = vmatprep.subr.bf16.mxu0 0
        %2203 = vmatpush1.bf16.msra.mxu0 %v1672
        %2204 = vmatprep.subr.bf16.mxu0 0
        %2205 = vmatpush2.bf16.msra.mxu0 %v1687
        %2206 = vmatprep.subr.bf16.mxu0 0
        %2207 = vmatpush2.bf16.msra.mxu0 %v1686
        %2208 = vmatprep.subr.bf16.mxu0 0
        %2209 = vmatpush2.bf16.msra.mxu0 %v1685
        %2210 = vmatprep.subr.bf16.mxu0 0
        %2211 = vmatpush2.bf16.msra.mxu0 %v1684
        %2212 = vmatprep.subr.bf16.mxu0 0
        %2213 = vmatpush2.bf16.msra.mxu0 %v1683
        %2214 = vmatprep.subr.bf16.mxu0 0
        %2215 = vmatpush2.bf16.msra.mxu0 %v1682
        %2216 = vmatprep.subr.bf16.mxu0 0
        %2217 = vmatpush2.bf16.msra.mxu0 %v1681
        %2218 = vmatprep.subr.bf16.mxu0 0
        %2219 = vmatpush2.bf16.msra.mxu0 %v1680
        %2220 = vmatprep.mubr.bf16.mxu0 %v719
        %2221 = vmatmul.mubr.bf16.gmra.mxu0 %v717
        %v2222 = vpop.f32.mrf.mxu0
        %v2223 = vadd.f32 %v2183, %v2222
        %v2224 = vpop.f32.mrf.mxu0
        %v2225 = vpop.f32.mrf.mxu0
        %v2226 = vpop.f32.mrf.mxu0
        %2227 = vdwg.mxu0
        %2228 = vmatprep.subr.bf16.mxu0 0
        %2229 = vmatpush1.bf16.msra.mxu0 %v1695
        %2230 = vmatprep.subr.bf16.mxu0 0
        %2231 = vmatpush1.bf16.msra.mxu0 %v1694
        %2232 = vmatprep.subr.bf16.mxu0 0
        %2233 = vmatpush1.bf16.msra.mxu0 %v1693
        %2234 = vmatprep.subr.bf16.mxu0 0
        %2235 = vmatpush1.bf16.msra.mxu0 %v1692
        %2236 = vmatprep.subr.bf16.mxu0 0
        %2237 = vmatpush1.bf16.msra.mxu0 %v1691
        %2238 = vmatprep.subr.bf16.mxu0 0
        %2239 = vmatpush1.bf16.msra.mxu0 %v1690
        %2240 = vmatprep.subr.bf16.mxu0 0
        %2241 = vmatpush1.bf16.msra.mxu0 %v1689
        %2242 = vmatprep.subr.bf16.mxu0 0
        %2243 = vmatpush1.bf16.msra.mxu0 %v1688
        %2244 = vmatprep.subr.bf16.mxu0 0
        %2245 = vmatpush2.bf16.msra.mxu0 %v1703
        %2246 = vmatprep.subr.bf16.mxu0 0
        %2247 = vmatpush2.bf16.msra.mxu0 %v1702
        %2248 = vmatprep.subr.bf16.mxu0 0
        %2249 = vmatpush2.bf16.msra.mxu0 %v1701
        %2250 = vmatprep.subr.bf16.mxu0 0
        %2251 = vmatpush2.bf16.msra.mxu0 %v1700
        %2252 = vmatprep.subr.bf16.mxu0 0
        %2253 = vmatpush2.bf16.msra.mxu0 %v1699
        %2254 = vmatprep.subr.bf16.mxu0 0
        %2255 = vmatpush2.bf16.msra.mxu0 %v1698
        %2256 = vmatprep.subr.bf16.mxu0 0
        %2257 = vmatpush2.bf16.msra.mxu0 %v1697
        %2258 = vmatprep.subr.bf16.mxu0 0
        %2259 = vmatpush2.bf16.msra.mxu0 %v1696
        %2260 = vmatprep.mubr.bf16.mxu0 %v716
        %2261 = vmatmul.mubr.bf16.gmra.mxu0 %v702
        %v2262 = vpop.f32.mrf.mxu0
        %v2263 = vadd.f32 %v2223, %v2262
        %v2264 = vpop.f32.mrf.mxu0
        %v2265 = vpop.f32.mrf.mxu0
        %v2266 = vpop.f32.mrf.mxu0
        %2267 = vdwg.mxu0
        %2268 = vmatprep.subr.bf16.mxu0 0
        %2269 = vmatpush1.bf16.msra.mxu0 %v1711
        %2270 = vmatprep.subr.bf16.mxu0 0
        %2271 = vmatpush1.bf16.msra.mxu0 %v1710
        %2272 = vmatprep.subr.bf16.mxu0 0
        %2273 = vmatpush1.bf16.msra.mxu0 %v1709
        %2274 = vmatprep.subr.bf16.mxu0 0
        %2275 = vmatpush1.bf16.msra.mxu0 %v1708
        %2276 = vmatprep.subr.bf16.mxu0 0
        %2277 = vmatpush1.bf16.msra.mxu0 %v1707
        %2278 = vmatprep.subr.bf16.mxu0 0
        %2279 = vmatpush1.bf16.msra.mxu0 %v1706
        %2280 = vmatprep.subr.bf16.mxu0 0
        %2281 = vmatpush1.bf16.msra.mxu0 %v1705
        %2282 = vmatprep.subr.bf16.mxu0 0
        %2283 = vmatpush1.bf16.msra.mxu0 %v1704
        %2284 = vmatprep.subr.bf16.mxu0 0
        %2285 = vmatpush2.bf16.msra.mxu0 %v1719
        %2286 = vmatprep.subr.bf16.mxu0 0
        %2287 = vmatpush2.bf16.msra.mxu0 %v1718
        %2288 = vmatprep.subr.bf16.mxu0 0
        %2289 = vmatpush2.bf16.msra.mxu0 %v1717
        %2290 = vmatprep.subr.bf16.mxu0 0
        %2291 = vmatpush2.bf16.msra.mxu0 %v1716
        %2292 = vmatprep.subr.bf16.mxu0 0
        %2293 = vmatpush2.bf16.msra.mxu0 %v1715
        %2294 = vmatprep.subr.bf16.mxu0 0
        %2295 = vmatpush2.bf16.msra.mxu0 %v1714
        %2296 = vmatprep.subr.bf16.mxu0 0
        %2297 = vmatpush2.bf16.msra.mxu0 %v1713
        %2298 = vmatprep.subr.bf16.mxu0 0
        %2299 = vmatpush2.bf16.msra.mxu0 %v1712
        %2300 = vmatprep.mubr.bf16.mxu0 %v720
        %2301 = vmatmul.mubr.bf16.gmra.mxu0 %v718
        %v2302 = vpop.f32.mrf.mxu0
        %v2303 = vadd.f32 %v2263, %v2302
        %v2304 = vpop.f32.mrf.mxu0
        %v2305 = vpop.f32.mrf.mxu0
        %v2306 = vpop.f32.mrf.mxu0
        %2307 = vdwg.mxu0
        %2308 = vmatprep.subr.bf16.mxu0 0
        %2309 = vmatpush1.bf16.msra.mxu0 %v1727
        %2310 = vmatprep.subr.bf16.mxu0 0
        %2311 = vmatpush1.bf16.msra.mxu0 %v1726
        %2312 = vmatprep.subr.bf16.mxu0 0
        %2313 = vmatpush1.bf16.msra.mxu0 %v1725
        %2314 = vmatprep.subr.bf16.mxu0 0
        %2315 = vmatpush1.bf16.msra.mxu0 %v1724
        %2316 = vmatprep.subr.bf16.mxu0 0
        %2317 = vmatpush1.bf16.msra.mxu0 %v1723
        %2318 = vmatprep.subr.bf16.mxu0 0
        %2319 = vmatpush1.bf16.msra.mxu0 %v1722
        %2320 = vmatprep.subr.bf16.mxu0 0
        %2321 = vmatpush1.bf16.msra.mxu0 %v1721
        %2322 = vmatprep.subr.bf16.mxu0 0
        %2323 = vmatpush1.bf16.msra.mxu0 %v1720
        %2324 = vmatprep.subr.bf16.mxu0 0
        %2325 = vmatpush2.bf16.msra.mxu0 %v1735
        %2326 = vmatprep.subr.bf16.mxu0 0
        %2327 = vmatpush2.bf16.msra.mxu0 %v1734
        %2328 = vmatprep.subr.bf16.mxu0 0
        %2329 = vmatpush2.bf16.msra.mxu0 %v1733
        %2330 = vmatprep.subr.bf16.mxu0 0
        %2331 = vmatpush2.bf16.msra.mxu0 %v1732
        %2332 = vmatprep.subr.bf16.mxu0 0
        %2333 = vmatpush2.bf16.msra.mxu0 %v1731
        %2334 = vmatprep.subr.bf16.mxu0 0
        %2335 = vmatpush2.bf16.msra.mxu0 %v1730
        %2336 = vmatprep.subr.bf16.mxu0 0
        %2337 = vmatpush2.bf16.msra.mxu0 %v1729
        %2338 = vmatprep.subr.bf16.mxu0 0
        %2339 = vmatpush2.bf16.msra.mxu0 %v1728
        %2340 = vmatprep.mubr.bf16.mxu0 %v758
        %2341 = vmatmul.mubr.bf16.gmra.mxu0 %v744
        %v2342 = vpop.f32.mrf.mxu0
        %v2343 = vadd.f32 %v2303, %v2342
        %v2344 = vpop.f32.mrf.mxu0
        %v2345 = vpop.f32.mrf.mxu0
        %v2346 = vpop.f32.mrf.mxu0
        %2347 = vdwg.mxu0
        %2348 = vmatprep.subr.bf16.mxu0 0
        %2349 = vmatpush1.bf16.msra.mxu0 %v1743
        %2350 = vmatprep.subr.bf16.mxu0 0
        %2351 = vmatpush1.bf16.msra.mxu0 %v1742
        %2352 = vmatprep.subr.bf16.mxu0 0
        %2353 = vmatpush1.bf16.msra.mxu0 %v1741
        %2354 = vmatprep.subr.bf16.mxu0 0
        %2355 = vmatpush1.bf16.msra.mxu0 %v1740
        %2356 = vmatprep.subr.bf16.mxu0 0
        %2357 = vmatpush1.bf16.msra.mxu0 %v1739
        %2358 = vmatprep.subr.bf16.mxu0 0
        %2359 = vmatpush1.bf16.msra.mxu0 %v1738
        %2360 = vmatprep.subr.bf16.mxu0 0
        %2361 = vmatpush1.bf16.msra.mxu0 %v1737
        %2362 = vmatprep.subr.bf16.mxu0 0
        %2363 = vmatpush1.bf16.msra.mxu0 %v1736
        %2364 = vmatprep.subr.bf16.mxu0 0
        %2365 = vmatpush2.bf16.msra.mxu0 %v1751
        %2366 = vmatprep.subr.bf16.mxu0 0
        %2367 = vmatpush2.bf16.msra.mxu0 %v1750
        %2368 = vmatprep.subr.bf16.mxu0 0
        %2369 = vmatpush2.bf16.msra.mxu0 %v1749
        %2370 = vmatprep.subr.bf16.mxu0 0
        %2371 = vmatpush2.bf16.msra.mxu0 %v1748
        %2372 = vmatprep.subr.bf16.mxu0 0
        %2373 = vmatpush2.bf16.msra.mxu0 %v1747
        %2374 = vmatprep.subr.bf16.mxu0 0
        %2375 = vmatpush2.bf16.msra.mxu0 %v1746
        %2376 = vmatprep.subr.bf16.mxu0 0
        %2377 = vmatpush2.bf16.msra.mxu0 %v1745
        %2378 = vmatprep.subr.bf16.mxu0 0
        %2379 = vmatpush2.bf16.msra.mxu0 %v1744
        %2380 = vmatprep.mubr.bf16.mxu0 %v768
        %2381 = vmatmul.mubr.bf16.gmra.mxu0 %v766
        %v2382 = vpop.f32.mrf.mxu0
        %v2383 = vadd.f32 %v2343, %v2382
        %v2384 = vpop.f32.mrf.mxu0
        %v2385 = vpop.f32.mrf.mxu0
        %v2386 = vpop.f32.mrf.mxu0
        %2387 = vdwg.mxu0
        %2388 = vmatprep.subr.bf16.mxu0 0
        %2389 = vmatpush1.bf16.msra.mxu0 %v1759
        %2390 = vmatprep.subr.bf16.mxu0 0
        %2391 = vmatpush1.bf16.msra.mxu0 %v1758
        %2392 = vmatprep.subr.bf16.mxu0 0
        %2393 = vmatpush1.bf16.msra.mxu0 %v1757
        %2394 = vmatprep.subr.bf16.mxu0 0
        %2395 = vmatpush1.bf16.msra.mxu0 %v1756
        %2396 = vmatprep.subr.bf16.mxu0 0
        %2397 = vmatpush1.bf16.msra.mxu0 %v1755
        %2398 = vmatprep.subr.bf16.mxu0 0
        %2399 = vmatpush1.bf16.msra.mxu0 %v1754
        %2400 = vmatprep.subr.bf16.mxu0 0
        %2401 = vmatpush1.bf16.msra.mxu0 %v1753
        %2402 = vmatprep.subr.bf16.mxu0 0
        %2403 = vmatpush1.bf16.msra.mxu0 %v1752
        %2404 = vmatprep.subr.bf16.mxu0 0
        %2405 = vmatpush2.bf16.msra.mxu0 %v1767
        %2406 = vmatprep.subr.bf16.mxu0 0
        %2407 = vmatpush2.bf16.msra.mxu0 %v1766
        %2408 = vmatprep.subr.bf16.mxu0 0
        %2409 = vmatpush2.bf16.msra.mxu0 %v1765
        %2410 = vmatprep.subr.bf16.mxu0 0
        %2411 = vmatpush2.bf16.msra.mxu0 %v1764
        %2412 = vmatprep.subr.bf16.mxu0 0
        %2413 = vmatpush2.bf16.msra.mxu0 %v1763
        %2414 = vmatprep.subr.bf16.mxu0 0
        %2415 = vmatpush2.bf16.msra.mxu0 %v1762
        %2416 = vmatprep.subr.bf16.mxu0 0
        %2417 = vmatpush2.bf16.msra.mxu0 %v1761
        %2418 = vmatprep.subr.bf16.mxu0 0
        %2419 = vmatpush2.bf16.msra.mxu0 %v1760
        %2420 = vmatprep.mubr.bf16.mxu0 %v765
        %2421 = vmatmul.mubr.bf16.gmra.mxu0 %v751
        %v2422 = vpop.f32.mrf.mxu0
        %v2423 = vadd.f32 %v2383, %v2422
        %v2424 = vpop.f32.mrf.mxu0
        %v2425 = vpop.f32.mrf.mxu0
        %v2426 = vpop.f32.mrf.mxu0
        %2427 = vdwg.mxu0
        %2428 = vmatprep.subr.bf16.mxu0 0
        %2429 = vmatpush1.bf16.msra.mxu0 %v1775
        %2430 = vmatprep.subr.bf16.mxu0 0
        %2431 = vmatpush1.bf16.msra.mxu0 %v1774
        %2432 = vmatprep.subr.bf16.mxu0 0
        %2433 = vmatpush1.bf16.msra.mxu0 %v1773
        %2434 = vmatprep.subr.bf16.mxu0 0
        %2435 = vmatpush1.bf16.msra.mxu0 %v1772
        %2436 = vmatprep.subr.bf16.mxu0 0
        %2437 = vmatpush1.bf16.msra.mxu0 %v1771
        %2438 = vmatprep.subr.bf16.mxu0 0
        %2439 = vmatpush1.bf16.msra.mxu0 %v1770
        %2440 = vmatprep.subr.bf16.mxu0 0
        %2441 = vmatpush1.bf16.msra.mxu0 %v1769
        %2442 = vmatprep.subr.bf16.mxu0 0
        %2443 = vmatpush1.bf16.msra.mxu0 %v1768
        %2444 = vmatprep.subr.bf16.mxu0 0
        %2445 = vmatpush2.bf16.msra.mxu0 %v1783
        %2446 = vmatprep.subr.bf16.mxu0 0
        %2447 = vmatpush2.bf16.msra.mxu0 %v1782
        %2448 = vmatprep.subr.bf16.mxu0 0
        %2449 = vmatpush2.bf16.msra.mxu0 %v1781
        %2450 = vmatprep.subr.bf16.mxu0 0
        %2451 = vmatpush2.bf16.msra.mxu0 %v1780
        %2452 = vmatprep.subr.bf16.mxu0 0
        %2453 = vmatpush2.bf16.msra.mxu0 %v1779
        %2454 = vmatprep.subr.bf16.mxu0 0
        %2455 = vmatpush2.bf16.msra.mxu0 %v1778
        %2456 = vmatprep.subr.bf16.mxu0 0
        %2457 = vmatpush2.bf16.msra.mxu0 %v1777
        %2458 = vmatprep.subr.bf16.mxu0 0
        %2459 = vmatpush2.bf16.msra.mxu0 %v1776
        %2460 = vmatprep.mubr.bf16.mxu0 %v769
        %2461 = vmatmul.mubr.bf16.gmra.mxu0 %v767
        %v2462 = vpop.f32.mrf.mxu0
        %v2463 = vadd.f32 %v2423, %v2462
        %v2464 = vpop.f32.mrf.mxu0
        %v2465 = vpop.f32.mrf.mxu0
        %v2466 = vpop.f32.mrf.mxu0
        %2467 = vdwg.mxu0
        %2468 = vmatprep.subr.bf16.mxu0 0
        %2469 = vmatpush1.bf16.msra.mxu0 0
        %2470 = vmatprep.subr.bf16.mxu0 0
        %2471 = vmatpush1.bf16.msra.mxu0 0
        %2472 = vmatprep.subr.bf16.mxu0 0
        %2473 = vmatpush1.bf16.msra.mxu0 0
        %2474 = vmatprep.subr.bf16.mxu0 0
        %2475 = vmatpush1.bf16.msra.mxu0 0
        %2476 = vmatprep.subr.bf16.mxu0 0
        %2477 = vmatpush1.bf16.msra.mxu0 %v1787
        %2478 = vmatprep.subr.bf16.mxu0 0
        %2479 = vmatpush1.bf16.msra.mxu0 %v1786
        %2480 = vmatprep.subr.bf16.mxu0 0
        %2481 = vmatpush1.bf16.msra.mxu0 %v1785
        %2482 = vmatprep.subr.bf16.mxu0 0
        %2483 = vmatpush1.bf16.msra.mxu0 %v1784
        %2484 = vmatprep.subr.bf16.mxu0 0
        %2485 = vmatpush2.bf16.msra.mxu0 0
        %2486 = vmatprep.subr.bf16.mxu0 0
        %2487 = vmatpush2.bf16.msra.mxu0 0
        %2488 = vmatprep.subr.bf16.mxu0 0
        %2489 = vmatpush2.bf16.msra.mxu0 0
        %2490 = vmatprep.subr.bf16.mxu0 0
        %2491 = vmatpush2.bf16.msra.mxu0 0
        %2492 = vmatprep.subr.bf16.mxu0 0
        %2493 = vmatpush2.bf16.msra.mxu0 0
        %2494 = vmatprep.subr.bf16.mxu0 0
        %2495 = vmatpush2.bf16.msra.mxu0 0
        %2496 = vmatprep.subr.bf16.mxu0 0
        %2497 = vmatpush2.bf16.msra.mxu0 0
        %2498 = vmatprep.subr.bf16.mxu0 0
        %2499 = vmatpush2.bf16.msra.mxu0 0
        %2500 = vmatprep.mubr.bf16.mxu0 0
        %2501 = vmatmul.mubr.bf16.gmra.mxu0 %v1986
        %v2502 = vpop.f32.mrf.mxu0
        %v2503 = vadd.f32 %v2463, %v2502
        %v2504 = vpop.f32.mrf.mxu0
        %v2505 = vpop.f32.mrf.mxu0
        %v2506 = vpop.f32.mrf.mxu0
        %2507 = vdwg.mxu0
        %v2508 = vld [vmem:[#allocation2] sm:$0x3]
        %v2509 = vmul.f32 %v2508, 0.5
        %v2510 = vadd.f32 %v2509, %v2503
        %vm2511 = vcmp.ge.f32.partialorder %v2510, 1.0
        %v2512 = vsel %vm2511, 1, 0
        %v2513 = vcvt.s32.f32 %v2512
        %v2514 = vsub.f32 1.0, %v2513
        %v2515 = vmul.f32 %v2510, %v2514
        %vm2516 = vcmask 517120
        %2517 = vst.msk [vmem:[#allocation2] sm:$0x3] %vm2516, %v2515
        %v2518 = vld [vmem:[#allocation3] sm:$0x3]
        %v2519 = vadd.f32 %v2518, %v2513
        %2520 = vst.msk [vmem:[#allocation3] sm:$0x3] %vm2516, %v2519
        %p2521 = scmp.eq.s32.totalorder %s17, 3
        // Predicated region
        $region45: #{lenet5_forward.7} parent=39 // pred_check
          %p2522 = pneg %p2521
        $region46: #{lenet5_forward.7} parent=39 // pred_check_branch
          %2524 = sbr.rel (%p2522) target = $region48
        $region47: #{lenet5_forward.7} parent=39 // pred_region
          %v2525 = vld [vmem:[#allocation3] sm:$0x3]
          %v2526 = vmul.f32 %v2525, 0.25
          %v2527 = vld [vmem:[%s3] sm:$0xff]
          %v2528 = vld [vmem:[%s3 + $0x8] sm:$0xff]
          %v2529 = vld [vmem:[%s3 + $0x10] sm:$0xff]
          %v2530 = vld [vmem:[%s3 + $0x18] sm:$0xff]
          %v2531 = vld [vmem:[%s3 + $0x20] sm:$0xff]
          %v2532 = vld [vmem:[%s3 + $0x28] sm:$0xff]
          %v2533 = vld [vmem:[%s3 + $0x30] sm:$0xff]
          %v2534 = vld [vmem:[%s3 + $0x38] sm:$0xff]
          %v2535 = vld [vmem:[%s4] sm:$0x1]
          %v2537 = vlaneseq
          %v2538 = vshrl.u32 %v2537, 7
          %v2539 = vsub.s32 0, %v2538
          %v2540 = vrot.slane %v2535, %v2539
          %v2543 = vsel %vm1984, %v2526, 0
          %2545 = vmatprep.subr.mxu0 0.0
          %2546 = vmatpush1.msra.mxu0 0.0
          %2547 = vmatprep.subr.mxu0 0.0
          %2548 = vmatpush1.msra.mxu0 0.0
          %2549 = vmatprep.subr.mxu0 0.0
          %2550 = vmatpush1.msra.mxu0 0.0
          %2551 = vmatprep.subr.mxu0 0.0
          %2552 = vmatpush1.msra.mxu0 0.0
          %2553 = vmatprep.subr.mxu0 0.0
          %2554 = vmatpush1.msra.mxu0 0.0
          %2555 = vmatprep.subr.mxu0 0.0
          %2556 = vmatpush1.msra.mxu0 0.0
          %2557 = vmatprep.subr.mxu0 0.0
          %2558 = vmatpush1.msra.mxu0 0.0
          %2559 = vmatprep.subr.mxu0 0.0
          %2560 = vmatpush1.msra.mxu0 0.0
          %2561 = vmatprep.subr.mxu0 0.0
          %2562 = vmatpush1.msra.mxu0 %v2534
          %2563 = vmatprep.subr.mxu0 0.0
          %2564 = vmatpush1.msra.mxu0 %v2533
          %2565 = vmatprep.subr.mxu0 0.0
          %2566 = vmatpush1.msra.mxu0 %v2532
          %2567 = vmatprep.subr.mxu0 0.0
          %2568 = vmatpush1.msra.mxu0 %v2531
          %2569 = vmatprep.subr.mxu0 0.0
          %2570 = vmatpush1.msra.mxu0 %v2530
          %2571 = vmatprep.subr.mxu0 0.0
          %2572 = vmatpush1.msra.mxu0 %v2529
          %2573 = vmatprep.subr.mxu0 0.0
          %2574 = vmatpush1.msra.mxu0 %v2528
          %2575 = vmatprep.subr.mxu0 0.0
          %2576 = vmatpush1.msra.mxu0 %v2527
          %2577 = vmatprep.subr.mxu0 0.0
          %2578 = vmatpush2.msra.mxu0 0.0
          %2579 = vmatprep.subr.mxu0 0.0
          %2580 = vmatpush2.msra.mxu0 0.0
          %2581 = vmatprep.subr.mxu0 0.0
          %2582 = vmatpush2.msra.mxu0 0.0
          %2583 = vmatprep.subr.mxu0 0.0
          %2584 = vmatpush2.msra.mxu0 0.0
          %2585 = vmatprep.subr.mxu0 0.0
          %2586 = vmatpush2.msra.mxu0 0.0
          %2587 = vmatprep.subr.mxu0 0.0
          %2588 = vmatpush2.msra.mxu0 0.0
          %2589 = vmatprep.subr.mxu0 0.0
          %2590 = vmatpush2.msra.mxu0 0.0
          %2591 = vmatprep.subr.mxu0 0.0
          %2592 = vmatpush2.msra.mxu0 0.0
          %2593 = vmatprep.subr.mxu0 0.0
          %2594 = vmatpush2.msra.mxu0 0.0
          %2595 = vmatprep.subr.mxu0 0.0
          %2596 = vmatpush2.msra.mxu0 0.0
          %2597 = vmatprep.subr.mxu0 0.0
          %2598 = vmatpush2.msra.mxu0 0.0
          %2599 = vmatprep.subr.mxu0 0.0
          %2600 = vmatpush2.msra.mxu0 0.0
          %2601 = vmatprep.subr.mxu0 0.0
          %2602 = vmatpush2.msra.mxu0 0.0
          %2603 = vmatprep.subr.mxu0 0.0
          %2604 = vmatpush2.msra.mxu0 0.0
          %2605 = vmatprep.subr.mxu0 0.0
          %2606 = vmatpush2.msra.mxu0 0.0
          %2607 = vmatprep.subr.mxu0 0.0
          %2608 = vmatpush2.msra.mxu0 0.0
          %2609 = vmatprep.mubr.f32.mxu0 0.0
          %2610 = vmatmul.mubr.f32.gmra.mxu0 %v2543
          %v2611 = vpop.f32.mrf.mxu0
          %v2612 = vadd.f32 %v2540, %v2611
          %v2613 = vpop.f32.mrf.mxu0
          %2614 = vdwg.mxu0
          %vm2615 = vcmask 74752
          %2616 = vst.msk [vmem:[#allocation4] sm:$0x3] %vm2615, %v2612
        $region48: #{lenet5_forward.7} parent=39 // pred_fallthru
          _
        // Predicated region
        $region49: #{lenet5_forward.7} parent=39 // pred_check
          %p2617 = pneg %p140
        $region50: #{lenet5_forward.7} parent=39 // pred_check_branch
          %2619 = sbr.rel (%p2617) target = $region52
        $region51: #{lenet5_forward.7} parent=39 // pred_region
          %s2621 = ssub.s32 32, 32
          %2622 = vsyncadd [#allocation5], %s2621
          %s2624 = sshll.u32 [#allocation4], 4
          %s2625 = int_to_ptr.vmem [resolvable:$true] %s2624
          %2627 = dma.vmem_to_hbm [thread:$0]  %s2625, 32, %s5, [#allocation5]
        $region52: #{lenet5_forward.7} parent=39 // pred_fallthru
          _
        // Predicated region
        $region53: #{lenet5_forward.7} parent=39 // pred_check
          %p2628 = pneg %p140
        $region54: #{lenet5_forward.7} parent=39 // pred_check_branch
          %2630 = sbr.rel (%p2628) target = $region56
        $region55: #{lenet5_forward.7} parent=39 // pred_region
          %2631 = dma.done [#allocation5], 32
        $region56: #{lenet5_forward.7} parent=39 // pred_fallthru
          _
      $region40: #{lenet5_forward.7} parent=5 // pred_fallthru
        _
      %p2632 = scmp.le.s32.totalorder 2, %s12
      // Predicated region
      $region57: #{lenet5_forward.7} parent=5 // pred_check
        %p2633 = pneg %p2632
      $region58: #{lenet5_forward.7} parent=5 // pred_check_branch
        %2635 = sbr.rel (%p2633) target = $region60
      $region59: #{lenet5_forward.7} parent=5 // pred_region
        %s2636 = ssub.s32 %s12, 2
      $region60: #{lenet5_forward.7} parent=5 // pred_fallthru
        _
    $region6: #{lenet5_forward.7} parent=1 // loop_footer
      %s16 = sadd.s32 1, %s12
    $region7: #{lenet5_forward.7} parent=1 // loop_footer_branch
      %11 = sbr.rel target = $region3
    $region8: #{lenet5_forward.7} parent=1 // loop_exit
      _
    %2637 = vsyncpa [#allocation5], 1
    %s2638 = scalar_lea.sflag [#allocation5], 1
    %2639 = vsyncpa %s2638, 1

</llo_original>
